<compile_context>
chip_gen: v7x
topology: tpu7x:2x2x1
jax: 0.10.0
libtpu: 0.0.40
codegen_flags: <defaults>
</compile_context>

<pallas_src>
import functools

import jax
import jax.numpy as jnp
from jax.experimental import pallas as pl
from jax.experimental.pallas import tpu as pltpu


LATENT = 100
LATENT_PAD = 128            # zero-padded so the first matmul is (8,128)-aligned
HIDDEN = (128, 256, 512, 1024)
IMG_FEATURES = 3 * 64 * 64
BN_EPS = 0.8
LRELU_SLOPE = 0.2
OUT_TILE_N = 1536           # 12288 / 1536 = 8 grid steps (4 per v7x TensorCore)


# --------------------------------------------------------------------------
# Fused kernel: hidden stack (recomputed per step, all weights VMEM-resident)
# + one output-feature tile of the final Linear(1024,12288) + Tanh.
# --------------------------------------------------------------------------
def _generator_kernel(z_ref, w1_ref, b1_ref, w2_ref, b2_ref, w3_ref, b3_ref,
                      w4_ref, b4_ref, w5_ref, b5_ref, o_ref, *, eps, slope):
    def leaky(x):
        return jnp.where(x > 0, x, slope * x)

    def bn(x):
        # Training-mode BatchNorm1d over the full batch, single-pass variance.
        # var = E[x^2] - E[x]^2 is safe only because eps=0.8 dominates any
        # cancellation error.
        m = jnp.mean(x, axis=0, keepdims=True)
        ms = jnp.mean(x * x, axis=0, keepdims=True)
        return (x - m) * jax.lax.rsqrt(ms - m * m + eps)

    # Hidden stack: cheap (B x 1024 max), recomputed every grid step so the
    # grid axis can stay "parallel" (megacore-safe) and the compute hides
    # under the 3 MiB w5-tile DMA.  w2..w4 are bf16; accumulation is f32.
    h = leaky(jnp.dot(z_ref[...], w1_ref[...],
                      preferred_element_type=jnp.float32) + b1_ref[...])
    h = leaky(bn(jnp.dot(h.astype(jnp.bfloat16), w2_ref[...],
                         preferred_element_type=jnp.float32) + b2_ref[...]))
    h = leaky(bn(jnp.dot(h.astype(jnp.bfloat16), w3_ref[...],
                         preferred_element_type=jnp.float32) + b3_ref[...]))
    h = leaky(bn(jnp.dot(h.astype(jnp.bfloat16), w4_ref[...],
                         preferred_element_type=jnp.float32) + b4_ref[...]))

    # Output tile: bf16 MXU matmul, f32 accumulation, bias, tanh.
    # Lane-dense output (tile_n = 1536, multiple of 128) -> unmasked stores.
    y = jnp.dot(h.astype(jnp.bfloat16), w5_ref[0],
                preferred_element_type=jnp.float32) + b5_ref[...]
    o_ref[...] = jnp.tanh(y)


def _const_spec(shape):
    """BlockSpec covering the whole array with a constant block index, so the
    operand is DMA'd once and stays VMEM-resident across the grid."""
    zeros = (0,) * len(shape)
    return pl.BlockSpec(shape, lambda j: zeros)


def generator_forward(z, packed):
    """z: (B, 100) f32 -> img: (B, 3, 64, 64) f32."""
    B = z.shape[0]
    tile_n = packed["tile_n"]
    w5_tiles = packed["w5_tiles"]
    b5 = packed["b5"]
    (w1, b1), (w2, b2), (w3, b3), (w4, b4) = packed["hidden"]

    n_tiles, K, tn = w5_tiles.shape
    assert tn == tile_n and K == HIDDEN[3]
    N = n_tiles * tile_n

    # Zero-pad latent dim 100 -> 128 (w1 rows already padded at pack time).
    z_pad = jnp.pad(z, ((0, 0), (0, LATENT_PAD - LATENT)))

    # Cost estimate (hidden stack is recomputed on each of the n_tiles steps).
    hid_dims = [(LATENT_PAD, HIDDEN[0]), (HIDDEN[0], HIDDEN[1]),
                (HIDDEN[1], HIDDEN[2]), (HIDDEN[2], HIDDEN[3])]
    hid_flops = sum(2 * B * fi * fo for fi, fo in hid_dims)
    flops = n_tiles * hid_flops + 2 * B * HIDDEN[3] * N
    transcendentals = n_tiles * sum(HIDDEN[1:]) + B * N   # rsqrt + tanh
    weight_bytes = sum(int(w.size) * w.dtype.itemsize +
                       int(b.size) * b.dtype.itemsize
                       for w, b in packed["hidden"])
    weight_bytes += int(w5_tiles.size) * w5_tiles.dtype.itemsize
    weight_bytes += int(b5.size) * b5.dtype.itemsize
    bytes_accessed = weight_bytes + int(z_pad.size) * 4 + B * N * 4

    kernel = functools.partial(_generator_kernel, eps=BN_EPS, slope=LRELU_SLOPE)

    in_specs = [
        _const_spec((B, LATENT_PAD)),                       # z (resident)
        _const_spec((LATENT_PAD, HIDDEN[0])),               # w1 (f32)
        _const_spec((1, HIDDEN[0])),                        # b1
        _const_spec((HIDDEN[0], HIDDEN[1])),                # w2 (bf16)
        _const_spec((1, HIDDEN[1])),                        # b2
        _const_spec((HIDDEN[1], HIDDEN[2])),                # w3 (bf16)
        _const_spec((1, HIDDEN[2])),                        # b3
        _const_spec((HIDDEN[2], HIDDEN[3])),                # w4 (bf16)
        _const_spec((1, HIDDEN[3])),                        # b4
        pl.BlockSpec((1, HIDDEN[3], tile_n), lambda j: (j, 0, 0)),  # w5 tile
        pl.BlockSpec((1, tile_n), lambda j: (0, j)),                # b5 tile
    ]

    img_flat = pl.pallas_call(
        kernel,
        out_shape=jax.ShapeDtypeStruct((B, N), jnp.float32),
        grid=(n_tiles,),
        in_specs=in_specs,
        out_specs=pl.BlockSpec((B, tile_n), lambda j: (0, j)),
        compiler_params=pltpu.CompilerParams(
            dimension_semantics=("parallel",),
            # Sized to actual need (~10 MiB at B=8 with double-buffered 3 MiB
            # weight tiles + resident hidden weights); NOT the full 64 MiB
            # physical VMEM of v7x.  Re-derive if B grows into the hundreds.
            vmem_limit_bytes=32 << 20,
        ),
        cost_estimate=pl.CostEstimate(
            flops=flops,
            transcendentals=transcendentals,
            bytes_accessed=bytes_accessed,
        ),
    )(z_pad, w1, b1, w2, b2, w3, b3, w4, b4, w5_tiles, b5)

    return img_flat.reshape(B, 3, 64, 64)


# --------------------------------------------------------------------------
# Parameter init / packing
# --------------------------------------------------------------------------
def init_generator_params(key):
    """Deterministic synthetic init matching the PyTorch layer shapes (f32)."""
    dims = [(LATENT, HIDDEN[0]), (HIDDEN[0], HIDDEN[1]),
            (HIDDEN[1], HIDDEN[2]), (HIDDEN[2], HIDDEN[3]),
            (HIDDEN[3], IMG_FEATURES)]
    params = []
    for fin, fout in dims:
        kw, kb, key = jax.random.split(key, 3)
        bound = 1.0 / jnp.sqrt(fin)
        w = jax.random.uniform(kw, (fin, fout), jnp.float32, -bound, bound)
        b = jax.random.uniform(kb, (fout,), jnp.float32, -bound, bound)
        params.append((w, b))
    return params


def pack_generator_params(params, *, tile_n=OUT_TILE_N):
    """One-time device-side repack:
       * w1 rows zero-padded 100 -> 128 (aligned first matmul);
       * w2..w4 cast to bf16 (halves hidden-weight HBM traffic);
       * biases -> (1, F) rows;
       * w5 -> bf16, pre-tiled (n_tiles, K, tile_n) so each grid step's weight
         DMA is one contiguous block."""
    (w1, b1), (w2, b2), (w3, b3), (w4, b4), (w5, b5) = params
    w1p = jnp.pad(w1, ((0, LATENT_PAD - LATENT), (0, 0)))
    hidden = (
        (w1p, b1.reshape(1, -1)),
        (w2.astype(jnp.bfloat16), b2.reshape(1, -1)),
        (w3.astype(jnp.bfloat16), b3.reshape(1, -1)),
        (w4.astype(jnp.bfloat16), b4.reshape(1, -1)),
    )
    K, N = w5.shape
    assert N % tile_n == 0 and tile_n % 128 == 0
    n_tiles = N // tile_n
    w5_tiles = jnp.transpose(
        w5.reshape(K, n_tiles, tile_n).astype(jnp.bfloat16), (1, 0, 2))
    return {
        "hidden": hidden,
        "w5_tiles": w5_tiles,
        "b5": b5.reshape(1, -1),
        "tile_n": tile_n,
    }


# --------------------------------------------------------------------------
# Pure-JAX reference (f32 everywhere) for a correctness spot-check.
# --------------------------------------------------------------------------
def _reference_forward(z, params):
    (w1, b1), (w2, b2), (w3, b3), (w4, b4), (w5, b5) = params

    def leaky(x):
        return jnp.where(x > 0, x, LRELU_SLOPE * x)

    def bn(x, eps=BN_EPS):
        m = jnp.mean(x, axis=0, keepdims=True)
        v = jnp.mean((x - m) ** 2, axis=0, keepdims=True)
        return (x - m) / jnp.sqrt(v + eps)

    h = leaky(z @ w1 + b1)
    h = leaky(bn(h @ w2 + b2))
    h = leaky(bn(h @ w3 + b3))
    h = leaky(bn(h @ w4 + b4))
    img = jnp.tanh(h @ w5 + b5)
    return img.reshape(img.shape[0], 3, 64, 64)


if __name__ == "__main__":
    key = jax.random.PRNGKey(0)
    kz, kp = jax.random.split(key)

    # NOTE: per-sample throughput scales ~linearly with B (weight HBM traffic
    # is B-independent); B=8 kept small for the smoke test.  BatchNorm needs
    # the full batch resident in each grid step, which holds for any B here
    # since the batch dimension is never tiled.
    B = 8
    z = jax.random.normal(kz, (B, LATENT), dtype=jnp.float32)
    params = init_generator_params(kp)
    packed = pack_generator_params(params)   # one-time repack (bf16 weights)

    img = generator_forward(z, packed)
    img = jax.block_until_ready(img)
    assert img.shape == (B, 3, 64, 64), img.shape

    ref = _reference_forward(z, params)
    err = float(jnp.max(jnp.abs(img - ref)))
    # Tolerance loosened vs the pure-f32 reference: layers 2-5 use bf16 weights
    # / activations on the MXU with f32 accumulation.
    assert err < 5e-2, f"mismatch vs reference: {err}"

    print("KERNEL_OK")
</pallas_src>

<mosaic_0001>
module attributes {stable_mosaic.version = 11 : i64} {
  func.func @_generator_kernel(%arg0: i32, %arg1: memref<8x128xf32, #tpu.memory_space<vmem>>, %arg2: memref<128x128xf32, #tpu.memory_space<vmem>>, %arg3: memref<1x128xf32, #tpu.memory_space<vmem>>, %arg4: memref<128x256xbf16, #tpu.memory_space<vmem>>, %arg5: memref<1x256xf32, #tpu.memory_space<vmem>>, %arg6: memref<256x512xbf16, #tpu.memory_space<vmem>>, %arg7: memref<1x512xf32, #tpu.memory_space<vmem>>, %arg8: memref<512x1024xbf16, #tpu.memory_space<vmem>>, %arg9: memref<1x1024xf32, #tpu.memory_space<vmem>>, %arg10: memref<1x1024x1536xbf16, #tpu.memory_space<vmem>>, %arg11: memref<1x1536xf32, #tpu.memory_space<vmem>>, %arg12: memref<8x1536xf32, #tpu.memory_space<vmem>>) attributes {dimension_semantics = [#tpu.dimension_semantics<parallel>], iteration_bounds = array<i64: 8>, scalar_prefetch = 0 : i64, scratch_operands = 0 : i64, tpu.core_type = #tpu.core_type<tc>, window_params = [{pipeline_mode = #tpu.pipeline_mode<synchronous>, transform_indices = @transform_0, window_bounds = array<i64: 8, 128>}, {pipeline_mode = #tpu.pipeline_mode<synchronous>, transform_indices = @transform_1, window_bounds = array<i64: 128, 128>}, {pipeline_mode = #tpu.pipeline_mode<synchronous>, transform_indices = @transform_2, window_bounds = array<i64: 1, 128>}, {pipeline_mode = #tpu.pipeline_mode<synchronous>, transform_indices = @transform_3, window_bounds = array<i64: 128, 256>}, {pipeline_mode = #tpu.pipeline_mode<synchronous>, transform_indices = @transform_4, window_bounds = array<i64: 1, 256>}, {pipeline_mode = #tpu.pipeline_mode<synchronous>, transform_indices = @transform_5, window_bounds = array<i64: 256, 512>}, {pipeline_mode = #tpu.pipeline_mode<synchronous>, transform_indices = @transform_6, window_bounds = array<i64: 1, 512>}, {pipeline_mode = #tpu.pipeline_mode<synchronous>, transform_indices = @transform_7, window_bounds = array<i64: 512, 1024>}, {pipeline_mode = #tpu.pipeline_mode<synchronous>, transform_indices = @transform_8, window_bounds = array<i64: 1, 1024>}, {transform_indices = @transform_9, window_bounds = array<i64: 1, 1024, 1536>}, {transform_indices = @transform_10, window_bounds = array<i64: 1, 1536>}, {transform_indices = @transform_11, window_bounds = array<i64: 8, 1536>}]} {
    %c0 = arith.constant 0 : index
    %c0_0 = arith.constant 0 : index
    %0 = vector.load %arg1[%c0, %c0_0] : memref<8x128xf32, #tpu.memory_space<vmem>>, vector<8x128xf32>
    %c0_1 = arith.constant 0 : index
    %c0_2 = arith.constant 0 : index
    %1 = vector.load %arg2[%c0_1, %c0_2] : memref<128x128xf32, #tpu.memory_space<vmem>>, vector<128x128xf32>
    %cst = arith.constant dense<0.000000e+00> : vector<8x128xf32>
    %2 = tpu.matmul %0, %1, %cst {dimension_numbers = #tpu.dot_dimension_numbers<[1], [0], [0], [1], [0, 0, 1, 1], [], []>} : vector<8x128xf32>, vector<128x128xf32>, vector<8x128xf32> -> vector<8x128xf32>
    %c0_3 = arith.constant 0 : index
    %c0_4 = arith.constant 0 : index
    %3 = vector.load %arg3[%c0_3, %c0_4] : memref<1x128xf32, #tpu.memory_space<vmem>>, vector<1x128xf32>
    %4 = vector.broadcast %3 : vector<1x128xf32> to vector<8x128xf32>
    %5 = arith.addf %2, %4 : vector<8x128xf32>
    %cst_5 = arith.constant 0.000000e+00 : f32
    %6 = vector.broadcast %cst_5 : f32 to vector<8x128xf32>
    %7 = arith.cmpf ogt, %5, %6 : vector<8x128xf32>
    %cst_6 = arith.constant 2.000000e-01 : f32
    %8 = vector.broadcast %cst_6 : f32 to vector<8x128xf32>
    %9 = arith.mulf %8, %5 : vector<8x128xf32>
    %10 = arith.select %7, %5, %9 : vector<8x128xi1>, vector<8x128xf32>
    %11 = arith.truncf %10 : vector<8x128xf32> to vector<8x128xbf16>
    %c0_7 = arith.constant 0 : index
    %c0_8 = arith.constant 0 : index
    %12 = vector.load %arg4[%c0_7, %c0_8] : memref<128x256xbf16, #tpu.memory_space<vmem>>, vector<128x256xbf16>
    %cst_9 = arith.constant dense<0.000000e+00> : vector<8x256xf32>
    %13 = tpu.matmul %11, %12, %cst_9 {dimension_numbers = #tpu.dot_dimension_numbers<[1], [0], [0], [1], [0, 0, 1, 1], [], []>} : vector<8x128xbf16>, vector<128x256xbf16>, vector<8x256xf32> -> vector<8x256xf32>
    %c0_10 = arith.constant 0 : index
    %c0_11 = arith.constant 0 : index
    %14 = vector.load %arg5[%c0_10, %c0_11] : memref<1x256xf32, #tpu.memory_space<vmem>>, vector<1x256xf32>
    %15 = vector.broadcast %14 : vector<1x256xf32> to vector<8x256xf32>
    %16 = arith.addf %13, %15 : vector<8x256xf32>
    %cst_12 = arith.constant dense<0.000000e+00> : vector<256xf32>
    %17 = vector.multi_reduction <add>, %16, %cst_12 [0] : vector<8x256xf32> to vector<256xf32>
    %18 = vector.shape_cast %17 : vector<256xf32> to vector<1x256xf32>
    %cst_13 = arith.constant 8.000000e+00 : f32
    %19 = vector.broadcast %cst_13 : f32 to vector<1x256xf32>
    %20 = arith.divf %18, %19 : vector<1x256xf32>
    %21 = arith.mulf %16, %16 : vector<8x256xf32>
    %cst_14 = arith.constant dense<0.000000e+00> : vector<256xf32>
    %22 = vector.multi_reduction <add>, %21, %cst_14 [0] : vector<8x256xf32> to vector<256xf32>
    %23 = vector.shape_cast %22 : vector<256xf32> to vector<1x256xf32>
    %cst_15 = arith.constant 8.000000e+00 : f32
    %24 = vector.broadcast %cst_15 : f32 to vector<1x256xf32>
    %25 = arith.divf %23, %24 : vector<1x256xf32>
    %26 = vector.broadcast %20 : vector<1x256xf32> to vector<8x256xf32>
    %27 = arith.subf %16, %26 : vector<8x256xf32>
    %28 = arith.mulf %20, %20 : vector<1x256xf32>
    %29 = arith.subf %25, %28 : vector<1x256xf32>
    %cst_16 = arith.constant 8.000000e-01 : f32
    %30 = vector.broadcast %cst_16 : f32 to vector<1x256xf32>
    %31 = arith.addf %29, %30 : vector<1x256xf32>
    %32 = math.rsqrt %31 : vector<1x256xf32>
    %33 = vector.broadcast %32 : vector<1x256xf32> to vector<8x256xf32>
    %34 = arith.mulf %27, %33 : vector<8x256xf32>
    %cst_17 = arith.constant 0.000000e+00 : f32
    %35 = vector.broadcast %cst_17 : f32 to vector<8x256xf32>
    %36 = arith.cmpf ogt, %34, %35 : vector<8x256xf32>
    %cst_18 = arith.constant 2.000000e-01 : f32
    %37 = vector.broadcast %cst_18 : f32 to vector<8x256xf32>
    %38 = arith.mulf %37, %34 : vector<8x256xf32>
    %39 = arith.select %36, %34, %38 : vector<8x256xi1>, vector<8x256xf32>
    %40 = arith.truncf %39 : vector<8x256xf32> to vector<8x256xbf16>
    %c0_19 = arith.constant 0 : index
    %c0_20 = arith.constant 0 : index
    %41 = vector.load %arg6[%c0_19, %c0_20] : memref<256x512xbf16, #tpu.memory_space<vmem>>, vector<256x512xbf16>
    %cst_21 = arith.constant dense<0.000000e+00> : vector<8x512xf32>
    %42 = tpu.matmul %40, %41, %cst_21 {dimension_numbers = #tpu.dot_dimension_numbers<[1], [0], [0], [1], [0, 0, 1, 1], [], []>} : vector<8x256xbf16>, vector<256x512xbf16>, vector<8x512xf32> -> vector<8x512xf32>
    %c0_22 = arith.constant 0 : index
    %c0_23 = arith.constant 0 : index
    %43 = vector.load %arg7[%c0_22, %c0_23] : memref<1x512xf32, #tpu.memory_space<vmem>>, vector<1x512xf32>
    %44 = vector.broadcast %43 : vector<1x512xf32> to vector<8x512xf32>
    %45 = arith.addf %42, %44 : vector<8x512xf32>
    %cst_24 = arith.constant dense<0.000000e+00> : vector<512xf32>
    %46 = vector.multi_reduction <add>, %45, %cst_24 [0] : vector<8x512xf32> to vector<512xf32>
    %47 = vector.shape_cast %46 : vector<512xf32> to vector<1x512xf32>
    %cst_25 = arith.constant 8.000000e+00 : f32
    %48 = vector.broadcast %cst_25 : f32 to vector<1x512xf32>
    %49 = arith.divf %47, %48 : vector<1x512xf32>
    %50 = arith.mulf %45, %45 : vector<8x512xf32>
    %cst_26 = arith.constant dense<0.000000e+00> : vector<512xf32>
    %51 = vector.multi_reduction <add>, %50, %cst_26 [0] : vector<8x512xf32> to vector<512xf32>
    %52 = vector.shape_cast %51 : vector<512xf32> to vector<1x512xf32>
    %cst_27 = arith.constant 8.000000e+00 : f32
    %53 = vector.broadcast %cst_27 : f32 to vector<1x512xf32>
    %54 = arith.divf %52, %53 : vector<1x512xf32>
    %55 = vector.broadcast %49 : vector<1x512xf32> to vector<8x512xf32>
    %56 = arith.subf %45, %55 : vector<8x512xf32>
    %57 = arith.mulf %49, %49 : vector<1x512xf32>
    %58 = arith.subf %54, %57 : vector<1x512xf32>
    %cst_28 = arith.constant 8.000000e-01 : f32
    %59 = vector.broadcast %cst_28 : f32 to vector<1x512xf32>
    %60 = arith.addf %58, %59 : vector<1x512xf32>
    %61 = math.rsqrt %60 : vector<1x512xf32>
    %62 = vector.broadcast %61 : vector<1x512xf32> to vector<8x512xf32>
    %63 = arith.mulf %56, %62 : vector<8x512xf32>
    %cst_29 = arith.constant 0.000000e+00 : f32
    %64 = vector.broadcast %cst_29 : f32 to vector<8x512xf32>
    %65 = arith.cmpf ogt, %63, %64 : vector<8x512xf32>
    %cst_30 = arith.constant 2.000000e-01 : f32
    %66 = vector.broadcast %cst_30 : f32 to vector<8x512xf32>
    %67 = arith.mulf %66, %63 : vector<8x512xf32>
    %68 = arith.select %65, %63, %67 : vector<8x512xi1>, vector<8x512xf32>
    %69 = arith.truncf %68 : vector<8x512xf32> to vector<8x512xbf16>
    %c0_31 = arith.constant 0 : index
    %c0_32 = arith.constant 0 : index
    %70 = vector.load %arg8[%c0_31, %c0_32] : memref<512x1024xbf16, #tpu.memory_space<vmem>>, vector<512x1024xbf16>
    %cst_33 = arith.constant dense<0.000000e+00> : vector<8x1024xf32>
    %71 = tpu.matmul %69, %70, %cst_33 {dimension_numbers = #tpu.dot_dimension_numbers<[1], [0], [0], [1], [0, 0, 1, 1], [], []>} : vector<8x512xbf16>, vector<512x1024xbf16>, vector<8x1024xf32> -> vector<8x1024xf32>
    %c0_34 = arith.constant 0 : index
    %c0_35 = arith.constant 0 : index
    %72 = vector.load %arg9[%c0_34, %c0_35] : memref<1x1024xf32, #tpu.memory_space<vmem>>, vector<1x1024xf32>
    %73 = vector.broadcast %72 : vector<1x1024xf32> to vector<8x1024xf32>
    %74 = arith.addf %71, %73 : vector<8x1024xf32>
    %cst_36 = arith.constant dense<0.000000e+00> : vector<1024xf32>
    %75 = vector.multi_reduction <add>, %74, %cst_36 [0] : vector<8x1024xf32> to vector<1024xf32>
    %76 = vector.shape_cast %75 : vector<1024xf32> to vector<1x1024xf32>
    %cst_37 = arith.constant 8.000000e+00 : f32
    %77 = vector.broadcast %cst_37 : f32 to vector<1x1024xf32>
    %78 = arith.divf %76, %77 : vector<1x1024xf32>
    %79 = arith.mulf %74, %74 : vector<8x1024xf32>
    %cst_38 = arith.constant dense<0.000000e+00> : vector<1024xf32>
    %80 = vector.multi_reduction <add>, %79, %cst_38 [0] : vector<8x1024xf32> to vector<1024xf32>
    %81 = vector.shape_cast %80 : vector<1024xf32> to vector<1x1024xf32>
    %cst_39 = arith.constant 8.000000e+00 : f32
    %82 = vector.broadcast %cst_39 : f32 to vector<1x1024xf32>
    %83 = arith.divf %81, %82 : vector<1x1024xf32>
    %84 = vector.broadcast %78 : vector<1x1024xf32> to vector<8x1024xf32>
    %85 = arith.subf %74, %84 : vector<8x1024xf32>
    %86 = arith.mulf %78, %78 : vector<1x1024xf32>
    %87 = arith.subf %83, %86 : vector<1x1024xf32>
    %cst_40 = arith.constant 8.000000e-01 : f32
    %88 = vector.broadcast %cst_40 : f32 to vector<1x1024xf32>
    %89 = arith.addf %87, %88 : vector<1x1024xf32>
    %90 = math.rsqrt %89 : vector<1x1024xf32>
    %91 = vector.broadcast %90 : vector<1x1024xf32> to vector<8x1024xf32>
    %92 = arith.mulf %85, %91 : vector<8x1024xf32>
    %cst_41 = arith.constant 0.000000e+00 : f32
    %93 = vector.broadcast %cst_41 : f32 to vector<8x1024xf32>
    %94 = arith.cmpf ogt, %92, %93 : vector<8x1024xf32>
    %cst_42 = arith.constant 2.000000e-01 : f32
    %95 = vector.broadcast %cst_42 : f32 to vector<8x1024xf32>
    %96 = arith.mulf %95, %92 : vector<8x1024xf32>
    %97 = arith.select %94, %92, %96 : vector<8x1024xi1>, vector<8x1024xf32>
    %98 = arith.truncf %97 : vector<8x1024xf32> to vector<8x1024xbf16>
    %c0_43 = arith.constant 0 : index
    %c0_44 = arith.constant 0 : index
    %c0_45 = arith.constant 0 : index
    %99 = vector.load %arg10[%c0_43, %c0_44, %c0_45] : memref<1x1024x1536xbf16, #tpu.memory_space<vmem>>, vector<1x1024x1536xbf16>
    %100 = vector.shape_cast %99 : vector<1x1024x1536xbf16> to vector<1024x1536xbf16>
    %cst_46 = arith.constant dense<0.000000e+00> : vector<8x1536xf32>
    %101 = tpu.matmul %98, %100, %cst_46 {dimension_numbers = #tpu.dot_dimension_numbers<[1], [0], [0], [1], [0, 0, 1, 1], [], []>} : vector<8x1024xbf16>, vector<1024x1536xbf16>, vector<8x1536xf32> -> vector<8x1536xf32>
    %c0_47 = arith.constant 0 : index
    %c0_48 = arith.constant 0 : index
    %102 = vector.load %arg11[%c0_47, %c0_48] : memref<1x1536xf32, #tpu.memory_space<vmem>>, vector<1x1536xf32>
    %103 = vector.broadcast %102 : vector<1x1536xf32> to vector<8x1536xf32>
    %104 = arith.addf %101, %103 : vector<8x1536xf32>
    %105 = math.tanh %104 : vector<8x1536xf32>
    %c0_49 = arith.constant 0 : index
    %c0_50 = arith.constant 0 : index
    %106 = vector.load %arg12[%c0_49, %c0_50] : memref<8x1536xf32, #tpu.memory_space<vmem>>, vector<8x1536xf32>
    tpu.vector_store %arg12[%c0_49, %c0_50], %105 {strides = array<i32>} : memref<8x1536xf32, #tpu.memory_space<vmem>>, vector<8x1536xf32>,
    return
  }
  func.func @transform_0(%arg0: i32) -> (i32, i32) {
    %c0_i32 = arith.constant 0 : i32
    %c0_i32_0 = arith.constant 0 : i32
    %c0_i32_1 = arith.constant 0 : i32
    return %c0_i32, %c0_i32_0 : i32, i32
  }
  func.func @transform_1(%arg0: i32) -> (i32, i32) {
    %c0_i32 = arith.constant 0 : i32
    %c0_i32_0 = arith.constant 0 : i32
    %c0_i32_1 = arith.constant 0 : i32
    return %c0_i32, %c0_i32_0 : i32, i32
  }
  func.func @transform_2(%arg0: i32) -> (i32, i32) {
    %c0_i32 = arith.constant 0 : i32
    %c0_i32_0 = arith.constant 0 : i32
    %c0_i32_1 = arith.constant 0 : i32
    return %c0_i32, %c0_i32_0 : i32, i32
  }
  func.func @transform_3(%arg0: i32) -> (i32, i32) {
    %c0_i32 = arith.constant 0 : i32
    %c0_i32_0 = arith.constant 0 : i32
    %c0_i32_1 = arith.constant 0 : i32
    return %c0_i32, %c0_i32_0 : i32, i32
  }
  func.func @transform_4(%arg0: i32) -> (i32, i32) {
    %c0_i32 = arith.constant 0 : i32
    %c0_i32_0 = arith.constant 0 : i32
    %c0_i32_1 = arith.constant 0 : i32
    return %c0_i32, %c0_i32_0 : i32, i32
  }
  func.func @transform_5(%arg0: i32) -> (i32, i32) {
    %c0_i32 = arith.constant 0 : i32
    %c0_i32_0 = arith.constant 0 : i32
    %c0_i32_1 = arith.constant 0 : i32
    return %c0_i32, %c0_i32_0 : i32, i32
  }
  func.func @transform_6(%arg0: i32) -> (i32, i32) {
    %c0_i32 = arith.constant 0 : i32
    %c0_i32_0 = arith.constant 0 : i32
    %c0_i32_1 = arith.constant 0 : i32
    return %c0_i32, %c0_i32_0 : i32, i32
  }
  func.func @transform_7(%arg0: i32) -> (i32, i32) {
    %c0_i32 = arith.constant 0 : i32
    %c0_i32_0 = arith.constant 0 : i32
    %c0_i32_1 = arith.constant 0 : i32
    return %c0_i32, %c0_i32_0 : i32, i32
  }
  func.func @transform_8(%arg0: i32) -> (i32, i32) {
    %c0_i32 = arith.constant 0 : i32
    %c0_i32_0 = arith.constant 0 : i32
    %c0_i32_1 = arith.constant 0 : i32
    return %c0_i32, %c0_i32_0 : i32, i32
  }
  func.func @transform_9(%arg0: i32) -> (i32, i32, i32) {
    %c0_i32 = arith.constant 0 : i32
    %c0_i32_0 = arith.constant 0 : i32
    %c0_i32_1 = arith.constant 0 : i32
    return %arg0, %c0_i32, %c0_i32_0 : i32, i32, i32
  }
  func.func @transform_10(%arg0: i32) -> (i32, i32) {
    %c0_i32 = arith.constant 0 : i32
    %c0_i32_0 = arith.constant 0 : i32
    return %c0_i32, %arg0 : i32, i32
  }
  func.func @transform_11(%arg0: i32) -> (i32, i32) {
    %c0_i32 = arith.constant 0 : i32
    %c0_i32_0 = arith.constant 0 : i32
    return %c0_i32, %arg0 : i32, i32
  }
}

</mosaic_0001>

<llo_original>
// kernel: tpu_custom_call.1
$region0: #{tpu_custom_call.1}
  #allocation0 [shape = 'u32[]', space=smem, size = 0x4, offset = 0x4, fixed_abs, tag = 'smem constant byte address 0x4 - core index']
  #allocation1 [shape = 'u32[144,128]{1,0:T(1,128)}', space=vmem, size = 0x12000, scoped, tag = 'internal scratch']
  %s0 = inlined_call_operand.hbm [shape: f32[8,128], index: 0, kind: input, shape index: {}]
  %s1 = inlined_call_operand.hbm [shape: f32[128,128], index: 1, kind: input, shape index: {}]
  %s2 = inlined_call_operand.hbm [shape: f32[1,128], index: 2, kind: input, shape index: {}]
  %s3 = inlined_call_operand.hbm [shape: bf16[128,256], index: 3, kind: input, shape index: {}]
  %s4 = inlined_call_operand.hbm [shape: f32[1,256], index: 4, kind: input, shape index: {}]
  %s5 = inlined_call_operand.hbm [shape: bf16[256,512], index: 5, kind: input, shape index: {}]
  %s6 = inlined_call_operand.hbm [shape: f32[1,512], index: 6, kind: input, shape index: {}]
  %s7 = inlined_call_operand.hbm [shape: bf16[512,1024], index: 7, kind: input, shape index: {}]
  %s8 = inlined_call_operand.hbm [shape: f32[1,1024], index: 8, kind: input, shape index: {}]
  %s9 = inlined_call_operand.hbm [shape: bf16[8,1024,1536], index: 9, kind: input, shape index: {}]
  %s10 = inlined_call_operand.hbm [shape: f32[1,12288], index: 10, kind: input, shape index: {}]
  %s11 = inlined_call_operand.hbm [shape: f32[8,12288], index: 11, kind: output, shape index: {}]
  %s12 = sld [smem:[#allocation0]]
  $region121: #{tpu_custom_call.1} parent=0
    _
  %s14 = ssub.s32 1, %s12
  %s15 = scalar_select 0, %s14, %s12
  $region1: #{tpu_custom_call.1} parent=0
    #allocation2 [shape = 'u8[4096]{0}', space=vmem, size = 0x1000, scoped, tag = 'input window, operand 0, single buffered']
    #allocation3 [shape = 's32[2]{0}', space=sflag, size = 0x8, scoped, tag = 'scoped memory for tpu_custom_call.1']
    #allocation4 [shape = 's32[2]{0}', space=sflag, size = 0x8, scoped, tag = 'scoped memory for tpu_custom_call.1']
    #allocation5 [shape = 'u8[65536]{0}', space=vmem, size = 0x10000, scoped, tag = 'input window, operand 1, single buffered']
    #allocation6 [shape = 's32[1]{0}', space=sflag, size = 0x4, scoped, tag = 'scoped memory for tpu_custom_call.1']
    #allocation7 [shape = 'u8[512]{0}', space=vmem, size = 0x400, scoped, tag = 'input window, operand 2, single buffered']
    #allocation8 [shape = 'u8[65536]{0}', space=vmem, size = 0x10000, scoped, tag = 'input window, operand 3, single buffered']
    #allocation9 [shape = 's32[1]{0}', space=sflag, size = 0x4, scoped, tag = 'scoped memory for tpu_custom_call.1']
    #allocation10 [shape = 'u8[1024]{0}', space=vmem, size = 0x400, scoped, tag = 'input window, operand 4, single buffered']
    #allocation11 [shape = 'u8[262144]{0}', space=vmem, size = 0x40000, scoped, tag = 'input window, operand 5, single buffered']
    #allocation12 [shape = 's32[1]{0}', space=sflag, size = 0x4, scoped, tag = 'scoped memory for tpu_custom_call.1']
    #allocation13 [shape = 'u8[2048]{0}', space=vmem, size = 0x800, scoped, tag = 'input window, operand 6, single buffered']
    #allocation14 [shape = 'u8[1048576]{0}', space=vmem, size = 0x100000, scoped, tag = 'input window, operand 7, single buffered']
    #allocation15 [shape = 's32[1]{0}', space=sflag, size = 0x4, scoped, tag = 'scoped memory for tpu_custom_call.1']
    #allocation16 [shape = 'u8[4096]{0}', space=vmem, size = 0x1000, scoped, tag = 'input window, operand 8, single buffered']
    #allocation17 [shape = 'u8[6291456]{0}', space=vmem, size = 0x600000, scoped, tag = 'input window, operand 9']
    #allocation18 [shape = 's32[2]{0}', space=sflag, size = 0x8, scoped, tag = 'scoped memory for tpu_custom_call.1']
    #allocation19 [shape = 'u8[12288]{0}', space=vmem, size = 0x3000, scoped, tag = 'input window, operand 10']
    #allocation20 [shape = 'u8[98304]{0}', space=vmem, size = 0x18000, scoped, tag = 'output window, operand 0']
    %16 = vsyncpa [#allocation3], 0
    %17 = vsyncpa [#allocation6], 0
    %18 = vsyncpa [#allocation9], 0
    %19 = vsyncpa [#allocation12], 0
    %20 = vsyncpa [#allocation15], 0
    %21 = vsyncpa [#allocation18], 0
    %s22 = scalar_lea.sflag [#allocation18], 1
    %23 = vsyncpa %s22, 0
    %24 = vsyncpa [#allocation4], 0
    %s25 = scalar_lea.sflag [#allocation4], 1
    %26 = vsyncpa %s25, 0
    loop: start=0, step=1, limit=10
    $region2: #{tpu_custom_call.1} parent=1 // loop_pre_header
      _
    $region3: #{tpu_custom_call.1} parent=1 // loop_header
      %s28 = sphi 0, %s32
      %p29 = scmp.ge.s32.totalorder %s28, 10
      %s36 = sphi 0, %s36
      %s38 = sphi 0, %s36
      %s39 = sphi 0, %s38
      %s53 = sphi 0, %s39
      %s57 = sphi 0, %s57
      %s59 = sphi 0, %s57
      %s60 = sphi 0, %s59
      %s74 = sphi 0, %s60
      %s78 = sphi 0, %s78
      %s80 = sphi 0, %s78
      %s81 = sphi 0, %s80
      %s95 = sphi 0, %s81
      %s99 = sphi 0, %s99
      %s101 = sphi 0, %s99
      %s102 = sphi 0, %s101
      %s116 = sphi 0, %s102
      %s120 = sphi 0, %s120
      %s122 = sphi 0, %s120
      %s123 = sphi 0, %s122
      %s137 = sphi 0, %s123
      %s141 = sphi 0, %s141
      %s143 = sphi 0, %s141
      %s144 = sphi 0, %s143
      %s158 = sphi 0, %s144
      %s162 = sphi 0, %s162
      %s164 = sphi 0, %s162
      %s165 = sphi 0, %s164
      %s179 = sphi 0, %s165
      %s183 = sphi 0, %s183
      %s185 = sphi 0, %s183
      %s186 = sphi 0, %s185
      %s200 = sphi 0, %s186
      %s204 = sphi 0, %s204
      %s206 = sphi 0, %s204
      %s207 = sphi 0, %s206
      %s221 = sphi 0, %s207
      %s227 = sphi 0, %s229
      %s230 = sphi 0, %s227
      %s231 = sphi 0, %s230
      %s247 = sphi 0, %s231
      %s253 = sphi 0, %s255
      %s256 = sphi 0, %s253
      %s257 = sphi 0, %s256
      %s273 = sphi 0, %s257
      %s279 = sphi 0, %s281
      %s282 = sphi 0, %s279
      %s283 = sphi 0, %s282
      %s299 = sphi 0, %s283
    $region4: #{tpu_custom_call.1} parent=1 // loop_header_branch
      %31 = sbr.rel (%p29) target = $region8
    $region5: #{tpu_custom_call.1} parent=1 // loop_body
      %s33 = ssub.s32 %s28, 1
      %s34 = ssub.s32 %s28, 2
      %s35 = sadd.s32 %s28, 1
      %s37 = sadd.s32 %s36, 1
      %p40 = scmp.eq.s32.totalorder %s28, 7
      %p41 = scmp.ne.s32.totalorder %s36, %s38
      %p42 = scmp.eq.s32.totalorder %s28, 0
      %p43 = por %p41, %p42
      %p44 = scmp.ne.s32.totalorder %s36, %s38
      %p45 = scmp.eq.s32.totalorder %s33, 7
      %p46 = por %p44, %p45
      %p47 = scmp.ne.s32.totalorder %s38, %s39
      %p48 = scmp.eq.s32.totalorder %s33, 0
      %p49 = por %p47, %p48
      %p50 = scmp.ne.s32.totalorder %s38, %s39
      %p51 = scmp.eq.s32.totalorder %s34, 7
      %p52 = por %p50, %p51
      %p54 = scmp.ne.s32.totalorder %s39, %s53
      %p55 = scmp.eq.s32.totalorder %s34, 0
      %p56 = por %p54, %p55
      %s58 = sadd.s32 %s57, 1
      %p61 = scmp.eq.s32.totalorder %s28, 7
      %p62 = scmp.ne.s32.totalorder %s57, %s59
      %p63 = scmp.eq.s32.totalorder %s28, 0
      %p64 = por %p62, %p63
      %p65 = scmp.ne.s32.totalorder %s57, %s59
      %p66 = scmp.eq.s32.totalorder %s33, 7
      %p67 = por %p65, %p66
      %p68 = scmp.ne.s32.totalorder %s59, %s60
      %p69 = scmp.eq.s32.totalorder %s33, 0
      %p70 = por %p68, %p69
      %p71 = scmp.ne.s32.totalorder %s59, %s60
      %p72 = scmp.eq.s32.totalorder %s34, 7
      %p73 = por %p71, %p72
      %p75 = scmp.ne.s32.totalorder %s60, %s74
      %p76 = scmp.eq.s32.totalorder %s34, 0
      %p77 = por %p75, %p76
      %s79 = sadd.s32 %s78, 1
      %p82 = scmp.eq.s32.totalorder %s28, 7
      %p83 = scmp.ne.s32.totalorder %s78, %s80
      %p84 = scmp.eq.s32.totalorder %s28, 0
      %p85 = por %p83, %p84
      %p86 = scmp.ne.s32.totalorder %s78, %s80
      %p87 = scmp.eq.s32.totalorder %s33, 7
      %p88 = por %p86, %p87
      %p89 = scmp.ne.s32.totalorder %s80, %s81
      %p90 = scmp.eq.s32.totalorder %s33, 0
      %p91 = por %p89, %p90
      %p92 = scmp.ne.s32.totalorder %s80, %s81
      %p93 = scmp.eq.s32.totalorder %s34, 7
      %p94 = por %p92, %p93
      %p96 = scmp.ne.s32.totalorder %s81, %s95
      %p97 = scmp.eq.s32.totalorder %s34, 0
      %p98 = por %p96, %p97
      %s100 = sadd.s32 %s99, 1
      %p103 = scmp.eq.s32.totalorder %s28, 7
      %p104 = scmp.ne.s32.totalorder %s99, %s101
      %p105 = scmp.eq.s32.totalorder %s28, 0
      %p106 = por %p104, %p105
      %p107 = scmp.ne.s32.totalorder %s99, %s101
      %p108 = scmp.eq.s32.totalorder %s33, 7
      %p109 = por %p107, %p108
      %p110 = scmp.ne.s32.totalorder %s101, %s102
      %p111 = scmp.eq.s32.totalorder %s33, 0
      %p112 = por %p110, %p111
      %p113 = scmp.ne.s32.totalorder %s101, %s102
      %p114 = scmp.eq.s32.totalorder %s34, 7
      %p115 = por %p113, %p114
      %p117 = scmp.ne.s32.totalorder %s102, %s116
      %p118 = scmp.eq.s32.totalorder %s34, 0
      %p119 = por %p117, %p118
      %s121 = sadd.s32 %s120, 1
      %p124 = scmp.eq.s32.totalorder %s28, 7
      %p125 = scmp.ne.s32.totalorder %s120, %s122
      %p126 = scmp.eq.s32.totalorder %s28, 0
      %p127 = por %p125, %p126
      %p128 = scmp.ne.s32.totalorder %s120, %s122
      %p129 = scmp.eq.s32.totalorder %s33, 7
      %p130 = por %p128, %p129
      %p131 = scmp.ne.s32.totalorder %s122, %s123
      %p132 = scmp.eq.s32.totalorder %s33, 0
      %p133 = por %p131, %p132
      %p134 = scmp.ne.s32.totalorder %s122, %s123
      %p135 = scmp.eq.s32.totalorder %s34, 7
      %p136 = por %p134, %p135
      %p138 = scmp.ne.s32.totalorder %s123, %s137
      %p139 = scmp.eq.s32.totalorder %s34, 0
      %p140 = por %p138, %p139
      %s142 = sadd.s32 %s141, 1
      %p145 = scmp.eq.s32.totalorder %s28, 7
      %p146 = scmp.ne.s32.totalorder %s141, %s143
      %p147 = scmp.eq.s32.totalorder %s28, 0
      %p148 = por %p146, %p147
      %p149 = scmp.ne.s32.totalorder %s141, %s143
      %p150 = scmp.eq.s32.totalorder %s33, 7
      %p151 = por %p149, %p150
      %p152 = scmp.ne.s32.totalorder %s143, %s144
      %p153 = scmp.eq.s32.totalorder %s33, 0
      %p154 = por %p152, %p153
      %p155 = scmp.ne.s32.totalorder %s143, %s144
      %p156 = scmp.eq.s32.totalorder %s34, 7
      %p157 = por %p155, %p156
      %p159 = scmp.ne.s32.totalorder %s144, %s158
      %p160 = scmp.eq.s32.totalorder %s34, 0
      %p161 = por %p159, %p160
      %s163 = sadd.s32 %s162, 1
      %p166 = scmp.eq.s32.totalorder %s28, 7
      %p167 = scmp.ne.s32.totalorder %s162, %s164
      %p168 = scmp.eq.s32.totalorder %s28, 0
      %p169 = por %p167, %p168
      %p170 = scmp.ne.s32.totalorder %s162, %s164
      %p171 = scmp.eq.s32.totalorder %s33, 7
      %p172 = por %p170, %p171
      %p173 = scmp.ne.s32.totalorder %s164, %s165
      %p174 = scmp.eq.s32.totalorder %s33, 0
      %p175 = por %p173, %p174
      %p176 = scmp.ne.s32.totalorder %s164, %s165
      %p177 = scmp.eq.s32.totalorder %s34, 7
      %p178 = por %p176, %p177
      %p180 = scmp.ne.s32.totalorder %s165, %s179
      %p181 = scmp.eq.s32.totalorder %s34, 0
      %p182 = por %p180, %p181
      %s184 = sadd.s32 %s183, 1
      %p187 = scmp.eq.s32.totalorder %s28, 7
      %p188 = scmp.ne.s32.totalorder %s183, %s185
      %p189 = scmp.eq.s32.totalorder %s28, 0
      %p190 = por %p188, %p189
      %p191 = scmp.ne.s32.totalorder %s183, %s185
      %p192 = scmp.eq.s32.totalorder %s33, 7
      %p193 = por %p191, %p192
      %p194 = scmp.ne.s32.totalorder %s185, %s186
      %p195 = scmp.eq.s32.totalorder %s33, 0
      %p196 = por %p194, %p195
      %p197 = scmp.ne.s32.totalorder %s185, %s186
      %p198 = scmp.eq.s32.totalorder %s34, 7
      %p199 = por %p197, %p198
      %p201 = scmp.ne.s32.totalorder %s186, %s200
      %p202 = scmp.eq.s32.totalorder %s34, 0
      %p203 = por %p201, %p202
      %s205 = sadd.s32 %s204, 1
      %p208 = scmp.eq.s32.totalorder %s28, 7
      %p209 = scmp.ne.s32.totalorder %s204, %s206
      %p210 = scmp.eq.s32.totalorder %s28, 0
      %p211 = por %p209, %p210
      %p212 = scmp.ne.s32.totalorder %s204, %s206
      %p213 = scmp.eq.s32.totalorder %s33, 7
      %p214 = por %p212, %p213
      %p215 = scmp.ne.s32.totalorder %s206, %s207
      %p216 = scmp.eq.s32.totalorder %s33, 0
      %p217 = por %p215, %p216
      %p218 = scmp.ne.s32.totalorder %s206, %s207
      %p219 = scmp.eq.s32.totalorder %s34, 7
      %p220 = por %p218, %p219
      %p222 = scmp.ne.s32.totalorder %s207, %s221
      %p223 = scmp.eq.s32.totalorder %s34, 0
      %p224 = por %p222, %p223
      %s225 = ssub.s32 %s28, %s35
      %p226 = scmp.eq.s32.totalorder %s225, 0
      %s228 = sadd.s32 %s227, 1
      %s229 = scalar_select %p226, %s227, %s228
      %p232 = pneg %p226
      %p233 = scmp.eq.s32.totalorder %s28, 7
      %p234 = por %p232, %p233
      %p235 = scmp.ne.s32.totalorder %s227, %s230
      %p236 = scmp.eq.s32.totalorder %s28, 0
      %p237 = por %p235, %p236
      %p238 = scmp.ne.s32.totalorder %s227, %s230
      %p239 = scmp.eq.s32.totalorder %s33, 7
      %p240 = por %p238, %p239
      %p241 = scmp.ne.s32.totalorder %s230, %s231
      %p242 = scmp.eq.s32.totalorder %s33, 0
      %p243 = por %p241, %p242
      %p244 = scmp.ne.s32.totalorder %s230, %s231
      %p245 = scmp.eq.s32.totalorder %s34, 7
      %p246 = por %p244, %p245
      %p248 = scmp.ne.s32.totalorder %s231, %s247
      %p249 = scmp.eq.s32.totalorder %s34, 0
      %p250 = por %p248, %p249
      %s251 = ssub.s32 %s28, %s35
      %p252 = scmp.eq.s32.totalorder %s251, 0
      %s254 = sadd.s32 %s253, 1
      %s255 = scalar_select %p252, %s253, %s254
      %p258 = pneg %p252
      %p259 = scmp.eq.s32.totalorder %s28, 7
      %p260 = por %p258, %p259
      %p261 = scmp.ne.s32.totalorder %s253, %s256
      %p262 = scmp.eq.s32.totalorder %s28, 0
      %p263 = por %p261, %p262
      %p264 = scmp.ne.s32.totalorder %s253, %s256
      %p265 = scmp.eq.s32.totalorder %s33, 7
      %p266 = por %p264, %p265
      %p267 = scmp.ne.s32.totalorder %s256, %s257
      %p268 = scmp.eq.s32.totalorder %s33, 0
      %p269 = por %p267, %p268
      %p270 = scmp.ne.s32.totalorder %s256, %s257
      %p271 = scmp.eq.s32.totalorder %s34, 7
      %p272 = por %p270, %p271
      %p274 = scmp.ne.s32.totalorder %s257, %s273
      %p275 = scmp.eq.s32.totalorder %s34, 0
      %p276 = por %p274, %p275
      %s277 = ssub.s32 %s28, %s35
      %p278 = scmp.eq.s32.totalorder %s277, 0
      %s280 = sadd.s32 %s279, 1
      %s281 = scalar_select %p278, %s279, %s280
      %p284 = pneg %p278
      %p285 = scmp.eq.s32.totalorder %s28, 7
      %p286 = por %p284, %p285
      %p287 = scmp.ne.s32.totalorder %s279, %s282
      %p288 = scmp.eq.s32.totalorder %s28, 0
      %p289 = por %p287, %p288
      %p290 = scmp.ne.s32.totalorder %s279, %s282
      %p291 = scmp.eq.s32.totalorder %s33, 7
      %p292 = por %p290, %p291
      %p293 = scmp.ne.s32.totalorder %s282, %s283
      %p294 = scmp.eq.s32.totalorder %s33, 0
      %p295 = por %p293, %p294
      %p296 = scmp.ne.s32.totalorder %s282, %s283
      %p297 = scmp.eq.s32.totalorder %s34, 7
      %p298 = por %p296, %p297
      %p300 = scmp.ne.s32.totalorder %s283, %s299
      %p301 = scmp.eq.s32.totalorder %s34, 0
      %p302 = por %p300, %p301
      %p303 = scmp.le.s32.totalorder 1, %s28
      %p304 = scmp.lt.s32.totalorder %s28, 9
      %p305 = pnand %p303, %p304
      %p306 = pneg %p305
      // Predicated region
      $region9: #{tpu_custom_call.1} parent=5 // pred_check
        _
      $region10: #{tpu_custom_call.1} parent=5 // pred_check_branch
        %308 = sbr.rel (%p305) target = $region12
      $region11: #{tpu_custom_call.1} parent=5 // pred_region
        %s309 = ssub.s32 %s28, 1
        // Predicated region
        $region13: #{tpu_custom_call.1} parent=11 // pred_check
          %p310 = pneg %p49
        $region14: #{tpu_custom_call.1} parent=11 // pred_check_branch
          %312 = sbr.rel (%p310) target = $region16
        $region15: #{tpu_custom_call.1} parent=11 // pred_region
          %s314 = ssub.s32 128, 128
          %315 = vsyncadd [#allocation3], %s314
          %s317 = sshll.u32 [#allocation2], 4
          %s318 = int_to_ptr.vmem [resolvable:$true] %s317
          %320 = dma.hbm_to_vmem [thread:$0]  %s0, 128, %s318, [#allocation3]
        $region16: #{tpu_custom_call.1} parent=11 // pred_fallthru
          _
        // Predicated region
        $region17: #{tpu_custom_call.1} parent=11 // pred_check
          %p321 = pneg %p70
        $region18: #{tpu_custom_call.1} parent=11 // pred_check_branch
          %323 = sbr.rel (%p321) target = $region20
        $region19: #{tpu_custom_call.1} parent=11 // pred_region
          %s325 = ssub.s32 2048, 2048
          %326 = vsyncadd [#allocation6], %s325
          %s327 = sshll.u32 [#allocation5], 4
          %s328 = int_to_ptr.vmem [resolvable:$true] %s327
          %333 = dma.hbm_to_vmem [thread:$0]  %s1, 2048, %s328, [#allocation6], 128, 128, 8
        $region20: #{tpu_custom_call.1} parent=11 // pred_fallthru
          _
        // Predicated region
        $region21: #{tpu_custom_call.1} parent=11 // pred_check
          %p334 = pneg %p91
        $region22: #{tpu_custom_call.1} parent=11 // pred_check_branch
          %336 = sbr.rel (%p334) target = $region24
        $region23: #{tpu_custom_call.1} parent=11 // pred_region
          %s338 = ssub.s32 16, 16
          %339 = vsyncadd [#allocation6], %s338
          %s341 = sshll.u32 [#allocation7], 4
          %s342 = int_to_ptr.vmem [resolvable:$true] %s341
          %344 = dma.hbm_to_vmem [thread:$0]  %s2, 16, %s342, [#allocation6]
        $region24: #{tpu_custom_call.1} parent=11 // pred_fallthru
          _
        // Predicated region
        $region25: #{tpu_custom_call.1} parent=11 // pred_check
          %p345 = pneg %p112
        $region26: #{tpu_custom_call.1} parent=11 // pred_check_branch
          %347 = sbr.rel (%p345) target = $region28
        $region27: #{tpu_custom_call.1} parent=11 // pred_region
          %s349 = ssub.s32 2048, 2048
          %350 = vsyncadd [#allocation9], %s349
          %s351 = sshll.u32 [#allocation8], 4
          %s352 = int_to_ptr.vmem [resolvable:$true] %s351
          %357 = dma.hbm_to_vmem [thread:$0]  %s3, 2048, %s352, [#allocation9], 128, 128, 8
        $region28: #{tpu_custom_call.1} parent=11 // pred_fallthru
          _
        // Predicated region
        $region29: #{tpu_custom_call.1} parent=11 // pred_check
          %p358 = pneg %p133
        $region30: #{tpu_custom_call.1} parent=11 // pred_check_branch
          %360 = sbr.rel (%p358) target = $region32
        $region31: #{tpu_custom_call.1} parent=11 // pred_region
          %s362 = ssub.s32 32, 32
          %363 = vsyncadd [#allocation9], %s362
          %s365 = sshll.u32 [#allocation10], 4
          %s366 = int_to_ptr.vmem [resolvable:$true] %s365
          %368 = dma.hbm_to_vmem [thread:$0]  %s4, 32, %s366, [#allocation9]
        $region32: #{tpu_custom_call.1} parent=11 // pred_fallthru
          _
        // Predicated region
        $region33: #{tpu_custom_call.1} parent=11 // pred_check
          %p369 = pneg %p154
        $region34: #{tpu_custom_call.1} parent=11 // pred_check_branch
          %371 = sbr.rel (%p369) target = $region36
        $region35: #{tpu_custom_call.1} parent=11 // pred_region
          %s373 = ssub.s32 8192, 8192
          %374 = vsyncadd [#allocation12], %s373
          %s375 = sshll.u32 [#allocation11], 4
          %s376 = int_to_ptr.vmem [resolvable:$true] %s375
          %381 = dma.hbm_to_vmem [thread:$0]  %s5, 8192, %s376, [#allocation12], 256, 256, 16
        $region36: #{tpu_custom_call.1} parent=11 // pred_fallthru
          _
        // Predicated region
        $region37: #{tpu_custom_call.1} parent=11 // pred_check
          %p382 = pneg %p175
        $region38: #{tpu_custom_call.1} parent=11 // pred_check_branch
          %384 = sbr.rel (%p382) target = $region40
        $region39: #{tpu_custom_call.1} parent=11 // pred_region
          %s386 = ssub.s32 64, 64
          %387 = vsyncadd [#allocation12], %s386
          %s389 = sshll.u32 [#allocation13], 4
          %s390 = int_to_ptr.vmem [resolvable:$true] %s389
          %392 = dma.hbm_to_vmem [thread:$0]  %s6, 64, %s390, [#allocation12]
        $region40: #{tpu_custom_call.1} parent=11 // pred_fallthru
          _
        // Predicated region
        $region41: #{tpu_custom_call.1} parent=11 // pred_check
          %p393 = pneg %p196
        $region42: #{tpu_custom_call.1} parent=11 // pred_check_branch
          %395 = sbr.rel (%p393) target = $region44
        $region43: #{tpu_custom_call.1} parent=11 // pred_region
          %s397 = ssub.s32 32768, 32768
          %398 = vsyncadd [#allocation15], %s397
          %s399 = sshll.u32 [#allocation14], 4
          %s400 = int_to_ptr.vmem [resolvable:$true] %s399
          %405 = dma.hbm_to_vmem [thread:$0]  %s7, 32768, %s400, [#allocation15], 512, 512, 32
        $region44: #{tpu_custom_call.1} parent=11 // pred_fallthru
          _
        // Predicated region
        $region45: #{tpu_custom_call.1} parent=11 // pred_check
          %p406 = pneg %p217
        $region46: #{tpu_custom_call.1} parent=11 // pred_check_branch
          %408 = sbr.rel (%p406) target = $region48
        $region47: #{tpu_custom_call.1} parent=11 // pred_region
          %s410 = ssub.s32 128, 128
          %411 = vsyncadd [#allocation15], %s410
          %s413 = sshll.u32 [#allocation16], 4
          %s414 = int_to_ptr.vmem [resolvable:$true] %s413
          %416 = dma.hbm_to_vmem [thread:$0]  %s8, 128, %s414, [#allocation15]
        $region48: #{tpu_custom_call.1} parent=11 // pred_fallthru
          _
      $region12: #{tpu_custom_call.1} parent=5 // pred_fallthru
        _
      %p417 = scmp.lt.s32.totalorder %s28, 8
      // Predicated region
      $region49: #{tpu_custom_call.1} parent=5 // pred_check
        %p418 = pneg %p417
      $region50: #{tpu_custom_call.1} parent=5 // pred_check_branch
        %420 = sbr.rel (%p418) target = $region52
      $region51: #{tpu_custom_call.1} parent=5 // pred_region
        // Predicated region
        $region53: #{tpu_custom_call.1} parent=51 // pred_check
          %p421 = pneg %p237
        $region54: #{tpu_custom_call.1} parent=51 // pred_check_branch
          %423 = sbr.rel (%p421) target = $region56
        $region55: #{tpu_custom_call.1} parent=51 // pred_region
          %s424 = sand.u32 %s28, 1
          %s425 = scalar_lea.sflag [#allocation18], %s424
          %s426 = sand.u32 %s227, 1
          %s427 = smul.addr %s426, 6144
          %s428 = scalar_lea.vmem [#allocation17], %s427
          %s430 = ssub.s32 98304, 98304
          %431 = vsyncadd %s425, %s430
          %s432 = smul.addr %s28, 1536
          %s433 = smul.addr %s432, 64
          %s434 = scalar_lea.hbm %s9, %s433
          %s435 = sshll.u32 %s428, 4
          %s436 = int_to_ptr.vmem [resolvable:$true] %s435
          %441 = dma.hbm_to_vmem [thread:$0]  %s434, 98304, %s436, %s425, 768, 768, 48
        $region56: #{tpu_custom_call.1} parent=51 // pred_fallthru
          _
        // Predicated region
        $region57: #{tpu_custom_call.1} parent=51 // pred_check
          %p442 = pneg %p263
        $region58: #{tpu_custom_call.1} parent=51 // pred_check_branch
          %444 = sbr.rel (%p442) target = $region60
        $region59: #{tpu_custom_call.1} parent=51 // pred_region
          %s445 = sand.u32 %s28, 1
          %s446 = scalar_lea.sflag [#allocation18], %s445
          %s447 = sand.u32 %s253, 1
          %s448 = smul.addr %s447, 12
          %s449 = scalar_lea.vmem [#allocation19], %s448
          %s450 = smul.u32 12, %s28
          %s452 = ssub.s32 192, 192
          %453 = vsyncadd %s446, %s452
          %s454 = smul.addr %s450, 16
          %s455 = scalar_lea.hbm %s10, %s454
          %s457 = sshll.u32 %s449, 4
          %s458 = int_to_ptr.vmem [resolvable:$true] %s457
          %460 = dma.hbm_to_vmem [thread:$0]  %s455, 192, %s458, %s446
        $region60: #{tpu_custom_call.1} parent=51 // pred_fallthru
          _
      $region52: #{tpu_custom_call.1} parent=5 // pred_fallthru
        _
      %p461 = scmp.le.s32.totalorder 1, %s28
      %p462 = scmp.lt.s32.totalorder %s28, 9
      %p463 = pnand %p461, %p462
      %p464 = pneg %p463
      // Predicated region
      $region61: #{tpu_custom_call.1} parent=5 // pred_check
        _
      $region62: #{tpu_custom_call.1} parent=5 // pred_check_branch
        %466 = sbr.rel (%p463) target = $region64
      $region63: #{tpu_custom_call.1} parent=5 // pred_region
        %s467 = ssub.s32 %s28, 1
        // Predicated region
        $region65: #{tpu_custom_call.1} parent=63 // pred_check
          %p468 = pneg %p49
        $region66: #{tpu_custom_call.1} parent=63 // pred_check_branch
          %470 = sbr.rel (%p468) target = $region68
        $region67: #{tpu_custom_call.1} parent=63 // pred_region
          %471 = dma.done [#allocation3], 128
        $region68: #{tpu_custom_call.1} parent=63 // pred_fallthru
          _
        // Predicated region
        $region69: #{tpu_custom_call.1} parent=63 // pred_check
          %p472 = pneg %p70
        $region70: #{tpu_custom_call.1} parent=63 // pred_check_branch
          %474 = sbr.rel (%p472) target = $region72
        $region71: #{tpu_custom_call.1} parent=63 // pred_region
          %475 = dma.done [#allocation6], 2048
        $region72: #{tpu_custom_call.1} parent=63 // pred_fallthru
          _
        // Predicated region
        $region73: #{tpu_custom_call.1} parent=63 // pred_check
          %p476 = pneg %p91
        $region74: #{tpu_custom_call.1} parent=63 // pred_check_branch
          %478 = sbr.rel (%p476) target = $region76
        $region75: #{tpu_custom_call.1} parent=63 // pred_region
          %479 = dma.done [#allocation6], 16
        $region76: #{tpu_custom_call.1} parent=63 // pred_fallthru
          _
        // Predicated region
        $region77: #{tpu_custom_call.1} parent=63 // pred_check
          %p480 = pneg %p112
        $region78: #{tpu_custom_call.1} parent=63 // pred_check_branch
          %482 = sbr.rel (%p480) target = $region80
        $region79: #{tpu_custom_call.1} parent=63 // pred_region
          %483 = dma.done [#allocation9], 2048
        $region80: #{tpu_custom_call.1} parent=63 // pred_fallthru
          _
        // Predicated region
        $region81: #{tpu_custom_call.1} parent=63 // pred_check
          %p484 = pneg %p133
        $region82: #{tpu_custom_call.1} parent=63 // pred_check_branch
          %486 = sbr.rel (%p484) target = $region84
        $region83: #{tpu_custom_call.1} parent=63 // pred_region
          %487 = dma.done [#allocation9], 32
        $region84: #{tpu_custom_call.1} parent=63 // pred_fallthru
          _
        // Predicated region
        $region85: #{tpu_custom_call.1} parent=63 // pred_check
          %p488 = pneg %p154
        $region86: #{tpu_custom_call.1} parent=63 // pred_check_branch
          %490 = sbr.rel (%p488) target = $region88
        $region87: #{tpu_custom_call.1} parent=63 // pred_region
          %491 = dma.done [#allocation12], 8192
        $region88: #{tpu_custom_call.1} parent=63 // pred_fallthru
          _
        // Predicated region
        $region89: #{tpu_custom_call.1} parent=63 // pred_check
          %p492 = pneg %p175
        $region90: #{tpu_custom_call.1} parent=63 // pred_check_branch
          %494 = sbr.rel (%p492) target = $region92
        $region91: #{tpu_custom_call.1} parent=63 // pred_region
          %495 = dma.done [#allocation12], 64
        $region92: #{tpu_custom_call.1} parent=63 // pred_fallthru
          _
        // Predicated region
        $region93: #{tpu_custom_call.1} parent=63 // pred_check
          %p496 = pneg %p196
        $region94: #{tpu_custom_call.1} parent=63 // pred_check_branch
          %498 = sbr.rel (%p496) target = $region96
        $region95: #{tpu_custom_call.1} parent=63 // pred_region
          %499 = dma.done [#allocation15], 32768
        $region96: #{tpu_custom_call.1} parent=63 // pred_fallthru
          _
        // Predicated region
        $region97: #{tpu_custom_call.1} parent=63 // pred_check
          %p500 = pneg %p217
        $region98: #{tpu_custom_call.1} parent=63 // pred_check_branch
          %502 = sbr.rel (%p500) target = $region100
        $region99: #{tpu_custom_call.1} parent=63 // pred_region
          %503 = dma.done [#allocation15], 128
        $region100: #{tpu_custom_call.1} parent=63 // pred_fallthru
          _
        %s504 = sand.u32 %s33, 1
        %s505 = scalar_lea.sflag [#allocation18], %s504
        %s506 = sand.u32 %s230, 1
        %s507 = smul.addr %s506, 6144
        %s508 = scalar_lea.vmem [#allocation17], %s507
        // Predicated region
        $region101: #{tpu_custom_call.1} parent=63 // pred_check
          %p509 = pneg %p243
        $region102: #{tpu_custom_call.1} parent=63 // pred_check_branch
          %511 = sbr.rel (%p509) target = $region104
        $region103: #{tpu_custom_call.1} parent=63 // pred_region
          %512 = dma.done %s505, 98304
        $region104: #{tpu_custom_call.1} parent=63 // pred_fallthru
          _
        %s513 = sand.u32 %s33, 1
        %s514 = scalar_lea.sflag [#allocation18], %s513
        %s515 = sand.u32 %s256, 1
        %s516 = smul.addr %s515, 12
        %s517 = scalar_lea.vmem [#allocation19], %s516
        // Predicated region
        $region105: #{tpu_custom_call.1} parent=63 // pred_check
          %p518 = pneg %p269
        $region106: #{tpu_custom_call.1} parent=63 // pred_check_branch
          %520 = sbr.rel (%p518) target = $region108
        $region107: #{tpu_custom_call.1} parent=63 // pred_region
          %521 = dma.done %s514, 192
        $region108: #{tpu_custom_call.1} parent=63 // pred_fallthru
          _
        %p522 = pneg %p49
        %p523 = pneg %p46
        %p524 = pneg %p70
        %p525 = pneg %p67
        %p526 = pneg %p91
        %p527 = pneg %p88
        %p528 = pneg %p112
        %p529 = pneg %p109
        %p530 = pneg %p133
        %p531 = pneg %p130
        %p532 = pneg %p154
        %p533 = pneg %p151
        %p534 = pneg %p175
        %p535 = pneg %p172
        %p536 = pneg %p196
        %p537 = pneg %p193
        %p538 = pneg %p217
        %p539 = pneg %p214
        %s540 = sand.u32 %s33, 1
        %s541 = scalar_lea.sflag [#allocation18], %s540
        %s542 = sand.u32 %s230, 1
        %s543 = smul.addr %s542, 6144
        %s544 = scalar_lea.vmem [#allocation17], %s543
        %p545 = pneg %p243
        %p546 = pneg %p240
        %s547 = sand.u32 %s33, 1
        %s548 = scalar_lea.sflag [#allocation18], %s547
        %s549 = sand.u32 %s256, 1
        %s550 = smul.addr %s549, 12
        %s551 = scalar_lea.vmem [#allocation19], %s550
        %p552 = pneg %p269
        %p553 = pneg %p266
        %p554 = pneg %p295
        %p555 = pneg %p292
        %s556 = sand.u32 %s282, 1
        %s557 = scalar_lea.sflag [#allocation4], %s556
        %s558 = sand.u32 %s282, 1
        %s559 = smul.addr %s558, 96
        %s560 = scalar_lea.vmem [#allocation20], %s559
        %s561 = smul.u32 12, %s33
        %s562 = smul.u32 12, %s33
        %v564 = vld [vmem:[#allocation2] sm:$0xff]
        %v565 = vld [vmem:[#allocation5] sm:$0xff]
        %v566 = vld [vmem:[#allocation5 + $0x8] sm:$0xff]
        %v567 = vld [vmem:[#allocation5 + $0x10] sm:$0xff]
        %v568 = vld [vmem:[#allocation5 + $0x18] sm:$0xff]
        %v569 = vld [vmem:[#allocation5 + $0x20] sm:$0xff]
        %v570 = vld [vmem:[#allocation5 + $0x28] sm:$0xff]
        %v571 = vld [vmem:[#allocation5 + $0x30] sm:$0xff]
        %v572 = vld [vmem:[#allocation5 + $0x38] sm:$0xff]
        %v573 = vld [vmem:[#allocation5 + $0x40] sm:$0xff]
        %v574 = vld [vmem:[#allocation5 + $0x48] sm:$0xff]
        %v575 = vld [vmem:[#allocation5 + $0x50] sm:$0xff]
        %v576 = vld [vmem:[#allocation5 + $0x58] sm:$0xff]
        %v577 = vld [vmem:[#allocation5 + $0x60] sm:$0xff]
        %v578 = vld [vmem:[#allocation5 + $0x68] sm:$0xff]
        %v579 = vld [vmem:[#allocation5 + $0x70] sm:$0xff]
        %v580 = vld [vmem:[#allocation5 + $0x78] sm:$0xff]
        %v581 = vld [vmem:[#allocation7] sm:$0x1]
        %v583 = vlaneseq
        %v584 = vshrl.u32 %v583, 7
        %v585 = vsub.s32 0, %v584
        %v586 = vrot.slane %v581, %v585
        %588 = vmatprep.subr.mxu0 0.0
        %589 = vmatpush1.msra.mxu0 %v565
        %590 = vmatprep.subr.mxu0 0.0
        %591 = vmatpush1.msra.mxu0 %v566
        %592 = vmatprep.subr.mxu0 0.0
        %593 = vmatpush1.msra.mxu0 %v567
        %594 = vmatprep.subr.mxu0 0.0
        %595 = vmatpush1.msra.mxu0 %v568
        %596 = vmatprep.subr.mxu0 0.0
        %597 = vmatpush1.msra.mxu0 %v569
        %598 = vmatprep.subr.mxu0 0.0
        %599 = vmatpush1.msra.mxu0 %v570
        %600 = vmatprep.subr.mxu0 0.0
        %601 = vmatpush1.msra.mxu0 %v571
        %602 = vmatprep.subr.mxu0 0.0
        %603 = vmatpush1.msra.mxu0 %v572
        %604 = vmatprep.subr.mxu0 0.0
        %605 = vmatpush1.msra.mxu0 %v573
        %606 = vmatprep.subr.mxu0 0.0
        %607 = vmatpush1.msra.mxu0 %v574
        %608 = vmatprep.subr.mxu0 0.0
        %609 = vmatpush1.msra.mxu0 %v575
        %610 = vmatprep.subr.mxu0 0.0
        %611 = vmatpush1.msra.mxu0 %v576
        %612 = vmatprep.subr.mxu0 0.0
        %613 = vmatpush1.msra.mxu0 %v577
        %614 = vmatprep.subr.mxu0 0.0
        %615 = vmatpush1.msra.mxu0 %v578
        %616 = vmatprep.subr.mxu0 0.0
        %617 = vmatpush1.msra.mxu0 %v579
        %618 = vmatprep.subr.mxu0 0.0
        %619 = vmatpush1.msra.mxu0 %v580
        %620 = vmatprep.subr.mxu0 0.0
        %621 = vmatpush1.msra.mxu0 0.0
        %622 = vmatprep.subr.mxu0 0.0
        %623 = vmatpush1.msra.mxu0 0.0
        %624 = vmatprep.subr.mxu0 0.0
        %625 = vmatpush1.msra.mxu0 0.0
        %626 = vmatprep.subr.mxu0 0.0
        %627 = vmatpush1.msra.mxu0 0.0
        %628 = vmatprep.subr.mxu0 0.0
        %629 = vmatpush1.msra.mxu0 0.0
        %630 = vmatprep.subr.mxu0 0.0
        %631 = vmatpush1.msra.mxu0 0.0
        %632 = vmatprep.subr.mxu0 0.0
        %633 = vmatpush1.msra.mxu0 0.0
        %634 = vmatprep.subr.mxu0 0.0
        %635 = vmatpush1.msra.mxu0 0.0
        %636 = vmatprep.subr.mxu0 0.0
        %637 = vmatpush1.msra.mxu0 0.0
        %638 = vmatprep.subr.mxu0 0.0
        %639 = vmatpush1.msra.mxu0 0.0
        %640 = vmatprep.subr.mxu0 0.0
        %641 = vmatpush1.msra.mxu0 0.0
        %642 = vmatprep.subr.mxu0 0.0
        %643 = vmatpush1.msra.mxu0 0.0
        %644 = vmatprep.subr.mxu0 0.0
        %645 = vmatpush1.msra.mxu0 0.0
        %646 = vmatprep.subr.mxu0 0.0
        %647 = vmatpush1.msra.mxu0 0.0
        %648 = vmatprep.subr.mxu0 0.0
        %649 = vmatpush1.msra.mxu0 0.0
        %650 = vmatprep.subr.mxu0 0.0
        %651 = vmatpush1.msra.mxu0 0.0
        %652 = vmatprep.mubr.f32.mxu0 0.0
        %653 = vmatmul.mubr.f32.gmra.mrb[0].mxu0 %v564
        %v654 = vpop.f32.mrb[0].mxu0
        %v655 = vadd.f32 %v586, %v654
        %v656 = vpop.f32.mrb[0].mxu0
        %657 = vdwg.mxu0
        %vm658 = vcmp.gt.f32.partialorder %v655, 0.0
        %v659 = vmul.f32 %v655, 0.2
        %v660 = vsel %vm658, %v655, %v659
        %v661 = vpack.c.bf16 %v660, %v660
        %v662 = vld [vmem:[#allocation8] sm:$0xff]
        %v663 = vld [vmem:[#allocation8 + $0x8] sm:$0xff]
        %v664 = vld [vmem:[#allocation8 + $0x10] sm:$0xff]
        %v665 = vld [vmem:[#allocation8 + $0x18] sm:$0xff]
        %v666 = vld [vmem:[#allocation8 + $0x20] sm:$0xff]
        %v667 = vld [vmem:[#allocation8 + $0x28] sm:$0xff]
        %v668 = vld [vmem:[#allocation8 + $0x30] sm:$0xff]
        %v669 = vld [vmem:[#allocation8 + $0x38] sm:$0xff]
        %v670 = vld [vmem:[#allocation8 + $0x40] sm:$0xff]
        %v671 = vld [vmem:[#allocation8 + $0x48] sm:$0xff]
        %v672 = vld [vmem:[#allocation8 + $0x50] sm:$0xff]
        %v673 = vld [vmem:[#allocation8 + $0x58] sm:$0xff]
        %v674 = vld [vmem:[#allocation8 + $0x60] sm:$0xff]
        %v675 = vld [vmem:[#allocation8 + $0x68] sm:$0xff]
        %v676 = vld [vmem:[#allocation8 + $0x70] sm:$0xff]
        %v677 = vld [vmem:[#allocation8 + $0x78] sm:$0xff]
        %v678 = vld [vmem:[#allocation10] sm:$0x3]
        %v680 = vlaneseq
        %v681 = vshrl.u32 %v680, 7
        %v682 = vsub.s32 0, %v681
        %v683 = vrot.slane %v678, %v682
        %v684 = vlaneseq
        %v685 = vshrl.u32 %v684, 7
        %v686 = vsub.s32 1, %v685
        %v687 = vrot.slane %v678, %v686
        %v706 = vunpack.c.l.b16 %v662
        %v707 = vunpack.c.h.b16 %v662
        %v708 = vunpack.c.l.b16 %v663
        %v709 = vunpack.c.h.b16 %v663
        %v710 = vunpack.c.l.b16 %v664
        %v711 = vunpack.c.h.b16 %v664
        %v712 = vunpack.c.l.b16 %v665
        %v713 = vunpack.c.h.b16 %v665
        %v714 = vunpack.c.l.b16 %v666
        %v715 = vunpack.c.h.b16 %v666
        %v716 = vunpack.c.l.b16 %v667
        %v717 = vunpack.c.h.b16 %v667
        %v718 = vunpack.c.l.b16 %v668
        %v719 = vunpack.c.h.b16 %v668
        %v720 = vunpack.c.l.b16 %v669
        %v721 = vunpack.c.h.b16 %v669
        %v722 = vunpack.c.l.b16 %v670
        %v723 = vunpack.c.h.b16 %v670
        %v724 = vunpack.c.l.b16 %v671
        %v725 = vunpack.c.h.b16 %v671
        %v726 = vunpack.c.l.b16 %v672
        %v727 = vunpack.c.h.b16 %v672
        %v728 = vunpack.c.l.b16 %v673
        %v729 = vunpack.c.h.b16 %v673
        %v730 = vunpack.c.l.b16 %v674
        %v731 = vunpack.c.h.b16 %v674
        %v732 = vunpack.c.l.b16 %v675
        %v733 = vunpack.c.h.b16 %v675
        %v734 = vunpack.c.l.b16 %v676
        %v735 = vunpack.c.h.b16 %v676
        %v736 = vunpack.c.l.b16 %v677
        %v737 = vunpack.c.h.b16 %v677
        %v738 = vpack.c.b16 %v708, %v706
        %v739 = vpack.c.b16 %v709, %v707
        %v740 = vpack.c.b16 %v712, %v710
        %v741 = vpack.c.b16 %v713, %v711
        %v742 = vpack.c.b16 %v716, %v714
        %v743 = vpack.c.b16 %v717, %v715
        %v744 = vpack.c.b16 %v720, %v718
        %v745 = vpack.c.b16 %v721, %v719
        %v746 = vpack.c.b16 %v724, %v722
        %v747 = vpack.c.b16 %v725, %v723
        %v748 = vpack.c.b16 %v728, %v726
        %v749 = vpack.c.b16 %v729, %v727
        %v750 = vpack.c.b16 %v732, %v730
        %v751 = vpack.c.b16 %v733, %v731
        %v752 = vpack.c.b16 %v736, %v734
        %v753 = vpack.c.b16 %v737, %v735
        %770 = vmatprep.subr.bf16.mxu0 %v739
        %771 = vmatpush1.bf16.msra.mxu0 %v738
        %772 = vmatprep.subr.bf16.mxu0 %v741
        %773 = vmatpush1.bf16.msra.mxu0 %v740
        %774 = vmatprep.subr.bf16.mxu0 %v743
        %775 = vmatpush1.bf16.msra.mxu0 %v742
        %776 = vmatprep.subr.bf16.mxu0 %v745
        %777 = vmatpush1.bf16.msra.mxu0 %v744
        %778 = vmatprep.subr.bf16.mxu0 %v747
        %779 = vmatpush1.bf16.msra.mxu0 %v746
        %780 = vmatprep.subr.bf16.mxu0 %v749
        %781 = vmatpush1.bf16.msra.mxu0 %v748
        %782 = vmatprep.subr.bf16.mxu0 %v751
        %783 = vmatpush1.bf16.msra.mxu0 %v750
        %784 = vmatprep.subr.bf16.mxu0 %v753
        %785 = vmatpush1.bf16.msra.mxu0 %v752
        %786 = vmatprep.subr.bf16.mxu0 0
        %787 = vmatpush1.bf16.msra.mxu0 0
        %788 = vmatprep.subr.bf16.mxu0 0
        %789 = vmatpush1.bf16.msra.mxu0 0
        %790 = vmatprep.subr.bf16.mxu0 0
        %791 = vmatpush1.bf16.msra.mxu0 0
        %792 = vmatprep.subr.bf16.mxu0 0
        %793 = vmatpush1.bf16.msra.mxu0 0
        %794 = vmatprep.subr.bf16.mxu0 0
        %795 = vmatpush1.bf16.msra.mxu0 0
        %796 = vmatprep.subr.bf16.mxu0 0
        %797 = vmatpush1.bf16.msra.mxu0 0
        %798 = vmatprep.subr.bf16.mxu0 0
        %799 = vmatpush1.bf16.msra.mxu0 0
        %800 = vmatprep.subr.bf16.mxu0 0
        %801 = vmatpush1.bf16.msra.mxu0 0
        %802 = vmatprep.mubr.bf16.mxu0 0
        %803 = vmatmul.mubr.bf16.gmra.mrb[0].mxu0 %v661
        %v804 = vpop.f32.mrb[0].mxu0
        %v805 = vadd.f32 %v683, %v804
        %v806 = vpop.f32.mrb[0].mxu0
        %v807 = vadd.f32 %v687, %v806
        %v808 = vpop.f32.mrb[0].mxu0
        %v809 = vpop.f32.mrb[0].mxu0
        %810 = vdwg.mxu0
        %v811 = vrot.slane %v805, 4
        %v812 = vadd.f32 %v805, %v811
        %v813 = vrot.slane %v812, 2
        %v814 = vadd.f32 %v812, %v813
        %v815 = vrot.slane %v814, 1
        %v816 = vadd.f32 %v814, %v815
        %v817 = vrot.slane %v807, 4
        %v818 = vadd.f32 %v807, %v817
        %v819 = vrot.slane %v818, 2
        %v820 = vadd.f32 %v818, %v819
        %v821 = vrot.slane %v820, 1
        %v822 = vadd.f32 %v820, %v821
        %v823 = vrcp.pop 8.0
        %v824 = vmul.f32 %v816, %v823
        %v825 = vmul.f32 %v822, %v823
        %v826 = vmul.f32 %v805, %v805
        %v827 = vmul.f32 %v807, %v807
        %v828 = vrot.slane %v826, 4
        %v829 = vadd.f32 %v826, %v828
        %v830 = vrot.slane %v829, 2
        %v831 = vadd.f32 %v829, %v830
        %v832 = vrot.slane %v831, 1
        %v833 = vadd.f32 %v831, %v832
        %v834 = vrot.slane %v827, 4
        %v835 = vadd.f32 %v827, %v834
        %v836 = vrot.slane %v835, 2
        %v837 = vadd.f32 %v835, %v836
        %v838 = vrot.slane %v837, 1
        %v839 = vadd.f32 %v837, %v838
        %v840 = vmul.f32 %v833, %v823
        %v841 = vmul.f32 %v839, %v823
        %v842 = vsub.f32 %v805, %v824
        %v843 = vsub.f32 %v807, %v825
        %v844 = vmul.f32 %v824, %v824
        %v845 = vmul.f32 %v825, %v825
        %v846 = vsub.f32 %v840, %v844
        %v847 = vsub.f32 %v841, %v845
        %v848 = vadd.f32 %v846, 0.8
        %v849 = vadd.f32 %v847, 0.8
        %v850 = vrsqrt.pop %v848
        %v851 = vrsqrt.pop %v849
        %v852 = vmul.f32 %v842, %v850
        %v853 = vmul.f32 %v843, %v851
        %vm854 = vcmp.gt.f32.partialorder %v852, 0.0
        %vm855 = vcmp.gt.f32.partialorder %v853, 0.0
        %v856 = vmul.f32 %v852, 0.2
        %v857 = vmul.f32 %v853, 0.2
        %v858 = vsel %vm854, %v852, %v856
        %v859 = vsel %vm855, %v853, %v857
        %v860 = vpack.c.bf16 %v858, %v858
        %v861 = vpack.c.bf16 %v859, %v859
        %v862 = vld [vmem:[#allocation11] sm:$0xff]
        %v863 = vld [vmem:[#allocation11 + $0x8] sm:$0xff]
        %v864 = vld [vmem:[#allocation11 + $0x10] sm:$0xff]
        %v865 = vld [vmem:[#allocation11 + $0x18] sm:$0xff]
        %v866 = vld [vmem:[#allocation11 + $0x20] sm:$0xff]
        %v867 = vld [vmem:[#allocation11 + $0x28] sm:$0xff]
        %v868 = vld [vmem:[#allocation11 + $0x30] sm:$0xff]
        %v869 = vld [vmem:[#allocation11 + $0x38] sm:$0xff]
        %v870 = vld [vmem:[#allocation11 + $0x40] sm:$0xff]
        %v871 = vld [vmem:[#allocation11 + $0x48] sm:$0xff]
        %v872 = vld [vmem:[#allocation11 + $0x50] sm:$0xff]
        %v873 = vld [vmem:[#allocation11 + $0x58] sm:$0xff]
        %v874 = vld [vmem:[#allocation11 + $0x60] sm:$0xff]
        %v875 = vld [vmem:[#allocation11 + $0x68] sm:$0xff]
        %v876 = vld [vmem:[#allocation11 + $0x70] sm:$0xff]
        %v877 = vld [vmem:[#allocation11 + $0x78] sm:$0xff]
        %v878 = vld [vmem:[#allocation11 + $0x80] sm:$0xff]
        %v879 = vld [vmem:[#allocation11 + $0x88] sm:$0xff]
        %v880 = vld [vmem:[#allocation11 + $0x90] sm:$0xff]
        %v881 = vld [vmem:[#allocation11 + $0x98] sm:$0xff]
        %v882 = vld [vmem:[#allocation11 + $0xa0] sm:$0xff]
        %v883 = vld [vmem:[#allocation11 + $0xa8] sm:$0xff]
        %v884 = vld [vmem:[#allocation11 + $0xb0] sm:$0xff]
        %v885 = vld [vmem:[#allocation11 + $0xb8] sm:$0xff]
        %v886 = vld [vmem:[#allocation11 + $0xc0] sm:$0xff]
        %v887 = vld [vmem:[#allocation11 + $0xc8] sm:$0xff]
        %v888 = vld [vmem:[#allocation11 + $0xd0] sm:$0xff]
        %v889 = vld [vmem:[#allocation11 + $0xd8] sm:$0xff]
        %v890 = vld [vmem:[#allocation11 + $0xe0] sm:$0xff]
        %v891 = vld [vmem:[#allocation11 + $0xe8] sm:$0xff]
        %v892 = vld [vmem:[#allocation11 + $0xf0] sm:$0xff]
        %v893 = vld [vmem:[#allocation11 + $0xf8] sm:$0xff]
        %v894 = vld [vmem:[#allocation11 + $0x100] sm:$0xff]
        %v895 = vld [vmem:[#allocation11 + $0x108] sm:$0xff]
        %v896 = vld [vmem:[#allocation11 + $0x110] sm:$0xff]
        %v897 = vld [vmem:[#allocation11 + $0x118] sm:$0xff]
        %v898 = vld [vmem:[#allocation11 + $0x120] sm:$0xff]
        %v899 = vld [vmem:[#allocation11 + $0x128] sm:$0xff]
        %v900 = vld [vmem:[#allocation11 + $0x130] sm:$0xff]
        %v901 = vld [vmem:[#allocation11 + $0x138] sm:$0xff]
        %v902 = vld [vmem:[#allocation11 + $0x140] sm:$0xff]
        %v903 = vld [vmem:[#allocation11 + $0x148] sm:$0xff]
        %v904 = vld [vmem:[#allocation11 + $0x150] sm:$0xff]
        %v905 = vld [vmem:[#allocation11 + $0x158] sm:$0xff]
        %v906 = vld [vmem:[#allocation11 + $0x160] sm:$0xff]
        %v907 = vld [vmem:[#allocation11 + $0x168] sm:$0xff]
        %v908 = vld [vmem:[#allocation11 + $0x170] sm:$0xff]
        %v909 = vld [vmem:[#allocation11 + $0x178] sm:$0xff]
        %v910 = vld [vmem:[#allocation11 + $0x180] sm:$0xff]
        %v911 = vld [vmem:[#allocation11 + $0x188] sm:$0xff]
        %v912 = vld [vmem:[#allocation11 + $0x190] sm:$0xff]
        %v913 = vld [vmem:[#allocation11 + $0x198] sm:$0xff]
        %v914 = vld [vmem:[#allocation11 + $0x1a0] sm:$0xff]
        %v915 = vld [vmem:[#allocation11 + $0x1a8] sm:$0xff]
        %v916 = vld [vmem:[#allocation11 + $0x1b0] sm:$0xff]
        %v917 = vld [vmem:[#allocation11 + $0x1b8] sm:$0xff]
        %v918 = vld [vmem:[#allocation11 + $0x1c0] sm:$0xff]
        %v919 = vld [vmem:[#allocation11 + $0x1c8] sm:$0xff]
        %v920 = vld [vmem:[#allocation11 + $0x1d0] sm:$0xff]
        %v921 = vld [vmem:[#allocation11 + $0x1d8] sm:$0xff]
        %v922 = vld [vmem:[#allocation11 + $0x1e0] sm:$0xff]
        %v923 = vld [vmem:[#allocation11 + $0x1e8] sm:$0xff]
        %v924 = vld [vmem:[#allocation11 + $0x1f0] sm:$0xff]
        %v925 = vld [vmem:[#allocation11 + $0x1f8] sm:$0xff]
        %v926 = vld [vmem:[#allocation13] sm:$0xf]
        %v928 = vlaneseq
        %v929 = vshrl.u32 %v928, 7
        %v930 = vsub.s32 0, %v929
        %v931 = vrot.slane %v926, %v930
        %v932 = vlaneseq
        %v933 = vshrl.u32 %v932, 7
        %v934 = vsub.s32 1, %v933
        %v935 = vrot.slane %v926, %v934
        %v936 = vlaneseq
        %v937 = vshrl.u32 %v936, 7
        %v938 = vsub.s32 2, %v937
        %v939 = vrot.slane %v926, %v938
        %v940 = vlaneseq
        %v941 = vshrl.u32 %v940, 7
        %v942 = vsub.s32 3, %v941
        %v943 = vrot.slane %v926, %v942
        %v1012 = vunpack.c.l.b16 %v862
        %v1013 = vunpack.c.h.b16 %v862
        %v1014 = vunpack.c.l.b16 %v863
        %v1015 = vunpack.c.h.b16 %v863
        %v1016 = vunpack.c.l.b16 %v864
        %v1017 = vunpack.c.h.b16 %v864
        %v1018 = vunpack.c.l.b16 %v865
        %v1019 = vunpack.c.h.b16 %v865
        %v1020 = vunpack.c.l.b16 %v866
        %v1021 = vunpack.c.h.b16 %v866
        %v1022 = vunpack.c.l.b16 %v867
        %v1023 = vunpack.c.h.b16 %v867
        %v1024 = vunpack.c.l.b16 %v868
        %v1025 = vunpack.c.h.b16 %v868
        %v1026 = vunpack.c.l.b16 %v869
        %v1027 = vunpack.c.h.b16 %v869
        %v1028 = vunpack.c.l.b16 %v870
        %v1029 = vunpack.c.h.b16 %v870
        %v1030 = vunpack.c.l.b16 %v871
        %v1031 = vunpack.c.h.b16 %v871
        %v1032 = vunpack.c.l.b16 %v872
        %v1033 = vunpack.c.h.b16 %v872
        %v1034 = vunpack.c.l.b16 %v873
        %v1035 = vunpack.c.h.b16 %v873
        %v1036 = vunpack.c.l.b16 %v874
        %v1037 = vunpack.c.h.b16 %v874
        %v1038 = vunpack.c.l.b16 %v875
        %v1039 = vunpack.c.h.b16 %v875
        %v1040 = vunpack.c.l.b16 %v876
        %v1041 = vunpack.c.h.b16 %v876
        %v1042 = vunpack.c.l.b16 %v877
        %v1043 = vunpack.c.h.b16 %v877
        %v1044 = vunpack.c.l.b16 %v878
        %v1045 = vunpack.c.h.b16 %v878
        %v1046 = vunpack.c.l.b16 %v879
        %v1047 = vunpack.c.h.b16 %v879
        %v1048 = vunpack.c.l.b16 %v880
        %v1049 = vunpack.c.h.b16 %v880
        %v1050 = vunpack.c.l.b16 %v881
        %v1051 = vunpack.c.h.b16 %v881
        %v1052 = vunpack.c.l.b16 %v882
        %v1053 = vunpack.c.h.b16 %v882
        %v1054 = vunpack.c.l.b16 %v883
        %v1055 = vunpack.c.h.b16 %v883
        %v1056 = vunpack.c.l.b16 %v884
        %v1057 = vunpack.c.h.b16 %v884
        %v1058 = vunpack.c.l.b16 %v885
        %v1059 = vunpack.c.h.b16 %v885
        %v1060 = vunpack.c.l.b16 %v886
        %v1061 = vunpack.c.h.b16 %v886
        %v1062 = vunpack.c.l.b16 %v887
        %v1063 = vunpack.c.h.b16 %v887
        %v1064 = vunpack.c.l.b16 %v888
        %v1065 = vunpack.c.h.b16 %v888
        %v1066 = vunpack.c.l.b16 %v889
        %v1067 = vunpack.c.h.b16 %v889
        %v1068 = vunpack.c.l.b16 %v890
        %v1069 = vunpack.c.h.b16 %v890
        %v1070 = vunpack.c.l.b16 %v891
        %v1071 = vunpack.c.h.b16 %v891
        %v1072 = vunpack.c.l.b16 %v892
        %v1073 = vunpack.c.h.b16 %v892
        %v1074 = vunpack.c.l.b16 %v893
        %v1075 = vunpack.c.h.b16 %v893
        %v1076 = vunpack.c.l.b16 %v894
        %v1077 = vunpack.c.h.b16 %v894
        %v1078 = vunpack.c.l.b16 %v895
        %v1079 = vunpack.c.h.b16 %v895
        %v1080 = vunpack.c.l.b16 %v896
        %v1081 = vunpack.c.h.b16 %v896
        %v1082 = vunpack.c.l.b16 %v897
        %v1083 = vunpack.c.h.b16 %v897
        %v1084 = vunpack.c.l.b16 %v898
        %v1085 = vunpack.c.h.b16 %v898
        %v1086 = vunpack.c.l.b16 %v899
        %v1087 = vunpack.c.h.b16 %v899
        %v1088 = vunpack.c.l.b16 %v900
        %v1089 = vunpack.c.h.b16 %v900
        %v1090 = vunpack.c.l.b16 %v901
        %v1091 = vunpack.c.h.b16 %v901
        %v1092 = vunpack.c.l.b16 %v902
        %v1093 = vunpack.c.h.b16 %v902
        %v1094 = vunpack.c.l.b16 %v903
        %v1095 = vunpack.c.h.b16 %v903
        %v1096 = vunpack.c.l.b16 %v904
        %v1097 = vunpack.c.h.b16 %v904
        %v1098 = vunpack.c.l.b16 %v905
        %v1099 = vunpack.c.h.b16 %v905
        %v1100 = vunpack.c.l.b16 %v906
        %v1101 = vunpack.c.h.b16 %v906
        %v1102 = vunpack.c.l.b16 %v907
        %v1103 = vunpack.c.h.b16 %v907
        %v1104 = vunpack.c.l.b16 %v908
        %v1105 = vunpack.c.h.b16 %v908
        %v1106 = vunpack.c.l.b16 %v909
        %v1107 = vunpack.c.h.b16 %v909
        %v1108 = vunpack.c.l.b16 %v910
        %v1109 = vunpack.c.h.b16 %v910
        %v1110 = vunpack.c.l.b16 %v911
        %v1111 = vunpack.c.h.b16 %v911
        %v1112 = vunpack.c.l.b16 %v912
        %v1113 = vunpack.c.h.b16 %v912
        %v1114 = vunpack.c.l.b16 %v913
        %v1115 = vunpack.c.h.b16 %v913
        %v1116 = vunpack.c.l.b16 %v914
        %v1117 = vunpack.c.h.b16 %v914
        %v1118 = vunpack.c.l.b16 %v915
        %v1119 = vunpack.c.h.b16 %v915
        %v1120 = vunpack.c.l.b16 %v916
        %v1121 = vunpack.c.h.b16 %v916
        %v1122 = vunpack.c.l.b16 %v917
        %v1123 = vunpack.c.h.b16 %v917
        %v1124 = vunpack.c.l.b16 %v918
        %v1125 = vunpack.c.h.b16 %v918
        %v1126 = vunpack.c.l.b16 %v919
        %v1127 = vunpack.c.h.b16 %v919
        %v1128 = vunpack.c.l.b16 %v920
        %v1129 = vunpack.c.h.b16 %v920
        %v1130 = vunpack.c.l.b16 %v921
        %v1131 = vunpack.c.h.b16 %v921
        %v1132 = vunpack.c.l.b16 %v922
        %v1133 = vunpack.c.h.b16 %v922
        %v1134 = vunpack.c.l.b16 %v923
        %v1135 = vunpack.c.h.b16 %v923
        %v1136 = vunpack.c.l.b16 %v924
        %v1137 = vunpack.c.h.b16 %v924
        %v1138 = vunpack.c.l.b16 %v925
        %v1139 = vunpack.c.h.b16 %v925
        %v1140 = vpack.c.b16 %v1016, %v1012
        %v1141 = vpack.c.b16 %v1017, %v1013
        %v1142 = vpack.c.b16 %v1018, %v1014
        %v1143 = vpack.c.b16 %v1019, %v1015
        %v1144 = vpack.c.b16 %v1024, %v1020
        %v1145 = vpack.c.b16 %v1025, %v1021
        %v1146 = vpack.c.b16 %v1026, %v1022
        %v1147 = vpack.c.b16 %v1027, %v1023
        %v1148 = vpack.c.b16 %v1032, %v1028
        %v1149 = vpack.c.b16 %v1033, %v1029
        %v1150 = vpack.c.b16 %v1034, %v1030
        %v1151 = vpack.c.b16 %v1035, %v1031
        %v1152 = vpack.c.b16 %v1040, %v1036
        %v1153 = vpack.c.b16 %v1041, %v1037
        %v1154 = vpack.c.b16 %v1042, %v1038
        %v1155 = vpack.c.b16 %v1043, %v1039
        %v1156 = vpack.c.b16 %v1048, %v1044
        %v1157 = vpack.c.b16 %v1049, %v1045
        %v1158 = vpack.c.b16 %v1050, %v1046
        %v1159 = vpack.c.b16 %v1051, %v1047
        %v1160 = vpack.c.b16 %v1056, %v1052
        %v1161 = vpack.c.b16 %v1057, %v1053
        %v1162 = vpack.c.b16 %v1058, %v1054
        %v1163 = vpack.c.b16 %v1059, %v1055
        %v1164 = vpack.c.b16 %v1064, %v1060
        %v1165 = vpack.c.b16 %v1065, %v1061
        %v1166 = vpack.c.b16 %v1066, %v1062
        %v1167 = vpack.c.b16 %v1067, %v1063
        %v1168 = vpack.c.b16 %v1072, %v1068
        %v1169 = vpack.c.b16 %v1073, %v1069
        %v1170 = vpack.c.b16 %v1074, %v1070
        %v1171 = vpack.c.b16 %v1075, %v1071
        %v1172 = vpack.c.b16 %v1080, %v1076
        %v1173 = vpack.c.b16 %v1081, %v1077
        %v1174 = vpack.c.b16 %v1082, %v1078
        %v1175 = vpack.c.b16 %v1083, %v1079
        %v1176 = vpack.c.b16 %v1088, %v1084
        %v1177 = vpack.c.b16 %v1089, %v1085
        %v1178 = vpack.c.b16 %v1090, %v1086
        %v1179 = vpack.c.b16 %v1091, %v1087
        %v1180 = vpack.c.b16 %v1096, %v1092
        %v1181 = vpack.c.b16 %v1097, %v1093
        %v1182 = vpack.c.b16 %v1098, %v1094
        %v1183 = vpack.c.b16 %v1099, %v1095
        %v1184 = vpack.c.b16 %v1104, %v1100
        %v1185 = vpack.c.b16 %v1105, %v1101
        %v1186 = vpack.c.b16 %v1106, %v1102
        %v1187 = vpack.c.b16 %v1107, %v1103
        %v1188 = vpack.c.b16 %v1112, %v1108
        %v1189 = vpack.c.b16 %v1113, %v1109
        %v1190 = vpack.c.b16 %v1114, %v1110
        %v1191 = vpack.c.b16 %v1115, %v1111
        %v1192 = vpack.c.b16 %v1120, %v1116
        %v1193 = vpack.c.b16 %v1121, %v1117
        %v1194 = vpack.c.b16 %v1122, %v1118
        %v1195 = vpack.c.b16 %v1123, %v1119
        %v1196 = vpack.c.b16 %v1128, %v1124
        %v1197 = vpack.c.b16 %v1129, %v1125
        %v1198 = vpack.c.b16 %v1130, %v1126
        %v1199 = vpack.c.b16 %v1131, %v1127
        %v1200 = vpack.c.b16 %v1136, %v1132
        %v1201 = vpack.c.b16 %v1137, %v1133
        %v1202 = vpack.c.b16 %v1138, %v1134
        %v1203 = vpack.c.b16 %v1139, %v1135
        %1268 = vmatprep.subr.bf16.mxu0 %v1141
        %1269 = vmatpush1.bf16.msra.mxu0 %v1140
        %1270 = vmatprep.subr.bf16.mxu0 %v1145
        %1271 = vmatpush1.bf16.msra.mxu0 %v1144
        %1272 = vmatprep.subr.bf16.mxu0 %v1149
        %1273 = vmatpush1.bf16.msra.mxu0 %v1148
        %1274 = vmatprep.subr.bf16.mxu0 %v1153
        %1275 = vmatpush1.bf16.msra.mxu0 %v1152
        %1276 = vmatprep.subr.bf16.mxu0 %v1157
        %1277 = vmatpush1.bf16.msra.mxu0 %v1156
        %1278 = vmatprep.subr.bf16.mxu0 %v1161
        %1279 = vmatpush1.bf16.msra.mxu0 %v1160
        %1280 = vmatprep.subr.bf16.mxu0 %v1165
        %1281 = vmatpush1.bf16.msra.mxu0 %v1164
        %1282 = vmatprep.subr.bf16.mxu0 %v1169
        %1283 = vmatpush1.bf16.msra.mxu0 %v1168
        %1284 = vmatprep.subr.bf16.mxu0 %v1173
        %1285 = vmatpush1.bf16.msra.mxu0 %v1172
        %1286 = vmatprep.subr.bf16.mxu0 %v1177
        %1287 = vmatpush1.bf16.msra.mxu0 %v1176
        %1288 = vmatprep.subr.bf16.mxu0 %v1181
        %1289 = vmatpush1.bf16.msra.mxu0 %v1180
        %1290 = vmatprep.subr.bf16.mxu0 %v1185
        %1291 = vmatpush1.bf16.msra.mxu0 %v1184
        %1292 = vmatprep.subr.bf16.mxu0 %v1189
        %1293 = vmatpush1.bf16.msra.mxu0 %v1188
        %1294 = vmatprep.subr.bf16.mxu0 %v1193
        %1295 = vmatpush1.bf16.msra.mxu0 %v1192
        %1296 = vmatprep.subr.bf16.mxu0 %v1197
        %1297 = vmatpush1.bf16.msra.mxu0 %v1196
        %1298 = vmatprep.subr.bf16.mxu0 %v1201
        %1299 = vmatpush1.bf16.msra.mxu0 %v1200
        %1300 = vmatprep.mubr.bf16.mxu0 %v861
        %1301 = vmatmul.mubr.bf16.gmra.mrb[0].mxu0 %v860
        %v1302 = vpop.f32.mrb[0].mxu0
        %v1303 = vadd.f32 %v931, %v1302
        %v1304 = vpop.f32.mrb[0].mxu0
        %v1305 = vadd.f32 %v935, %v1304
        %v1306 = vpop.f32.mrb[0].mxu0
        %v1307 = vpop.f32.mrb[0].mxu0
        %1308 = vdwg.mxu0
        %1309 = vmatprep.subr.bf16.mxu0 %v1143
        %1310 = vmatpush1.bf16.msra.mxu0 %v1142
        %1311 = vmatprep.subr.bf16.mxu0 %v1147
        %1312 = vmatpush1.bf16.msra.mxu0 %v1146
        %1313 = vmatprep.subr.bf16.mxu0 %v1151
        %1314 = vmatpush1.bf16.msra.mxu0 %v1150
        %1315 = vmatprep.subr.bf16.mxu0 %v1155
        %1316 = vmatpush1.bf16.msra.mxu0 %v1154
        %1317 = vmatprep.subr.bf16.mxu0 %v1159
        %1318 = vmatpush1.bf16.msra.mxu0 %v1158
        %1319 = vmatprep.subr.bf16.mxu0 %v1163
        %1320 = vmatpush1.bf16.msra.mxu0 %v1162
        %1321 = vmatprep.subr.bf16.mxu0 %v1167
        %1322 = vmatpush1.bf16.msra.mxu0 %v1166
        %1323 = vmatprep.subr.bf16.mxu0 %v1171
        %1324 = vmatpush1.bf16.msra.mxu0 %v1170
        %1325 = vmatprep.subr.bf16.mxu0 %v1175
        %1326 = vmatpush1.bf16.msra.mxu0 %v1174
        %1327 = vmatprep.subr.bf16.mxu0 %v1179
        %1328 = vmatpush1.bf16.msra.mxu0 %v1178
        %1329 = vmatprep.subr.bf16.mxu0 %v1183
        %1330 = vmatpush1.bf16.msra.mxu0 %v1182
        %1331 = vmatprep.subr.bf16.mxu0 %v1187
        %1332 = vmatpush1.bf16.msra.mxu0 %v1186
        %1333 = vmatprep.subr.bf16.mxu0 %v1191
        %1334 = vmatpush1.bf16.msra.mxu0 %v1190
        %1335 = vmatprep.subr.bf16.mxu0 %v1195
        %1336 = vmatpush1.bf16.msra.mxu0 %v1194
        %1337 = vmatprep.subr.bf16.mxu0 %v1199
        %1338 = vmatpush1.bf16.msra.mxu0 %v1198
        %1339 = vmatprep.subr.bf16.mxu0 %v1203
        %1340 = vmatpush1.bf16.msra.mxu0 %v1202
        %1341 = vmatprep.mubr.bf16.mxu0 %v861
        %1342 = vmatmul.mubr.bf16.gmra.mrb[0].mxu0 %v860
        %v1343 = vpop.f32.mrb[0].mxu0
        %v1344 = vadd.f32 %v939, %v1343
        %v1345 = vpop.f32.mrb[0].mxu0
        %v1346 = vadd.f32 %v943, %v1345
        %v1347 = vpop.f32.mrb[0].mxu0
        %v1348 = vpop.f32.mrb[0].mxu0
        %1349 = vdwg.mxu0
        %v1350 = vrot.slane %v1303, 4
        %v1351 = vadd.f32 %v1303, %v1350
        %v1352 = vrot.slane %v1351, 2
        %v1353 = vadd.f32 %v1351, %v1352
        %v1354 = vrot.slane %v1353, 1
        %v1355 = vadd.f32 %v1353, %v1354
        %v1356 = vrot.slane %v1305, 4
        %v1357 = vadd.f32 %v1305, %v1356
        %v1358 = vrot.slane %v1357, 2
        %v1359 = vadd.f32 %v1357, %v1358
        %v1360 = vrot.slane %v1359, 1
        %v1361 = vadd.f32 %v1359, %v1360
        %v1362 = vrot.slane %v1344, 4
        %v1363 = vadd.f32 %v1344, %v1362
        %v1364 = vrot.slane %v1363, 2
        %v1365 = vadd.f32 %v1363, %v1364
        %v1366 = vrot.slane %v1365, 1
        %v1367 = vadd.f32 %v1365, %v1366
        %v1368 = vrot.slane %v1346, 4
        %v1369 = vadd.f32 %v1346, %v1368
        %v1370 = vrot.slane %v1369, 2
        %v1371 = vadd.f32 %v1369, %v1370
        %v1372 = vrot.slane %v1371, 1
        %v1373 = vadd.f32 %v1371, %v1372
        %v1374 = vmul.f32 %v1355, %v823
        %v1375 = vmul.f32 %v1361, %v823
        %v1376 = vmul.f32 %v1367, %v823
        %v1377 = vmul.f32 %v1373, %v823
        %v1378 = vmul.f32 %v1303, %v1303
        %v1379 = vmul.f32 %v1305, %v1305
        %v1380 = vmul.f32 %v1344, %v1344
        %v1381 = vmul.f32 %v1346, %v1346
        %v1382 = vrot.slane %v1378, 4
        %v1383 = vadd.f32 %v1378, %v1382
        %v1384 = vrot.slane %v1383, 2
        %v1385 = vadd.f32 %v1383, %v1384
        %v1386 = vrot.slane %v1385, 1
        %v1387 = vadd.f32 %v1385, %v1386
        %v1388 = vrot.slane %v1379, 4
        %v1389 = vadd.f32 %v1379, %v1388
        %v1390 = vrot.slane %v1389, 2
        %v1391 = vadd.f32 %v1389, %v1390
        %v1392 = vrot.slane %v1391, 1
        %v1393 = vadd.f32 %v1391, %v1392
        %v1394 = vrot.slane %v1380, 4
        %v1395 = vadd.f32 %v1380, %v1394
        %v1396 = vrot.slane %v1395, 2
        %v1397 = vadd.f32 %v1395, %v1396
        %v1398 = vrot.slane %v1397, 1
        %v1399 = vadd.f32 %v1397, %v1398
        %v1400 = vrot.slane %v1381, 4
        %v1401 = vadd.f32 %v1381, %v1400
        %v1402 = vrot.slane %v1401, 2
        %v1403 = vadd.f32 %v1401, %v1402
        %v1404 = vrot.slane %v1403, 1
        %v1405 = vadd.f32 %v1403, %v1404
        %v1406 = vmul.f32 %v1387, %v823
        %v1407 = vmul.f32 %v1393, %v823
        %v1408 = vmul.f32 %v1399, %v823
        %v1409 = vmul.f32 %v1405, %v823
        %v1410 = vsub.f32 %v1303, %v1374
        %v1411 = vsub.f32 %v1305, %v1375
        %v1412 = vsub.f32 %v1344, %v1376
        %v1413 = vsub.f32 %v1346, %v1377
        %v1414 = vmul.f32 %v1374, %v1374
        %v1415 = vmul.f32 %v1375, %v1375
        %v1416 = vmul.f32 %v1376, %v1376
        %v1417 = vmul.f32 %v1377, %v1377
        %v1418 = vsub.f32 %v1406, %v1414
        %v1419 = vsub.f32 %v1407, %v1415
        %v1420 = vsub.f32 %v1408, %v1416
        %v1421 = vsub.f32 %v1409, %v1417
        %v1422 = vadd.f32 %v1418, 0.8
        %v1423 = vadd.f32 %v1419, 0.8
        %v1424 = vadd.f32 %v1420, 0.8
        %v1425 = vadd.f32 %v1421, 0.8
        %v1426 = vrsqrt.pop %v1422
        %v1427 = vrsqrt.pop %v1423
        %v1428 = vrsqrt.pop %v1424
        %v1429 = vrsqrt.pop %v1425
        %v1430 = vmul.f32 %v1410, %v1426
        %v1431 = vmul.f32 %v1411, %v1427
        %v1432 = vmul.f32 %v1412, %v1428
        %v1433 = vmul.f32 %v1413, %v1429
        %vm1434 = vcmp.gt.f32.partialorder %v1430, 0.0
        %vm1435 = vcmp.gt.f32.partialorder %v1431, 0.0
        %vm1436 = vcmp.gt.f32.partialorder %v1432, 0.0
        %vm1437 = vcmp.gt.f32.partialorder %v1433, 0.0
        %v1438 = vmul.f32 %v1430, 0.2
        %v1439 = vmul.f32 %v1431, 0.2
        %v1440 = vmul.f32 %v1432, 0.2
        %v1441 = vmul.f32 %v1433, 0.2
        %v1442 = vsel %vm1434, %v1430, %v1438
        %v1443 = vsel %vm1435, %v1431, %v1439
        %v1444 = vsel %vm1436, %v1432, %v1440
        %v1445 = vsel %vm1437, %v1433, %v1441
        %v1446 = vpack.c.bf16 %v1442, %v1442
        %v1447 = vpack.c.bf16 %v1443, %v1443
        %v1448 = vpack.c.bf16 %v1444, %v1444
        %v1449 = vpack.c.bf16 %v1445, %v1445
        %v1450 = vld [vmem:[#allocation14] sm:$0xff]
        %v1451 = vld [vmem:[#allocation14 + $0x8] sm:$0xff]
        %v1452 = vld [vmem:[#allocation14 + $0x10] sm:$0xff]
        %v1453 = vld [vmem:[#allocation14 + $0x18] sm:$0xff]
        %v1454 = vld [vmem:[#allocation14 + $0x20] sm:$0xff]
        %v1455 = vld [vmem:[#allocation14 + $0x28] sm:$0xff]
        %v1456 = vld [vmem:[#allocation14 + $0x30] sm:$0xff]
        %v1457 = vld [vmem:[#allocation14 + $0x38] sm:$0xff]
        %v1458 = vld [vmem:[#allocation14 + $0x40] sm:$0xff]
        %v1459 = vld [vmem:[#allocation14 + $0x48] sm:$0xff]
        %v1460 = vld [vmem:[#allocation14 + $0x50] sm:$0xff]
        %v1461 = vld [vmem:[#allocation14 + $0x58] sm:$0xff]
        %v1462 = vld [vmem:[#allocation14 + $0x60] sm:$0xff]
        %v1463 = vld [vmem:[#allocation14 + $0x68] sm:$0xff]
        %v1464 = vld [vmem:[#allocation14 + $0x70] sm:$0xff]
        %v1465 = vld [vmem:[#allocation14 + $0x78] sm:$0xff]
        %v1466 = vld [vmem:[#allocation14 + $0x80] sm:$0xff]
        %v1467 = vld [vmem:[#allocation14 + $0x88] sm:$0xff]
        %v1468 = vld [vmem:[#allocation14 + $0x90] sm:$0xff]
        %v1469 = vld [vmem:[#allocation14 + $0x98] sm:$0xff]
        %v1470 = vld [vmem:[#allocation14 + $0xa0] sm:$0xff]
        %v1471 = vld [vmem:[#allocation14 + $0xa8] sm:$0xff]
        %v1472 = vld [vmem:[#allocation14 + $0xb0] sm:$0xff]
        %v1473 = vld [vmem:[#allocation14 + $0xb8] sm:$0xff]
        %v1474 = vld [vmem:[#allocation14 + $0xc0] sm:$0xff]
        %v1475 = vld [vmem:[#allocation14 + $0xc8] sm:$0xff]
        %v1476 = vld [vmem:[#allocation14 + $0xd0] sm:$0xff]
        %v1477 = vld [vmem:[#allocation14 + $0xd8] sm:$0xff]
        %v1478 = vld [vmem:[#allocation14 + $0xe0] sm:$0xff]
        %v1479 = vld [vmem:[#allocation14 + $0xe8] sm:$0xff]
        %v1480 = vld [vmem:[#allocation14 + $0xf0] sm:$0xff]
        %v1481 = vld [vmem:[#allocation14 + $0xf8] sm:$0xff]
        %v1482 = vld [vmem:[#allocation14 + $0x100] sm:$0xff]
        %v1483 = vld [vmem:[#allocation14 + $0x108] sm:$0xff]
        %v1484 = vld [vmem:[#allocation14 + $0x110] sm:$0xff]
        %v1485 = vld [vmem:[#allocation14 + $0x118] sm:$0xff]
        %v1486 = vld [vmem:[#allocation14 + $0x120] sm:$0xff]
        %v1487 = vld [vmem:[#allocation14 + $0x128] sm:$0xff]
        %v1488 = vld [vmem:[#allocation14 + $0x130] sm:$0xff]
        %v1489 = vld [vmem:[#allocation14 + $0x138] sm:$0xff]
        %v1490 = vld [vmem:[#allocation14 + $0x140] sm:$0xff]
        %v1491 = vld [vmem:[#allocation14 + $0x148] sm:$0xff]
        %v1492 = vld [vmem:[#allocation14 + $0x150] sm:$0xff]
        %v1493 = vld [vmem:[#allocation14 + $0x158] sm:$0xff]
        %v1494 = vld [vmem:[#allocation14 + $0x160] sm:$0xff]
        %v1495 = vld [vmem:[#allocation14 + $0x168] sm:$0xff]
        %v1496 = vld [vmem:[#allocation14 + $0x170] sm:$0xff]
        %v1497 = vld [vmem:[#allocation14 + $0x178] sm:$0xff]
        %v1498 = vld [vmem:[#allocation14 + $0x180] sm:$0xff]
        %v1499 = vld [vmem:[#allocation14 + $0x188] sm:$0xff]
        %v1500 = vld [vmem:[#allocation14 + $0x190] sm:$0xff]
        %v1501 = vld [vmem:[#allocation14 + $0x198] sm:$0xff]
        %v1502 = vld [vmem:[#allocation14 + $0x1a0] sm:$0xff]
        %v1503 = vld [vmem:[#allocation14 + $0x1a8] sm:$0xff]
        %v1504 = vld [vmem:[#allocation14 + $0x1b0] sm:$0xff]
        %v1505 = vld [vmem:[#allocation14 + $0x1b8] sm:$0xff]
        %v1506 = vld [vmem:[#allocation14 + $0x1c0] sm:$0xff]
        %v1507 = vld [vmem:[#allocation14 + $0x1c8] sm:$0xff]
        %v1508 = vld [vmem:[#allocation14 + $0x1d0] sm:$0xff]
        %v1509 = vld [vmem:[#allocation14 + $0x1d8] sm:$0xff]
        %v1510 = vld [vmem:[#allocation14 + $0x1e0] sm:$0xff]
        %v1511 = vld [vmem:[#allocation14 + $0x1e8] sm:$0xff]
        %v1512 = vld [vmem:[#allocation14 + $0x1f0] sm:$0xff]
        %v1513 = vld [vmem:[#allocation14 + $0x1f8] sm:$0xff]
        %v1514 = vld [vmem:[#allocation14 + $0x200] sm:$0xff]
        %v1515 = vld [vmem:[#allocation14 + $0x208] sm:$0xff]
        %v1516 = vld [vmem:[#allocation14 + $0x210] sm:$0xff]
        %v1517 = vld [vmem:[#allocation14 + $0x218] sm:$0xff]
        %v1518 = vld [vmem:[#allocation14 + $0x220] sm:$0xff]
        %v1519 = vld [vmem:[#allocation14 + $0x228] sm:$0xff]
        %v1520 = vld [vmem:[#allocation14 + $0x230] sm:$0xff]
        %v1521 = vld [vmem:[#allocation14 + $0x238] sm:$0xff]
        %v1522 = vld [vmem:[#allocation14 + $0x240] sm:$0xff]
        %v1523 = vld [vmem:[#allocation14 + $0x248] sm:$0xff]
        %v1524 = vld [vmem:[#allocation14 + $0x250] sm:$0xff]
        %v1525 = vld [vmem:[#allocation14 + $0x258] sm:$0xff]
        %v1526 = vld [vmem:[#allocation14 + $0x260] sm:$0xff]
        %v1527 = vld [vmem:[#allocation14 + $0x268] sm:$0xff]
        %v1528 = vld [vmem:[#allocation14 + $0x270] sm:$0xff]
        %v1529 = vld [vmem:[#allocation14 + $0x278] sm:$0xff]
        %v1530 = vld [vmem:[#allocation14 + $0x280] sm:$0xff]
        %v1531 = vld [vmem:[#allocation14 + $0x288] sm:$0xff]
        %v1532 = vld [vmem:[#allocation14 + $0x290] sm:$0xff]
        %v1533 = vld [vmem:[#allocation14 + $0x298] sm:$0xff]
        %v1534 = vld [vmem:[#allocation14 + $0x2a0] sm:$0xff]
        %v1535 = vld [vmem:[#allocation14 + $0x2a8] sm:$0xff]
        %v1536 = vld [vmem:[#allocation14 + $0x2b0] sm:$0xff]
        %v1537 = vld [vmem:[#allocation14 + $0x2b8] sm:$0xff]
        %v1538 = vld [vmem:[#allocation14 + $0x2c0] sm:$0xff]
        %v1539 = vld [vmem:[#allocation14 + $0x2c8] sm:$0xff]
        %v1540 = vld [vmem:[#allocation14 + $0x2d0] sm:$0xff]
        %v1541 = vld [vmem:[#allocation14 + $0x2d8] sm:$0xff]
        %v1542 = vld [vmem:[#allocation14 + $0x2e0] sm:$0xff]
        %v1543 = vld [vmem:[#allocation14 + $0x2e8] sm:$0xff]
        %v1544 = vld [vmem:[#allocation14 + $0x2f0] sm:$0xff]
        %v1545 = vld [vmem:[#allocation14 + $0x2f8] sm:$0xff]
        %v1546 = vld [vmem:[#allocation14 + $0x300] sm:$0xff]
        %v1547 = vld [vmem:[#allocation14 + $0x308] sm:$0xff]
        %v1548 = vld [vmem:[#allocation14 + $0x310] sm:$0xff]
        %v1549 = vld [vmem:[#allocation14 + $0x318] sm:$0xff]
        %v1550 = vld [vmem:[#allocation14 + $0x320] sm:$0xff]
        %v1551 = vld [vmem:[#allocation14 + $0x328] sm:$0xff]
        %v1552 = vld [vmem:[#allocation14 + $0x330] sm:$0xff]
        %v1553 = vld [vmem:[#allocation14 + $0x338] sm:$0xff]
        %v1554 = vld [vmem:[#allocation14 + $0x340] sm:$0xff]
        %v1555 = vld [vmem:[#allocation14 + $0x348] sm:$0xff]
        %v1556 = vld [vmem:[#allocation14 + $0x350] sm:$0xff]
        %v1557 = vld [vmem:[#allocation14 + $0x358] sm:$0xff]
        %v1558 = vld [vmem:[#allocation14 + $0x360] sm:$0xff]
        %v1559 = vld [vmem:[#allocation14 + $0x368] sm:$0xff]
        %v1560 = vld [vmem:[#allocation14 + $0x370] sm:$0xff]
        %v1561 = vld [vmem:[#allocation14 + $0x378] sm:$0xff]
        %v1562 = vld [vmem:[#allocation14 + $0x380] sm:$0xff]
        %v1563 = vld [vmem:[#allocation14 + $0x388] sm:$0xff]
        %v1564 = vld [vmem:[#allocation14 + $0x390] sm:$0xff]
        %v1565 = vld [vmem:[#allocation14 + $0x398] sm:$0xff]
        %v1566 = vld [vmem:[#allocation14 + $0x3a0] sm:$0xff]
        %v1567 = vld [vmem:[#allocation14 + $0x3a8] sm:$0xff]
        %v1568 = vld [vmem:[#allocation14 + $0x3b0] sm:$0xff]
        %v1569 = vld [vmem:[#allocation14 + $0x3b8] sm:$0xff]
        %v1570 = vld [vmem:[#allocation14 + $0x3c0] sm:$0xff]
        %v1571 = vld [vmem:[#allocation14 + $0x3c8] sm:$0xff]
        %v1572 = vld [vmem:[#allocation14 + $0x3d0] sm:$0xff]
        %v1573 = vld [vmem:[#allocation14 + $0x3d8] sm:$0xff]
        %v1574 = vld [vmem:[#allocation14 + $0x3e0] sm:$0xff]
        %v1575 = vld [vmem:[#allocation14 + $0x3e8] sm:$0xff]
        %v1576 = vld [vmem:[#allocation14 + $0x3f0] sm:$0xff]
        %v1577 = vld [vmem:[#allocation14 + $0x3f8] sm:$0xff]
        %v1578 = vld [vmem:[#allocation14 + $0x400] sm:$0xff]
        %v1579 = vld [vmem:[#allocation14 + $0x408] sm:$0xff]
        %v1580 = vld [vmem:[#allocation14 + $0x410] sm:$0xff]
        %v1581 = vld [vmem:[#allocation14 + $0x418] sm:$0xff]
        %v1582 = vld [vmem:[#allocation14 + $0x420] sm:$0xff]
        %v1583 = vld [vmem:[#allocation14 + $0x428] sm:$0xff]
        %v1584 = vld [vmem:[#allocation14 + $0x430] sm:$0xff]
        %v1585 = vld [vmem:[#allocation14 + $0x438] sm:$0xff]
        %v1586 = vld [vmem:[#allocation14 + $0x440] sm:$0xff]
        %v1587 = vld [vmem:[#allocation14 + $0x448] sm:$0xff]
        %v1588 = vld [vmem:[#allocation14 + $0x450] sm:$0xff]
        %v1589 = vld [vmem:[#allocation14 + $0x458] sm:$0xff]
        %v1590 = vld [vmem:[#allocation14 + $0x460] sm:$0xff]
        %v1591 = vld [vmem:[#allocation14 + $0x468] sm:$0xff]
        %v1592 = vld [vmem:[#allocation14 + $0x470] sm:$0xff]
        %v1593 = vld [vmem:[#allocation14 + $0x478] sm:$0xff]
        %v1594 = vld [vmem:[#allocation14 + $0x480] sm:$0xff]
        %v1595 = vld [vmem:[#allocation14 + $0x488] sm:$0xff]
        %v1596 = vld [vmem:[#allocation14 + $0x490] sm:$0xff]
        %v1597 = vld [vmem:[#allocation14 + $0x498] sm:$0xff]
        %v1598 = vld [vmem:[#allocation14 + $0x4a0] sm:$0xff]
        %v1599 = vld [vmem:[#allocation14 + $0x4a8] sm:$0xff]
        %v1600 = vld [vmem:[#allocation14 + $0x4b0] sm:$0xff]
        %v1601 = vld [vmem:[#allocation14 + $0x4b8] sm:$0xff]
        %v1602 = vld [vmem:[#allocation14 + $0x4c0] sm:$0xff]
        %v1603 = vld [vmem:[#allocation14 + $0x4c8] sm:$0xff]
        %v1604 = vld [vmem:[#allocation14 + $0x4d0] sm:$0xff]
        %v1605 = vld [vmem:[#allocation14 + $0x4d8] sm:$0xff]
        %v1606 = vld [vmem:[#allocation14 + $0x4e0] sm:$0xff]
        %v1607 = vld [vmem:[#allocation14 + $0x4e8] sm:$0xff]
        %v1608 = vld [vmem:[#allocation14 + $0x4f0] sm:$0xff]
        %v1609 = vld [vmem:[#allocation14 + $0x4f8] sm:$0xff]
        %v1610 = vld [vmem:[#allocation14 + $0x500] sm:$0xff]
        %v1611 = vld [vmem:[#allocation14 + $0x508] sm:$0xff]
        %v1612 = vld [vmem:[#allocation14 + $0x510] sm:$0xff]
        %v1613 = vld [vmem:[#allocation14 + $0x518] sm:$0xff]
        %v1614 = vld [vmem:[#allocation14 + $0x520] sm:$0xff]
        %v1615 = vld [vmem:[#allocation14 + $0x528] sm:$0xff]
        %v1616 = vld [vmem:[#allocation14 + $0x530] sm:$0xff]
        %v1617 = vld [vmem:[#allocation14 + $0x538] sm:$0xff]
        %v1618 = vld [vmem:[#allocation14 + $0x540] sm:$0xff]
        %v1619 = vld [vmem:[#allocation14 + $0x548] sm:$0xff]
        %v1620 = vld [vmem:[#allocation14 + $0x550] sm:$0xff]
        %v1621 = vld [vmem:[#allocation14 + $0x558] sm:$0xff]
        %v1622 = vld [vmem:[#allocation14 + $0x560] sm:$0xff]
        %v1623 = vld [vmem:[#allocation14 + $0x568] sm:$0xff]
        %v1624 = vld [vmem:[#allocation14 + $0x570] sm:$0xff]
        %v1625 = vld [vmem:[#allocation14 + $0x578] sm:$0xff]
        %v1626 = vld [vmem:[#allocation14 + $0x580] sm:$0xff]
        %v1627 = vld [vmem:[#allocation14 + $0x588] sm:$0xff]
        %v1628 = vld [vmem:[#allocation14 + $0x590] sm:$0xff]
        %v1629 = vld [vmem:[#allocation14 + $0x598] sm:$0xff]
        %v1630 = vld [vmem:[#allocation14 + $0x5a0] sm:$0xff]
        %v1631 = vld [vmem:[#allocation14 + $0x5a8] sm:$0xff]
        %v1632 = vld [vmem:[#allocation14 + $0x5b0] sm:$0xff]
        %v1633 = vld [vmem:[#allocation14 + $0x5b8] sm:$0xff]
        %v1634 = vld [vmem:[#allocation14 + $0x5c0] sm:$0xff]
        %v1635 = vld [vmem:[#allocation14 + $0x5c8] sm:$0xff]
        %v1636 = vld [vmem:[#allocation14 + $0x5d0] sm:$0xff]
        %v1637 = vld [vmem:[#allocation14 + $0x5d8] sm:$0xff]
        %v1638 = vld [vmem:[#allocation14 + $0x5e0] sm:$0xff]
        %v1639 = vld [vmem:[#allocation14 + $0x5e8] sm:$0xff]
        %v1640 = vld [vmem:[#allocation14 + $0x5f0] sm:$0xff]
        %v1641 = vld [vmem:[#allocation14 + $0x5f8] sm:$0xff]
        %v1642 = vld [vmem:[#allocation14 + $0x600] sm:$0xff]
        %v1643 = vld [vmem:[#allocation14 + $0x608] sm:$0xff]
        %v1644 = vld [vmem:[#allocation14 + $0x610] sm:$0xff]
        %v1645 = vld [vmem:[#allocation14 + $0x618] sm:$0xff]
        %v1646 = vld [vmem:[#allocation14 + $0x620] sm:$0xff]
        %v1647 = vld [vmem:[#allocation14 + $0x628] sm:$0xff]
        %v1648 = vld [vmem:[#allocation14 + $0x630] sm:$0xff]
        %v1649 = vld [vmem:[#allocation14 + $0x638] sm:$0xff]
        %v1650 = vld [vmem:[#allocation14 + $0x640] sm:$0xff]
        %v1651 = vld [vmem:[#allocation14 + $0x648] sm:$0xff]
        %v1652 = vld [vmem:[#allocation14 + $0x650] sm:$0xff]
        %v1653 = vld [vmem:[#allocation14 + $0x658] sm:$0xff]
        %v1654 = vld [vmem:[#allocation14 + $0x660] sm:$0xff]
        %v1655 = vld [vmem:[#allocation14 + $0x668] sm:$0xff]
        %v1656 = vld [vmem:[#allocation14 + $0x670] sm:$0xff]
        %v1657 = vld [vmem:[#allocation14 + $0x678] sm:$0xff]
        %v1658 = vld [vmem:[#allocation14 + $0x680] sm:$0xff]
        %v1659 = vld [vmem:[#allocation14 + $0x688] sm:$0xff]
        %v1660 = vld [vmem:[#allocation14 + $0x690] sm:$0xff]
        %v1661 = vld [vmem:[#allocation14 + $0x698] sm:$0xff]
        %v1662 = vld [vmem:[#allocation14 + $0x6a0] sm:$0xff]
        %v1663 = vld [vmem:[#allocation14 + $0x6a8] sm:$0xff]
        %v1664 = vld [vmem:[#allocation14 + $0x6b0] sm:$0xff]
        %v1665 = vld [vmem:[#allocation14 + $0x6b8] sm:$0xff]
        %v1666 = vld [vmem:[#allocation14 + $0x6c0] sm:$0xff]
        %v1667 = vld [vmem:[#allocation14 + $0x6c8] sm:$0xff]
        %v1668 = vld [vmem:[#allocation14 + $0x6d0] sm:$0xff]
        %v1669 = vld [vmem:[#allocation14 + $0x6d8] sm:$0xff]
        %v1670 = vld [vmem:[#allocation14 + $0x6e0] sm:$0xff]
        %v1671 = vld [vmem:[#allocation14 + $0x6e8] sm:$0xff]
        %v1672 = vld [vmem:[#allocation14 + $0x6f0] sm:$0xff]
        %v1673 = vld [vmem:[#allocation14 + $0x6f8] sm:$0xff]
        %v1674 = vld [vmem:[#allocation14 + $0x700] sm:$0xff]
        %v1675 = vld [vmem:[#allocation14 + $0x708] sm:$0xff]
        %v1676 = vld [vmem:[#allocation14 + $0x710] sm:$0xff]
        %v1677 = vld [vmem:[#allocation14 + $0x718] sm:$0xff]
        %v1678 = vld [vmem:[#allocation14 + $0x720] sm:$0xff]
        %v1679 = vld [vmem:[#allocation14 + $0x728] sm:$0xff]
        %v1680 = vld [vmem:[#allocation14 + $0x730] sm:$0xff]
        %v1681 = vld [vmem:[#allocation14 + $0x738] sm:$0xff]
        %v1682 = vld [vmem:[#allocation14 + $0x740] sm:$0xff]
        %v1683 = vld [vmem:[#allocation14 + $0x748] sm:$0xff]
        %v1684 = vld [vmem:[#allocation14 + $0x750] sm:$0xff]
        %v1685 = vld [vmem:[#allocation14 + $0x758] sm:$0xff]
        %v1686 = vld [vmem:[#allocation14 + $0x760] sm:$0xff]
        %v1687 = vld [vmem:[#allocation14 + $0x768] sm:$0xff]
        %v1688 = vld [vmem:[#allocation14 + $0x770] sm:$0xff]
        %v1689 = vld [vmem:[#allocation14 + $0x778] sm:$0xff]
        %v1690 = vld [vmem:[#allocation14 + $0x780] sm:$0xff]
        %v1691 = vld [vmem:[#allocation14 + $0x788] sm:$0xff]
        %v1692 = vld [vmem:[#allocation14 + $0x790] sm:$0xff]
        %v1693 = vld [vmem:[#allocation14 + $0x798] sm:$0xff]
        %v1694 = vld [vmem:[#allocation14 + $0x7a0] sm:$0xff]
        %v1695 = vld [vmem:[#allocation14 + $0x7a8] sm:$0xff]
        %v1696 = vld [vmem:[#allocation14 + $0x7b0] sm:$0xff]
        %v1697 = vld [vmem:[#allocation14 + $0x7b8] sm:$0xff]
        %v1698 = vld [vmem:[#allocation14 + $0x7c0] sm:$0xff]
        %v1699 = vld [vmem:[#allocation14 + $0x7c8] sm:$0xff]
        %v1700 = vld [vmem:[#allocation14 + $0x7d0] sm:$0xff]
        %v1701 = vld [vmem:[#allocation14 + $0x7d8] sm:$0xff]
        %v1702 = vld [vmem:[#allocation14 + $0x7e0] sm:$0xff]
        %v1703 = vld [vmem:[#allocation14 + $0x7e8] sm:$0xff]
        %v1704 = vld [vmem:[#allocation14 + $0x7f0] sm:$0xff]
        %v1705 = vld [vmem:[#allocation14 + $0x7f8] sm:$0xff]
        %v1706 = vld [vmem:[#allocation16] sm:$0xff]
        %v1708 = vlaneseq
        %v1709 = vshrl.u32 %v1708, 7
        %v1710 = vsub.s32 0, %v1709
        %v1711 = vrot.slane %v1706, %v1710
        %v1712 = vlaneseq
        %v1713 = vshrl.u32 %v1712, 7
        %v1714 = vsub.s32 1, %v1713
        %v1715 = vrot.slane %v1706, %v1714
        %v1716 = vlaneseq
        %v1717 = vshrl.u32 %v1716, 7
        %v1718 = vsub.s32 2, %v1717
        %v1719 = vrot.slane %v1706, %v1718
        %v1720 = vlaneseq
        %v1721 = vshrl.u32 %v1720, 7
        %v1722 = vsub.s32 3, %v1721
        %v1723 = vrot.slane %v1706, %v1722
        %v1724 = vlaneseq
        %v1725 = vshrl.u32 %v1724, 7
        %v1726 = vsub.s32 4, %v1725
        %v1727 = vrot.slane %v1706, %v1726
        %v1728 = vlaneseq
        %v1729 = vshrl.u32 %v1728, 7
        %v1730 = vsub.s32 5, %v1729
        %v1731 = vrot.slane %v1706, %v1730
        %v1732 = vlaneseq
        %v1733 = vshrl.u32 %v1732, 7
        %v1734 = vsub.s32 6, %v1733
        %v1735 = vrot.slane %v1706, %v1734
        %v1736 = vlaneseq
        %v1737 = vshrl.u32 %v1736, 7
        %v1738 = vsub.s32 7, %v1737
        %v1739 = vrot.slane %v1706, %v1738
        %v2004 = vunpack.c.l.b16 %v1450
        %v2005 = vunpack.c.h.b16 %v1450
        %v2006 = vunpack.c.l.b16 %v1451
        %v2007 = vunpack.c.h.b16 %v1451
        %v2008 = vunpack.c.l.b16 %v1452
        %v2009 = vunpack.c.h.b16 %v1452
        %v2010 = vunpack.c.l.b16 %v1453
        %v2011 = vunpack.c.h.b16 %v1453
        %v2012 = vunpack.c.l.b16 %v1454
        %v2013 = vunpack.c.h.b16 %v1454
        %v2014 = vunpack.c.l.b16 %v1455
        %v2015 = vunpack.c.h.b16 %v1455
        %v2016 = vunpack.c.l.b16 %v1456
        %v2017 = vunpack.c.h.b16 %v1456
        %v2018 = vunpack.c.l.b16 %v1457
        %v2019 = vunpack.c.h.b16 %v1457
        %v2020 = vunpack.c.l.b16 %v1458
        %v2021 = vunpack.c.h.b16 %v1458
        %v2022 = vunpack.c.l.b16 %v1459
        %v2023 = vunpack.c.h.b16 %v1459
        %v2024 = vunpack.c.l.b16 %v1460
        %v2025 = vunpack.c.h.b16 %v1460
        %v2026 = vunpack.c.l.b16 %v1461
        %v2027 = vunpack.c.h.b16 %v1461
        %v2028 = vunpack.c.l.b16 %v1462
        %v2029 = vunpack.c.h.b16 %v1462
        %v2030 = vunpack.c.l.b16 %v1463
        %v2031 = vunpack.c.h.b16 %v1463
        %v2032 = vunpack.c.l.b16 %v1464
        %v2033 = vunpack.c.h.b16 %v1464
        %v2034 = vunpack.c.l.b16 %v1465
        %v2035 = vunpack.c.h.b16 %v1465
        %v2036 = vunpack.c.l.b16 %v1466
        %v2037 = vunpack.c.h.b16 %v1466
        %v2038 = vunpack.c.l.b16 %v1467
        %v2039 = vunpack.c.h.b16 %v1467
        %v2040 = vunpack.c.l.b16 %v1468
        %v2041 = vunpack.c.h.b16 %v1468
        %v2042 = vunpack.c.l.b16 %v1469
        %v2043 = vunpack.c.h.b16 %v1469
        %v2044 = vunpack.c.l.b16 %v1470
        %v2045 = vunpack.c.h.b16 %v1470
        %v2046 = vunpack.c.l.b16 %v1471
        %v2047 = vunpack.c.h.b16 %v1471
        %v2048 = vunpack.c.l.b16 %v1472
        %v2049 = vunpack.c.h.b16 %v1472
        %v2050 = vunpack.c.l.b16 %v1473
        %v2051 = vunpack.c.h.b16 %v1473
        %v2052 = vunpack.c.l.b16 %v1474
        %v2053 = vunpack.c.h.b16 %v1474
        %v2054 = vunpack.c.l.b16 %v1475
        %v2055 = vunpack.c.h.b16 %v1475
        %v2056 = vunpack.c.l.b16 %v1476
        %v2057 = vunpack.c.h.b16 %v1476
        %v2058 = vunpack.c.l.b16 %v1477
        %v2059 = vunpack.c.h.b16 %v1477
        %v2060 = vunpack.c.l.b16 %v1478
        %v2061 = vunpack.c.h.b16 %v1478
        %v2062 = vunpack.c.l.b16 %v1479
        %v2063 = vunpack.c.h.b16 %v1479
        %v2064 = vunpack.c.l.b16 %v1480
        %v2065 = vunpack.c.h.b16 %v1480
        %v2066 = vunpack.c.l.b16 %v1481
        %v2067 = vunpack.c.h.b16 %v1481
        %v2068 = vunpack.c.l.b16 %v1482
        %v2069 = vunpack.c.h.b16 %v1482
        %v2070 = vunpack.c.l.b16 %v1483
        %v2071 = vunpack.c.h.b16 %v1483
        %v2072 = vunpack.c.l.b16 %v1484
        %v2073 = vunpack.c.h.b16 %v1484
        %v2074 = vunpack.c.l.b16 %v1485
        %v2075 = vunpack.c.h.b16 %v1485
        %v2076 = vunpack.c.l.b16 %v1486
        %v2077 = vunpack.c.h.b16 %v1486
        %v2078 = vunpack.c.l.b16 %v1487
        %v2079 = vunpack.c.h.b16 %v1487
        %v2080 = vunpack.c.l.b16 %v1488
        %v2081 = vunpack.c.h.b16 %v1488
        %v2082 = vunpack.c.l.b16 %v1489
        %v2083 = vunpack.c.h.b16 %v1489
        %v2084 = vunpack.c.l.b16 %v1490
        %v2085 = vunpack.c.h.b16 %v1490
        %v2086 = vunpack.c.l.b16 %v1491
        %v2087 = vunpack.c.h.b16 %v1491
        %v2088 = vunpack.c.l.b16 %v1492
        %v2089 = vunpack.c.h.b16 %v1492
        %v2090 = vunpack.c.l.b16 %v1493
        %v2091 = vunpack.c.h.b16 %v1493
        %v2092 = vunpack.c.l.b16 %v1494
        %v2093 = vunpack.c.h.b16 %v1494
        %v2094 = vunpack.c.l.b16 %v1495
        %v2095 = vunpack.c.h.b16 %v1495
        %v2096 = vunpack.c.l.b16 %v1496
        %v2097 = vunpack.c.h.b16 %v1496
        %v2098 = vunpack.c.l.b16 %v1497
        %v2099 = vunpack.c.h.b16 %v1497
        %v2100 = vunpack.c.l.b16 %v1498
        %v2101 = vunpack.c.h.b16 %v1498
        %v2102 = vunpack.c.l.b16 %v1499
        %v2103 = vunpack.c.h.b16 %v1499
        %v2104 = vunpack.c.l.b16 %v1500
        %v2105 = vunpack.c.h.b16 %v1500
        %v2106 = vunpack.c.l.b16 %v1501
        %v2107 = vunpack.c.h.b16 %v1501
        %v2108 = vunpack.c.l.b16 %v1502
        %v2109 = vunpack.c.h.b16 %v1502
        %v2110 = vunpack.c.l.b16 %v1503
        %v2111 = vunpack.c.h.b16 %v1503
        %v2112 = vunpack.c.l.b16 %v1504
        %v2113 = vunpack.c.h.b16 %v1504
        %v2114 = vunpack.c.l.b16 %v1505
        %v2115 = vunpack.c.h.b16 %v1505
        %v2116 = vunpack.c.l.b16 %v1506
        %v2117 = vunpack.c.h.b16 %v1506
        %v2118 = vunpack.c.l.b16 %v1507
        %v2119 = vunpack.c.h.b16 %v1507
        %v2120 = vunpack.c.l.b16 %v1508
        %v2121 = vunpack.c.h.b16 %v1508
        %v2122 = vunpack.c.l.b16 %v1509
        %v2123 = vunpack.c.h.b16 %v1509
        %v2124 = vunpack.c.l.b16 %v1510
        %v2125 = vunpack.c.h.b16 %v1510
        %v2126 = vunpack.c.l.b16 %v1511
        %v2127 = vunpack.c.h.b16 %v1511
        %v2128 = vunpack.c.l.b16 %v1512
        %v2129 = vunpack.c.h.b16 %v1512
        %v2130 = vunpack.c.l.b16 %v1513
        %v2131 = vunpack.c.h.b16 %v1513
        %v2132 = vunpack.c.l.b16 %v1514
        %v2133 = vunpack.c.h.b16 %v1514
        %v2134 = vunpack.c.l.b16 %v1515
        %v2135 = vunpack.c.h.b16 %v1515
        %v2136 = vunpack.c.l.b16 %v1516
        %v2137 = vunpack.c.h.b16 %v1516
        %v2138 = vunpack.c.l.b16 %v1517
        %v2139 = vunpack.c.h.b16 %v1517
        %v2140 = vunpack.c.l.b16 %v1518
        %v2141 = vunpack.c.h.b16 %v1518
        %v2142 = vunpack.c.l.b16 %v1519
        %v2143 = vunpack.c.h.b16 %v1519
        %v2144 = vunpack.c.l.b16 %v1520
        %v2145 = vunpack.c.h.b16 %v1520
        %v2146 = vunpack.c.l.b16 %v1521
        %v2147 = vunpack.c.h.b16 %v1521
        %v2148 = vunpack.c.l.b16 %v1522
        %v2149 = vunpack.c.h.b16 %v1522
        %v2150 = vunpack.c.l.b16 %v1523
        %v2151 = vunpack.c.h.b16 %v1523
        %v2152 = vunpack.c.l.b16 %v1524
        %v2153 = vunpack.c.h.b16 %v1524
        %v2154 = vunpack.c.l.b16 %v1525
        %v2155 = vunpack.c.h.b16 %v1525
        %v2156 = vunpack.c.l.b16 %v1526
        %v2157 = vunpack.c.h.b16 %v1526
        %v2158 = vunpack.c.l.b16 %v1527
        %v2159 = vunpack.c.h.b16 %v1527
        %v2160 = vunpack.c.l.b16 %v1528
        %v2161 = vunpack.c.h.b16 %v1528
        %v2162 = vunpack.c.l.b16 %v1529
        %v2163 = vunpack.c.h.b16 %v1529
        %v2164 = vunpack.c.l.b16 %v1530
        %v2165 = vunpack.c.h.b16 %v1530
        %v2166 = vunpack.c.l.b16 %v1531
        %v2167 = vunpack.c.h.b16 %v1531
        %v2168 = vunpack.c.l.b16 %v1532
        %v2169 = vunpack.c.h.b16 %v1532
        %v2170 = vunpack.c.l.b16 %v1533
        %v2171 = vunpack.c.h.b16 %v1533
        %v2172 = vunpack.c.l.b16 %v1534
        %v2173 = vunpack.c.h.b16 %v1534
        %v2174 = vunpack.c.l.b16 %v1535
        %v2175 = vunpack.c.h.b16 %v1535
        %v2176 = vunpack.c.l.b16 %v1536
        %v2177 = vunpack.c.h.b16 %v1536
        %v2178 = vunpack.c.l.b16 %v1537
        %v2179 = vunpack.c.h.b16 %v1537
        %v2180 = vunpack.c.l.b16 %v1538
        %v2181 = vunpack.c.h.b16 %v1538
        %v2182 = vunpack.c.l.b16 %v1539
        %v2183 = vunpack.c.h.b16 %v1539
        %v2184 = vunpack.c.l.b16 %v1540
        %v2185 = vunpack.c.h.b16 %v1540
        %v2186 = vunpack.c.l.b16 %v1541
        %v2187 = vunpack.c.h.b16 %v1541
        %v2188 = vunpack.c.l.b16 %v1542
        %v2189 = vunpack.c.h.b16 %v1542
        %v2190 = vunpack.c.l.b16 %v1543
        %v2191 = vunpack.c.h.b16 %v1543
        %v2192 = vunpack.c.l.b16 %v1544
        %v2193 = vunpack.c.h.b16 %v1544
        %v2194 = vunpack.c.l.b16 %v1545
        %v2195 = vunpack.c.h.b16 %v1545
        %v2196 = vunpack.c.l.b16 %v1546
        %v2197 = vunpack.c.h.b16 %v1546
        %v2198 = vunpack.c.l.b16 %v1547
        %v2199 = vunpack.c.h.b16 %v1547
        %v2200 = vunpack.c.l.b16 %v1548
        %v2201 = vunpack.c.h.b16 %v1548
        %v2202 = vunpack.c.l.b16 %v1549
        %v2203 = vunpack.c.h.b16 %v1549
        %v2204 = vunpack.c.l.b16 %v1550
        %v2205 = vunpack.c.h.b16 %v1550
        %v2206 = vunpack.c.l.b16 %v1551
        %v2207 = vunpack.c.h.b16 %v1551
        %v2208 = vunpack.c.l.b16 %v1552
        %v2209 = vunpack.c.h.b16 %v1552
        %v2210 = vunpack.c.l.b16 %v1553
        %v2211 = vunpack.c.h.b16 %v1553
        %v2212 = vunpack.c.l.b16 %v1554
        %v2213 = vunpack.c.h.b16 %v1554
        %v2214 = vunpack.c.l.b16 %v1555
        %v2215 = vunpack.c.h.b16 %v1555
        %v2216 = vunpack.c.l.b16 %v1556
        %v2217 = vunpack.c.h.b16 %v1556
        %v2218 = vunpack.c.l.b16 %v1557
        %v2219 = vunpack.c.h.b16 %v1557
        %v2220 = vunpack.c.l.b16 %v1558
        %v2221 = vunpack.c.h.b16 %v1558
        %v2222 = vunpack.c.l.b16 %v1559
        %v2223 = vunpack.c.h.b16 %v1559
        %v2224 = vunpack.c.l.b16 %v1560
        %v2225 = vunpack.c.h.b16 %v1560
        %v2226 = vunpack.c.l.b16 %v1561
        %v2227 = vunpack.c.h.b16 %v1561
        %v2228 = vunpack.c.l.b16 %v1562
        %v2229 = vunpack.c.h.b16 %v1562
        %v2230 = vunpack.c.l.b16 %v1563
        %v2231 = vunpack.c.h.b16 %v1563
        %v2232 = vunpack.c.l.b16 %v1564
        %v2233 = vunpack.c.h.b16 %v1564
        %v2234 = vunpack.c.l.b16 %v1565
        %v2235 = vunpack.c.h.b16 %v1565
        %v2236 = vunpack.c.l.b16 %v1566
        %v2237 = vunpack.c.h.b16 %v1566
        %v2238 = vunpack.c.l.b16 %v1567
        %v2239 = vunpack.c.h.b16 %v1567
        %v2240 = vunpack.c.l.b16 %v1568
        %v2241 = vunpack.c.h.b16 %v1568
        %v2242 = vunpack.c.l.b16 %v1569
        %v2243 = vunpack.c.h.b16 %v1569
        %v2244 = vunpack.c.l.b16 %v1570
        %v2245 = vunpack.c.h.b16 %v1570
        %v2246 = vunpack.c.l.b16 %v1571
        %v2247 = vunpack.c.h.b16 %v1571
        %v2248 = vunpack.c.l.b16 %v1572
        %v2249 = vunpack.c.h.b16 %v1572
        %v2250 = vunpack.c.l.b16 %v1573
        %v2251 = vunpack.c.h.b16 %v1573
        %v2252 = vunpack.c.l.b16 %v1574
        %v2253 = vunpack.c.h.b16 %v1574
        %v2254 = vunpack.c.l.b16 %v1575
        %v2255 = vunpack.c.h.b16 %v1575
        %v2256 = vunpack.c.l.b16 %v1576
        %v2257 = vunpack.c.h.b16 %v1576
        %v2258 = vunpack.c.l.b16 %v1577
        %v2259 = vunpack.c.h.b16 %v1577
        %v2260 = vunpack.c.l.b16 %v1578
        %v2261 = vunpack.c.h.b16 %v1578
        %v2262 = vunpack.c.l.b16 %v1579
        %v2263 = vunpack.c.h.b16 %v1579
        %v2264 = vunpack.c.l.b16 %v1580
        %v2265 = vunpack.c.h.b16 %v1580
        %v2266 = vunpack.c.l.b16 %v1581
        %v2267 = vunpack.c.h.b16 %v1581
        %v2268 = vunpack.c.l.b16 %v1582
        %v2269 = vunpack.c.h.b16 %v1582
        %v2270 = vunpack.c.l.b16 %v1583
        %v2271 = vunpack.c.h.b16 %v1583
        %v2272 = vunpack.c.l.b16 %v1584
        %v2273 = vunpack.c.h.b16 %v1584
        %v2274 = vunpack.c.l.b16 %v1585
        %v2275 = vunpack.c.h.b16 %v1585
        %v2276 = vunpack.c.l.b16 %v1586
        %v2277 = vunpack.c.h.b16 %v1586
        %v2278 = vunpack.c.l.b16 %v1587
        %v2279 = vunpack.c.h.b16 %v1587
        %v2280 = vunpack.c.l.b16 %v1588
        %v2281 = vunpack.c.h.b16 %v1588
        %v2282 = vunpack.c.l.b16 %v1589
        %v2283 = vunpack.c.h.b16 %v1589
        %v2284 = vunpack.c.l.b16 %v1590
        %v2285 = vunpack.c.h.b16 %v1590
        %v2286 = vunpack.c.l.b16 %v1591
        %v2287 = vunpack.c.h.b16 %v1591
        %v2288 = vunpack.c.l.b16 %v1592
        %v2289 = vunpack.c.h.b16 %v1592
        %v2290 = vunpack.c.l.b16 %v1593
        %v2291 = vunpack.c.h.b16 %v1593
        %v2292 = vunpack.c.l.b16 %v1594
        %v2293 = vunpack.c.h.b16 %v1594
        %v2294 = vunpack.c.l.b16 %v1595
        %v2295 = vunpack.c.h.b16 %v1595
        %v2296 = vunpack.c.l.b16 %v1596
        %v2297 = vunpack.c.h.b16 %v1596
        %v2298 = vunpack.c.l.b16 %v1597
        %v2299 = vunpack.c.h.b16 %v1597
        %v2300 = vunpack.c.l.b16 %v1598
        %v2301 = vunpack.c.h.b16 %v1598
        %v2302 = vunpack.c.l.b16 %v1599
        %v2303 = vunpack.c.h.b16 %v1599
        %v2304 = vunpack.c.l.b16 %v1600
        %v2305 = vunpack.c.h.b16 %v1600
        %v2306 = vunpack.c.l.b16 %v1601
        %v2307 = vunpack.c.h.b16 %v1601
        %v2308 = vunpack.c.l.b16 %v1602
        %v2309 = vunpack.c.h.b16 %v1602
        %v2310 = vunpack.c.l.b16 %v1603
        %v2311 = vunpack.c.h.b16 %v1603
        %v2312 = vunpack.c.l.b16 %v1604
        %v2313 = vunpack.c.h.b16 %v1604
        %v2314 = vunpack.c.l.b16 %v1605
        %v2315 = vunpack.c.h.b16 %v1605
        %v2316 = vunpack.c.l.b16 %v1606
        %v2317 = vunpack.c.h.b16 %v1606
        %v2318 = vunpack.c.l.b16 %v1607
        %v2319 = vunpack.c.h.b16 %v1607
        %v2320 = vunpack.c.l.b16 %v1608
        %v2321 = vunpack.c.h.b16 %v1608
        %v2322 = vunpack.c.l.b16 %v1609
        %v2323 = vunpack.c.h.b16 %v1609
        %v2324 = vunpack.c.l.b16 %v1610
        %v2325 = vunpack.c.h.b16 %v1610
        %v2326 = vunpack.c.l.b16 %v1611
        %v2327 = vunpack.c.h.b16 %v1611
        %v2328 = vunpack.c.l.b16 %v1612
        %v2329 = vunpack.c.h.b16 %v1612
        %v2330 = vunpack.c.l.b16 %v1613
        %v2331 = vunpack.c.h.b16 %v1613
        %v2332 = vunpack.c.l.b16 %v1614
        %v2333 = vunpack.c.h.b16 %v1614
        %v2334 = vunpack.c.l.b16 %v1615
        %v2335 = vunpack.c.h.b16 %v1615
        %v2336 = vunpack.c.l.b16 %v1616
        %v2337 = vunpack.c.h.b16 %v1616
        %v2338 = vunpack.c.l.b16 %v1617
        %v2339 = vunpack.c.h.b16 %v1617
        %v2340 = vunpack.c.l.b16 %v1618
        %v2341 = vunpack.c.h.b16 %v1618
        %v2342 = vunpack.c.l.b16 %v1619
        %v2343 = vunpack.c.h.b16 %v1619
        %v2344 = vunpack.c.l.b16 %v1620
        %v2345 = vunpack.c.h.b16 %v1620
        %v2346 = vunpack.c.l.b16 %v1621
        %v2347 = vunpack.c.h.b16 %v1621
        %v2348 = vunpack.c.l.b16 %v1622
        %v2349 = vunpack.c.h.b16 %v1622
        %v2350 = vunpack.c.l.b16 %v1623
        %v2351 = vunpack.c.h.b16 %v1623
        %v2352 = vunpack.c.l.b16 %v1624
        %v2353 = vunpack.c.h.b16 %v1624
        %v2354 = vunpack.c.l.b16 %v1625
        %v2355 = vunpack.c.h.b16 %v1625
        %v2356 = vunpack.c.l.b16 %v1626
        %v2357 = vunpack.c.h.b16 %v1626
        %v2358 = vunpack.c.l.b16 %v1627
        %v2359 = vunpack.c.h.b16 %v1627
        %v2360 = vunpack.c.l.b16 %v1628
        %v2361 = vunpack.c.h.b16 %v1628
        %v2362 = vunpack.c.l.b16 %v1629
        %v2363 = vunpack.c.h.b16 %v1629
        %v2364 = vunpack.c.l.b16 %v1630
        %v2365 = vunpack.c.h.b16 %v1630
        %v2366 = vunpack.c.l.b16 %v1631
        %v2367 = vunpack.c.h.b16 %v1631
        %v2368 = vunpack.c.l.b16 %v1632
        %v2369 = vunpack.c.h.b16 %v1632
        %v2370 = vunpack.c.l.b16 %v1633
        %v2371 = vunpack.c.h.b16 %v1633
        %v2372 = vunpack.c.l.b16 %v1634
        %v2373 = vunpack.c.h.b16 %v1634
        %v2374 = vunpack.c.l.b16 %v1635
        %v2375 = vunpack.c.h.b16 %v1635
        %v2376 = vunpack.c.l.b16 %v1636
        %v2377 = vunpack.c.h.b16 %v1636
        %v2378 = vunpack.c.l.b16 %v1637
        %v2379 = vunpack.c.h.b16 %v1637
        %v2380 = vunpack.c.l.b16 %v1638
        %v2381 = vunpack.c.h.b16 %v1638
        %v2382 = vunpack.c.l.b16 %v1639
        %v2383 = vunpack.c.h.b16 %v1639
        %v2384 = vunpack.c.l.b16 %v1640
        %v2385 = vunpack.c.h.b16 %v1640
        %v2386 = vunpack.c.l.b16 %v1641
        %v2387 = vunpack.c.h.b16 %v1641
        %v2388 = vunpack.c.l.b16 %v1642
        %v2389 = vunpack.c.h.b16 %v1642
        %v2390 = vunpack.c.l.b16 %v1643
        %v2391 = vunpack.c.h.b16 %v1643
        %v2392 = vunpack.c.l.b16 %v1644
        %v2393 = vunpack.c.h.b16 %v1644
        %v2394 = vunpack.c.l.b16 %v1645
        %v2395 = vunpack.c.h.b16 %v1645
        %v2396 = vunpack.c.l.b16 %v1646
        %v2397 = vunpack.c.h.b16 %v1646
        %v2398 = vunpack.c.l.b16 %v1647
        %v2399 = vunpack.c.h.b16 %v1647
        %v2400 = vunpack.c.l.b16 %v1648
        %v2401 = vunpack.c.h.b16 %v1648
        %v2402 = vunpack.c.l.b16 %v1649
        %v2403 = vunpack.c.h.b16 %v1649
        %v2404 = vunpack.c.l.b16 %v1650
        %v2405 = vunpack.c.h.b16 %v1650
        %v2406 = vunpack.c.l.b16 %v1651
        %v2407 = vunpack.c.h.b16 %v1651
        %v2408 = vunpack.c.l.b16 %v1652
        %v2409 = vunpack.c.h.b16 %v1652
        %v2410 = vunpack.c.l.b16 %v1653
        %v2411 = vunpack.c.h.b16 %v1653
        %v2412 = vunpack.c.l.b16 %v1654
        %v2413 = vunpack.c.h.b16 %v1654
        %v2414 = vunpack.c.l.b16 %v1655
        %v2415 = vunpack.c.h.b16 %v1655
        %v2416 = vunpack.c.l.b16 %v1656
        %v2417 = vunpack.c.h.b16 %v1656
        %v2418 = vunpack.c.l.b16 %v1657
        %v2419 = vunpack.c.h.b16 %v1657
        %v2420 = vunpack.c.l.b16 %v1658
        %v2421 = vunpack.c.h.b16 %v1658
        %v2422 = vunpack.c.l.b16 %v1659
        %v2423 = vunpack.c.h.b16 %v1659
        %v2424 = vunpack.c.l.b16 %v1660
        %v2425 = vunpack.c.h.b16 %v1660
        %v2426 = vunpack.c.l.b16 %v1661
        %v2427 = vunpack.c.h.b16 %v1661
        %v2428 = vunpack.c.l.b16 %v1662
        %v2429 = vunpack.c.h.b16 %v1662
        %v2430 = vunpack.c.l.b16 %v1663
        %v2431 = vunpack.c.h.b16 %v1663
        %v2432 = vunpack.c.l.b16 %v1664
        %v2433 = vunpack.c.h.b16 %v1664
        %v2434 = vunpack.c.l.b16 %v1665
        %v2435 = vunpack.c.h.b16 %v1665
        %v2436 = vunpack.c.l.b16 %v1666
        %v2437 = vunpack.c.h.b16 %v1666
        %v2438 = vunpack.c.l.b16 %v1667
        %v2439 = vunpack.c.h.b16 %v1667
        %v2440 = vunpack.c.l.b16 %v1668
        %v2441 = vunpack.c.h.b16 %v1668
        %v2442 = vunpack.c.l.b16 %v1669
        %v2443 = vunpack.c.h.b16 %v1669
        %v2444 = vunpack.c.l.b16 %v1670
        %v2445 = vunpack.c.h.b16 %v1670
        %v2446 = vunpack.c.l.b16 %v1671
        %v2447 = vunpack.c.h.b16 %v1671
        %v2448 = vunpack.c.l.b16 %v1672
        %v2449 = vunpack.c.h.b16 %v1672
        %v2450 = vunpack.c.l.b16 %v1673
        %v2451 = vunpack.c.h.b16 %v1673
        %v2452 = vunpack.c.l.b16 %v1674
        %v2453 = vunpack.c.h.b16 %v1674
        %v2454 = vunpack.c.l.b16 %v1675
        %v2455 = vunpack.c.h.b16 %v1675
        %v2456 = vunpack.c.l.b16 %v1676
        %v2457 = vunpack.c.h.b16 %v1676
        %v2458 = vunpack.c.l.b16 %v1677
        %v2459 = vunpack.c.h.b16 %v1677
        %v2460 = vunpack.c.l.b16 %v1678
        %v2461 = vunpack.c.h.b16 %v1678
        %v2462 = vunpack.c.l.b16 %v1679
        %v2463 = vunpack.c.h.b16 %v1679
        %v2464 = vunpack.c.l.b16 %v1680
        %v2465 = vunpack.c.h.b16 %v1680
        %v2466 = vunpack.c.l.b16 %v1681
        %v2467 = vunpack.c.h.b16 %v1681
        %v2468 = vunpack.c.l.b16 %v1682
        %v2469 = vunpack.c.h.b16 %v1682
        %v2470 = vunpack.c.l.b16 %v1683
        %v2471 = vunpack.c.h.b16 %v1683
        %v2472 = vunpack.c.l.b16 %v1684
        %v2473 = vunpack.c.h.b16 %v1684
        %v2474 = vunpack.c.l.b16 %v1685
        %v2475 = vunpack.c.h.b16 %v1685
        %v2476 = vunpack.c.l.b16 %v1686
        %v2477 = vunpack.c.h.b16 %v1686
        %v2478 = vunpack.c.l.b16 %v1687
        %v2479 = vunpack.c.h.b16 %v1687
        %v2480 = vunpack.c.l.b16 %v1688
        %v2481 = vunpack.c.h.b16 %v1688
        %v2482 = vunpack.c.l.b16 %v1689
        %v2483 = vunpack.c.h.b16 %v1689
        %v2484 = vunpack.c.l.b16 %v1690
        %v2485 = vunpack.c.h.b16 %v1690
        %v2486 = vunpack.c.l.b16 %v1691
        %v2487 = vunpack.c.h.b16 %v1691
        %v2488 = vunpack.c.l.b16 %v1692
        %v2489 = vunpack.c.h.b16 %v1692
        %v2490 = vunpack.c.l.b16 %v1693
        %v2491 = vunpack.c.h.b16 %v1693
        %v2492 = vunpack.c.l.b16 %v1694
        %v2493 = vunpack.c.h.b16 %v1694
        %v2494 = vunpack.c.l.b16 %v1695
        %v2495 = vunpack.c.h.b16 %v1695
        %v2496 = vunpack.c.l.b16 %v1696
        %v2497 = vunpack.c.h.b16 %v1696
        %v2498 = vunpack.c.l.b16 %v1697
        %v2499 = vunpack.c.h.b16 %v1697
        %v2500 = vunpack.c.l.b16 %v1698
        %v2501 = vunpack.c.h.b16 %v1698
        %v2502 = vunpack.c.l.b16 %v1699
        %v2503 = vunpack.c.h.b16 %v1699
        %v2504 = vunpack.c.l.b16 %v1700
        %v2505 = vunpack.c.h.b16 %v1700
        %v2506 = vunpack.c.l.b16 %v1701
        %v2507 = vunpack.c.h.b16 %v1701
        %v2508 = vunpack.c.l.b16 %v1702
        %v2509 = vunpack.c.h.b16 %v1702
        %v2510 = vunpack.c.l.b16 %v1703
        %v2511 = vunpack.c.h.b16 %v1703
        %v2512 = vunpack.c.l.b16 %v1704
        %v2513 = vunpack.c.h.b16 %v1704
        %v2514 = vunpack.c.l.b16 %v1705
        %v2515 = vunpack.c.h.b16 %v1705
        %v2516 = vpack.c.b16 %v2012, %v2004
        %v2517 = vpack.c.b16 %v2013, %v2005
        %v2518 = vpack.c.b16 %v2014, %v2006
        %v2519 = vpack.c.b16 %v2015, %v2007
        %v2520 = vpack.c.b16 %v2016, %v2008
        %v2521 = vpack.c.b16 %v2017, %v2009
        %v2522 = vpack.c.b16 %v2018, %v2010
        %v2523 = vpack.c.b16 %v2019, %v2011
        %v2524 = vpack.c.b16 %v2028, %v2020
        %v2525 = vpack.c.b16 %v2029, %v2021
        %v2526 = vpack.c.b16 %v2030, %v2022
        %v2527 = vpack.c.b16 %v2031, %v2023
        %v2528 = vpack.c.b16 %v2032, %v2024
        %v2529 = vpack.c.b16 %v2033, %v2025
        %v2530 = vpack.c.b16 %v2034, %v2026
        %v2531 = vpack.c.b16 %v2035, %v2027
        %v2532 = vpack.c.b16 %v2044, %v2036
        %v2533 = vpack.c.b16 %v2045, %v2037
        %v2534 = vpack.c.b16 %v2046, %v2038
        %v2535 = vpack.c.b16 %v2047, %v2039
        %v2536 = vpack.c.b16 %v2048, %v2040
        %v2537 = vpack.c.b16 %v2049, %v2041
        %v2538 = vpack.c.b16 %v2050, %v2042
        %v2539 = vpack.c.b16 %v2051, %v2043
        %v2540 = vpack.c.b16 %v2060, %v2052
        %v2541 = vpack.c.b16 %v2061, %v2053
        %v2542 = vpack.c.b16 %v2062, %v2054
        %v2543 = vpack.c.b16 %v2063, %v2055
        %v2544 = vpack.c.b16 %v2064, %v2056
        %v2545 = vpack.c.b16 %v2065, %v2057
        %v2546 = vpack.c.b16 %v2066, %v2058
        %v2547 = vpack.c.b16 %v2067, %v2059
        %v2548 = vpack.c.b16 %v2076, %v2068
        %v2549 = vpack.c.b16 %v2077, %v2069
        %v2550 = vpack.c.b16 %v2078, %v2070
        %v2551 = vpack.c.b16 %v2079, %v2071
        %v2552 = vpack.c.b16 %v2080, %v2072
        %v2553 = vpack.c.b16 %v2081, %v2073
        %v2554 = vpack.c.b16 %v2082, %v2074
        %v2555 = vpack.c.b16 %v2083, %v2075
        %v2556 = vpack.c.b16 %v2092, %v2084
        %v2557 = vpack.c.b16 %v2093, %v2085
        %v2558 = vpack.c.b16 %v2094, %v2086
        %v2559 = vpack.c.b16 %v2095, %v2087
        %v2560 = vpack.c.b16 %v2096, %v2088
        %v2561 = vpack.c.b16 %v2097, %v2089
        %v2562 = vpack.c.b16 %v2098, %v2090
        %v2563 = vpack.c.b16 %v2099, %v2091
        %v2564 = vpack.c.b16 %v2108, %v2100
        %v2565 = vpack.c.b16 %v2109, %v2101
        %v2566 = vpack.c.b16 %v2110, %v2102
        %v2567 = vpack.c.b16 %v2111, %v2103
        %v2568 = vpack.c.b16 %v2112, %v2104
        %v2569 = vpack.c.b16 %v2113, %v2105
        %v2570 = vpack.c.b16 %v2114, %v2106
        %v2571 = vpack.c.b16 %v2115, %v2107
        %v2572 = vpack.c.b16 %v2124, %v2116
        %v2573 = vpack.c.b16 %v2125, %v2117
        %v2574 = vpack.c.b16 %v2126, %v2118
        %v2575 = vpack.c.b16 %v2127, %v2119
        %v2576 = vpack.c.b16 %v2128, %v2120
        %v2577 = vpack.c.b16 %v2129, %v2121
        %v2578 = vpack.c.b16 %v2130, %v2122
        %v2579 = vpack.c.b16 %v2131, %v2123
        %v2580 = vpack.c.b16 %v2140, %v2132
        %v2581 = vpack.c.b16 %v2141, %v2133
        %v2582 = vpack.c.b16 %v2142, %v2134
        %v2583 = vpack.c.b16 %v2143, %v2135
        %v2584 = vpack.c.b16 %v2144, %v2136
        %v2585 = vpack.c.b16 %v2145, %v2137
        %v2586 = vpack.c.b16 %v2146, %v2138
        %v2587 = vpack.c.b16 %v2147, %v2139
        %v2588 = vpack.c.b16 %v2156, %v2148
        %v2589 = vpack.c.b16 %v2157, %v2149
        %v2590 = vpack.c.b16 %v2158, %v2150
        %v2591 = vpack.c.b16 %v2159, %v2151
        %v2592 = vpack.c.b16 %v2160, %v2152
        %v2593 = vpack.c.b16 %v2161, %v2153
        %v2594 = vpack.c.b16 %v2162, %v2154
        %v2595 = vpack.c.b16 %v2163, %v2155
        %v2596 = vpack.c.b16 %v2172, %v2164
        %v2597 = vpack.c.b16 %v2173, %v2165
        %v2598 = vpack.c.b16 %v2174, %v2166
        %v2599 = vpack.c.b16 %v2175, %v2167
        %v2600 = vpack.c.b16 %v2176, %v2168
        %v2601 = vpack.c.b16 %v2177, %v2169
        %v2602 = vpack.c.b16 %v2178, %v2170
        %v2603 = vpack.c.b16 %v2179, %v2171
        %v2604 = vpack.c.b16 %v2188, %v2180
        %v2605 = vpack.c.b16 %v2189, %v2181
        %v2606 = vpack.c.b16 %v2190, %v2182
        %v2607 = vpack.c.b16 %v2191, %v2183
        %v2608 = vpack.c.b16 %v2192, %v2184
        %v2609 = vpack.c.b16 %v2193, %v2185
        %v2610 = vpack.c.b16 %v2194, %v2186
        %v2611 = vpack.c.b16 %v2195, %v2187
        %v2612 = vpack.c.b16 %v2204, %v2196
        %v2613 = vpack.c.b16 %v2205, %v2197
        %v2614 = vpack.c.b16 %v2206, %v2198
        %v2615 = vpack.c.b16 %v2207, %v2199
        %v2616 = vpack.c.b16 %v2208, %v2200
        %v2617 = vpack.c.b16 %v2209, %v2201
        %v2618 = vpack.c.b16 %v2210, %v2202
        %v2619 = vpack.c.b16 %v2211, %v2203
        %v2620 = vpack.c.b16 %v2220, %v2212
        %v2621 = vpack.c.b16 %v2221, %v2213
        %v2622 = vpack.c.b16 %v2222, %v2214
        %v2623 = vpack.c.b16 %v2223, %v2215
        %v2624 = vpack.c.b16 %v2224, %v2216
        %v2625 = vpack.c.b16 %v2225, %v2217
        %v2626 = vpack.c.b16 %v2226, %v2218
        %v2627 = vpack.c.b16 %v2227, %v2219
        %v2628 = vpack.c.b16 %v2236, %v2228
        %v2629 = vpack.c.b16 %v2237, %v2229
        %v2630 = vpack.c.b16 %v2238, %v2230
        %v2631 = vpack.c.b16 %v2239, %v2231
        %v2632 = vpack.c.b16 %v2240, %v2232
        %v2633 = vpack.c.b16 %v2241, %v2233
        %v2634 = vpack.c.b16 %v2242, %v2234
        %v2635 = vpack.c.b16 %v2243, %v2235
        %v2636 = vpack.c.b16 %v2252, %v2244
        %v2637 = vpack.c.b16 %v2253, %v2245
        %v2638 = vpack.c.b16 %v2254, %v2246
        %v2639 = vpack.c.b16 %v2255, %v2247
        %v2640 = vpack.c.b16 %v2256, %v2248
        %v2641 = vpack.c.b16 %v2257, %v2249
        %v2642 = vpack.c.b16 %v2258, %v2250
        %v2643 = vpack.c.b16 %v2259, %v2251
        %v2644 = vpack.c.b16 %v2268, %v2260
        %v2645 = vpack.c.b16 %v2269, %v2261
        %v2646 = vpack.c.b16 %v2270, %v2262
        %v2647 = vpack.c.b16 %v2271, %v2263
        %v2648 = vpack.c.b16 %v2272, %v2264
        %v2649 = vpack.c.b16 %v2273, %v2265
        %v2650 = vpack.c.b16 %v2274, %v2266
        %v2651 = vpack.c.b16 %v2275, %v2267
        %v2652 = vpack.c.b16 %v2284, %v2276
        %v2653 = vpack.c.b16 %v2285, %v2277
        %v2654 = vpack.c.b16 %v2286, %v2278
        %v2655 = vpack.c.b16 %v2287, %v2279
        %v2656 = vpack.c.b16 %v2288, %v2280
        %v2657 = vpack.c.b16 %v2289, %v2281
        %v2658 = vpack.c.b16 %v2290, %v2282
        %v2659 = vpack.c.b16 %v2291, %v2283
        %v2660 = vpack.c.b16 %v2300, %v2292
        %v2661 = vpack.c.b16 %v2301, %v2293
        %v2662 = vpack.c.b16 %v2302, %v2294
        %v2663 = vpack.c.b16 %v2303, %v2295
        %v2664 = vpack.c.b16 %v2304, %v2296
        %v2665 = vpack.c.b16 %v2305, %v2297
        %v2666 = vpack.c.b16 %v2306, %v2298
        %v2667 = vpack.c.b16 %v2307, %v2299
        %v2668 = vpack.c.b16 %v2316, %v2308
        %v2669 = vpack.c.b16 %v2317, %v2309
        %v2670 = vpack.c.b16 %v2318, %v2310
        %v2671 = vpack.c.b16 %v2319, %v2311
        %v2672 = vpack.c.b16 %v2320, %v2312
        %v2673 = vpack.c.b16 %v2321, %v2313
        %v2674 = vpack.c.b16 %v2322, %v2314
        %v2675 = vpack.c.b16 %v2323, %v2315
        %v2676 = vpack.c.b16 %v2332, %v2324
        %v2677 = vpack.c.b16 %v2333, %v2325
        %v2678 = vpack.c.b16 %v2334, %v2326
        %v2679 = vpack.c.b16 %v2335, %v2327
        %v2680 = vpack.c.b16 %v2336, %v2328
        %v2681 = vpack.c.b16 %v2337, %v2329
        %v2682 = vpack.c.b16 %v2338, %v2330
        %v2683 = vpack.c.b16 %v2339, %v2331
        %v2684 = vpack.c.b16 %v2348, %v2340
        %v2685 = vpack.c.b16 %v2349, %v2341
        %v2686 = vpack.c.b16 %v2350, %v2342
        %v2687 = vpack.c.b16 %v2351, %v2343
        %v2688 = vpack.c.b16 %v2352, %v2344
        %v2689 = vpack.c.b16 %v2353, %v2345
        %v2690 = vpack.c.b16 %v2354, %v2346
        %v2691 = vpack.c.b16 %v2355, %v2347
        %v2692 = vpack.c.b16 %v2364, %v2356
        %v2693 = vpack.c.b16 %v2365, %v2357
        %v2694 = vpack.c.b16 %v2366, %v2358
        %v2695 = vpack.c.b16 %v2367, %v2359
        %v2696 = vpack.c.b16 %v2368, %v2360
        %v2697 = vpack.c.b16 %v2369, %v2361
        %v2698 = vpack.c.b16 %v2370, %v2362
        %v2699 = vpack.c.b16 %v2371, %v2363
        %v2700 = vpack.c.b16 %v2380, %v2372
        %v2701 = vpack.c.b16 %v2381, %v2373
        %v2702 = vpack.c.b16 %v2382, %v2374
        %v2703 = vpack.c.b16 %v2383, %v2375
        %v2704 = vpack.c.b16 %v2384, %v2376
        %v2705 = vpack.c.b16 %v2385, %v2377
        %v2706 = vpack.c.b16 %v2386, %v2378
        %v2707 = vpack.c.b16 %v2387, %v2379
        %v2708 = vpack.c.b16 %v2396, %v2388
        %v2709 = vpack.c.b16 %v2397, %v2389
        %v2710 = vpack.c.b16 %v2398, %v2390
        %v2711 = vpack.c.b16 %v2399, %v2391
        %v2712 = vpack.c.b16 %v2400, %v2392
        %v2713 = vpack.c.b16 %v2401, %v2393
        %v2714 = vpack.c.b16 %v2402, %v2394
        %v2715 = vpack.c.b16 %v2403, %v2395
        %v2716 = vpack.c.b16 %v2412, %v2404
        %v2717 = vpack.c.b16 %v2413, %v2405
        %v2718 = vpack.c.b16 %v2414, %v2406
        %v2719 = vpack.c.b16 %v2415, %v2407
        %v2720 = vpack.c.b16 %v2416, %v2408
        %v2721 = vpack.c.b16 %v2417, %v2409
        %v2722 = vpack.c.b16 %v2418, %v2410
        %v2723 = vpack.c.b16 %v2419, %v2411
        %v2724 = vpack.c.b16 %v2428, %v2420
        %v2725 = vpack.c.b16 %v2429, %v2421
        %v2726 = vpack.c.b16 %v2430, %v2422
        %v2727 = vpack.c.b16 %v2431, %v2423
        %v2728 = vpack.c.b16 %v2432, %v2424
        %v2729 = vpack.c.b16 %v2433, %v2425
        %v2730 = vpack.c.b16 %v2434, %v2426
        %v2731 = vpack.c.b16 %v2435, %v2427
        %v2732 = vpack.c.b16 %v2444, %v2436
        %v2733 = vpack.c.b16 %v2445, %v2437
        %v2734 = vpack.c.b16 %v2446, %v2438
        %v2735 = vpack.c.b16 %v2447, %v2439
        %v2736 = vpack.c.b16 %v2448, %v2440
        %v2737 = vpack.c.b16 %v2449, %v2441
        %v2738 = vpack.c.b16 %v2450, %v2442
        %v2739 = vpack.c.b16 %v2451, %v2443
        %v2740 = vpack.c.b16 %v2460, %v2452
        %v2741 = vpack.c.b16 %v2461, %v2453
        %v2742 = vpack.c.b16 %v2462, %v2454
        %v2743 = vpack.c.b16 %v2463, %v2455
        %v2744 = vpack.c.b16 %v2464, %v2456
        %v2745 = vpack.c.b16 %v2465, %v2457
        %v2746 = vpack.c.b16 %v2466, %v2458
        %v2747 = vpack.c.b16 %v2467, %v2459
        %v2748 = vpack.c.b16 %v2476, %v2468
        %v2749 = vpack.c.b16 %v2477, %v2469
        %v2750 = vpack.c.b16 %v2478, %v2470
        %v2751 = vpack.c.b16 %v2479, %v2471
        %v2752 = vpack.c.b16 %v2480, %v2472
        %v2753 = vpack.c.b16 %v2481, %v2473
        %v2754 = vpack.c.b16 %v2482, %v2474
        %v2755 = vpack.c.b16 %v2483, %v2475
        %v2756 = vpack.c.b16 %v2492, %v2484
        %v2757 = vpack.c.b16 %v2493, %v2485
        %v2758 = vpack.c.b16 %v2494, %v2486
        %v2759 = vpack.c.b16 %v2495, %v2487
        %v2760 = vpack.c.b16 %v2496, %v2488
        %v2761 = vpack.c.b16 %v2497, %v2489
        %v2762 = vpack.c.b16 %v2498, %v2490
        %v2763 = vpack.c.b16 %v2499, %v2491
        %v2764 = vpack.c.b16 %v2508, %v2500
        %v2765 = vpack.c.b16 %v2509, %v2501
        %v2766 = vpack.c.b16 %v2510, %v2502
        %v2767 = vpack.c.b16 %v2511, %v2503
        %v2768 = vpack.c.b16 %v2512, %v2504
        %v2769 = vpack.c.b16 %v2513, %v2505
        %v2770 = vpack.c.b16 %v2514, %v2506
        %v2771 = vpack.c.b16 %v2515, %v2507
        %3028 = vmatprep.subr.bf16.mxu0 %v2517
        %3029 = vmatpush1.bf16.msra.mxu0 %v2516
        %3030 = vmatprep.subr.bf16.mxu0 %v2525
        %3031 = vmatpush1.bf16.msra.mxu0 %v2524
        %3032 = vmatprep.subr.bf16.mxu0 %v2533
        %3033 = vmatpush1.bf16.msra.mxu0 %v2532
        %3034 = vmatprep.subr.bf16.mxu0 %v2541
        %3035 = vmatpush1.bf16.msra.mxu0 %v2540
        %3036 = vmatprep.subr.bf16.mxu0 %v2549
        %3037 = vmatpush1.bf16.msra.mxu0 %v2548
        %3038 = vmatprep.subr.bf16.mxu0 %v2557
        %3039 = vmatpush1.bf16.msra.mxu0 %v2556
        %3040 = vmatprep.subr.bf16.mxu0 %v2565
        %3041 = vmatpush1.bf16.msra.mxu0 %v2564
        %3042 = vmatprep.subr.bf16.mxu0 %v2573
        %3043 = vmatpush1.bf16.msra.mxu0 %v2572
        %3044 = vmatprep.subr.bf16.mxu0 %v2581
        %3045 = vmatpush1.bf16.msra.mxu0 %v2580
        %3046 = vmatprep.subr.bf16.mxu0 %v2589
        %3047 = vmatpush1.bf16.msra.mxu0 %v2588
        %3048 = vmatprep.subr.bf16.mxu0 %v2597
        %3049 = vmatpush1.bf16.msra.mxu0 %v2596
        %3050 = vmatprep.subr.bf16.mxu0 %v2605
        %3051 = vmatpush1.bf16.msra.mxu0 %v2604
        %3052 = vmatprep.subr.bf16.mxu0 %v2613
        %3053 = vmatpush1.bf16.msra.mxu0 %v2612
        %3054 = vmatprep.subr.bf16.mxu0 %v2621
        %3055 = vmatpush1.bf16.msra.mxu0 %v2620
        %3056 = vmatprep.subr.bf16.mxu0 %v2629
        %3057 = vmatpush1.bf16.msra.mxu0 %v2628
        %3058 = vmatprep.subr.bf16.mxu0 %v2637
        %3059 = vmatpush1.bf16.msra.mxu0 %v2636
        %3060 = vmatprep.mubr.bf16.mxu0 %v1447
        %3061 = vmatmul.mubr.bf16.gmra.mrb[0].mxu0 %v1446
        %v3062 = vpop.f32.mrb[0].mxu0
        %v3063 = vadd.f32 %v1711, %v3062
        %v3064 = vpop.f32.mrb[0].mxu0
        %v3065 = vadd.f32 %v1715, %v3064
        %v3066 = vpop.f32.mrb[0].mxu0
        %v3067 = vpop.f32.mrb[0].mxu0
        %3068 = vdwg.mxu0
        %3069 = vmatprep.subr.bf16.mxu0 %v2645
        %3070 = vmatpush1.bf16.msra.mxu0 %v2644
        %3071 = vmatprep.subr.bf16.mxu0 %v2653
        %3072 = vmatpush1.bf16.msra.mxu0 %v2652
        %3073 = vmatprep.subr.bf16.mxu0 %v2661
        %3074 = vmatpush1.bf16.msra.mxu0 %v2660
        %3075 = vmatprep.subr.bf16.mxu0 %v2669
        %3076 = vmatpush1.bf16.msra.mxu0 %v2668
        %3077 = vmatprep.subr.bf16.mxu0 %v2677
        %3078 = vmatpush1.bf16.msra.mxu0 %v2676
        %3079 = vmatprep.subr.bf16.mxu0 %v2685
        %3080 = vmatpush1.bf16.msra.mxu0 %v2684
        %3081 = vmatprep.subr.bf16.mxu0 %v2693
        %3082 = vmatpush1.bf16.msra.mxu0 %v2692
        %3083 = vmatprep.subr.bf16.mxu0 %v2701
        %3084 = vmatpush1.bf16.msra.mxu0 %v2700
        %3085 = vmatprep.subr.bf16.mxu0 %v2709
        %3086 = vmatpush1.bf16.msra.mxu0 %v2708
        %3087 = vmatprep.subr.bf16.mxu0 %v2717
        %3088 = vmatpush1.bf16.msra.mxu0 %v2716
        %3089 = vmatprep.subr.bf16.mxu0 %v2725
        %3090 = vmatpush1.bf16.msra.mxu0 %v2724
        %3091 = vmatprep.subr.bf16.mxu0 %v2733
        %3092 = vmatpush1.bf16.msra.mxu0 %v2732
        %3093 = vmatprep.subr.bf16.mxu0 %v2741
        %3094 = vmatpush1.bf16.msra.mxu0 %v2740
        %3095 = vmatprep.subr.bf16.mxu0 %v2749
        %3096 = vmatpush1.bf16.msra.mxu0 %v2748
        %3097 = vmatprep.subr.bf16.mxu0 %v2757
        %3098 = vmatpush1.bf16.msra.mxu0 %v2756
        %3099 = vmatprep.subr.bf16.mxu0 %v2765
        %3100 = vmatpush1.bf16.msra.mxu0 %v2764
        %3101 = vmatprep.mubr.bf16.mxu0 %v1449
        %3102 = vmatmul.mubr.bf16.gmra.mrb[0].mxu0 %v1448
        %v3103 = vpop.f32.mrb[0].mxu0
        %v3104 = vadd.f32 %v3063, %v3103
        %v3105 = vpop.f32.mrb[0].mxu0
        %v3106 = vadd.f32 %v3065, %v3105
        %v3107 = vpop.f32.mrb[0].mxu0
        %v3108 = vpop.f32.mrb[0].mxu0
        %3109 = vdwg.mxu0
        %3110 = vmatprep.subr.bf16.mxu0 %v2519
        %3111 = vmatpush1.bf16.msra.mxu0 %v2518
        %3112 = vmatprep.subr.bf16.mxu0 %v2527
        %3113 = vmatpush1.bf16.msra.mxu0 %v2526
        %3114 = vmatprep.subr.bf16.mxu0 %v2535
        %3115 = vmatpush1.bf16.msra.mxu0 %v2534
        %3116 = vmatprep.subr.bf16.mxu0 %v2543
        %3117 = vmatpush1.bf16.msra.mxu0 %v2542
        %3118 = vmatprep.subr.bf16.mxu0 %v2551
        %3119 = vmatpush1.bf16.msra.mxu0 %v2550
        %3120 = vmatprep.subr.bf16.mxu0 %v2559
        %3121 = vmatpush1.bf16.msra.mxu0 %v2558
        %3122 = vmatprep.subr.bf16.mxu0 %v2567
        %3123 = vmatpush1.bf16.msra.mxu0 %v2566
        %3124 = vmatprep.subr.bf16.mxu0 %v2575
        %3125 = vmatpush1.bf16.msra.mxu0 %v2574
        %3126 = vmatprep.subr.bf16.mxu0 %v2583
        %3127 = vmatpush1.bf16.msra.mxu0 %v2582
        %3128 = vmatprep.subr.bf16.mxu0 %v2591
        %3129 = vmatpush1.bf16.msra.mxu0 %v2590
        %3130 = vmatprep.subr.bf16.mxu0 %v2599
        %3131 = vmatpush1.bf16.msra.mxu0 %v2598
        %3132 = vmatprep.subr.bf16.mxu0 %v2607
        %3133 = vmatpush1.bf16.msra.mxu0 %v2606
        %3134 = vmatprep.subr.bf16.mxu0 %v2615
        %3135 = vmatpush1.bf16.msra.mxu0 %v2614
        %3136 = vmatprep.subr.bf16.mxu0 %v2623
        %3137 = vmatpush1.bf16.msra.mxu0 %v2622
        %3138 = vmatprep.subr.bf16.mxu0 %v2631
        %3139 = vmatpush1.bf16.msra.mxu0 %v2630
        %3140 = vmatprep.subr.bf16.mxu0 %v2639
        %3141 = vmatpush1.bf16.msra.mxu0 %v2638
        %3142 = vmatprep.mubr.bf16.mxu0 %v1447
        %3143 = vmatmul.mubr.bf16.gmra.mrb[0].mxu0 %v1446
        %v3144 = vpop.f32.mrb[0].mxu0
        %v3145 = vadd.f32 %v1719, %v3144
        %v3146 = vpop.f32.mrb[0].mxu0
        %v3147 = vadd.f32 %v1723, %v3146
        %v3148 = vpop.f32.mrb[0].mxu0
        %v3149 = vpop.f32.mrb[0].mxu0
        %3150 = vdwg.mxu0
        %3151 = vmatprep.subr.bf16.mxu0 %v2647
        %3152 = vmatpush1.bf16.msra.mxu0 %v2646
        %3153 = vmatprep.subr.bf16.mxu0 %v2655
        %3154 = vmatpush1.bf16.msra.mxu0 %v2654
        %3155 = vmatprep.subr.bf16.mxu0 %v2663
        %3156 = vmatpush1.bf16.msra.mxu0 %v2662
        %3157 = vmatprep.subr.bf16.mxu0 %v2671
        %3158 = vmatpush1.bf16.msra.mxu0 %v2670
        %3159 = vmatprep.subr.bf16.mxu0 %v2679
        %3160 = vmatpush1.bf16.msra.mxu0 %v2678
        %3161 = vmatprep.subr.bf16.mxu0 %v2687
        %3162 = vmatpush1.bf16.msra.mxu0 %v2686
        %3163 = vmatprep.subr.bf16.mxu0 %v2695
        %3164 = vmatpush1.bf16.msra.mxu0 %v2694
        %3165 = vmatprep.subr.bf16.mxu0 %v2703
        %3166 = vmatpush1.bf16.msra.mxu0 %v2702
        %3167 = vmatprep.subr.bf16.mxu0 %v2711
        %3168 = vmatpush1.bf16.msra.mxu0 %v2710
        %3169 = vmatprep.subr.bf16.mxu0 %v2719
        %3170 = vmatpush1.bf16.msra.mxu0 %v2718
        %3171 = vmatprep.subr.bf16.mxu0 %v2727
        %3172 = vmatpush1.bf16.msra.mxu0 %v2726
        %3173 = vmatprep.subr.bf16.mxu0 %v2735
        %3174 = vmatpush1.bf16.msra.mxu0 %v2734
        %3175 = vmatprep.subr.bf16.mxu0 %v2743
        %3176 = vmatpush1.bf16.msra.mxu0 %v2742
        %3177 = vmatprep.subr.bf16.mxu0 %v2751
        %3178 = vmatpush1.bf16.msra.mxu0 %v2750
        %3179 = vmatprep.subr.bf16.mxu0 %v2759
        %3180 = vmatpush1.bf16.msra.mxu0 %v2758
        %3181 = vmatprep.subr.bf16.mxu0 %v2767
        %3182 = vmatpush1.bf16.msra.mxu0 %v2766
        %3183 = vmatprep.mubr.bf16.mxu0 %v1449
        %3184 = vmatmul.mubr.bf16.gmra.mrb[0].mxu0 %v1448
        %v3185 = vpop.f32.mrb[0].mxu0
        %v3186 = vadd.f32 %v3145, %v3185
        %v3187 = vpop.f32.mrb[0].mxu0
        %v3188 = vadd.f32 %v3147, %v3187
        %v3189 = vpop.f32.mrb[0].mxu0
        %v3190 = vpop.f32.mrb[0].mxu0
        %3191 = vdwg.mxu0
        %3192 = vmatprep.subr.bf16.mxu0 %v2521
        %3193 = vmatpush1.bf16.msra.mxu0 %v2520
        %3194 = vmatprep.subr.bf16.mxu0 %v2529
        %3195 = vmatpush1.bf16.msra.mxu0 %v2528
        %3196 = vmatprep.subr.bf16.mxu0 %v2537
        %3197 = vmatpush1.bf16.msra.mxu0 %v2536
        %3198 = vmatprep.subr.bf16.mxu0 %v2545
        %3199 = vmatpush1.bf16.msra.mxu0 %v2544
        %3200 = vmatprep.subr.bf16.mxu0 %v2553
        %3201 = vmatpush1.bf16.msra.mxu0 %v2552
        %3202 = vmatprep.subr.bf16.mxu0 %v2561
        %3203 = vmatpush1.bf16.msra.mxu0 %v2560
        %3204 = vmatprep.subr.bf16.mxu0 %v2569
        %3205 = vmatpush1.bf16.msra.mxu0 %v2568
        %3206 = vmatprep.subr.bf16.mxu0 %v2577
        %3207 = vmatpush1.bf16.msra.mxu0 %v2576
        %3208 = vmatprep.subr.bf16.mxu0 %v2585
        %3209 = vmatpush1.bf16.msra.mxu0 %v2584
        %3210 = vmatprep.subr.bf16.mxu0 %v2593
        %3211 = vmatpush1.bf16.msra.mxu0 %v2592
        %3212 = vmatprep.subr.bf16.mxu0 %v2601
        %3213 = vmatpush1.bf16.msra.mxu0 %v2600
        %3214 = vmatprep.subr.bf16.mxu0 %v2609
        %3215 = vmatpush1.bf16.msra.mxu0 %v2608
        %3216 = vmatprep.subr.bf16.mxu0 %v2617
        %3217 = vmatpush1.bf16.msra.mxu0 %v2616
        %3218 = vmatprep.subr.bf16.mxu0 %v2625
        %3219 = vmatpush1.bf16.msra.mxu0 %v2624
        %3220 = vmatprep.subr.bf16.mxu0 %v2633
        %3221 = vmatpush1.bf16.msra.mxu0 %v2632
        %3222 = vmatprep.subr.bf16.mxu0 %v2641
        %3223 = vmatpush1.bf16.msra.mxu0 %v2640
        %3224 = vmatprep.mubr.bf16.mxu0 %v1447
        %3225 = vmatmul.mubr.bf16.gmra.mrb[0].mxu0 %v1446
        %v3226 = vpop.f32.mrb[0].mxu0
        %v3227 = vadd.f32 %v1727, %v3226
        %v3228 = vpop.f32.mrb[0].mxu0
        %v3229 = vadd.f32 %v1731, %v3228
        %v3230 = vpop.f32.mrb[0].mxu0
        %v3231 = vpop.f32.mrb[0].mxu0
        %3232 = vdwg.mxu0
        %3233 = vmatprep.subr.bf16.mxu0 %v2649
        %3234 = vmatpush1.bf16.msra.mxu0 %v2648
        %3235 = vmatprep.subr.bf16.mxu0 %v2657
        %3236 = vmatpush1.bf16.msra.mxu0 %v2656
        %3237 = vmatprep.subr.bf16.mxu0 %v2665
        %3238 = vmatpush1.bf16.msra.mxu0 %v2664
        %3239 = vmatprep.subr.bf16.mxu0 %v2673
        %3240 = vmatpush1.bf16.msra.mxu0 %v2672
        %3241 = vmatprep.subr.bf16.mxu0 %v2681
        %3242 = vmatpush1.bf16.msra.mxu0 %v2680
        %3243 = vmatprep.subr.bf16.mxu0 %v2689
        %3244 = vmatpush1.bf16.msra.mxu0 %v2688
        %3245 = vmatprep.subr.bf16.mxu0 %v2697
        %3246 = vmatpush1.bf16.msra.mxu0 %v2696
        %3247 = vmatprep.subr.bf16.mxu0 %v2705
        %3248 = vmatpush1.bf16.msra.mxu0 %v2704
        %3249 = vmatprep.subr.bf16.mxu0 %v2713
        %3250 = vmatpush1.bf16.msra.mxu0 %v2712
        %3251 = vmatprep.subr.bf16.mxu0 %v2721
        %3252 = vmatpush1.bf16.msra.mxu0 %v2720
        %3253 = vmatprep.subr.bf16.mxu0 %v2729
        %3254 = vmatpush1.bf16.msra.mxu0 %v2728
        %3255 = vmatprep.subr.bf16.mxu0 %v2737
        %3256 = vmatpush1.bf16.msra.mxu0 %v2736
        %3257 = vmatprep.subr.bf16.mxu0 %v2745
        %3258 = vmatpush1.bf16.msra.mxu0 %v2744
        %3259 = vmatprep.subr.bf16.mxu0 %v2753
        %3260 = vmatpush1.bf16.msra.mxu0 %v2752
        %3261 = vmatprep.subr.bf16.mxu0 %v2761
        %3262 = vmatpush1.bf16.msra.mxu0 %v2760
        %3263 = vmatprep.subr.bf16.mxu0 %v2769
        %3264 = vmatpush1.bf16.msra.mxu0 %v2768
        %3265 = vmatprep.mubr.bf16.mxu0 %v1449
        %3266 = vmatmul.mubr.bf16.gmra.mrb[0].mxu0 %v1448
        %v3267 = vpop.f32.mrb[0].mxu0
        %v3268 = vadd.f32 %v3227, %v3267
        %v3269 = vpop.f32.mrb[0].mxu0
        %v3270 = vadd.f32 %v3229, %v3269
        %v3271 = vpop.f32.mrb[0].mxu0
        %v3272 = vpop.f32.mrb[0].mxu0
        %3273 = vdwg.mxu0
        %3274 = vmatprep.subr.bf16.mxu0 %v2523
        %3275 = vmatpush1.bf16.msra.mxu0 %v2522
        %3276 = vmatprep.subr.bf16.mxu0 %v2531
        %3277 = vmatpush1.bf16.msra.mxu0 %v2530
        %3278 = vmatprep.subr.bf16.mxu0 %v2539
        %3279 = vmatpush1.bf16.msra.mxu0 %v2538
        %3280 = vmatprep.subr.bf16.mxu0 %v2547
        %3281 = vmatpush1.bf16.msra.mxu0 %v2546
        %3282 = vmatprep.subr.bf16.mxu0 %v2555
        %3283 = vmatpush1.bf16.msra.mxu0 %v2554
        %3284 = vmatprep.subr.bf16.mxu0 %v2563
        %3285 = vmatpush1.bf16.msra.mxu0 %v2562
        %3286 = vmatprep.subr.bf16.mxu0 %v2571
        %3287 = vmatpush1.bf16.msra.mxu0 %v2570
        %3288 = vmatprep.subr.bf16.mxu0 %v2579
        %3289 = vmatpush1.bf16.msra.mxu0 %v2578
        %3290 = vmatprep.subr.bf16.mxu0 %v2587
        %3291 = vmatpush1.bf16.msra.mxu0 %v2586
        %3292 = vmatprep.subr.bf16.mxu0 %v2595
        %3293 = vmatpush1.bf16.msra.mxu0 %v2594
        %3294 = vmatprep.subr.bf16.mxu0 %v2603
        %3295 = vmatpush1.bf16.msra.mxu0 %v2602
        %3296 = vmatprep.subr.bf16.mxu0 %v2611
        %3297 = vmatpush1.bf16.msra.mxu0 %v2610
        %3298 = vmatprep.subr.bf16.mxu0 %v2619
        %3299 = vmatpush1.bf16.msra.mxu0 %v2618
        %3300 = vmatprep.subr.bf16.mxu0 %v2627
        %3301 = vmatpush1.bf16.msra.mxu0 %v2626
        %3302 = vmatprep.subr.bf16.mxu0 %v2635
        %3303 = vmatpush1.bf16.msra.mxu0 %v2634
        %3304 = vmatprep.subr.bf16.mxu0 %v2643
        %3305 = vmatpush1.bf16.msra.mxu0 %v2642
        %3306 = vmatprep.mubr.bf16.mxu0 %v1447
        %3307 = vmatmul.mubr.bf16.gmra.mrb[0].mxu0 %v1446
        %v3308 = vpop.f32.mrb[0].mxu0
        %v3309 = vadd.f32 %v1735, %v3308
        %v3310 = vpop.f32.mrb[0].mxu0
        %v3311 = vadd.f32 %v1739, %v3310
        %v3312 = vpop.f32.mrb[0].mxu0
        %v3313 = vpop.f32.mrb[0].mxu0
        %3314 = vdwg.mxu0
        %3315 = vmatprep.subr.bf16.mxu0 %v2651
        %3316 = vmatpush1.bf16.msra.mxu0 %v2650
        %3317 = vmatprep.subr.bf16.mxu0 %v2659
        %3318 = vmatpush1.bf16.msra.mxu0 %v2658
        %3319 = vmatprep.subr.bf16.mxu0 %v2667
        %3320 = vmatpush1.bf16.msra.mxu0 %v2666
        %3321 = vmatprep.subr.bf16.mxu0 %v2675
        %3322 = vmatpush1.bf16.msra.mxu0 %v2674
        %3323 = vmatprep.subr.bf16.mxu0 %v2683
        %3324 = vmatpush1.bf16.msra.mxu0 %v2682
        %3325 = vmatprep.subr.bf16.mxu0 %v2691
        %3326 = vmatpush1.bf16.msra.mxu0 %v2690
        %3327 = vmatprep.subr.bf16.mxu0 %v2699
        %3328 = vmatpush1.bf16.msra.mxu0 %v2698
        %3329 = vmatprep.subr.bf16.mxu0 %v2707
        %3330 = vmatpush1.bf16.msra.mxu0 %v2706
        %3331 = vmatprep.subr.bf16.mxu0 %v2715
        %3332 = vmatpush1.bf16.msra.mxu0 %v2714
        %3333 = vmatprep.subr.bf16.mxu0 %v2723
        %3334 = vmatpush1.bf16.msra.mxu0 %v2722
        %3335 = vmatprep.subr.bf16.mxu0 %v2731
        %3336 = vmatpush1.bf16.msra.mxu0 %v2730
        %3337 = vmatprep.subr.bf16.mxu0 %v2739
        %3338 = vmatpush1.bf16.msra.mxu0 %v2738
        %3339 = vmatprep.subr.bf16.mxu0 %v2747
        %3340 = vmatpush1.bf16.msra.mxu0 %v2746
        %3341 = vmatprep.subr.bf16.mxu0 %v2755
        %3342 = vmatpush1.bf16.msra.mxu0 %v2754
        %3343 = vmatprep.subr.bf16.mxu0 %v2763
        %3344 = vmatpush1.bf16.msra.mxu0 %v2762
        %3345 = vmatprep.subr.bf16.mxu0 %v2771
        %3346 = vmatpush1.bf16.msra.mxu0 %v2770
        %3347 = vmatprep.mubr.bf16.mxu0 %v1449
        %3348 = vmatmul.mubr.bf16.gmra.mrb[0].mxu0 %v1448
        %v3349 = vpop.f32.mrb[0].mxu0
        %v3350 = vadd.f32 %v3309, %v3349
        %v3351 = vpop.f32.mrb[0].mxu0
        %v3352 = vadd.f32 %v3311, %v3351
        %v3353 = vpop.f32.mrb[0].mxu0
        %v3354 = vpop.f32.mrb[0].mxu0
        %3355 = vdwg.mxu0
        %v3356 = vrot.slane %v3104, 4
        %v3357 = vadd.f32 %v3104, %v3356
        %v3358 = vrot.slane %v3357, 2
        %v3359 = vadd.f32 %v3357, %v3358
        %v3360 = vrot.slane %v3359, 1
        %v3361 = vadd.f32 %v3359, %v3360
        %v3362 = vrot.slane %v3106, 4
        %v3363 = vadd.f32 %v3106, %v3362
        %v3364 = vrot.slane %v3363, 2
        %v3365 = vadd.f32 %v3363, %v3364
        %v3366 = vrot.slane %v3365, 1
        %v3367 = vadd.f32 %v3365, %v3366
        %v3368 = vrot.slane %v3186, 4
        %v3369 = vadd.f32 %v3186, %v3368
        %v3370 = vrot.slane %v3369, 2
        %v3371 = vadd.f32 %v3369, %v3370
        %v3372 = vrot.slane %v3371, 1
        %v3373 = vadd.f32 %v3371, %v3372
        %v3374 = vrot.slane %v3188, 4
        %v3375 = vadd.f32 %v3188, %v3374
        %v3376 = vrot.slane %v3375, 2
        %v3377 = vadd.f32 %v3375, %v3376
        %v3378 = vrot.slane %v3377, 1
        %v3379 = vadd.f32 %v3377, %v3378
        %v3380 = vrot.slane %v3268, 4
        %v3381 = vadd.f32 %v3268, %v3380
        %v3382 = vrot.slane %v3381, 2
        %v3383 = vadd.f32 %v3381, %v3382
        %v3384 = vrot.slane %v3383, 1
        %v3385 = vadd.f32 %v3383, %v3384
        %v3386 = vrot.slane %v3270, 4
        %v3387 = vadd.f32 %v3270, %v3386
        %v3388 = vrot.slane %v3387, 2
        %v3389 = vadd.f32 %v3387, %v3388
        %v3390 = vrot.slane %v3389, 1
        %v3391 = vadd.f32 %v3389, %v3390
        %v3392 = vrot.slane %v3350, 4
        %v3393 = vadd.f32 %v3350, %v3392
        %v3394 = vrot.slane %v3393, 2
        %v3395 = vadd.f32 %v3393, %v3394
        %v3396 = vrot.slane %v3395, 1
        %v3397 = vadd.f32 %v3395, %v3396
        %v3398 = vrot.slane %v3352, 4
        %v3399 = vadd.f32 %v3352, %v3398
        %v3400 = vrot.slane %v3399, 2
        %v3401 = vadd.f32 %v3399, %v3400
        %v3402 = vrot.slane %v3401, 1
        %v3403 = vadd.f32 %v3401, %v3402
        %v3404 = vmul.f32 %v3361, %v823
        %v3405 = vmul.f32 %v3367, %v823
        %v3406 = vmul.f32 %v3373, %v823
        %v3407 = vmul.f32 %v3379, %v823
        %v3408 = vmul.f32 %v3385, %v823
        %v3409 = vmul.f32 %v3391, %v823
        %v3410 = vmul.f32 %v3397, %v823
        %v3411 = vmul.f32 %v3403, %v823
        %v3412 = vmul.f32 %v3104, %v3104
        %v3413 = vmul.f32 %v3106, %v3106
        %v3414 = vmul.f32 %v3186, %v3186
        %v3415 = vmul.f32 %v3188, %v3188
        %v3416 = vmul.f32 %v3268, %v3268
        %v3417 = vmul.f32 %v3270, %v3270
        %v3418 = vmul.f32 %v3350, %v3350
        %v3419 = vmul.f32 %v3352, %v3352
        %v3420 = vrot.slane %v3412, 4
        %v3421 = vadd.f32 %v3412, %v3420
        %v3422 = vrot.slane %v3421, 2
        %v3423 = vadd.f32 %v3421, %v3422
        %v3424 = vrot.slane %v3423, 1
        %v3425 = vadd.f32 %v3423, %v3424
        %v3426 = vrot.slane %v3413, 4
        %v3427 = vadd.f32 %v3413, %v3426
        %v3428 = vrot.slane %v3427, 2
        %v3429 = vadd.f32 %v3427, %v3428
        %v3430 = vrot.slane %v3429, 1
        %v3431 = vadd.f32 %v3429, %v3430
        %v3432 = vrot.slane %v3414, 4
        %v3433 = vadd.f32 %v3414, %v3432
        %v3434 = vrot.slane %v3433, 2
        %v3435 = vadd.f32 %v3433, %v3434
        %v3436 = vrot.slane %v3435, 1
        %v3437 = vadd.f32 %v3435, %v3436
        %v3438 = vrot.slane %v3415, 4
        %v3439 = vadd.f32 %v3415, %v3438
        %v3440 = vrot.slane %v3439, 2
        %v3441 = vadd.f32 %v3439, %v3440
        %v3442 = vrot.slane %v3441, 1
        %v3443 = vadd.f32 %v3441, %v3442
        %v3444 = vrot.slane %v3416, 4
        %v3445 = vadd.f32 %v3416, %v3444
        %v3446 = vrot.slane %v3445, 2
        %v3447 = vadd.f32 %v3445, %v3446
        %v3448 = vrot.slane %v3447, 1
        %v3449 = vadd.f32 %v3447, %v3448
        %v3450 = vrot.slane %v3417, 4
        %v3451 = vadd.f32 %v3417, %v3450
        %v3452 = vrot.slane %v3451, 2
        %v3453 = vadd.f32 %v3451, %v3452
        %v3454 = vrot.slane %v3453, 1
        %v3455 = vadd.f32 %v3453, %v3454
        %v3456 = vrot.slane %v3418, 4
        %v3457 = vadd.f32 %v3418, %v3456
        %v3458 = vrot.slane %v3457, 2
        %v3459 = vadd.f32 %v3457, %v3458
        %v3460 = vrot.slane %v3459, 1
        %v3461 = vadd.f32 %v3459, %v3460
        %v3462 = vrot.slane %v3419, 4
        %v3463 = vadd.f32 %v3419, %v3462
        %v3464 = vrot.slane %v3463, 2
        %v3465 = vadd.f32 %v3463, %v3464
        %v3466 = vrot.slane %v3465, 1
        %v3467 = vadd.f32 %v3465, %v3466
        %v3468 = vmul.f32 %v3425, %v823
        %v3469 = vmul.f32 %v3431, %v823
        %v3470 = vmul.f32 %v3437, %v823
        %v3471 = vmul.f32 %v3443, %v823
        %v3472 = vmul.f32 %v3449, %v823
        %v3473 = vmul.f32 %v3455, %v823
        %v3474 = vmul.f32 %v3461, %v823
        %v3475 = vmul.f32 %v3467, %v823
        %v3476 = vsub.f32 %v3104, %v3404
        %v3477 = vsub.f32 %v3106, %v3405
        %v3478 = vsub.f32 %v3186, %v3406
        %v3479 = vsub.f32 %v3188, %v3407
        %v3480 = vsub.f32 %v3268, %v3408
        %v3481 = vsub.f32 %v3270, %v3409
        %v3482 = vsub.f32 %v3350, %v3410
        %v3483 = vsub.f32 %v3352, %v3411
        %v3484 = vmul.f32 %v3404, %v3404
        %v3485 = vmul.f32 %v3405, %v3405
        %v3486 = vmul.f32 %v3406, %v3406
        %v3487 = vmul.f32 %v3407, %v3407
        %v3488 = vmul.f32 %v3408, %v3408
        %v3489 = vmul.f32 %v3409, %v3409
        %v3490 = vmul.f32 %v3410, %v3410
        %v3491 = vmul.f32 %v3411, %v3411
        %v3492 = vsub.f32 %v3468, %v3484
        %v3493 = vsub.f32 %v3469, %v3485
        %v3494 = vsub.f32 %v3470, %v3486
        %v3495 = vsub.f32 %v3471, %v3487
        %v3496 = vsub.f32 %v3472, %v3488
        %v3497 = vsub.f32 %v3473, %v3489
        %v3498 = vsub.f32 %v3474, %v3490
        %v3499 = vsub.f32 %v3475, %v3491
        %v3500 = vadd.f32 %v3492, 0.8
        %v3501 = vadd.f32 %v3493, 0.8
        %v3502 = vadd.f32 %v3494, 0.8
        %v3503 = vadd.f32 %v3495, 0.8
        %v3504 = vadd.f32 %v3496, 0.8
        %v3505 = vadd.f32 %v3497, 0.8
        %v3506 = vadd.f32 %v3498, 0.8
        %v3507 = vadd.f32 %v3499, 0.8
        %v3508 = vrsqrt.pop %v3500
        %v3509 = vrsqrt.pop %v3501
        %v3510 = vrsqrt.pop %v3502
        %v3511 = vrsqrt.pop %v3503
        %v3512 = vrsqrt.pop %v3504
        %v3513 = vrsqrt.pop %v3505
        %v3514 = vrsqrt.pop %v3506
        %v3515 = vrsqrt.pop %v3507
        %v3516 = vmul.f32 %v3476, %v3508
        %v3517 = vmul.f32 %v3477, %v3509
        %v3518 = vmul.f32 %v3478, %v3510
        %v3519 = vmul.f32 %v3479, %v3511
        %v3520 = vmul.f32 %v3480, %v3512
        %v3521 = vmul.f32 %v3481, %v3513
        %v3522 = vmul.f32 %v3482, %v3514
        %v3523 = vmul.f32 %v3483, %v3515
        %vm3524 = vcmp.gt.f32.partialorder %v3516, 0.0
        %vm3525 = vcmp.gt.f32.partialorder %v3517, 0.0
        %vm3526 = vcmp.gt.f32.partialorder %v3518, 0.0
        %vm3527 = vcmp.gt.f32.partialorder %v3519, 0.0
        %vm3528 = vcmp.gt.f32.partialorder %v3520, 0.0
        %vm3529 = vcmp.gt.f32.partialorder %v3521, 0.0
        %vm3530 = vcmp.gt.f32.partialorder %v3522, 0.0
        %vm3531 = vcmp.gt.f32.partialorder %v3523, 0.0
        %v3532 = vmul.f32 %v3516, 0.2
        %v3533 = vmul.f32 %v3517, 0.2
        %v3534 = vmul.f32 %v3518, 0.2
        %v3535 = vmul.f32 %v3519, 0.2
        %v3536 = vmul.f32 %v3520, 0.2
        %v3537 = vmul.f32 %v3521, 0.2
        %v3538 = vmul.f32 %v3522, 0.2
        %v3539 = vmul.f32 %v3523, 0.2
        %v3540 = vsel %vm3524, %v3516, %v3532
        %v3541 = vsel %vm3525, %v3517, %v3533
        %v3542 = vsel %vm3526, %v3518, %v3534
        %v3543 = vsel %vm3527, %v3519, %v3535
        %v3544 = vsel %vm3528, %v3520, %v3536
        %v3545 = vsel %vm3529, %v3521, %v3537
        %v3546 = vsel %vm3530, %v3522, %v3538
        %v3547 = vsel %vm3531, %v3523, %v3539
        %v3548 = vpack.c.bf16 %v3540, %v3540
        %v3549 = vpack.c.bf16 %v3541, %v3541
        %v3550 = vpack.c.bf16 %v3542, %v3542
        %v3551 = vpack.c.bf16 %v3543, %v3543
        %v3552 = vpack.c.bf16 %v3544, %v3544
        %v3553 = vpack.c.bf16 %v3545, %v3545
        %v3554 = vpack.c.bf16 %v3546, %v3546
        %v3555 = vpack.c.bf16 %v3547, %v3547
        %v3556 = vld [vmem:[%s508] sm:$0xff]
        %v3557 = vld [vmem:[%s508 + $0x8] sm:$0xff]
        %v3558 = vld [vmem:[%s508 + $0x10] sm:$0xff]
        %v3559 = vld [vmem:[%s508 + $0x18] sm:$0xff]
        %v3560 = vld [vmem:[%s508 + $0x20] sm:$0xff]
        %v3561 = vld [vmem:[%s508 + $0x28] sm:$0xff]
        %v3562 = vld [vmem:[%s508 + $0x30] sm:$0xff]
        %v3563 = vld [vmem:[%s508 + $0x38] sm:$0xff]
        %v3564 = vld [vmem:[%s508 + $0x40] sm:$0xff]
        %v3565 = vld [vmem:[%s508 + $0x48] sm:$0xff]
        %v3566 = vld [vmem:[%s508 + $0x50] sm:$0xff]
        %v3567 = vld [vmem:[%s508 + $0x58] sm:$0xff]
        %v3568 = vld [vmem:[%s508 + $0x60] sm:$0xff]
        %v3569 = vld [vmem:[%s508 + $0x68] sm:$0xff]
        %v3570 = vld [vmem:[%s508 + $0x70] sm:$0xff]
        %v3571 = vld [vmem:[%s508 + $0x78] sm:$0xff]
        %v3572 = vld [vmem:[%s508 + $0x80] sm:$0xff]
        %v3573 = vld [vmem:[%s508 + $0x88] sm:$0xff]
        %v3574 = vld [vmem:[%s508 + $0x90] sm:$0xff]
        %v3575 = vld [vmem:[%s508 + $0x98] sm:$0xff]
        %v3576 = vld [vmem:[%s508 + $0xa0] sm:$0xff]
        %v3577 = vld [vmem:[%s508 + $0xa8] sm:$0xff]
        %v3578 = vld [vmem:[%s508 + $0xb0] sm:$0xff]
        %v3579 = vld [vmem:[%s508 + $0xb8] sm:$0xff]
        %v3580 = vld [vmem:[%s508 + $0xc0] sm:$0xff]
        %v3581 = vld [vmem:[%s508 + $0xc8] sm:$0xff]
        %v3582 = vld [vmem:[%s508 + $0xd0] sm:$0xff]
        %v3583 = vld [vmem:[%s508 + $0xd8] sm:$0xff]
        %v3584 = vld [vmem:[%s508 + $0xe0] sm:$0xff]
        %v3585 = vld [vmem:[%s508 + $0xe8] sm:$0xff]
        %v3586 = vld [vmem:[%s508 + $0xf0] sm:$0xff]
        %v3587 = vld [vmem:[%s508 + $0xf8] sm:$0xff]
        %v3588 = vld [vmem:[%s508 + $0x100] sm:$0xff]
        %v3589 = vld [vmem:[%s508 + $0x108] sm:$0xff]
        %v3590 = vld [vmem:[%s508 + $0x110] sm:$0xff]
        %v3591 = vld [vmem:[%s508 + $0x118] sm:$0xff]
        %v3592 = vld [vmem:[%s508 + $0x120] sm:$0xff]
        %v3593 = vld [vmem:[%s508 + $0x128] sm:$0xff]
        %v3594 = vld [vmem:[%s508 + $0x130] sm:$0xff]
        %v3595 = vld [vmem:[%s508 + $0x138] sm:$0xff]
        %v3596 = vld [vmem:[%s508 + $0x140] sm:$0xff]
        %v3597 = vld [vmem:[%s508 + $0x148] sm:$0xff]
        %v3598 = vld [vmem:[%s508 + $0x150] sm:$0xff]
        %v3599 = vld [vmem:[%s508 + $0x158] sm:$0xff]
        %v3600 = vld [vmem:[%s508 + $0x160] sm:$0xff]
        %v3601 = vld [vmem:[%s508 + $0x168] sm:$0xff]
        %v3602 = vld [vmem:[%s508 + $0x170] sm:$0xff]
        %v3603 = vld [vmem:[%s508 + $0x178] sm:$0xff]
        %v3604 = vld [vmem:[%s508 + $0x180] sm:$0xff]
        %v3605 = vld [vmem:[%s508 + $0x188] sm:$0xff]
        %v3606 = vld [vmem:[%s508 + $0x190] sm:$0xff]
        %v3607 = vld [vmem:[%s508 + $0x198] sm:$0xff]
        %v3608 = vld [vmem:[%s508 + $0x1a0] sm:$0xff]
        %v3609 = vld [vmem:[%s508 + $0x1a8] sm:$0xff]
        %v3610 = vld [vmem:[%s508 + $0x1b0] sm:$0xff]
        %v3611 = vld [vmem:[%s508 + $0x1b8] sm:$0xff]
        %v3612 = vld [vmem:[%s508 + $0x1c0] sm:$0xff]
        %v3613 = vld [vmem:[%s508 + $0x1c8] sm:$0xff]
        %v3614 = vld [vmem:[%s508 + $0x1d0] sm:$0xff]
        %v3615 = vld [vmem:[%s508 + $0x1d8] sm:$0xff]
        %v3616 = vld [vmem:[%s508 + $0x1e0] sm:$0xff]
        %v3617 = vld [vmem:[%s508 + $0x1e8] sm:$0xff]
        %v3618 = vld [vmem:[%s508 + $0x1f0] sm:$0xff]
        %v3619 = vld [vmem:[%s508 + $0x1f8] sm:$0xff]
        %v3620 = vld [vmem:[%s508 + $0x200] sm:$0xff]
        %v3621 = vld [vmem:[%s508 + $0x208] sm:$0xff]
        %v3622 = vld [vmem:[%s508 + $0x210] sm:$0xff]
        %v3623 = vld [vmem:[%s508 + $0x218] sm:$0xff]
        %v3624 = vld [vmem:[%s508 + $0x220] sm:$0xff]
        %v3625 = vld [vmem:[%s508 + $0x228] sm:$0xff]
        %v3626 = vld [vmem:[%s508 + $0x230] sm:$0xff]
        %v3627 = vld [vmem:[%s508 + $0x238] sm:$0xff]
        %v3628 = vld [vmem:[%s508 + $0x240] sm:$0xff]
        %v3629 = vld [vmem:[%s508 + $0x248] sm:$0xff]
        %v3630 = vld [vmem:[%s508 + $0x250] sm:$0xff]
        %v3631 = vld [vmem:[%s508 + $0x258] sm:$0xff]
        %v3632 = vld [vmem:[%s508 + $0x260] sm:$0xff]
        %v3633 = vld [vmem:[%s508 + $0x268] sm:$0xff]
        %v3634 = vld [vmem:[%s508 + $0x270] sm:$0xff]
        %v3635 = vld [vmem:[%s508 + $0x278] sm:$0xff]
        %v3636 = vld [vmem:[%s508 + $0x280] sm:$0xff]
        %v3637 = vld [vmem:[%s508 + $0x288] sm:$0xff]
        %v3638 = vld [vmem:[%s508 + $0x290] sm:$0xff]
        %v3639 = vld [vmem:[%s508 + $0x298] sm:$0xff]
        %v3640 = vld [vmem:[%s508 + $0x2a0] sm:$0xff]
        %v3641 = vld [vmem:[%s508 + $0x2a8] sm:$0xff]
        %v3642 = vld [vmem:[%s508 + $0x2b0] sm:$0xff]
        %v3643 = vld [vmem:[%s508 + $0x2b8] sm:$0xff]
        %v3644 = vld [vmem:[%s508 + $0x2c0] sm:$0xff]
        %v3645 = vld [vmem:[%s508 + $0x2c8] sm:$0xff]
        %v3646 = vld [vmem:[%s508 + $0x2d0] sm:$0xff]
        %v3647 = vld [vmem:[%s508 + $0x2d8] sm:$0xff]
        %v3648 = vld [vmem:[%s508 + $0x2e0] sm:$0xff]
        %v3649 = vld [vmem:[%s508 + $0x2e8] sm:$0xff]
        %v3650 = vld [vmem:[%s508 + $0x2f0] sm:$0xff]
        %v3651 = vld [vmem:[%s508 + $0x2f8] sm:$0xff]
        %v3652 = vld [vmem:[%s508 + $0x300] sm:$0xff]
        %v3653 = vld [vmem:[%s508 + $0x308] sm:$0xff]
        %v3654 = vld [vmem:[%s508 + $0x310] sm:$0xff]
        %v3655 = vld [vmem:[%s508 + $0x318] sm:$0xff]
        %v3656 = vld [vmem:[%s508 + $0x320] sm:$0xff]
        %v3657 = vld [vmem:[%s508 + $0x328] sm:$0xff]
        %v3658 = vld [vmem:[%s508 + $0x330] sm:$0xff]
        %v3659 = vld [vmem:[%s508 + $0x338] sm:$0xff]
        %v3660 = vld [vmem:[%s508 + $0x340] sm:$0xff]
        %v3661 = vld [vmem:[%s508 + $0x348] sm:$0xff]
        %v3662 = vld [vmem:[%s508 + $0x350] sm:$0xff]
        %v3663 = vld [vmem:[%s508 + $0x358] sm:$0xff]
        %v3664 = vld [vmem:[%s508 + $0x360] sm:$0xff]
        %v3665 = vld [vmem:[%s508 + $0x368] sm:$0xff]
        %v3666 = vld [vmem:[%s508 + $0x370] sm:$0xff]
        %v3667 = vld [vmem:[%s508 + $0x378] sm:$0xff]
        %v3668 = vld [vmem:[%s508 + $0x380] sm:$0xff]
        %v3669 = vld [vmem:[%s508 + $0x388] sm:$0xff]
        %v3670 = vld [vmem:[%s508 + $0x390] sm:$0xff]
        %v3671 = vld [vmem:[%s508 + $0x398] sm:$0xff]
        %v3672 = vld [vmem:[%s508 + $0x3a0] sm:$0xff]
        %v3673 = vld [vmem:[%s508 + $0x3a8] sm:$0xff]
        %v3674 = vld [vmem:[%s508 + $0x3b0] sm:$0xff]
        %v3675 = vld [vmem:[%s508 + $0x3b8] sm:$0xff]
        %v3676 = vld [vmem:[%s508 + $0x3c0] sm:$0xff]
        %v3677 = vld [vmem:[%s508 + $0x3c8] sm:$0xff]
        %v3678 = vld [vmem:[%s508 + $0x3d0] sm:$0xff]
        %v3679 = vld [vmem:[%s508 + $0x3d8] sm:$0xff]
        %v3680 = vld [vmem:[%s508 + $0x3e0] sm:$0xff]
        %v3681 = vld [vmem:[%s508 + $0x3e8] sm:$0xff]
        %v3682 = vld [vmem:[%s508 + $0x3f0] sm:$0xff]
        %v3683 = vld [vmem:[%s508 + $0x3f8] sm:$0xff]
        %v3684 = vld [vmem:[%s508 + $0x400] sm:$0xff]
        %v3685 = vld [vmem:[%s508 + $0x408] sm:$0xff]
        %v3686 = vld [vmem:[%s508 + $0x410] sm:$0xff]
        %v3687 = vld [vmem:[%s508 + $0x418] sm:$0xff]
        %v3688 = vld [vmem:[%s508 + $0x420] sm:$0xff]
        %v3689 = vld [vmem:[%s508 + $0x428] sm:$0xff]
        %v3690 = vld [vmem:[%s508 + $0x430] sm:$0xff]
        %v3691 = vld [vmem:[%s508 + $0x438] sm:$0xff]
        %v3692 = vld [vmem:[%s508 + $0x440] sm:$0xff]
        %v3693 = vld [vmem:[%s508 + $0x448] sm:$0xff]
        %v3694 = vld [vmem:[%s508 + $0x450] sm:$0xff]
        %v3695 = vld [vmem:[%s508 + $0x458] sm:$0xff]
        %v3696 = vld [vmem:[%s508 + $0x460] sm:$0xff]
        %v3697 = vld [vmem:[%s508 + $0x468] sm:$0xff]
        %v3698 = vld [vmem:[%s508 + $0x470] sm:$0xff]
        %v3699 = vld [vmem:[%s508 + $0x478] sm:$0xff]
        %v3700 = vld [vmem:[%s508 + $0x480] sm:$0xff]
        %v3701 = vld [vmem:[%s508 + $0x488] sm:$0xff]
        %v3702 = vld [vmem:[%s508 + $0x490] sm:$0xff]
        %v3703 = vld [vmem:[%s508 + $0x498] sm:$0xff]
        %v3704 = vld [vmem:[%s508 + $0x4a0] sm:$0xff]
        %v3705 = vld [vmem:[%s508 + $0x4a8] sm:$0xff]
        %v3706 = vld [vmem:[%s508 + $0x4b0] sm:$0xff]
        %v3707 = vld [vmem:[%s508 + $0x4b8] sm:$0xff]
        %v3708 = vld [vmem:[%s508 + $0x4c0] sm:$0xff]
        %v3709 = vld [vmem:[%s508 + $0x4c8] sm:$0xff]
        %v3710 = vld [vmem:[%s508 + $0x4d0] sm:$0xff]
        %v3711 = vld [vmem:[%s508 + $0x4d8] sm:$0xff]
        %v3712 = vld [vmem:[%s508 + $0x4e0] sm:$0xff]
        %v3713 = vld [vmem:[%s508 + $0x4e8] sm:$0xff]
        %v3714 = vld [vmem:[%s508 + $0x4f0] sm:$0xff]
        %v3715 = vld [vmem:[%s508 + $0x4f8] sm:$0xff]
        %v3716 = vld [vmem:[%s508 + $0x500] sm:$0xff]
        %v3717 = vld [vmem:[%s508 + $0x508] sm:$0xff]
        %v3718 = vld [vmem:[%s508 + $0x510] sm:$0xff]
        %v3719 = vld [vmem:[%s508 + $0x518] sm:$0xff]
        %v3720 = vld [vmem:[%s508 + $0x520] sm:$0xff]
        %v3721 = vld [vmem:[%s508 + $0x528] sm:$0xff]
        %v3722 = vld [vmem:[%s508 + $0x530] sm:$0xff]
        %v3723 = vld [vmem:[%s508 + $0x538] sm:$0xff]
        %v3724 = vld [vmem:[%s508 + $0x540] sm:$0xff]
        %v3725 = vld [vmem:[%s508 + $0x548] sm:$0xff]
        %v3726 = vld [vmem:[%s508 + $0x550] sm:$0xff]
        %v3727 = vld [vmem:[%s508 + $0x558] sm:$0xff]
        %v3728 = vld [vmem:[%s508 + $0x560] sm:$0xff]
        %v3729 = vld [vmem:[%s508 + $0x568] sm:$0xff]
        %v3730 = vld [vmem:[%s508 + $0x570] sm:$0xff]
        %v3731 = vld [vmem:[%s508 + $0x578] sm:$0xff]
        %v3732 = vld [vmem:[%s508 + $0x580] sm:$0xff]
        %v3733 = vld [vmem:[%s508 + $0x588] sm:$0xff]
        %v3734 = vld [vmem:[%s508 + $0x590] sm:$0xff]
        %v3735 = vld [vmem:[%s508 + $0x598] sm:$0xff]
        %v3736 = vld [vmem:[%s508 + $0x5a0] sm:$0xff]
        %v3737 = vld [vmem:[%s508 + $0x5a8] sm:$0xff]
        %v3738 = vld [vmem:[%s508 + $0x5b0] sm:$0xff]
        %v3739 = vld [vmem:[%s508 + $0x5b8] sm:$0xff]
        %v3740 = vld [vmem:[%s508 + $0x5c0] sm:$0xff]
        %v3741 = vld [vmem:[%s508 + $0x5c8] sm:$0xff]
        %v3742 = vld [vmem:[%s508 + $0x5d0] sm:$0xff]
        %v3743 = vld [vmem:[%s508 + $0x5d8] sm:$0xff]
        %v3744 = vld [vmem:[%s508 + $0x5e0] sm:$0xff]
        %v3745 = vld [vmem:[%s508 + $0x5e8] sm:$0xff]
        %v3746 = vld [vmem:[%s508 + $0x5f0] sm:$0xff]
        %v3747 = vld [vmem:[%s508 + $0x5f8] sm:$0xff]
        %v3748 = vld [vmem:[%s508 + $0x600] sm:$0xff]
        %v3749 = vld [vmem:[%s508 + $0x608] sm:$0xff]
        %v3750 = vld [vmem:[%s508 + $0x610] sm:$0xff]
        %v3751 = vld [vmem:[%s508 + $0x618] sm:$0xff]
        %v3752 = vld [vmem:[%s508 + $0x620] sm:$0xff]
        %v3753 = vld [vmem:[%s508 + $0x628] sm:$0xff]
        %v3754 = vld [vmem:[%s508 + $0x630] sm:$0xff]
        %v3755 = vld [vmem:[%s508 + $0x638] sm:$0xff]
        %v3756 = vld [vmem:[%s508 + $0x640] sm:$0xff]
        %v3757 = vld [vmem:[%s508 + $0x648] sm:$0xff]
        %v3758 = vld [vmem:[%s508 + $0x650] sm:$0xff]
        %v3759 = vld [vmem:[%s508 + $0x658] sm:$0xff]
        %v3760 = vld [vmem:[%s508 + $0x660] sm:$0xff]
        %v3761 = vld [vmem:[%s508 + $0x668] sm:$0xff]
        %v3762 = vld [vmem:[%s508 + $0x670] sm:$0xff]
        %v3763 = vld [vmem:[%s508 + $0x678] sm:$0xff]
        %v3764 = vld [vmem:[%s508 + $0x680] sm:$0xff]
        %v3765 = vld [vmem:[%s508 + $0x688] sm:$0xff]
        %v3766 = vld [vmem:[%s508 + $0x690] sm:$0xff]
        %v3767 = vld [vmem:[%s508 + $0x698] sm:$0xff]
        %v3768 = vld [vmem:[%s508 + $0x6a0] sm:$0xff]
        %v3769 = vld [vmem:[%s508 + $0x6a8] sm:$0xff]
        %v3770 = vld [vmem:[%s508 + $0x6b0] sm:$0xff]
        %v3771 = vld [vmem:[%s508 + $0x6b8] sm:$0xff]
        %v3772 = vld [vmem:[%s508 + $0x6c0] sm:$0xff]
        %v3773 = vld [vmem:[%s508 + $0x6c8] sm:$0xff]
        %v3774 = vld [vmem:[%s508 + $0x6d0] sm:$0xff]
        %v3775 = vld [vmem:[%s508 + $0x6d8] sm:$0xff]
        %v3776 = vld [vmem:[%s508 + $0x6e0] sm:$0xff]
        %v3777 = vld [vmem:[%s508 + $0x6e8] sm:$0xff]
        %v3778 = vld [vmem:[%s508 + $0x6f0] sm:$0xff]
        %v3779 = vld [vmem:[%s508 + $0x6f8] sm:$0xff]
        %v3780 = vld [vmem:[%s508 + $0x700] sm:$0xff]
        %v3781 = vld [vmem:[%s508 + $0x708] sm:$0xff]
        %v3782 = vld [vmem:[%s508 + $0x710] sm:$0xff]
        %v3783 = vld [vmem:[%s508 + $0x718] sm:$0xff]
        %v3784 = vld [vmem:[%s508 + $0x720] sm:$0xff]
        %v3785 = vld [vmem:[%s508 + $0x728] sm:$0xff]
        %v3786 = vld [vmem:[%s508 + $0x730] sm:$0xff]
        %v3787 = vld [vmem:[%s508 + $0x738] sm:$0xff]
        %v3788 = vld [vmem:[%s508 + $0x740] sm:$0xff]
        %v3789 = vld [vmem:[%s508 + $0x748] sm:$0xff]
        %v3790 = vld [vmem:[%s508 + $0x750] sm:$0xff]
        %v3791 = vld [vmem:[%s508 + $0x758] sm:$0xff]
        %v3792 = vld [vmem:[%s508 + $0x760] sm:$0xff]
        %v3793 = vld [vmem:[%s508 + $0x768] sm:$0xff]
        %v3794 = vld [vmem:[%s508 + $0x770] sm:$0xff]
        %v3795 = vld [vmem:[%s508 + $0x778] sm:$0xff]
        %v3796 = vld [vmem:[%s508 + $0x780] sm:$0xff]
        %v3797 = vld [vmem:[%s508 + $0x788] sm:$0xff]
        %v3798 = vld [vmem:[%s508 + $0x790] sm:$0xff]
        %v3799 = vld [vmem:[%s508 + $0x798] sm:$0xff]
        %v3800 = vld [vmem:[%s508 + $0x7a0] sm:$0xff]
        %v3801 = vld [vmem:[%s508 + $0x7a8] sm:$0xff]
        %v3802 = vld [vmem:[%s508 + $0x7b0] sm:$0xff]
        %v3803 = vld [vmem:[%s508 + $0x7b8] sm:$0xff]
        %v3804 = vld [vmem:[%s508 + $0x7c0] sm:$0xff]
        %v3805 = vld [vmem:[%s508 + $0x7c8] sm:$0xff]
        %v3806 = vld [vmem:[%s508 + $0x7d0] sm:$0xff]
        %v3807 = vld [vmem:[%s508 + $0x7d8] sm:$0xff]
        %v3808 = vld [vmem:[%s508 + $0x7e0] sm:$0xff]
        %v3809 = vld [vmem:[%s508 + $0x7e8] sm:$0xff]
        %v3810 = vld [vmem:[%s508 + $0x7f0] sm:$0xff]
        %v3811 = vld [vmem:[%s508 + $0x7f8] sm:$0xff]
        %v3812 = vld [vmem:[%s508 + $0x800] sm:$0xff]
        %v3813 = vld [vmem:[%s508 + $0x808] sm:$0xff]
        %v3814 = vld [vmem:[%s508 + $0x810] sm:$0xff]
        %v3815 = vld [vmem:[%s508 + $0x818] sm:$0xff]
        %v3816 = vld [vmem:[%s508 + $0x820] sm:$0xff]
        %v3817 = vld [vmem:[%s508 + $0x828] sm:$0xff]
        %v3818 = vld [vmem:[%s508 + $0x830] sm:$0xff]
        %v3819 = vld [vmem:[%s508 + $0x838] sm:$0xff]
        %v3820 = vld [vmem:[%s508 + $0x840] sm:$0xff]
        %v3821 = vld [vmem:[%s508 + $0x848] sm:$0xff]
        %v3822 = vld [vmem:[%s508 + $0x850] sm:$0xff]
        %v3823 = vld [vmem:[%s508 + $0x858] sm:$0xff]
        %v3824 = vld [vmem:[%s508 + $0x860] sm:$0xff]
        %v3825 = vld [vmem:[%s508 + $0x868] sm:$0xff]
        %v3826 = vld [vmem:[%s508 + $0x870] sm:$0xff]
        %v3827 = vld [vmem:[%s508 + $0x878] sm:$0xff]
        %v3828 = vld [vmem:[%s508 + $0x880] sm:$0xff]
        %v3829 = vld [vmem:[%s508 + $0x888] sm:$0xff]
        %v3830 = vld [vmem:[%s508 + $0x890] sm:$0xff]
        %v3831 = vld [vmem:[%s508 + $0x898] sm:$0xff]
        %v3832 = vld [vmem:[%s508 + $0x8a0] sm:$0xff]
        %v3833 = vld [vmem:[%s508 + $0x8a8] sm:$0xff]
        %v3834 = vld [vmem:[%s508 + $0x8b0] sm:$0xff]
        %v3835 = vld [vmem:[%s508 + $0x8b8] sm:$0xff]
        %v3836 = vld [vmem:[%s508 + $0x8c0] sm:$0xff]
        %v3837 = vld [vmem:[%s508 + $0x8c8] sm:$0xff]
        %v3838 = vld [vmem:[%s508 + $0x8d0] sm:$0xff]
        %v3839 = vld [vmem:[%s508 + $0x8d8] sm:$0xff]
        %v3840 = vld [vmem:[%s508 + $0x8e0] sm:$0xff]
        %v3841 = vld [vmem:[%s508 + $0x8e8] sm:$0xff]
        %v3842 = vld [vmem:[%s508 + $0x8f0] sm:$0xff]
        %v3843 = vld [vmem:[%s508 + $0x8f8] sm:$0xff]
        %v3844 = vld [vmem:[%s508 + $0x900] sm:$0xff]
        %v3845 = vld [vmem:[%s508 + $0x908] sm:$0xff]
        %v3846 = vld [vmem:[%s508 + $0x910] sm:$0xff]
        %v3847 = vld [vmem:[%s508 + $0x918] sm:$0xff]
        %v3848 = vld [vmem:[%s508 + $0x920] sm:$0xff]
        %v3849 = vld [vmem:[%s508 + $0x928] sm:$0xff]
        %v3850 = vld [vmem:[%s508 + $0x930] sm:$0xff]
        %v3851 = vld [vmem:[%s508 + $0x938] sm:$0xff]
        %v3852 = vld [vmem:[%s508 + $0x940] sm:$0xff]
        %v3853 = vld [vmem:[%s508 + $0x948] sm:$0xff]
        %v3854 = vld [vmem:[%s508 + $0x950] sm:$0xff]
        %v3855 = vld [vmem:[%s508 + $0x958] sm:$0xff]
        %v3856 = vld [vmem:[%s508 + $0x960] sm:$0xff]
        %v3857 = vld [vmem:[%s508 + $0x968] sm:$0xff]
        %v3858 = vld [vmem:[%s508 + $0x970] sm:$0xff]
        %v3859 = vld [vmem:[%s508 + $0x978] sm:$0xff]
        %v3860 = vld [vmem:[%s508 + $0x980] sm:$0xff]
        %v3861 = vld [vmem:[%s508 + $0x988] sm:$0xff]
        %v3862 = vld [vmem:[%s508 + $0x990] sm:$0xff]
        %v3863 = vld [vmem:[%s508 + $0x998] sm:$0xff]
        %v3864 = vld [vmem:[%s508 + $0x9a0] sm:$0xff]
        %v3865 = vld [vmem:[%s508 + $0x9a8] sm:$0xff]
        %v3866 = vld [vmem:[%s508 + $0x9b0] sm:$0xff]
        %v3867 = vld [vmem:[%s508 + $0x9b8] sm:$0xff]
        %v3868 = vld [vmem:[%s508 + $0x9c0] sm:$0xff]
        %v3869 = vld [vmem:[%s508 + $0x9c8] sm:$0xff]
        %v3870 = vld [vmem:[%s508 + $0x9d0] sm:$0xff]
        %v3871 = vld [vmem:[%s508 + $0x9d8] sm:$0xff]
        %v3872 = vld [vmem:[%s508 + $0x9e0] sm:$0xff]
        %v3873 = vld [vmem:[%s508 + $0x9e8] sm:$0xff]
        %v3874 = vld [vmem:[%s508 + $0x9f0] sm:$0xff]
        %v3875 = vld [vmem:[%s508 + $0x9f8] sm:$0xff]
        %v3876 = vld [vmem:[%s508 + $0xa00] sm:$0xff]
        %v3877 = vld [vmem:[%s508 + $0xa08] sm:$0xff]
        %v3878 = vld [vmem:[%s508 + $0xa10] sm:$0xff]
        %v3879 = vld [vmem:[%s508 + $0xa18] sm:$0xff]
        %v3880 = vld [vmem:[%s508 + $0xa20] sm:$0xff]
        %v3881 = vld [vmem:[%s508 + $0xa28] sm:$0xff]
        %v3882 = vld [vmem:[%s508 + $0xa30] sm:$0xff]
        %v3883 = vld [vmem:[%s508 + $0xa38] sm:$0xff]
        %v3884 = vld [vmem:[%s508 + $0xa40] sm:$0xff]
        %v3885 = vld [vmem:[%s508 + $0xa48] sm:$0xff]
        %v3886 = vld [vmem:[%s508 + $0xa50] sm:$0xff]
        %v3887 = vld [vmem:[%s508 + $0xa58] sm:$0xff]
        %v3888 = vld [vmem:[%s508 + $0xa60] sm:$0xff]
        %v3889 = vld [vmem:[%s508 + $0xa68] sm:$0xff]
        %v3890 = vld [vmem:[%s508 + $0xa70] sm:$0xff]
        %v3891 = vld [vmem:[%s508 + $0xa78] sm:$0xff]
        %v3892 = vld [vmem:[%s508 + $0xa80] sm:$0xff]
        %v3893 = vld [vmem:[%s508 + $0xa88] sm:$0xff]
        %v3894 = vld [vmem:[%s508 + $0xa90] sm:$0xff]
        %v3895 = vld [vmem:[%s508 + $0xa98] sm:$0xff]
        %v3896 = vld [vmem:[%s508 + $0xaa0] sm:$0xff]
        %v3897 = vld [vmem:[%s508 + $0xaa8] sm:$0xff]
        %v3898 = vld [vmem:[%s508 + $0xab0] sm:$0xff]
        %v3899 = vld [vmem:[%s508 + $0xab8] sm:$0xff]
        %v3900 = vld [vmem:[%s508 + $0xac0] sm:$0xff]
        %v3901 = vld [vmem:[%s508 + $0xac8] sm:$0xff]
        %v3902 = vld [vmem:[%s508 + $0xad0] sm:$0xff]
        %v3903 = vld [vmem:[%s508 + $0xad8] sm:$0xff]
        %v3904 = vld [vmem:[%s508 + $0xae0] sm:$0xff]
        %v3905 = vld [vmem:[%s508 + $0xae8] sm:$0xff]
        %v3906 = vld [vmem:[%s508 + $0xaf0] sm:$0xff]
        %v3907 = vld [vmem:[%s508 + $0xaf8] sm:$0xff]
        %v3908 = vld [vmem:[%s508 + $0xb00] sm:$0xff]
        %v3909 = vld [vmem:[%s508 + $0xb08] sm:$0xff]
        %v3910 = vld [vmem:[%s508 + $0xb10] sm:$0xff]
        %v3911 = vld [vmem:[%s508 + $0xb18] sm:$0xff]
        %v3912 = vld [vmem:[%s508 + $0xb20] sm:$0xff]
        %v3913 = vld [vmem:[%s508 + $0xb28] sm:$0xff]
        %v3914 = vld [vmem:[%s508 + $0xb30] sm:$0xff]
        %v3915 = vld [vmem:[%s508 + $0xb38] sm:$0xff]
        %v3916 = vld [vmem:[%s508 + $0xb40] sm:$0xff]
        %v3917 = vld [vmem:[%s508 + $0xb48] sm:$0xff]
        %v3918 = vld [vmem:[%s508 + $0xb50] sm:$0xff]
        %v3919 = vld [vmem:[%s508 + $0xb58] sm:$0xff]
        %v3920 = vld [vmem:[%s508 + $0xb60] sm:$0xff]
        %v3921 = vld [vmem:[%s508 + $0xb68] sm:$0xff]
        %v3922 = vld [vmem:[%s508 + $0xb70] sm:$0xff]
        %v3923 = vld [vmem:[%s508 + $0xb78] sm:$0xff]
        %v3924 = vld [vmem:[%s508 + $0xb80] sm:$0xff]
        %v3925 = vld [vmem:[%s508 + $0xb88] sm:$0xff]
        %v3926 = vld [vmem:[%s508 + $0xb90] sm:$0xff]
        %v3927 = vld [vmem:[%s508 + $0xb98] sm:$0xff]
        %v3928 = vld [vmem:[%s508 + $0xba0] sm:$0xff]
        %v3929 = vld [vmem:[%s508 + $0xba8] sm:$0xff]
        %v3930 = vld [vmem:[%s508 + $0xbb0] sm:$0xff]
        %v3931 = vld [vmem:[%s508 + $0xbb8] sm:$0xff]
        %v3932 = vld [vmem:[%s508 + $0xbc0] sm:$0xff]
        %v3933 = vld [vmem:[%s508 + $0xbc8] sm:$0xff]
        %v3934 = vld [vmem:[%s508 + $0xbd0] sm:$0xff]
        %v3935 = vld [vmem:[%s508 + $0xbd8] sm:$0xff]
        %v3936 = vld [vmem:[%s508 + $0xbe0] sm:$0xff]
        %v3937 = vld [vmem:[%s508 + $0xbe8] sm:$0xff]
        %v3938 = vld [vmem:[%s508 + $0xbf0] sm:$0xff]
        %v3939 = vld [vmem:[%s508 + $0xbf8] sm:$0xff]
        %v3940 = vld [vmem:[%s508 + $0xc00] sm:$0xff]
        %v3941 = vld [vmem:[%s508 + $0xc08] sm:$0xff]
        %v3942 = vld [vmem:[%s508 + $0xc10] sm:$0xff]
        %v3943 = vld [vmem:[%s508 + $0xc18] sm:$0xff]
        %v3944 = vld [vmem:[%s508 + $0xc20] sm:$0xff]
        %v3945 = vld [vmem:[%s508 + $0xc28] sm:$0xff]
        %v3946 = vld [vmem:[%s508 + $0xc30] sm:$0xff]
        %v3947 = vld [vmem:[%s508 + $0xc38] sm:$0xff]
        %v3948 = vld [vmem:[%s508 + $0xc40] sm:$0xff]
        %v3949 = vld [vmem:[%s508 + $0xc48] sm:$0xff]
        %v3950 = vld [vmem:[%s508 + $0xc50] sm:$0xff]
        %v3951 = vld [vmem:[%s508 + $0xc58] sm:$0xff]
        %v3952 = vld [vmem:[%s508 + $0xc60] sm:$0xff]
        %v3953 = vld [vmem:[%s508 + $0xc68] sm:$0xff]
        %v3954 = vld [vmem:[%s508 + $0xc70] sm:$0xff]
        %v3955 = vld [vmem:[%s508 + $0xc78] sm:$0xff]
        %v3956 = vld [vmem:[%s508 + $0xc80] sm:$0xff]
        %v3957 = vld [vmem:[%s508 + $0xc88] sm:$0xff]
        %v3958 = vld [vmem:[%s508 + $0xc90] sm:$0xff]
        %v3959 = vld [vmem:[%s508 + $0xc98] sm:$0xff]
        %v3960 = vld [vmem:[%s508 + $0xca0] sm:$0xff]
        %v3961 = vld [vmem:[%s508 + $0xca8] sm:$0xff]
        %v3962 = vld [vmem:[%s508 + $0xcb0] sm:$0xff]
        %v3963 = vld [vmem:[%s508 + $0xcb8] sm:$0xff]
        %v3964 = vld [vmem:[%s508 + $0xcc0] sm:$0xff]
        %v3965 = vld [vmem:[%s508 + $0xcc8] sm:$0xff]
        %v3966 = vld [vmem:[%s508 + $0xcd0] sm:$0xff]
        %v3967 = vld [vmem:[%s508 + $0xcd8] sm:$0xff]
        %v3968 = vld [vmem:[%s508 + $0xce0] sm:$0xff]
        %v3969 = vld [vmem:[%s508 + $0xce8] sm:$0xff]
        %v3970 = vld [vmem:[%s508 + $0xcf0] sm:$0xff]
        %v3971 = vld [vmem:[%s508 + $0xcf8] sm:$0xff]
        %v3972 = vld [vmem:[%s508 + $0xd00] sm:$0xff]
        %v3973 = vld [vmem:[%s508 + $0xd08] sm:$0xff]
        %v3974 = vld [vmem:[%s508 + $0xd10] sm:$0xff]
        %v3975 = vld [vmem:[%s508 + $0xd18] sm:$0xff]
        %v3976 = vld [vmem:[%s508 + $0xd20] sm:$0xff]
        %v3977 = vld [vmem:[%s508 + $0xd28] sm:$0xff]
        %v3978 = vld [vmem:[%s508 + $0xd30] sm:$0xff]
        %v3979 = vld [vmem:[%s508 + $0xd38] sm:$0xff]
        %v3980 = vld [vmem:[%s508 + $0xd40] sm:$0xff]
        %v3981 = vld [vmem:[%s508 + $0xd48] sm:$0xff]
        %v3982 = vld [vmem:[%s508 + $0xd50] sm:$0xff]
        %v3983 = vld [vmem:[%s508 + $0xd58] sm:$0xff]
        %v3984 = vld [vmem:[%s508 + $0xd60] sm:$0xff]
        %v3985 = vld [vmem:[%s508 + $0xd68] sm:$0xff]
        %v3986 = vld [vmem:[%s508 + $0xd70] sm:$0xff]
        %v3987 = vld [vmem:[%s508 + $0xd78] sm:$0xff]
        %v3988 = vld [vmem:[%s508 + $0xd80] sm:$0xff]
        %v3989 = vld [vmem:[%s508 + $0xd88] sm:$0xff]
        %v3990 = vld [vmem:[%s508 + $0xd90] sm:$0xff]
        %v3991 = vld [vmem:[%s508 + $0xd98] sm:$0xff]
        %v3992 = vld [vmem:[%s508 + $0xda0] sm:$0xff]
        %v3993 = vld [vmem:[%s508 + $0xda8] sm:$0xff]
        %v3994 = vld [vmem:[%s508 + $0xdb0] sm:$0xff]
        %v3995 = vld [vmem:[%s508 + $0xdb8] sm:$0xff]
        %v3996 = vld [vmem:[%s508 + $0xdc0] sm:$0xff]
        %v3997 = vld [vmem:[%s508 + $0xdc8] sm:$0xff]
        %v3998 = vld [vmem:[%s508 + $0xdd0] sm:$0xff]
        %v3999 = vld [vmem:[%s508 + $0xdd8] sm:$0xff]
        %v4000 = vld [vmem:[%s508 + $0xde0] sm:$0xff]
        %v4001 = vld [vmem:[%s508 + $0xde8] sm:$0xff]
        %v4002 = vld [vmem:[%s508 + $0xdf0] sm:$0xff]
        %v4003 = vld [vmem:[%s508 + $0xdf8] sm:$0xff]
        %v4004 = vld [vmem:[%s508 + $0xe00] sm:$0xff]
        %v4005 = vld [vmem:[%s508 + $0xe08] sm:$0xff]
        %v4006 = vld [vmem:[%s508 + $0xe10] sm:$0xff]
        %v4007 = vld [vmem:[%s508 + $0xe18] sm:$0xff]
        %v4008 = vld [vmem:[%s508 + $0xe20] sm:$0xff]
        %v4009 = vld [vmem:[%s508 + $0xe28] sm:$0xff]
        %v4010 = vld [vmem:[%s508 + $0xe30] sm:$0xff]
        %v4011 = vld [vmem:[%s508 + $0xe38] sm:$0xff]
        %v4012 = vld [vmem:[%s508 + $0xe40] sm:$0xff]
        %v4013 = vld [vmem:[%s508 + $0xe48] sm:$0xff]
        %v4014 = vld [vmem:[%s508 + $0xe50] sm:$0xff]
        %v4015 = vld [vmem:[%s508 + $0xe58] sm:$0xff]
        %v4016 = vld [vmem:[%s508 + $0xe60] sm:$0xff]
        %v4017 = vld [vmem:[%s508 + $0xe68] sm:$0xff]
        %v4018 = vld [vmem:[%s508 + $0xe70] sm:$0xff]
        %v4019 = vld [vmem:[%s508 + $0xe78] sm:$0xff]
        %v4020 = vld [vmem:[%s508 + $0xe80] sm:$0xff]
        %v4021 = vld [vmem:[%s508 + $0xe88] sm:$0xff]
        %v4022 = vld [vmem:[%s508 + $0xe90] sm:$0xff]
        %v4023 = vld [vmem:[%s508 + $0xe98] sm:$0xff]
        %v4024 = vld [vmem:[%s508 + $0xea0] sm:$0xff]
        %v4025 = vld [vmem:[%s508 + $0xea8] sm:$0xff]
        %v4026 = vld [vmem:[%s508 + $0xeb0] sm:$0xff]
        %v4027 = vld [vmem:[%s508 + $0xeb8] sm:$0xff]
        %v4028 = vld [vmem:[%s508 + $0xec0] sm:$0xff]
        %v4029 = vld [vmem:[%s508 + $0xec8] sm:$0xff]
        %v4030 = vld [vmem:[%s508 + $0xed0] sm:$0xff]
        %v4031 = vld [vmem:[%s508 + $0xed8] sm:$0xff]
        %v4032 = vld [vmem:[%s508 + $0xee0] sm:$0xff]
        %v4033 = vld [vmem:[%s508 + $0xee8] sm:$0xff]
        %v4034 = vld [vmem:[%s508 + $0xef0] sm:$0xff]
        %v4035 = vld [vmem:[%s508 + $0xef8] sm:$0xff]
        %v4036 = vld [vmem:[%s508 + $0xf00] sm:$0xff]
        %v4037 = vld [vmem:[%s508 + $0xf08] sm:$0xff]
        %v4038 = vld [vmem:[%s508 + $0xf10] sm:$0xff]
        %v4039 = vld [vmem:[%s508 + $0xf18] sm:$0xff]
        %v4040 = vld [vmem:[%s508 + $0xf20] sm:$0xff]
        %v4041 = vld [vmem:[%s508 + $0xf28] sm:$0xff]
        %v4042 = vld [vmem:[%s508 + $0xf30] sm:$0xff]
        %v4043 = vld [vmem:[%s508 + $0xf38] sm:$0xff]
        %v4044 = vld [vmem:[%s508 + $0xf40] sm:$0xff]
        %v4045 = vld [vmem:[%s508 + $0xf48] sm:$0xff]
        %v4046 = vld [vmem:[%s508 + $0xf50] sm:$0xff]
        %v4047 = vld [vmem:[%s508 + $0xf58] sm:$0xff]
        %v4048 = vld [vmem:[%s508 + $0xf60] sm:$0xff]
        %v4049 = vld [vmem:[%s508 + $0xf68] sm:$0xff]
        %v4050 = vld [vmem:[%s508 + $0xf70] sm:$0xff]
        %v4051 = vld [vmem:[%s508 + $0xf78] sm:$0xff]
        %v4052 = vld [vmem:[%s508 + $0xf80] sm:$0xff]
        %v4053 = vld [vmem:[%s508 + $0xf88] sm:$0xff]
        %v4054 = vld [vmem:[%s508 + $0xf90] sm:$0xff]
        %v4055 = vld [vmem:[%s508 + $0xf98] sm:$0xff]
        %v4056 = vld [vmem:[%s508 + $0xfa0] sm:$0xff]
        %v4057 = vld [vmem:[%s508 + $0xfa8] sm:$0xff]
        %v4058 = vld [vmem:[%s508 + $0xfb0] sm:$0xff]
        %v4059 = vld [vmem:[%s508 + $0xfb8] sm:$0xff]
        %v4060 = vld [vmem:[%s508 + $0xfc0] sm:$0xff]
        %v4061 = vld [vmem:[%s508 + $0xfc8] sm:$0xff]
        %v4062 = vld [vmem:[%s508 + $0xfd0] sm:$0xff]
        %v4063 = vld [vmem:[%s508 + $0xfd8] sm:$0xff]
        %v4064 = vld [vmem:[%s508 + $0xfe0] sm:$0xff]
        %v4065 = vld [vmem:[%s508 + $0xfe8] sm:$0xff]
        %v4066 = vld [vmem:[%s508 + $0xff0] sm:$0xff]
        %v4067 = vld [vmem:[%s508 + $0xff8] sm:$0xff]
        %v4068 = vld [vmem:[%s508 + $0x1000] sm:$0xff]
        %v4069 = vld [vmem:[%s508 + $0x1008] sm:$0xff]
        %v4070 = vld [vmem:[%s508 + $0x1010] sm:$0xff]
        %v4071 = vld [vmem:[%s508 + $0x1018] sm:$0xff]
        %v4072 = vld [vmem:[%s508 + $0x1020] sm:$0xff]
        %v4073 = vld [vmem:[%s508 + $0x1028] sm:$0xff]
        %v4074 = vld [vmem:[%s508 + $0x1030] sm:$0xff]
        %v4075 = vld [vmem:[%s508 + $0x1038] sm:$0xff]
        %v4076 = vld [vmem:[%s508 + $0x1040] sm:$0xff]
        %v4077 = vld [vmem:[%s508 + $0x1048] sm:$0xff]
        %v4078 = vld [vmem:[%s508 + $0x1050] sm:$0xff]
        %v4079 = vld [vmem:[%s508 + $0x1058] sm:$0xff]
        %v4080 = vld [vmem:[%s508 + $0x1060] sm:$0xff]
        %v4081 = vld [vmem:[%s508 + $0x1068] sm:$0xff]
        %v4082 = vld [vmem:[%s508 + $0x1070] sm:$0xff]
        %v4083 = vld [vmem:[%s508 + $0x1078] sm:$0xff]
        %v4084 = vld [vmem:[%s508 + $0x1080] sm:$0xff]
        %v4085 = vld [vmem:[%s508 + $0x1088] sm:$0xff]
        %v4086 = vld [vmem:[%s508 + $0x1090] sm:$0xff]
        %v4087 = vld [vmem:[%s508 + $0x1098] sm:$0xff]
        %v4088 = vld [vmem:[%s508 + $0x10a0] sm:$0xff]
        %v4089 = vld [vmem:[%s508 + $0x10a8] sm:$0xff]
        %v4090 = vld [vmem:[%s508 + $0x10b0] sm:$0xff]
        %v4091 = vld [vmem:[%s508 + $0x10b8] sm:$0xff]
        %v4092 = vld [vmem:[%s508 + $0x10c0] sm:$0xff]
        %v4093 = vld [vmem:[%s508 + $0x10c8] sm:$0xff]
        %v4094 = vld [vmem:[%s508 + $0x10d0] sm:$0xff]
        %v4095 = vld [vmem:[%s508 + $0x10d8] sm:$0xff]
        %v4096 = vld [vmem:[%s508 + $0x10e0] sm:$0xff]
        %v4097 = vld [vmem:[%s508 + $0x10e8] sm:$0xff]
        %v4098 = vld [vmem:[%s508 + $0x10f0] sm:$0xff]
        %v4099 = vld [vmem:[%s508 + $0x10f8] sm:$0xff]
        %v4100 = vld [vmem:[%s508 + $0x1100] sm:$0xff]
        %v4101 = vld [vmem:[%s508 + $0x1108] sm:$0xff]
        %v4102 = vld [vmem:[%s508 + $0x1110] sm:$0xff]
        %v4103 = vld [vmem:[%s508 + $0x1118] sm:$0xff]
        %v4104 = vld [vmem:[%s508 + $0x1120] sm:$0xff]
        %v4105 = vld [vmem:[%s508 + $0x1128] sm:$0xff]
        %v4106 = vld [vmem:[%s508 + $0x1130] sm:$0xff]
        %v4107 = vld [vmem:[%s508 + $0x1138] sm:$0xff]
        %v4108 = vld [vmem:[%s508 + $0x1140] sm:$0xff]
        %v4109 = vld [vmem:[%s508 + $0x1148] sm:$0xff]
        %v4110 = vld [vmem:[%s508 + $0x1150] sm:$0xff]
        %v4111 = vld [vmem:[%s508 + $0x1158] sm:$0xff]
        %v4112 = vld [vmem:[%s508 + $0x1160] sm:$0xff]
        %v4113 = vld [vmem:[%s508 + $0x1168] sm:$0xff]
        %v4114 = vld [vmem:[%s508 + $0x1170] sm:$0xff]
        %v4115 = vld [vmem:[%s508 + $0x1178] sm:$0xff]
        %v4116 = vld [vmem:[%s508 + $0x1180] sm:$0xff]
        %v4117 = vld [vmem:[%s508 + $0x1188] sm:$0xff]
        %v4118 = vld [vmem:[%s508 + $0x1190] sm:$0xff]
        %v4119 = vld [vmem:[%s508 + $0x1198] sm:$0xff]
        %v4120 = vld [vmem:[%s508 + $0x11a0] sm:$0xff]
        %v4121 = vld [vmem:[%s508 + $0x11a8] sm:$0xff]
        %v4122 = vld [vmem:[%s508 + $0x11b0] sm:$0xff]
        %v4123 = vld [vmem:[%s508 + $0x11b8] sm:$0xff]
        %v4124 = vld [vmem:[%s508 + $0x11c0] sm:$0xff]
        %v4125 = vld [vmem:[%s508 + $0x11c8] sm:$0xff]
        %v4126 = vld [vmem:[%s508 + $0x11d0] sm:$0xff]
        %v4127 = vld [vmem:[%s508 + $0x11d8] sm:$0xff]
        %v4128 = vld [vmem:[%s508 + $0x11e0] sm:$0xff]
        %v4129 = vld [vmem:[%s508 + $0x11e8] sm:$0xff]
        %v4130 = vld [vmem:[%s508 + $0x11f0] sm:$0xff]
        %v4131 = vld [vmem:[%s508 + $0x11f8] sm:$0xff]
        %v4132 = vld [vmem:[%s508 + $0x1200] sm:$0xff]
        %v4133 = vld [vmem:[%s508 + $0x1208] sm:$0xff]
        %v4134 = vld [vmem:[%s508 + $0x1210] sm:$0xff]
        %v4135 = vld [vmem:[%s508 + $0x1218] sm:$0xff]
        %v4136 = vld [vmem:[%s508 + $0x1220] sm:$0xff]
        %v4137 = vld [vmem:[%s508 + $0x1228] sm:$0xff]
        %v4138 = vld [vmem:[%s508 + $0x1230] sm:$0xff]
        %v4139 = vld [vmem:[%s508 + $0x1238] sm:$0xff]
        %v4140 = vld [vmem:[%s508 + $0x1240] sm:$0xff]
        %v4141 = vld [vmem:[%s508 + $0x1248] sm:$0xff]
        %v4142 = vld [vmem:[%s508 + $0x1250] sm:$0xff]
        %v4143 = vld [vmem:[%s508 + $0x1258] sm:$0xff]
        %v4144 = vld [vmem:[%s508 + $0x1260] sm:$0xff]
        %v4145 = vld [vmem:[%s508 + $0x1268] sm:$0xff]
        %v4146 = vld [vmem:[%s508 + $0x1270] sm:$0xff]
        %v4147 = vld [vmem:[%s508 + $0x1278] sm:$0xff]
        %v4148 = vld [vmem:[%s508 + $0x1280] sm:$0xff]
        %v4149 = vld [vmem:[%s508 + $0x1288] sm:$0xff]
        %v4150 = vld [vmem:[%s508 + $0x1290] sm:$0xff]
        %v4151 = vld [vmem:[%s508 + $0x1298] sm:$0xff]
        %v4152 = vld [vmem:[%s508 + $0x12a0] sm:$0xff]
        %v4153 = vld [vmem:[%s508 + $0x12a8] sm:$0xff]
        %v4154 = vld [vmem:[%s508 + $0x12b0] sm:$0xff]
        %v4155 = vld [vmem:[%s508 + $0x12b8] sm:$0xff]
        %v4156 = vld [vmem:[%s508 + $0x12c0] sm:$0xff]
        %v4157 = vld [vmem:[%s508 + $0x12c8] sm:$0xff]
        %v4158 = vld [vmem:[%s508 + $0x12d0] sm:$0xff]
        %v4159 = vld [vmem:[%s508 + $0x12d8] sm:$0xff]
        %v4160 = vld [vmem:[%s508 + $0x12e0] sm:$0xff]
        %v4161 = vld [vmem:[%s508 + $0x12e8] sm:$0xff]
        %v4162 = vld [vmem:[%s508 + $0x12f0] sm:$0xff]
        %v4163 = vld [vmem:[%s508 + $0x12f8] sm:$0xff]
        %v4164 = vld [vmem:[%s508 + $0x1300] sm:$0xff]
        %v4165 = vld [vmem:[%s508 + $0x1308] sm:$0xff]
        %v4166 = vld [vmem:[%s508 + $0x1310] sm:$0xff]
        %v4167 = vld [vmem:[%s508 + $0x1318] sm:$0xff]
        %v4168 = vld [vmem:[%s508 + $0x1320] sm:$0xff]
        %v4169 = vld [vmem:[%s508 + $0x1328] sm:$0xff]
        %v4170 = vld [vmem:[%s508 + $0x1330] sm:$0xff]
        %v4171 = vld [vmem:[%s508 + $0x1338] sm:$0xff]
        %v4172 = vld [vmem:[%s508 + $0x1340] sm:$0xff]
        %v4173 = vld [vmem:[%s508 + $0x1348] sm:$0xff]
        %v4174 = vld [vmem:[%s508 + $0x1350] sm:$0xff]
        %v4175 = vld [vmem:[%s508 + $0x1358] sm:$0xff]
        %v4176 = vld [vmem:[%s508 + $0x1360] sm:$0xff]
        %v4177 = vld [vmem:[%s508 + $0x1368] sm:$0xff]
        %v4178 = vld [vmem:[%s508 + $0x1370] sm:$0xff]
        %v4179 = vld [vmem:[%s508 + $0x1378] sm:$0xff]
        %v4180 = vld [vmem:[%s508 + $0x1380] sm:$0xff]
        %v4181 = vld [vmem:[%s508 + $0x1388] sm:$0xff]
        %v4182 = vld [vmem:[%s508 + $0x1390] sm:$0xff]
        %v4183 = vld [vmem:[%s508 + $0x1398] sm:$0xff]
        %v4184 = vld [vmem:[%s508 + $0x13a0] sm:$0xff]
        %v4185 = vld [vmem:[%s508 + $0x13a8] sm:$0xff]
        %v4186 = vld [vmem:[%s508 + $0x13b0] sm:$0xff]
        %v4187 = vld [vmem:[%s508 + $0x13b8] sm:$0xff]
        %v4188 = vld [vmem:[%s508 + $0x13c0] sm:$0xff]
        %v4189 = vld [vmem:[%s508 + $0x13c8] sm:$0xff]
        %v4190 = vld [vmem:[%s508 + $0x13d0] sm:$0xff]
        %v4191 = vld [vmem:[%s508 + $0x13d8] sm:$0xff]
        %v4192 = vld [vmem:[%s508 + $0x13e0] sm:$0xff]
        %v4193 = vld [vmem:[%s508 + $0x13e8] sm:$0xff]
        %v4194 = vld [vmem:[%s508 + $0x13f0] sm:$0xff]
        %v4195 = vld [vmem:[%s508 + $0x13f8] sm:$0xff]
        %v4196 = vld [vmem:[%s508 + $0x1400] sm:$0xff]
        %v4197 = vld [vmem:[%s508 + $0x1408] sm:$0xff]
        %v4198 = vld [vmem:[%s508 + $0x1410] sm:$0xff]
        %v4199 = vld [vmem:[%s508 + $0x1418] sm:$0xff]
        %v4200 = vld [vmem:[%s508 + $0x1420] sm:$0xff]
        %v4201 = vld [vmem:[%s508 + $0x1428] sm:$0xff]
        %v4202 = vld [vmem:[%s508 + $0x1430] sm:$0xff]
        %v4203 = vld [vmem:[%s508 + $0x1438] sm:$0xff]
        %v4204 = vld [vmem:[%s508 + $0x1440] sm:$0xff]
        %v4205 = vld [vmem:[%s508 + $0x1448] sm:$0xff]
        %v4206 = vld [vmem:[%s508 + $0x1450] sm:$0xff]
        %v4207 = vld [vmem:[%s508 + $0x1458] sm:$0xff]
        %v4208 = vld [vmem:[%s508 + $0x1460] sm:$0xff]
        %v4209 = vld [vmem:[%s508 + $0x1468] sm:$0xff]
        %v4210 = vld [vmem:[%s508 + $0x1470] sm:$0xff]
        %v4211 = vld [vmem:[%s508 + $0x1478] sm:$0xff]
        %v4212 = vld [vmem:[%s508 + $0x1480] sm:$0xff]
        %v4213 = vld [vmem:[%s508 + $0x1488] sm:$0xff]
        %v4214 = vld [vmem:[%s508 + $0x1490] sm:$0xff]
        %v4215 = vld [vmem:[%s508 + $0x1498] sm:$0xff]
        %v4216 = vld [vmem:[%s508 + $0x14a0] sm:$0xff]
        %v4217 = vld [vmem:[%s508 + $0x14a8] sm:$0xff]
        %v4218 = vld [vmem:[%s508 + $0x14b0] sm:$0xff]
        %v4219 = vld [vmem:[%s508 + $0x14b8] sm:$0xff]
        %v4220 = vld [vmem:[%s508 + $0x14c0] sm:$0xff]
        %v4221 = vld [vmem:[%s508 + $0x14c8] sm:$0xff]
        %v4222 = vld [vmem:[%s508 + $0x14d0] sm:$0xff]
        %v4223 = vld [vmem:[%s508 + $0x14d8] sm:$0xff]
        %v4224 = vld [vmem:[%s508 + $0x14e0] sm:$0xff]
        %v4225 = vld [vmem:[%s508 + $0x14e8] sm:$0xff]
        %v4226 = vld [vmem:[%s508 + $0x14f0] sm:$0xff]
        %v4227 = vld [vmem:[%s508 + $0x14f8] sm:$0xff]
        %v4228 = vld [vmem:[%s508 + $0x1500] sm:$0xff]
        %v4229 = vld [vmem:[%s508 + $0x1508] sm:$0xff]
        %v4230 = vld [vmem:[%s508 + $0x1510] sm:$0xff]
        %v4231 = vld [vmem:[%s508 + $0x1518] sm:$0xff]
        %v4232 = vld [vmem:[%s508 + $0x1520] sm:$0xff]
        %v4233 = vld [vmem:[%s508 + $0x1528] sm:$0xff]
        %v4234 = vld [vmem:[%s508 + $0x1530] sm:$0xff]
        %v4235 = vld [vmem:[%s508 + $0x1538] sm:$0xff]
        %v4236 = vld [vmem:[%s508 + $0x1540] sm:$0xff]
        %v4237 = vld [vmem:[%s508 + $0x1548] sm:$0xff]
        %v4238 = vld [vmem:[%s508 + $0x1550] sm:$0xff]
        %v4239 = vld [vmem:[%s508 + $0x1558] sm:$0xff]
        %v4240 = vld [vmem:[%s508 + $0x1560] sm:$0xff]
        %v4241 = vld [vmem:[%s508 + $0x1568] sm:$0xff]
        %v4242 = vld [vmem:[%s508 + $0x1570] sm:$0xff]
        %v4243 = vld [vmem:[%s508 + $0x1578] sm:$0xff]
        %v4244 = vld [vmem:[%s508 + $0x1580] sm:$0xff]
        %v4245 = vld [vmem:[%s508 + $0x1588] sm:$0xff]
        %v4246 = vld [vmem:[%s508 + $0x1590] sm:$0xff]
        %v4247 = vld [vmem:[%s508 + $0x1598] sm:$0xff]
        %v4248 = vld [vmem:[%s508 + $0x15a0] sm:$0xff]
        %v4249 = vld [vmem:[%s508 + $0x15a8] sm:$0xff]
        %v4250 = vld [vmem:[%s508 + $0x15b0] sm:$0xff]
        %v4251 = vld [vmem:[%s508 + $0x15b8] sm:$0xff]
        %v4252 = vld [vmem:[%s508 + $0x15c0] sm:$0xff]
        %v4253 = vld [vmem:[%s508 + $0x15c8] sm:$0xff]
        %v4254 = vld [vmem:[%s508 + $0x15d0] sm:$0xff]
        %v4255 = vld [vmem:[%s508 + $0x15d8] sm:$0xff]
        %v4256 = vld [vmem:[%s508 + $0x15e0] sm:$0xff]
        %v4257 = vld [vmem:[%s508 + $0x15e8] sm:$0xff]
        %v4258 = vld [vmem:[%s508 + $0x15f0] sm:$0xff]
        %v4259 = vld [vmem:[%s508 + $0x15f8] sm:$0xff]
        %v4260 = vld [vmem:[%s508 + $0x1600] sm:$0xff]
        %v4261 = vld [vmem:[%s508 + $0x1608] sm:$0xff]
        %v4262 = vld [vmem:[%s508 + $0x1610] sm:$0xff]
        %v4263 = vld [vmem:[%s508 + $0x1618] sm:$0xff]
        %v4264 = vld [vmem:[%s508 + $0x1620] sm:$0xff]
        %v4265 = vld [vmem:[%s508 + $0x1628] sm:$0xff]
        %v4266 = vld [vmem:[%s508 + $0x1630] sm:$0xff]
        %v4267 = vld [vmem:[%s508 + $0x1638] sm:$0xff]
        %v4268 = vld [vmem:[%s508 + $0x1640] sm:$0xff]
        %v4269 = vld [vmem:[%s508 + $0x1648] sm:$0xff]
        %v4270 = vld [vmem:[%s508 + $0x1650] sm:$0xff]
        %v4271 = vld [vmem:[%s508 + $0x1658] sm:$0xff]
        %v4272 = vld [vmem:[%s508 + $0x1660] sm:$0xff]
        %v4273 = vld [vmem:[%s508 + $0x1668] sm:$0xff]
        %v4274 = vld [vmem:[%s508 + $0x1670] sm:$0xff]
        %v4275 = vld [vmem:[%s508 + $0x1678] sm:$0xff]
        %v4276 = vld [vmem:[%s508 + $0x1680] sm:$0xff]
        %v4277 = vld [vmem:[%s508 + $0x1688] sm:$0xff]
        %v4278 = vld [vmem:[%s508 + $0x1690] sm:$0xff]
        %v4279 = vld [vmem:[%s508 + $0x1698] sm:$0xff]
        %v4280 = vld [vmem:[%s508 + $0x16a0] sm:$0xff]
        %v4281 = vld [vmem:[%s508 + $0x16a8] sm:$0xff]
        %v4282 = vld [vmem:[%s508 + $0x16b0] sm:$0xff]
        %v4283 = vld [vmem:[%s508 + $0x16b8] sm:$0xff]
        %v4284 = vld [vmem:[%s508 + $0x16c0] sm:$0xff]
        %v4285 = vld [vmem:[%s508 + $0x16c8] sm:$0xff]
        %v4286 = vld [vmem:[%s508 + $0x16d0] sm:$0xff]
        %v4287 = vld [vmem:[%s508 + $0x16d8] sm:$0xff]
        %v4288 = vld [vmem:[%s508 + $0x16e0] sm:$0xff]
        %v4289 = vld [vmem:[%s508 + $0x16e8] sm:$0xff]
        %v4290 = vld [vmem:[%s508 + $0x16f0] sm:$0xff]
        %v4291 = vld [vmem:[%s508 + $0x16f8] sm:$0xff]
        %v4292 = vld [vmem:[%s508 + $0x1700] sm:$0xff]
        %v4293 = vld [vmem:[%s508 + $0x1708] sm:$0xff]
        %v4294 = vld [vmem:[%s508 + $0x1710] sm:$0xff]
        %v4295 = vld [vmem:[%s508 + $0x1718] sm:$0xff]
        %v4296 = vld [vmem:[%s508 + $0x1720] sm:$0xff]
        %v4297 = vld [vmem:[%s508 + $0x1728] sm:$0xff]
        %v4298 = vld [vmem:[%s508 + $0x1730] sm:$0xff]
        %v4299 = vld [vmem:[%s508 + $0x1738] sm:$0xff]
        %v4300 = vld [vmem:[%s508 + $0x1740] sm:$0xff]
        %v4301 = vld [vmem:[%s508 + $0x1748] sm:$0xff]
        %v4302 = vld [vmem:[%s508 + $0x1750] sm:$0xff]
        %v4303 = vld [vmem:[%s508 + $0x1758] sm:$0xff]
        %v4304 = vld [vmem:[%s508 + $0x1760] sm:$0xff]
        %v4305 = vld [vmem:[%s508 + $0x1768] sm:$0xff]
        %v4306 = vld [vmem:[%s508 + $0x1770] sm:$0xff]
        %v4307 = vld [vmem:[%s508 + $0x1778] sm:$0xff]
        %v4308 = vld [vmem:[%s508 + $0x1780] sm:$0xff]
        %v4309 = vld [vmem:[%s508 + $0x1788] sm:$0xff]
        %v4310 = vld [vmem:[%s508 + $0x1790] sm:$0xff]
        %v4311 = vld [vmem:[%s508 + $0x1798] sm:$0xff]
        %v4312 = vld [vmem:[%s508 + $0x17a0] sm:$0xff]
        %v4313 = vld [vmem:[%s508 + $0x17a8] sm:$0xff]
        %v4314 = vld [vmem:[%s508 + $0x17b0] sm:$0xff]
        %v4315 = vld [vmem:[%s508 + $0x17b8] sm:$0xff]
        %v4316 = vld [vmem:[%s508 + $0x17c0] sm:$0xff]
        %v4317 = vld [vmem:[%s508 + $0x17c8] sm:$0xff]
        %v4318 = vld [vmem:[%s508 + $0x17d0] sm:$0xff]
        %v4319 = vld [vmem:[%s508 + $0x17d8] sm:$0xff]
        %v4320 = vld [vmem:[%s508 + $0x17e0] sm:$0xff]
        %v4321 = vld [vmem:[%s508 + $0x17e8] sm:$0xff]
        %v4322 = vld [vmem:[%s508 + $0x17f0] sm:$0xff]
        %v4323 = vld [vmem:[%s508 + $0x17f8] sm:$0xff]
        %v4324 = vld [vmem:[%s517] sm:$0xff]
        %v4325 = vld [vmem:[%s517 + $0x8] sm:$0xf]
        %v4328 = vlaneseq
        %v4329 = vshrl.u32 %v4328, 7
        %v4330 = vsub.s32 0, %v4329
        %v4331 = vrot.slane %v4324, %v4330
        %v4332 = vlaneseq
        %v4333 = vshrl.u32 %v4332, 7
        %v4334 = vsub.s32 1, %v4333
        %v4335 = vrot.slane %v4324, %v4334
        %v4336 = vlaneseq
        %v4337 = vshrl.u32 %v4336, 7
        %v4338 = vsub.s32 2, %v4337
        %v4339 = vrot.slane %v4324, %v4338
        %v4340 = vlaneseq
        %v4341 = vshrl.u32 %v4340, 7
        %v4342 = vsub.s32 3, %v4341
        %v4343 = vrot.slane %v4324, %v4342
        %v4344 = vlaneseq
        %v4345 = vshrl.u32 %v4344, 7
        %v4346 = vsub.s32 4, %v4345
        %v4347 = vrot.slane %v4324, %v4346
        %v4348 = vlaneseq
        %v4349 = vshrl.u32 %v4348, 7
        %v4350 = vsub.s32 5, %v4349
        %v4351 = vrot.slane %v4324, %v4350
        %v4352 = vlaneseq
        %v4353 = vshrl.u32 %v4352, 7
        %v4354 = vsub.s32 6, %v4353
        %v4355 = vrot.slane %v4324, %v4354
        %v4356 = vlaneseq
        %v4357 = vshrl.u32 %v4356, 7
        %v4358 = vsub.s32 7, %v4357
        %v4359 = vrot.slane %v4324, %v4358
        %v4360 = vlaneseq
        %v4361 = vshrl.u32 %v4360, 7
        %v4362 = vsub.s32 0, %v4361
        %v4363 = vrot.slane %v4325, %v4362
        %v4364 = vlaneseq
        %v4365 = vshrl.u32 %v4364, 7
        %v4366 = vsub.s32 1, %v4365
        %v4367 = vrot.slane %v4325, %v4366
        %v4368 = vlaneseq
        %v4369 = vshrl.u32 %v4368, 7
        %v4370 = vsub.s32 2, %v4369
        %v4371 = vrot.slane %v4325, %v4370
        %v4372 = vlaneseq
        %v4373 = vshrl.u32 %v4372, 7
        %v4374 = vsub.s32 3, %v4373
        %v4375 = vrot.slane %v4325, %v4374
        %v5156 = vunpack.c.l.b16 %v3556
        %v5157 = vunpack.c.h.b16 %v3556
        %v5158 = vunpack.c.l.b16 %v3557
        %v5159 = vunpack.c.h.b16 %v3557
        %v5160 = vunpack.c.l.b16 %v3558
        %v5161 = vunpack.c.h.b16 %v3558
        %v5162 = vunpack.c.l.b16 %v3559
        %v5163 = vunpack.c.h.b16 %v3559
        %v5164 = vunpack.c.l.b16 %v3560
        %v5165 = vunpack.c.h.b16 %v3560
        %v5166 = vunpack.c.l.b16 %v3561
        %v5167 = vunpack.c.h.b16 %v3561
        %v5168 = vunpack.c.l.b16 %v3562
        %v5169 = vunpack.c.h.b16 %v3562
        %v5170 = vunpack.c.l.b16 %v3563
        %v5171 = vunpack.c.h.b16 %v3563
        %v5172 = vunpack.c.l.b16 %v3564
        %v5173 = vunpack.c.h.b16 %v3564
        %v5174 = vunpack.c.l.b16 %v3565
        %v5175 = vunpack.c.h.b16 %v3565
        %v5176 = vunpack.c.l.b16 %v3566
        %v5177 = vunpack.c.h.b16 %v3566
        %v5178 = vunpack.c.l.b16 %v3567
        %v5179 = vunpack.c.h.b16 %v3567
        %v5180 = vunpack.c.l.b16 %v3568
        %v5181 = vunpack.c.h.b16 %v3568
        %v5182 = vunpack.c.l.b16 %v3569
        %v5183 = vunpack.c.h.b16 %v3569
        %v5184 = vunpack.c.l.b16 %v3570
        %v5185 = vunpack.c.h.b16 %v3570
        %v5186 = vunpack.c.l.b16 %v3571
        %v5187 = vunpack.c.h.b16 %v3571
        %v5188 = vunpack.c.l.b16 %v3572
        %v5189 = vunpack.c.h.b16 %v3572
        %v5190 = vunpack.c.l.b16 %v3573
        %v5191 = vunpack.c.h.b16 %v3573
        %v5192 = vunpack.c.l.b16 %v3574
        %v5193 = vunpack.c.h.b16 %v3574
        %v5194 = vunpack.c.l.b16 %v3575
        %v5195 = vunpack.c.h.b16 %v3575
        %v5196 = vunpack.c.l.b16 %v3576
        %v5197 = vunpack.c.h.b16 %v3576
        %v5198 = vunpack.c.l.b16 %v3577
        %v5199 = vunpack.c.h.b16 %v3577
        %v5200 = vunpack.c.l.b16 %v3578
        %v5201 = vunpack.c.h.b16 %v3578
        %v5202 = vunpack.c.l.b16 %v3579
        %v5203 = vunpack.c.h.b16 %v3579
        %v5204 = vunpack.c.l.b16 %v3580
        %v5205 = vunpack.c.h.b16 %v3580
        %v5206 = vunpack.c.l.b16 %v3581
        %v5207 = vunpack.c.h.b16 %v3581
        %v5208 = vunpack.c.l.b16 %v3582
        %v5209 = vunpack.c.h.b16 %v3582
        %v5210 = vunpack.c.l.b16 %v3583
        %v5211 = vunpack.c.h.b16 %v3583
        %v5212 = vunpack.c.l.b16 %v3584
        %v5213 = vunpack.c.h.b16 %v3584
        %v5214 = vunpack.c.l.b16 %v3585
        %v5215 = vunpack.c.h.b16 %v3585
        %v5216 = vunpack.c.l.b16 %v3586
        %v5217 = vunpack.c.h.b16 %v3586
        %v5218 = vunpack.c.l.b16 %v3587
        %v5219 = vunpack.c.h.b16 %v3587
        %v5220 = vunpack.c.l.b16 %v3588
        %v5221 = vunpack.c.h.b16 %v3588
        %v5222 = vunpack.c.l.b16 %v3589
        %v5223 = vunpack.c.h.b16 %v3589
        %v5224 = vunpack.c.l.b16 %v3590
        %v5225 = vunpack.c.h.b16 %v3590
        %v5226 = vunpack.c.l.b16 %v3591
        %v5227 = vunpack.c.h.b16 %v3591
        %v5228 = vunpack.c.l.b16 %v3592
        %v5229 = vunpack.c.h.b16 %v3592
        %v5230 = vunpack.c.l.b16 %v3593
        %v5231 = vunpack.c.h.b16 %v3593
        %v5232 = vunpack.c.l.b16 %v3594
        %v5233 = vunpack.c.h.b16 %v3594
        %v5234 = vunpack.c.l.b16 %v3595
        %v5235 = vunpack.c.h.b16 %v3595
        %v5236 = vunpack.c.l.b16 %v3596
        %v5237 = vunpack.c.h.b16 %v3596
        %v5238 = vunpack.c.l.b16 %v3597
        %v5239 = vunpack.c.h.b16 %v3597
        %v5240 = vunpack.c.l.b16 %v3598
        %v5241 = vunpack.c.h.b16 %v3598
        %v5242 = vunpack.c.l.b16 %v3599
        %v5243 = vunpack.c.h.b16 %v3599
        %v5244 = vunpack.c.l.b16 %v3600
        %v5245 = vunpack.c.h.b16 %v3600
        %v5246 = vunpack.c.l.b16 %v3601
        %v5247 = vunpack.c.h.b16 %v3601
        %v5248 = vunpack.c.l.b16 %v3602
        %v5249 = vunpack.c.h.b16 %v3602
        %v5250 = vunpack.c.l.b16 %v3603
        %v5251 = vunpack.c.h.b16 %v3603
        %v5252 = vunpack.c.l.b16 %v3604
        %v5253 = vunpack.c.h.b16 %v3604
        %v5254 = vunpack.c.l.b16 %v3605
        %v5255 = vunpack.c.h.b16 %v3605
        %v5256 = vunpack.c.l.b16 %v3606
        %v5257 = vunpack.c.h.b16 %v3606
        %v5258 = vunpack.c.l.b16 %v3607
        %v5259 = vunpack.c.h.b16 %v3607
        %v5260 = vunpack.c.l.b16 %v3608
        %v5261 = vunpack.c.h.b16 %v3608
        %v5262 = vunpack.c.l.b16 %v3609
        %v5263 = vunpack.c.h.b16 %v3609
        %v5264 = vunpack.c.l.b16 %v3610
        %v5265 = vunpack.c.h.b16 %v3610
        %v5266 = vunpack.c.l.b16 %v3611
        %v5267 = vunpack.c.h.b16 %v3611
        %v5268 = vunpack.c.l.b16 %v3612
        %v5269 = vunpack.c.h.b16 %v3612
        %v5270 = vunpack.c.l.b16 %v3613
        %v5271 = vunpack.c.h.b16 %v3613
        %v5272 = vunpack.c.l.b16 %v3614
        %v5273 = vunpack.c.h.b16 %v3614
        %v5274 = vunpack.c.l.b16 %v3615
        %v5275 = vunpack.c.h.b16 %v3615
        %v5276 = vunpack.c.l.b16 %v3616
        %v5277 = vunpack.c.h.b16 %v3616
        %v5278 = vunpack.c.l.b16 %v3617
        %v5279 = vunpack.c.h.b16 %v3617
        %v5280 = vunpack.c.l.b16 %v3618
        %v5281 = vunpack.c.h.b16 %v3618
        %v5282 = vunpack.c.l.b16 %v3619
        %v5283 = vunpack.c.h.b16 %v3619
        %v5284 = vunpack.c.l.b16 %v3620
        %v5285 = vunpack.c.h.b16 %v3620
        %v5286 = vunpack.c.l.b16 %v3621
        %v5287 = vunpack.c.h.b16 %v3621
        %v5288 = vunpack.c.l.b16 %v3622
        %v5289 = vunpack.c.h.b16 %v3622
        %v5290 = vunpack.c.l.b16 %v3623
        %v5291 = vunpack.c.h.b16 %v3623
        %v5292 = vunpack.c.l.b16 %v3624
        %v5293 = vunpack.c.h.b16 %v3624
        %v5294 = vunpack.c.l.b16 %v3625
        %v5295 = vunpack.c.h.b16 %v3625
        %v5296 = vunpack.c.l.b16 %v3626
        %v5297 = vunpack.c.h.b16 %v3626
        %v5298 = vunpack.c.l.b16 %v3627
        %v5299 = vunpack.c.h.b16 %v3627
        %v5300 = vunpack.c.l.b16 %v3628
        %v5301 = vunpack.c.h.b16 %v3628
        %v5302 = vunpack.c.l.b16 %v3629
        %v5303 = vunpack.c.h.b16 %v3629
        %v5304 = vunpack.c.l.b16 %v3630
        %v5305 = vunpack.c.h.b16 %v3630
        %v5306 = vunpack.c.l.b16 %v3631
        %v5307 = vunpack.c.h.b16 %v3631
        %v5308 = vunpack.c.l.b16 %v3632
        %v5309 = vunpack.c.h.b16 %v3632
        %v5310 = vunpack.c.l.b16 %v3633
        %v5311 = vunpack.c.h.b16 %v3633
        %v5312 = vunpack.c.l.b16 %v3634
        %v5313 = vunpack.c.h.b16 %v3634
        %v5314 = vunpack.c.l.b16 %v3635
        %v5315 = vunpack.c.h.b16 %v3635
        %v5316 = vunpack.c.l.b16 %v3636
        %v5317 = vunpack.c.h.b16 %v3636
        %v5318 = vunpack.c.l.b16 %v3637
        %v5319 = vunpack.c.h.b16 %v3637
        %v5320 = vunpack.c.l.b16 %v3638
        %v5321 = vunpack.c.h.b16 %v3638
        %v5322 = vunpack.c.l.b16 %v3639
        %v5323 = vunpack.c.h.b16 %v3639
        %v5324 = vunpack.c.l.b16 %v3640
        %v5325 = vunpack.c.h.b16 %v3640
        %v5326 = vunpack.c.l.b16 %v3641
        %v5327 = vunpack.c.h.b16 %v3641
        %v5328 = vunpack.c.l.b16 %v3642
        %v5329 = vunpack.c.h.b16 %v3642
        %v5330 = vunpack.c.l.b16 %v3643
        %v5331 = vunpack.c.h.b16 %v3643
        %v5332 = vunpack.c.l.b16 %v3644
        %v5333 = vunpack.c.h.b16 %v3644
        %v5334 = vunpack.c.l.b16 %v3645
        %v5335 = vunpack.c.h.b16 %v3645
        %v5336 = vunpack.c.l.b16 %v3646
        %v5337 = vunpack.c.h.b16 %v3646
        %v5338 = vunpack.c.l.b16 %v3647
        %v5339 = vunpack.c.h.b16 %v3647
        %v5340 = vunpack.c.l.b16 %v3648
        %v5341 = vunpack.c.h.b16 %v3648
        %v5342 = vunpack.c.l.b16 %v3649
        %v5343 = vunpack.c.h.b16 %v3649
        %v5344 = vunpack.c.l.b16 %v3650
        %v5345 = vunpack.c.h.b16 %v3650
        %v5346 = vunpack.c.l.b16 %v3651
        %v5347 = vunpack.c.h.b16 %v3651
        %v5348 = vunpack.c.l.b16 %v3652
        %v5349 = vunpack.c.h.b16 %v3652
        %v5350 = vunpack.c.l.b16 %v3653
        %v5351 = vunpack.c.h.b16 %v3653
        %v5352 = vunpack.c.l.b16 %v3654
        %v5353 = vunpack.c.h.b16 %v3654
        %v5354 = vunpack.c.l.b16 %v3655
        %v5355 = vunpack.c.h.b16 %v3655
        %v5356 = vunpack.c.l.b16 %v3656
        %v5357 = vunpack.c.h.b16 %v3656
        %v5358 = vunpack.c.l.b16 %v3657
        %v5359 = vunpack.c.h.b16 %v3657
        %v5360 = vunpack.c.l.b16 %v3658
        %v5361 = vunpack.c.h.b16 %v3658
        %v5362 = vunpack.c.l.b16 %v3659
        %v5363 = vunpack.c.h.b16 %v3659
        %v5364 = vunpack.c.l.b16 %v3660
        %v5365 = vunpack.c.h.b16 %v3660
        %v5366 = vunpack.c.l.b16 %v3661
        %v5367 = vunpack.c.h.b16 %v3661
        %v5368 = vunpack.c.l.b16 %v3662
        %v5369 = vunpack.c.h.b16 %v3662
        %v5370 = vunpack.c.l.b16 %v3663
        %v5371 = vunpack.c.h.b16 %v3663
        %v5372 = vunpack.c.l.b16 %v3664
        %v5373 = vunpack.c.h.b16 %v3664
        %v5374 = vunpack.c.l.b16 %v3665
        %v5375 = vunpack.c.h.b16 %v3665
        %v5376 = vunpack.c.l.b16 %v3666
        %v5377 = vunpack.c.h.b16 %v3666
        %v5378 = vunpack.c.l.b16 %v3667
        %v5379 = vunpack.c.h.b16 %v3667
        %v5380 = vunpack.c.l.b16 %v3668
        %v5381 = vunpack.c.h.b16 %v3668
        %v5382 = vunpack.c.l.b16 %v3669
        %v5383 = vunpack.c.h.b16 %v3669
        %v5384 = vunpack.c.l.b16 %v3670
        %v5385 = vunpack.c.h.b16 %v3670
        %v5386 = vunpack.c.l.b16 %v3671
        %v5387 = vunpack.c.h.b16 %v3671
        %v5388 = vunpack.c.l.b16 %v3672
        %v5389 = vunpack.c.h.b16 %v3672
        %v5390 = vunpack.c.l.b16 %v3673
        %v5391 = vunpack.c.h.b16 %v3673
        %v5392 = vunpack.c.l.b16 %v3674
        %v5393 = vunpack.c.h.b16 %v3674
        %v5394 = vunpack.c.l.b16 %v3675
        %v5395 = vunpack.c.h.b16 %v3675
        %v5396 = vunpack.c.l.b16 %v3676
        %v5397 = vunpack.c.h.b16 %v3676
        %v5398 = vunpack.c.l.b16 %v3677
        %v5399 = vunpack.c.h.b16 %v3677
        %v5400 = vunpack.c.l.b16 %v3678
        %v5401 = vunpack.c.h.b16 %v3678
        %v5402 = vunpack.c.l.b16 %v3679
        %v5403 = vunpack.c.h.b16 %v3679
        %v5404 = vunpack.c.l.b16 %v3680
        %v5405 = vunpack.c.h.b16 %v3680
        %v5406 = vunpack.c.l.b16 %v3681
        %v5407 = vunpack.c.h.b16 %v3681
        %v5408 = vunpack.c.l.b16 %v3682
        %v5409 = vunpack.c.h.b16 %v3682
        %v5410 = vunpack.c.l.b16 %v3683
        %v5411 = vunpack.c.h.b16 %v3683
        %v5412 = vunpack.c.l.b16 %v3684
        %v5413 = vunpack.c.h.b16 %v3684
        %v5414 = vunpack.c.l.b16 %v3685
        %v5415 = vunpack.c.h.b16 %v3685
        %v5416 = vunpack.c.l.b16 %v3686
        %v5417 = vunpack.c.h.b16 %v3686
        %v5418 = vunpack.c.l.b16 %v3687
        %v5419 = vunpack.c.h.b16 %v3687
        %v5420 = vunpack.c.l.b16 %v3688
        %v5421 = vunpack.c.h.b16 %v3688
        %v5422 = vunpack.c.l.b16 %v3689
        %v5423 = vunpack.c.h.b16 %v3689
        %v5424 = vunpack.c.l.b16 %v3690
        %v5425 = vunpack.c.h.b16 %v3690
        %v5426 = vunpack.c.l.b16 %v3691
        %v5427 = vunpack.c.h.b16 %v3691
        %v5428 = vunpack.c.l.b16 %v3692
        %v5429 = vunpack.c.h.b16 %v3692
        %v5430 = vunpack.c.l.b16 %v3693
        %v5431 = vunpack.c.h.b16 %v3693
        %v5432 = vunpack.c.l.b16 %v3694
        %v5433 = vunpack.c.h.b16 %v3694
        %v5434 = vunpack.c.l.b16 %v3695
        %v5435 = vunpack.c.h.b16 %v3695
        %v5436 = vunpack.c.l.b16 %v3696
        %v5437 = vunpack.c.h.b16 %v3696
        %v5438 = vunpack.c.l.b16 %v3697
        %v5439 = vunpack.c.h.b16 %v3697
        %v5440 = vunpack.c.l.b16 %v3698
        %v5441 = vunpack.c.h.b16 %v3698
        %v5442 = vunpack.c.l.b16 %v3699
        %v5443 = vunpack.c.h.b16 %v3699
        %v5444 = vunpack.c.l.b16 %v3700
        %v5445 = vunpack.c.h.b16 %v3700
        %v5446 = vunpack.c.l.b16 %v3701
        %v5447 = vunpack.c.h.b16 %v3701
        %v5448 = vunpack.c.l.b16 %v3702
        %v5449 = vunpack.c.h.b16 %v3702
        %v5450 = vunpack.c.l.b16 %v3703
        %v5451 = vunpack.c.h.b16 %v3703
        %v5452 = vunpack.c.l.b16 %v3704
        %v5453 = vunpack.c.h.b16 %v3704
        %v5454 = vunpack.c.l.b16 %v3705
        %v5455 = vunpack.c.h.b16 %v3705
        %v5456 = vunpack.c.l.b16 %v3706
        %v5457 = vunpack.c.h.b16 %v3706
        %v5458 = vunpack.c.l.b16 %v3707
        %v5459 = vunpack.c.h.b16 %v3707
        %v5460 = vunpack.c.l.b16 %v3708
        %v5461 = vunpack.c.h.b16 %v3708
        %v5462 = vunpack.c.l.b16 %v3709
        %v5463 = vunpack.c.h.b16 %v3709
        %v5464 = vunpack.c.l.b16 %v3710
        %v5465 = vunpack.c.h.b16 %v3710
        %v5466 = vunpack.c.l.b16 %v3711
        %v5467 = vunpack.c.h.b16 %v3711
        %v5468 = vunpack.c.l.b16 %v3712
        %v5469 = vunpack.c.h.b16 %v3712
        %v5470 = vunpack.c.l.b16 %v3713
        %v5471 = vunpack.c.h.b16 %v3713
        %v5472 = vunpack.c.l.b16 %v3714
        %v5473 = vunpack.c.h.b16 %v3714
        %v5474 = vunpack.c.l.b16 %v3715
        %v5475 = vunpack.c.h.b16 %v3715
        %v5476 = vunpack.c.l.b16 %v3716
        %v5477 = vunpack.c.h.b16 %v3716
        %v5478 = vunpack.c.l.b16 %v3717
        %v5479 = vunpack.c.h.b16 %v3717
        %v5480 = vunpack.c.l.b16 %v3718
        %v5481 = vunpack.c.h.b16 %v3718
        %v5482 = vunpack.c.l.b16 %v3719
        %v5483 = vunpack.c.h.b16 %v3719
        %v5484 = vunpack.c.l.b16 %v3720
        %v5485 = vunpack.c.h.b16 %v3720
        %v5486 = vunpack.c.l.b16 %v3721
        %v5487 = vunpack.c.h.b16 %v3721
        %v5488 = vunpack.c.l.b16 %v3722
        %v5489 = vunpack.c.h.b16 %v3722
        %v5490 = vunpack.c.l.b16 %v3723
        %v5491 = vunpack.c.h.b16 %v3723
        %v5492 = vunpack.c.l.b16 %v3724
        %v5493 = vunpack.c.h.b16 %v3724
        %v5494 = vunpack.c.l.b16 %v3725
        %v5495 = vunpack.c.h.b16 %v3725
        %v5496 = vunpack.c.l.b16 %v3726
        %v5497 = vunpack.c.h.b16 %v3726
        %v5498 = vunpack.c.l.b16 %v3727
        %v5499 = vunpack.c.h.b16 %v3727
        %v5500 = vunpack.c.l.b16 %v3728
        %v5501 = vunpack.c.h.b16 %v3728
        %v5502 = vunpack.c.l.b16 %v3729
        %v5503 = vunpack.c.h.b16 %v3729
        %v5504 = vunpack.c.l.b16 %v3730
        %v5505 = vunpack.c.h.b16 %v3730
        %v5506 = vunpack.c.l.b16 %v3731
        %v5507 = vunpack.c.h.b16 %v3731
        %v5508 = vunpack.c.l.b16 %v3732
        %v5509 = vunpack.c.h.b16 %v3732
        %v5510 = vunpack.c.l.b16 %v3733
        %v5511 = vunpack.c.h.b16 %v3733
        %v5512 = vunpack.c.l.b16 %v3734
        %v5513 = vunpack.c.h.b16 %v3734
        %v5514 = vunpack.c.l.b16 %v3735
        %v5515 = vunpack.c.h.b16 %v3735
        %v5516 = vunpack.c.l.b16 %v3736
        %v5517 = vunpack.c.h.b16 %v3736
        %v5518 = vunpack.c.l.b16 %v3737
        %v5519 = vunpack.c.h.b16 %v3737
        %v5520 = vunpack.c.l.b16 %v3738
        %v5521 = vunpack.c.h.b16 %v3738
        %v5522 = vunpack.c.l.b16 %v3739
        %v5523 = vunpack.c.h.b16 %v3739
        %v5524 = vunpack.c.l.b16 %v3740
        %v5525 = vunpack.c.h.b16 %v3740
        %v5526 = vunpack.c.l.b16 %v3741
        %v5527 = vunpack.c.h.b16 %v3741
        %v5528 = vunpack.c.l.b16 %v3742
        %v5529 = vunpack.c.h.b16 %v3742
        %v5530 = vunpack.c.l.b16 %v3743
        %v5531 = vunpack.c.h.b16 %v3743
        %v5532 = vunpack.c.l.b16 %v3744
        %v5533 = vunpack.c.h.b16 %v3744
        %v5534 = vunpack.c.l.b16 %v3745
        %v5535 = vunpack.c.h.b16 %v3745
        %v5536 = vunpack.c.l.b16 %v3746
        %v5537 = vunpack.c.h.b16 %v3746
        %v5538 = vunpack.c.l.b16 %v3747
        %v5539 = vunpack.c.h.b16 %v3747
        %v5540 = vunpack.c.l.b16 %v3748
        %v5541 = vunpack.c.h.b16 %v3748
        %v5542 = vunpack.c.l.b16 %v3749
        %v5543 = vunpack.c.h.b16 %v3749
        %v5544 = vunpack.c.l.b16 %v3750
        %v5545 = vunpack.c.h.b16 %v3750
        %v5546 = vunpack.c.l.b16 %v3751
        %v5547 = vunpack.c.h.b16 %v3751
        %v5548 = vunpack.c.l.b16 %v3752
        %v5549 = vunpack.c.h.b16 %v3752
        %v5550 = vunpack.c.l.b16 %v3753
        %v5551 = vunpack.c.h.b16 %v3753
        %v5552 = vunpack.c.l.b16 %v3754
        %v5553 = vunpack.c.h.b16 %v3754
        %v5554 = vunpack.c.l.b16 %v3755
        %v5555 = vunpack.c.h.b16 %v3755
        %v5556 = vunpack.c.l.b16 %v3756
        %v5557 = vunpack.c.h.b16 %v3756
        %v5558 = vunpack.c.l.b16 %v3757
        %v5559 = vunpack.c.h.b16 %v3757
        %v5560 = vunpack.c.l.b16 %v3758
        %v5561 = vunpack.c.h.b16 %v3758
        %v5562 = vunpack.c.l.b16 %v3759
        %v5563 = vunpack.c.h.b16 %v3759
        %v5564 = vunpack.c.l.b16 %v3760
        %v5565 = vunpack.c.h.b16 %v3760
        %v5566 = vunpack.c.l.b16 %v3761
        %v5567 = vunpack.c.h.b16 %v3761
        %v5568 = vunpack.c.l.b16 %v3762
        %v5569 = vunpack.c.h.b16 %v3762
        %v5570 = vunpack.c.l.b16 %v3763
        %v5571 = vunpack.c.h.b16 %v3763
        %v5572 = vunpack.c.l.b16 %v3764
        %v5573 = vunpack.c.h.b16 %v3764
        %v5574 = vunpack.c.l.b16 %v3765
        %v5575 = vunpack.c.h.b16 %v3765
        %v5576 = vunpack.c.l.b16 %v3766
        %v5577 = vunpack.c.h.b16 %v3766
        %v5578 = vunpack.c.l.b16 %v3767
        %v5579 = vunpack.c.h.b16 %v3767
        %v5580 = vunpack.c.l.b16 %v3768
        %v5581 = vunpack.c.h.b16 %v3768
        %v5582 = vunpack.c.l.b16 %v3769
        %v5583 = vunpack.c.h.b16 %v3769
        %v5584 = vunpack.c.l.b16 %v3770
        %v5585 = vunpack.c.h.b16 %v3770
        %v5586 = vunpack.c.l.b16 %v3771
        %v5587 = vunpack.c.h.b16 %v3771
        %v5588 = vunpack.c.l.b16 %v3772
        %v5589 = vunpack.c.h.b16 %v3772
        %v5590 = vunpack.c.l.b16 %v3773
        %v5591 = vunpack.c.h.b16 %v3773
        %v5592 = vunpack.c.l.b16 %v3774
        %v5593 = vunpack.c.h.b16 %v3774
        %v5594 = vunpack.c.l.b16 %v3775
        %v5595 = vunpack.c.h.b16 %v3775
        %v5596 = vunpack.c.l.b16 %v3776
        %v5597 = vunpack.c.h.b16 %v3776
        %v5598 = vunpack.c.l.b16 %v3777
        %v5599 = vunpack.c.h.b16 %v3777
        %v5600 = vunpack.c.l.b16 %v3778
        %v5601 = vunpack.c.h.b16 %v3778
        %v5602 = vunpack.c.l.b16 %v3779
        %v5603 = vunpack.c.h.b16 %v3779
        %v5604 = vunpack.c.l.b16 %v3780
        %v5605 = vunpack.c.h.b16 %v3780
        %v5606 = vunpack.c.l.b16 %v3781
        %v5607 = vunpack.c.h.b16 %v3781
        %v5608 = vunpack.c.l.b16 %v3782
        %v5609 = vunpack.c.h.b16 %v3782
        %v5610 = vunpack.c.l.b16 %v3783
        %v5611 = vunpack.c.h.b16 %v3783
        %v5612 = vunpack.c.l.b16 %v3784
        %v5613 = vunpack.c.h.b16 %v3784
        %v5614 = vunpack.c.l.b16 %v3785
        %v5615 = vunpack.c.h.b16 %v3785
        %v5616 = vunpack.c.l.b16 %v3786
        %v5617 = vunpack.c.h.b16 %v3786
        %v5618 = vunpack.c.l.b16 %v3787
        %v5619 = vunpack.c.h.b16 %v3787
        %v5620 = vunpack.c.l.b16 %v3788
        %v5621 = vunpack.c.h.b16 %v3788
        %v5622 = vunpack.c.l.b16 %v3789
        %v5623 = vunpack.c.h.b16 %v3789
        %v5624 = vunpack.c.l.b16 %v3790
        %v5625 = vunpack.c.h.b16 %v3790
        %v5626 = vunpack.c.l.b16 %v3791
        %v5627 = vunpack.c.h.b16 %v3791
        %v5628 = vunpack.c.l.b16 %v3792
        %v5629 = vunpack.c.h.b16 %v3792
        %v5630 = vunpack.c.l.b16 %v3793
        %v5631 = vunpack.c.h.b16 %v3793
        %v5632 = vunpack.c.l.b16 %v3794
        %v5633 = vunpack.c.h.b16 %v3794
        %v5634 = vunpack.c.l.b16 %v3795
        %v5635 = vunpack.c.h.b16 %v3795
        %v5636 = vunpack.c.l.b16 %v3796
        %v5637 = vunpack.c.h.b16 %v3796
        %v5638 = vunpack.c.l.b16 %v3797
        %v5639 = vunpack.c.h.b16 %v3797
        %v5640 = vunpack.c.l.b16 %v3798
        %v5641 = vunpack.c.h.b16 %v3798
        %v5642 = vunpack.c.l.b16 %v3799
        %v5643 = vunpack.c.h.b16 %v3799
        %v5644 = vunpack.c.l.b16 %v3800
        %v5645 = vunpack.c.h.b16 %v3800
        %v5646 = vunpack.c.l.b16 %v3801
        %v5647 = vunpack.c.h.b16 %v3801
        %v5648 = vunpack.c.l.b16 %v3802
        %v5649 = vunpack.c.h.b16 %v3802
        %v5650 = vunpack.c.l.b16 %v3803
        %v5651 = vunpack.c.h.b16 %v3803
        %v5652 = vunpack.c.l.b16 %v3804
        %v5653 = vunpack.c.h.b16 %v3804
        %v5654 = vunpack.c.l.b16 %v3805
        %v5655 = vunpack.c.h.b16 %v3805
        %v5656 = vunpack.c.l.b16 %v3806
        %v5657 = vunpack.c.h.b16 %v3806
        %v5658 = vunpack.c.l.b16 %v3807
        %v5659 = vunpack.c.h.b16 %v3807
        %v5660 = vunpack.c.l.b16 %v3808
        %v5661 = vunpack.c.h.b16 %v3808
        %v5662 = vunpack.c.l.b16 %v3809
        %v5663 = vunpack.c.h.b16 %v3809
        %v5664 = vunpack.c.l.b16 %v3810
        %v5665 = vunpack.c.h.b16 %v3810
        %v5666 = vunpack.c.l.b16 %v3811
        %v5667 = vunpack.c.h.b16 %v3811
        %v5668 = vunpack.c.l.b16 %v3812
        %v5669 = vunpack.c.h.b16 %v3812
        %v5670 = vunpack.c.l.b16 %v3813
        %v5671 = vunpack.c.h.b16 %v3813
        %v5672 = vunpack.c.l.b16 %v3814
        %v5673 = vunpack.c.h.b16 %v3814
        %v5674 = vunpack.c.l.b16 %v3815
        %v5675 = vunpack.c.h.b16 %v3815
        %v5676 = vunpack.c.l.b16 %v3816
        %v5677 = vunpack.c.h.b16 %v3816
        %v5678 = vunpack.c.l.b16 %v3817
        %v5679 = vunpack.c.h.b16 %v3817
        %v5680 = vunpack.c.l.b16 %v3818
        %v5681 = vunpack.c.h.b16 %v3818
        %v5682 = vunpack.c.l.b16 %v3819
        %v5683 = vunpack.c.h.b16 %v3819
        %v5684 = vunpack.c.l.b16 %v3820
        %v5685 = vunpack.c.h.b16 %v3820
        %v5686 = vunpack.c.l.b16 %v3821
        %v5687 = vunpack.c.h.b16 %v3821
        %v5688 = vunpack.c.l.b16 %v3822
        %v5689 = vunpack.c.h.b16 %v3822
        %v5690 = vunpack.c.l.b16 %v3823
        %v5691 = vunpack.c.h.b16 %v3823
        %v5692 = vunpack.c.l.b16 %v3824
        %v5693 = vunpack.c.h.b16 %v3824
        %v5694 = vunpack.c.l.b16 %v3825
        %v5695 = vunpack.c.h.b16 %v3825
        %v5696 = vunpack.c.l.b16 %v3826
        %v5697 = vunpack.c.h.b16 %v3826
        %v5698 = vunpack.c.l.b16 %v3827
        %v5699 = vunpack.c.h.b16 %v3827
        %v5700 = vunpack.c.l.b16 %v3828
        %v5701 = vunpack.c.h.b16 %v3828
        %v5702 = vunpack.c.l.b16 %v3829
        %v5703 = vunpack.c.h.b16 %v3829
        %v5704 = vunpack.c.l.b16 %v3830
        %v5705 = vunpack.c.h.b16 %v3830
        %v5706 = vunpack.c.l.b16 %v3831
        %v5707 = vunpack.c.h.b16 %v3831
        %v5708 = vunpack.c.l.b16 %v3832
        %v5709 = vunpack.c.h.b16 %v3832
        %v5710 = vunpack.c.l.b16 %v3833
        %v5711 = vunpack.c.h.b16 %v3833
        %v5712 = vunpack.c.l.b16 %v3834
        %v5713 = vunpack.c.h.b16 %v3834
        %v5714 = vunpack.c.l.b16 %v3835
        %v5715 = vunpack.c.h.b16 %v3835
        %v5716 = vunpack.c.l.b16 %v3836
        %v5717 = vunpack.c.h.b16 %v3836
        %v5718 = vunpack.c.l.b16 %v3837
        %v5719 = vunpack.c.h.b16 %v3837
        %v5720 = vunpack.c.l.b16 %v3838
        %v5721 = vunpack.c.h.b16 %v3838
        %v5722 = vunpack.c.l.b16 %v3839
        %v5723 = vunpack.c.h.b16 %v3839
        %v5724 = vunpack.c.l.b16 %v3840
        %v5725 = vunpack.c.h.b16 %v3840
        %v5726 = vunpack.c.l.b16 %v3841
        %v5727 = vunpack.c.h.b16 %v3841
        %v5728 = vunpack.c.l.b16 %v3842
        %v5729 = vunpack.c.h.b16 %v3842
        %v5730 = vunpack.c.l.b16 %v3843
        %v5731 = vunpack.c.h.b16 %v3843
        %v5732 = vunpack.c.l.b16 %v3844
        %v5733 = vunpack.c.h.b16 %v3844
        %v5734 = vunpack.c.l.b16 %v3845
        %v5735 = vunpack.c.h.b16 %v3845
        %v5736 = vunpack.c.l.b16 %v3846
        %v5737 = vunpack.c.h.b16 %v3846
        %v5738 = vunpack.c.l.b16 %v3847
        %v5739 = vunpack.c.h.b16 %v3847
        %v5740 = vunpack.c.l.b16 %v3848
        %v5741 = vunpack.c.h.b16 %v3848
        %v5742 = vunpack.c.l.b16 %v3849
        %v5743 = vunpack.c.h.b16 %v3849
        %v5744 = vunpack.c.l.b16 %v3850
        %v5745 = vunpack.c.h.b16 %v3850
        %v5746 = vunpack.c.l.b16 %v3851
        %v5747 = vunpack.c.h.b16 %v3851
        %v5748 = vunpack.c.l.b16 %v3852
        %v5749 = vunpack.c.h.b16 %v3852
        %v5750 = vunpack.c.l.b16 %v3853
        %v5751 = vunpack.c.h.b16 %v3853
        %v5752 = vunpack.c.l.b16 %v3854
        %v5753 = vunpack.c.h.b16 %v3854
        %v5754 = vunpack.c.l.b16 %v3855
        %v5755 = vunpack.c.h.b16 %v3855
        %v5756 = vunpack.c.l.b16 %v3856
        %v5757 = vunpack.c.h.b16 %v3856
        %v5758 = vunpack.c.l.b16 %v3857
        %v5759 = vunpack.c.h.b16 %v3857
        %v5760 = vunpack.c.l.b16 %v3858
        %v5761 = vunpack.c.h.b16 %v3858
        %v5762 = vunpack.c.l.b16 %v3859
        %v5763 = vunpack.c.h.b16 %v3859
        %v5764 = vunpack.c.l.b16 %v3860
        %v5765 = vunpack.c.h.b16 %v3860
        %v5766 = vunpack.c.l.b16 %v3861
        %v5767 = vunpack.c.h.b16 %v3861
        %v5768 = vunpack.c.l.b16 %v3862
        %v5769 = vunpack.c.h.b16 %v3862
        %v5770 = vunpack.c.l.b16 %v3863
        %v5771 = vunpack.c.h.b16 %v3863
        %v5772 = vunpack.c.l.b16 %v3864
        %v5773 = vunpack.c.h.b16 %v3864
        %v5774 = vunpack.c.l.b16 %v3865
        %v5775 = vunpack.c.h.b16 %v3865
        %v5776 = vunpack.c.l.b16 %v3866
        %v5777 = vunpack.c.h.b16 %v3866
        %v5778 = vunpack.c.l.b16 %v3867
        %v5779 = vunpack.c.h.b16 %v3867
        %v5780 = vunpack.c.l.b16 %v3868
        %v5781 = vunpack.c.h.b16 %v3868
        %v5782 = vunpack.c.l.b16 %v3869
        %v5783 = vunpack.c.h.b16 %v3869
        %v5784 = vunpack.c.l.b16 %v3870
        %v5785 = vunpack.c.h.b16 %v3870
        %v5786 = vunpack.c.l.b16 %v3871
        %v5787 = vunpack.c.h.b16 %v3871
        %v5788 = vunpack.c.l.b16 %v3872
        %v5789 = vunpack.c.h.b16 %v3872
        %v5790 = vunpack.c.l.b16 %v3873
        %v5791 = vunpack.c.h.b16 %v3873
        %v5792 = vunpack.c.l.b16 %v3874
        %v5793 = vunpack.c.h.b16 %v3874
        %v5794 = vunpack.c.l.b16 %v3875
        %v5795 = vunpack.c.h.b16 %v3875
        %v5796 = vunpack.c.l.b16 %v3876
        %v5797 = vunpack.c.h.b16 %v3876
        %v5798 = vunpack.c.l.b16 %v3877
        %v5799 = vunpack.c.h.b16 %v3877
        %v5800 = vunpack.c.l.b16 %v3878
        %v5801 = vunpack.c.h.b16 %v3878
        %v5802 = vunpack.c.l.b16 %v3879
        %v5803 = vunpack.c.h.b16 %v3879
        %v5804 = vunpack.c.l.b16 %v3880
        %v5805 = vunpack.c.h.b16 %v3880
        %v5806 = vunpack.c.l.b16 %v3881
        %v5807 = vunpack.c.h.b16 %v3881
        %v5808 = vunpack.c.l.b16 %v3882
        %v5809 = vunpack.c.h.b16 %v3882
        %v5810 = vunpack.c.l.b16 %v3883
        %v5811 = vunpack.c.h.b16 %v3883
        %v5812 = vunpack.c.l.b16 %v3884
        %v5813 = vunpack.c.h.b16 %v3884
        %v5814 = vunpack.c.l.b16 %v3885
        %v5815 = vunpack.c.h.b16 %v3885
        %v5816 = vunpack.c.l.b16 %v3886
        %v5817 = vunpack.c.h.b16 %v3886
        %v5818 = vunpack.c.l.b16 %v3887
        %v5819 = vunpack.c.h.b16 %v3887
        %v5820 = vunpack.c.l.b16 %v3888
        %v5821 = vunpack.c.h.b16 %v3888
        %v5822 = vunpack.c.l.b16 %v3889
        %v5823 = vunpack.c.h.b16 %v3889
        %v5824 = vunpack.c.l.b16 %v3890
        %v5825 = vunpack.c.h.b16 %v3890
        %v5826 = vunpack.c.l.b16 %v3891
        %v5827 = vunpack.c.h.b16 %v3891
        %v5828 = vunpack.c.l.b16 %v3892
        %v5829 = vunpack.c.h.b16 %v3892
        %v5830 = vunpack.c.l.b16 %v3893
        %v5831 = vunpack.c.h.b16 %v3893
        %v5832 = vunpack.c.l.b16 %v3894
        %v5833 = vunpack.c.h.b16 %v3894
        %v5834 = vunpack.c.l.b16 %v3895
        %v5835 = vunpack.c.h.b16 %v3895
        %v5836 = vunpack.c.l.b16 %v3896
        %v5837 = vunpack.c.h.b16 %v3896
        %v5838 = vunpack.c.l.b16 %v3897
        %v5839 = vunpack.c.h.b16 %v3897
        %v5840 = vunpack.c.l.b16 %v3898
        %v5841 = vunpack.c.h.b16 %v3898
        %v5842 = vunpack.c.l.b16 %v3899
        %v5843 = vunpack.c.h.b16 %v3899
        %v5844 = vunpack.c.l.b16 %v3900
        %v5845 = vunpack.c.h.b16 %v3900
        %v5846 = vunpack.c.l.b16 %v3901
        %v5847 = vunpack.c.h.b16 %v3901
        %v5848 = vunpack.c.l.b16 %v3902
        %v5849 = vunpack.c.h.b16 %v3902
        %v5850 = vunpack.c.l.b16 %v3903
        %v5851 = vunpack.c.h.b16 %v3903
        %v5852 = vunpack.c.l.b16 %v3904
        %v5853 = vunpack.c.h.b16 %v3904
        %v5854 = vunpack.c.l.b16 %v3905
        %v5855 = vunpack.c.h.b16 %v3905
        %v5856 = vunpack.c.l.b16 %v3906
        %v5857 = vunpack.c.h.b16 %v3906
        %v5858 = vunpack.c.l.b16 %v3907
        %v5859 = vunpack.c.h.b16 %v3907
        %v5860 = vunpack.c.l.b16 %v3908
        %v5861 = vunpack.c.h.b16 %v3908
        %v5862 = vunpack.c.l.b16 %v3909
        %v5863 = vunpack.c.h.b16 %v3909
        %v5864 = vunpack.c.l.b16 %v3910
        %v5865 = vunpack.c.h.b16 %v3910
        %v5866 = vunpack.c.l.b16 %v3911
        %v5867 = vunpack.c.h.b16 %v3911
        %v5868 = vunpack.c.l.b16 %v3912
        %v5869 = vunpack.c.h.b16 %v3912
        %v5870 = vunpack.c.l.b16 %v3913
        %v5871 = vunpack.c.h.b16 %v3913
        %v5872 = vunpack.c.l.b16 %v3914
        %v5873 = vunpack.c.h.b16 %v3914
        %v5874 = vunpack.c.l.b16 %v3915
        %v5875 = vunpack.c.h.b16 %v3915
        %v5876 = vunpack.c.l.b16 %v3916
        %v5877 = vunpack.c.h.b16 %v3916
        %v5878 = vunpack.c.l.b16 %v3917
        %v5879 = vunpack.c.h.b16 %v3917
        %v5880 = vunpack.c.l.b16 %v3918
        %v5881 = vunpack.c.h.b16 %v3918
        %v5882 = vunpack.c.l.b16 %v3919
        %v5883 = vunpack.c.h.b16 %v3919
        %v5884 = vunpack.c.l.b16 %v3920
        %v5885 = vunpack.c.h.b16 %v3920
        %v5886 = vunpack.c.l.b16 %v3921
        %v5887 = vunpack.c.h.b16 %v3921
        %v5888 = vunpack.c.l.b16 %v3922
        %v5889 = vunpack.c.h.b16 %v3922
        %v5890 = vunpack.c.l.b16 %v3923
        %v5891 = vunpack.c.h.b16 %v3923
        %v5892 = vunpack.c.l.b16 %v3924
        %v5893 = vunpack.c.h.b16 %v3924
        %v5894 = vunpack.c.l.b16 %v3925
        %v5895 = vunpack.c.h.b16 %v3925
        %v5896 = vunpack.c.l.b16 %v3926
        %v5897 = vunpack.c.h.b16 %v3926
        %v5898 = vunpack.c.l.b16 %v3927
        %v5899 = vunpack.c.h.b16 %v3927
        %v5900 = vunpack.c.l.b16 %v3928
        %v5901 = vunpack.c.h.b16 %v3928
        %v5902 = vunpack.c.l.b16 %v3929
        %v5903 = vunpack.c.h.b16 %v3929
        %v5904 = vunpack.c.l.b16 %v3930
        %v5905 = vunpack.c.h.b16 %v3930
        %v5906 = vunpack.c.l.b16 %v3931
        %v5907 = vunpack.c.h.b16 %v3931
        %v5908 = vunpack.c.l.b16 %v3932
        %v5909 = vunpack.c.h.b16 %v3932
        %v5910 = vunpack.c.l.b16 %v3933
        %v5911 = vunpack.c.h.b16 %v3933
        %v5912 = vunpack.c.l.b16 %v3934
        %v5913 = vunpack.c.h.b16 %v3934
        %v5914 = vunpack.c.l.b16 %v3935
        %v5915 = vunpack.c.h.b16 %v3935
        %v5916 = vunpack.c.l.b16 %v3936
        %v5917 = vunpack.c.h.b16 %v3936
        %v5918 = vunpack.c.l.b16 %v3937
        %v5919 = vunpack.c.h.b16 %v3937
        %v5920 = vunpack.c.l.b16 %v3938
        %v5921 = vunpack.c.h.b16 %v3938
        %v5922 = vunpack.c.l.b16 %v3939
        %v5923 = vunpack.c.h.b16 %v3939
        %v5924 = vunpack.c.l.b16 %v3940
        %v5925 = vunpack.c.h.b16 %v3940
        %v5926 = vunpack.c.l.b16 %v3941
        %v5927 = vunpack.c.h.b16 %v3941
        %v5928 = vunpack.c.l.b16 %v3942
        %v5929 = vunpack.c.h.b16 %v3942
        %v5930 = vunpack.c.l.b16 %v3943
        %v5931 = vunpack.c.h.b16 %v3943
        %v5932 = vunpack.c.l.b16 %v3944
        %v5933 = vunpack.c.h.b16 %v3944
        %v5934 = vunpack.c.l.b16 %v3945
        %v5935 = vunpack.c.h.b16 %v3945
        %v5936 = vunpack.c.l.b16 %v3946
        %v5937 = vunpack.c.h.b16 %v3946
        %v5938 = vunpack.c.l.b16 %v3947
        %v5939 = vunpack.c.h.b16 %v3947
        %v5940 = vunpack.c.l.b16 %v3948
        %v5941 = vunpack.c.h.b16 %v3948
        %v5942 = vunpack.c.l.b16 %v3949
        %v5943 = vunpack.c.h.b16 %v3949
        %v5944 = vunpack.c.l.b16 %v3950
        %v5945 = vunpack.c.h.b16 %v3950
        %v5946 = vunpack.c.l.b16 %v3951
        %v5947 = vunpack.c.h.b16 %v3951
        %v5948 = vunpack.c.l.b16 %v3952
        %v5949 = vunpack.c.h.b16 %v3952
        %v5950 = vunpack.c.l.b16 %v3953
        %v5951 = vunpack.c.h.b16 %v3953
        %v5952 = vunpack.c.l.b16 %v3954
        %v5953 = vunpack.c.h.b16 %v3954
        %v5954 = vunpack.c.l.b16 %v3955
        %v5955 = vunpack.c.h.b16 %v3955
        %v5956 = vunpack.c.l.b16 %v3956
        %v5957 = vunpack.c.h.b16 %v3956
        %v5958 = vunpack.c.l.b16 %v3957
        %v5959 = vunpack.c.h.b16 %v3957
        %v5960 = vunpack.c.l.b16 %v3958
        %v5961 = vunpack.c.h.b16 %v3958
        %v5962 = vunpack.c.l.b16 %v3959
        %v5963 = vunpack.c.h.b16 %v3959
        %v5964 = vunpack.c.l.b16 %v3960
        %v5965 = vunpack.c.h.b16 %v3960
        %v5966 = vunpack.c.l.b16 %v3961
        %v5967 = vunpack.c.h.b16 %v3961
        %v5968 = vunpack.c.l.b16 %v3962
        %v5969 = vunpack.c.h.b16 %v3962
        %v5970 = vunpack.c.l.b16 %v3963
        %v5971 = vunpack.c.h.b16 %v3963
        %v5972 = vunpack.c.l.b16 %v3964
        %v5973 = vunpack.c.h.b16 %v3964
        %v5974 = vunpack.c.l.b16 %v3965
        %v5975 = vunpack.c.h.b16 %v3965
        %v5976 = vunpack.c.l.b16 %v3966
        %v5977 = vunpack.c.h.b16 %v3966
        %v5978 = vunpack.c.l.b16 %v3967
        %v5979 = vunpack.c.h.b16 %v3967
        %v5980 = vunpack.c.l.b16 %v3968
        %v5981 = vunpack.c.h.b16 %v3968
        %v5982 = vunpack.c.l.b16 %v3969
        %v5983 = vunpack.c.h.b16 %v3969
        %v5984 = vunpack.c.l.b16 %v3970
        %v5985 = vunpack.c.h.b16 %v3970
        %v5986 = vunpack.c.l.b16 %v3971
        %v5987 = vunpack.c.h.b16 %v3971
        %v5988 = vunpack.c.l.b16 %v3972
        %v5989 = vunpack.c.h.b16 %v3972
        %v5990 = vunpack.c.l.b16 %v3973
        %v5991 = vunpack.c.h.b16 %v3973
        %v5992 = vunpack.c.l.b16 %v3974
        %v5993 = vunpack.c.h.b16 %v3974
        %v5994 = vunpack.c.l.b16 %v3975
        %v5995 = vunpack.c.h.b16 %v3975
        %v5996 = vunpack.c.l.b16 %v3976
        %v5997 = vunpack.c.h.b16 %v3976
        %v5998 = vunpack.c.l.b16 %v3977
        %v5999 = vunpack.c.h.b16 %v3977
        %v6000 = vunpack.c.l.b16 %v3978
        %v6001 = vunpack.c.h.b16 %v3978
        %v6002 = vunpack.c.l.b16 %v3979
        %v6003 = vunpack.c.h.b16 %v3979
        %v6004 = vunpack.c.l.b16 %v3980
        %v6005 = vunpack.c.h.b16 %v3980
        %v6006 = vunpack.c.l.b16 %v3981
        %v6007 = vunpack.c.h.b16 %v3981
        %v6008 = vunpack.c.l.b16 %v3982
        %v6009 = vunpack.c.h.b16 %v3982
        %v6010 = vunpack.c.l.b16 %v3983
        %v6011 = vunpack.c.h.b16 %v3983
        %v6012 = vunpack.c.l.b16 %v3984
        %v6013 = vunpack.c.h.b16 %v3984
        %v6014 = vunpack.c.l.b16 %v3985
        %v6015 = vunpack.c.h.b16 %v3985
        %v6016 = vunpack.c.l.b16 %v3986
        %v6017 = vunpack.c.h.b16 %v3986
        %v6018 = vunpack.c.l.b16 %v3987
        %v6019 = vunpack.c.h.b16 %v3987
        %v6020 = vunpack.c.l.b16 %v3988
        %v6021 = vunpack.c.h.b16 %v3988
        %v6022 = vunpack.c.l.b16 %v3989
        %v6023 = vunpack.c.h.b16 %v3989
        %v6024 = vunpack.c.l.b16 %v3990
        %v6025 = vunpack.c.h.b16 %v3990
        %v6026 = vunpack.c.l.b16 %v3991
        %v6027 = vunpack.c.h.b16 %v3991
        %v6028 = vunpack.c.l.b16 %v3992
        %v6029 = vunpack.c.h.b16 %v3992
        %v6030 = vunpack.c.l.b16 %v3993
        %v6031 = vunpack.c.h.b16 %v3993
        %v6032 = vunpack.c.l.b16 %v3994
        %v6033 = vunpack.c.h.b16 %v3994
        %v6034 = vunpack.c.l.b16 %v3995
        %v6035 = vunpack.c.h.b16 %v3995
        %v6036 = vunpack.c.l.b16 %v3996
        %v6037 = vunpack.c.h.b16 %v3996
        %v6038 = vunpack.c.l.b16 %v3997
        %v6039 = vunpack.c.h.b16 %v3997
        %v6040 = vunpack.c.l.b16 %v3998
        %v6041 = vunpack.c.h.b16 %v3998
        %v6042 = vunpack.c.l.b16 %v3999
        %v6043 = vunpack.c.h.b16 %v3999
        %v6044 = vunpack.c.l.b16 %v4000
        %v6045 = vunpack.c.h.b16 %v4000
        %v6046 = vunpack.c.l.b16 %v4001
        %v6047 = vunpack.c.h.b16 %v4001
        %v6048 = vunpack.c.l.b16 %v4002
        %v6049 = vunpack.c.h.b16 %v4002
        %v6050 = vunpack.c.l.b16 %v4003
        %v6051 = vunpack.c.h.b16 %v4003
        %v6052 = vunpack.c.l.b16 %v4004
        %v6053 = vunpack.c.h.b16 %v4004
        %v6054 = vunpack.c.l.b16 %v4005
        %v6055 = vunpack.c.h.b16 %v4005
        %v6056 = vunpack.c.l.b16 %v4006
        %v6057 = vunpack.c.h.b16 %v4006
        %v6058 = vunpack.c.l.b16 %v4007
        %v6059 = vunpack.c.h.b16 %v4007
        %v6060 = vunpack.c.l.b16 %v4008
        %v6061 = vunpack.c.h.b16 %v4008
        %v6062 = vunpack.c.l.b16 %v4009
        %v6063 = vunpack.c.h.b16 %v4009
        %v6064 = vunpack.c.l.b16 %v4010
        %v6065 = vunpack.c.h.b16 %v4010
        %v6066 = vunpack.c.l.b16 %v4011
        %v6067 = vunpack.c.h.b16 %v4011
        %v6068 = vunpack.c.l.b16 %v4012
        %v6069 = vunpack.c.h.b16 %v4012
        %v6070 = vunpack.c.l.b16 %v4013
        %v6071 = vunpack.c.h.b16 %v4013
        %v6072 = vunpack.c.l.b16 %v4014
        %v6073 = vunpack.c.h.b16 %v4014
        %v6074 = vunpack.c.l.b16 %v4015
        %v6075 = vunpack.c.h.b16 %v4015
        %v6076 = vunpack.c.l.b16 %v4016
        %v6077 = vunpack.c.h.b16 %v4016
        %v6078 = vunpack.c.l.b16 %v4017
        %v6079 = vunpack.c.h.b16 %v4017
        %v6080 = vunpack.c.l.b16 %v4018
        %v6081 = vunpack.c.h.b16 %v4018
        %v6082 = vunpack.c.l.b16 %v4019
        %v6083 = vunpack.c.h.b16 %v4019
        %v6084 = vunpack.c.l.b16 %v4020
        %v6085 = vunpack.c.h.b16 %v4020
        %v6086 = vunpack.c.l.b16 %v4021
        %v6087 = vunpack.c.h.b16 %v4021
        %v6088 = vunpack.c.l.b16 %v4022
        %v6089 = vunpack.c.h.b16 %v4022
        %v6090 = vunpack.c.l.b16 %v4023
        %v6091 = vunpack.c.h.b16 %v4023
        %v6092 = vunpack.c.l.b16 %v4024
        %v6093 = vunpack.c.h.b16 %v4024
        %v6094 = vunpack.c.l.b16 %v4025
        %v6095 = vunpack.c.h.b16 %v4025
        %v6096 = vunpack.c.l.b16 %v4026
        %v6097 = vunpack.c.h.b16 %v4026
        %v6098 = vunpack.c.l.b16 %v4027
        %v6099 = vunpack.c.h.b16 %v4027
        %v6100 = vunpack.c.l.b16 %v4028
        %v6101 = vunpack.c.h.b16 %v4028
        %v6102 = vunpack.c.l.b16 %v4029
        %v6103 = vunpack.c.h.b16 %v4029
        %v6104 = vunpack.c.l.b16 %v4030
        %v6105 = vunpack.c.h.b16 %v4030
        %v6106 = vunpack.c.l.b16 %v4031
        %v6107 = vunpack.c.h.b16 %v4031
        %v6108 = vunpack.c.l.b16 %v4032
        %v6109 = vunpack.c.h.b16 %v4032
        %v6110 = vunpack.c.l.b16 %v4033
        %v6111 = vunpack.c.h.b16 %v4033
        %v6112 = vunpack.c.l.b16 %v4034
        %v6113 = vunpack.c.h.b16 %v4034
        %v6114 = vunpack.c.l.b16 %v4035
        %v6115 = vunpack.c.h.b16 %v4035
        %v6116 = vunpack.c.l.b16 %v4036
        %v6117 = vunpack.c.h.b16 %v4036
        %v6118 = vunpack.c.l.b16 %v4037
        %v6119 = vunpack.c.h.b16 %v4037
        %v6120 = vunpack.c.l.b16 %v4038
        %v6121 = vunpack.c.h.b16 %v4038
        %v6122 = vunpack.c.l.b16 %v4039
        %v6123 = vunpack.c.h.b16 %v4039
        %v6124 = vunpack.c.l.b16 %v4040
        %v6125 = vunpack.c.h.b16 %v4040
        %v6126 = vunpack.c.l.b16 %v4041
        %v6127 = vunpack.c.h.b16 %v4041
        %v6128 = vunpack.c.l.b16 %v4042
        %v6129 = vunpack.c.h.b16 %v4042
        %v6130 = vunpack.c.l.b16 %v4043
        %v6131 = vunpack.c.h.b16 %v4043
        %v6132 = vunpack.c.l.b16 %v4044
        %v6133 = vunpack.c.h.b16 %v4044
        %v6134 = vunpack.c.l.b16 %v4045
        %v6135 = vunpack.c.h.b16 %v4045
        %v6136 = vunpack.c.l.b16 %v4046
        %v6137 = vunpack.c.h.b16 %v4046
        %v6138 = vunpack.c.l.b16 %v4047
        %v6139 = vunpack.c.h.b16 %v4047
        %v6140 = vunpack.c.l.b16 %v4048
        %v6141 = vunpack.c.h.b16 %v4048
        %v6142 = vunpack.c.l.b16 %v4049
        %v6143 = vunpack.c.h.b16 %v4049
        %v6144 = vunpack.c.l.b16 %v4050
        %v6145 = vunpack.c.h.b16 %v4050
        %v6146 = vunpack.c.l.b16 %v4051
        %v6147 = vunpack.c.h.b16 %v4051
        %v6148 = vunpack.c.l.b16 %v4052
        %v6149 = vunpack.c.h.b16 %v4052
        %v6150 = vunpack.c.l.b16 %v4053
        %v6151 = vunpack.c.h.b16 %v4053
        %v6152 = vunpack.c.l.b16 %v4054
        %v6153 = vunpack.c.h.b16 %v4054
        %v6154 = vunpack.c.l.b16 %v4055
        %v6155 = vunpack.c.h.b16 %v4055
        %v6156 = vunpack.c.l.b16 %v4056
        %v6157 = vunpack.c.h.b16 %v4056
        %v6158 = vunpack.c.l.b16 %v4057
        %v6159 = vunpack.c.h.b16 %v4057
        %v6160 = vunpack.c.l.b16 %v4058
        %v6161 = vunpack.c.h.b16 %v4058
        %v6162 = vunpack.c.l.b16 %v4059
        %v6163 = vunpack.c.h.b16 %v4059
        %v6164 = vunpack.c.l.b16 %v4060
        %v6165 = vunpack.c.h.b16 %v4060
        %v6166 = vunpack.c.l.b16 %v4061
        %v6167 = vunpack.c.h.b16 %v4061
        %v6168 = vunpack.c.l.b16 %v4062
        %v6169 = vunpack.c.h.b16 %v4062
        %v6170 = vunpack.c.l.b16 %v4063
        %v6171 = vunpack.c.h.b16 %v4063
        %v6172 = vunpack.c.l.b16 %v4064
        %v6173 = vunpack.c.h.b16 %v4064
        %v6174 = vunpack.c.l.b16 %v4065
        %v6175 = vunpack.c.h.b16 %v4065
        %v6176 = vunpack.c.l.b16 %v4066
        %v6177 = vunpack.c.h.b16 %v4066
        %v6178 = vunpack.c.l.b16 %v4067
        %v6179 = vunpack.c.h.b16 %v4067
        %v6180 = vunpack.c.l.b16 %v4068
        %v6181 = vunpack.c.h.b16 %v4068
        %v6182 = vunpack.c.l.b16 %v4069
        %v6183 = vunpack.c.h.b16 %v4069
        %v6184 = vunpack.c.l.b16 %v4070
        %v6185 = vunpack.c.h.b16 %v4070
        %v6186 = vunpack.c.l.b16 %v4071
        %v6187 = vunpack.c.h.b16 %v4071
        %v6188 = vunpack.c.l.b16 %v4072
        %v6189 = vunpack.c.h.b16 %v4072
        %v6190 = vunpack.c.l.b16 %v4073
        %v6191 = vunpack.c.h.b16 %v4073
        %v6192 = vunpack.c.l.b16 %v4074
        %v6193 = vunpack.c.h.b16 %v4074
        %v6194 = vunpack.c.l.b16 %v4075
        %v6195 = vunpack.c.h.b16 %v4075
        %v6196 = vunpack.c.l.b16 %v4076
        %v6197 = vunpack.c.h.b16 %v4076
        %v6198 = vunpack.c.l.b16 %v4077
        %v6199 = vunpack.c.h.b16 %v4077
        %v6200 = vunpack.c.l.b16 %v4078
        %v6201 = vunpack.c.h.b16 %v4078
        %v6202 = vunpack.c.l.b16 %v4079
        %v6203 = vunpack.c.h.b16 %v4079
        %v6204 = vunpack.c.l.b16 %v4080
        %v6205 = vunpack.c.h.b16 %v4080
        %v6206 = vunpack.c.l.b16 %v4081
        %v6207 = vunpack.c.h.b16 %v4081
        %v6208 = vunpack.c.l.b16 %v4082
        %v6209 = vunpack.c.h.b16 %v4082
        %v6210 = vunpack.c.l.b16 %v4083
        %v6211 = vunpack.c.h.b16 %v4083
        %v6212 = vunpack.c.l.b16 %v4084
        %v6213 = vunpack.c.h.b16 %v4084
        %v6214 = vunpack.c.l.b16 %v4085
        %v6215 = vunpack.c.h.b16 %v4085
        %v6216 = vunpack.c.l.b16 %v4086
        %v6217 = vunpack.c.h.b16 %v4086
        %v6218 = vunpack.c.l.b16 %v4087
        %v6219 = vunpack.c.h.b16 %v4087
        %v6220 = vunpack.c.l.b16 %v4088
        %v6221 = vunpack.c.h.b16 %v4088
        %v6222 = vunpack.c.l.b16 %v4089
        %v6223 = vunpack.c.h.b16 %v4089
        %v6224 = vunpack.c.l.b16 %v4090
        %v6225 = vunpack.c.h.b16 %v4090
        %v6226 = vunpack.c.l.b16 %v4091
        %v6227 = vunpack.c.h.b16 %v4091
        %v6228 = vunpack.c.l.b16 %v4092
        %v6229 = vunpack.c.h.b16 %v4092
        %v6230 = vunpack.c.l.b16 %v4093
        %v6231 = vunpack.c.h.b16 %v4093
        %v6232 = vunpack.c.l.b16 %v4094
        %v6233 = vunpack.c.h.b16 %v4094
        %v6234 = vunpack.c.l.b16 %v4095
        %v6235 = vunpack.c.h.b16 %v4095
        %v6236 = vunpack.c.l.b16 %v4096
        %v6237 = vunpack.c.h.b16 %v4096
        %v6238 = vunpack.c.l.b16 %v4097
        %v6239 = vunpack.c.h.b16 %v4097
        %v6240 = vunpack.c.l.b16 %v4098
        %v6241 = vunpack.c.h.b16 %v4098
        %v6242 = vunpack.c.l.b16 %v4099
        %v6243 = vunpack.c.h.b16 %v4099
        %v6244 = vunpack.c.l.b16 %v4100
        %v6245 = vunpack.c.h.b16 %v4100
        %v6246 = vunpack.c.l.b16 %v4101
        %v6247 = vunpack.c.h.b16 %v4101
        %v6248 = vunpack.c.l.b16 %v4102
        %v6249 = vunpack.c.h.b16 %v4102
        %v6250 = vunpack.c.l.b16 %v4103
        %v6251 = vunpack.c.h.b16 %v4103
        %v6252 = vunpack.c.l.b16 %v4104
        %v6253 = vunpack.c.h.b16 %v4104
        %v6254 = vunpack.c.l.b16 %v4105
        %v6255 = vunpack.c.h.b16 %v4105
        %v6256 = vunpack.c.l.b16 %v4106
        %v6257 = vunpack.c.h.b16 %v4106
        %v6258 = vunpack.c.l.b16 %v4107
        %v6259 = vunpack.c.h.b16 %v4107
        %v6260 = vunpack.c.l.b16 %v4108
        %v6261 = vunpack.c.h.b16 %v4108
        %v6262 = vunpack.c.l.b16 %v4109
        %v6263 = vunpack.c.h.b16 %v4109
        %v6264 = vunpack.c.l.b16 %v4110
        %v6265 = vunpack.c.h.b16 %v4110
        %v6266 = vunpack.c.l.b16 %v4111
        %v6267 = vunpack.c.h.b16 %v4111
        %v6268 = vunpack.c.l.b16 %v4112
        %v6269 = vunpack.c.h.b16 %v4112
        %v6270 = vunpack.c.l.b16 %v4113
        %v6271 = vunpack.c.h.b16 %v4113
        %v6272 = vunpack.c.l.b16 %v4114
        %v6273 = vunpack.c.h.b16 %v4114
        %v6274 = vunpack.c.l.b16 %v4115
        %v6275 = vunpack.c.h.b16 %v4115
        %v6276 = vunpack.c.l.b16 %v4116
        %v6277 = vunpack.c.h.b16 %v4116
        %v6278 = vunpack.c.l.b16 %v4117
        %v6279 = vunpack.c.h.b16 %v4117
        %v6280 = vunpack.c.l.b16 %v4118
        %v6281 = vunpack.c.h.b16 %v4118
        %v6282 = vunpack.c.l.b16 %v4119
        %v6283 = vunpack.c.h.b16 %v4119
        %v6284 = vunpack.c.l.b16 %v4120
        %v6285 = vunpack.c.h.b16 %v4120
        %v6286 = vunpack.c.l.b16 %v4121
        %v6287 = vunpack.c.h.b16 %v4121
        %v6288 = vunpack.c.l.b16 %v4122
        %v6289 = vunpack.c.h.b16 %v4122
        %v6290 = vunpack.c.l.b16 %v4123
        %v6291 = vunpack.c.h.b16 %v4123
        %v6292 = vunpack.c.l.b16 %v4124
        %v6293 = vunpack.c.h.b16 %v4124
        %v6294 = vunpack.c.l.b16 %v4125
        %v6295 = vunpack.c.h.b16 %v4125
        %v6296 = vunpack.c.l.b16 %v4126
        %v6297 = vunpack.c.h.b16 %v4126
        %v6298 = vunpack.c.l.b16 %v4127
        %v6299 = vunpack.c.h.b16 %v4127
        %v6300 = vunpack.c.l.b16 %v4128
        %v6301 = vunpack.c.h.b16 %v4128
        %v6302 = vunpack.c.l.b16 %v4129
        %v6303 = vunpack.c.h.b16 %v4129
        %v6304 = vunpack.c.l.b16 %v4130
        %v6305 = vunpack.c.h.b16 %v4130
        %v6306 = vunpack.c.l.b16 %v4131
        %v6307 = vunpack.c.h.b16 %v4131
        %v6308 = vunpack.c.l.b16 %v4132
        %v6309 = vunpack.c.h.b16 %v4132
        %v6310 = vunpack.c.l.b16 %v4133
        %v6311 = vunpack.c.h.b16 %v4133
        %v6312 = vunpack.c.l.b16 %v4134
        %v6313 = vunpack.c.h.b16 %v4134
        %v6314 = vunpack.c.l.b16 %v4135
        %v6315 = vunpack.c.h.b16 %v4135
        %v6316 = vunpack.c.l.b16 %v4136
        %v6317 = vunpack.c.h.b16 %v4136
        %v6318 = vunpack.c.l.b16 %v4137
        %v6319 = vunpack.c.h.b16 %v4137
        %v6320 = vunpack.c.l.b16 %v4138
        %v6321 = vunpack.c.h.b16 %v4138
        %v6322 = vunpack.c.l.b16 %v4139
        %v6323 = vunpack.c.h.b16 %v4139
        %v6324 = vunpack.c.l.b16 %v4140
        %v6325 = vunpack.c.h.b16 %v4140
        %v6326 = vunpack.c.l.b16 %v4141
        %v6327 = vunpack.c.h.b16 %v4141
        %v6328 = vunpack.c.l.b16 %v4142
        %v6329 = vunpack.c.h.b16 %v4142
        %v6330 = vunpack.c.l.b16 %v4143
        %v6331 = vunpack.c.h.b16 %v4143
        %v6332 = vunpack.c.l.b16 %v4144
        %v6333 = vunpack.c.h.b16 %v4144
        %v6334 = vunpack.c.l.b16 %v4145
        %v6335 = vunpack.c.h.b16 %v4145
        %v6336 = vunpack.c.l.b16 %v4146
        %v6337 = vunpack.c.h.b16 %v4146
        %v6338 = vunpack.c.l.b16 %v4147
        %v6339 = vunpack.c.h.b16 %v4147
        %v6340 = vunpack.c.l.b16 %v4148
        %v6341 = vunpack.c.h.b16 %v4148
        %v6342 = vunpack.c.l.b16 %v4149
        %v6343 = vunpack.c.h.b16 %v4149
        %v6344 = vunpack.c.l.b16 %v4150
        %v6345 = vunpack.c.h.b16 %v4150
        %v6346 = vunpack.c.l.b16 %v4151
        %v6347 = vunpack.c.h.b16 %v4151
        %v6348 = vunpack.c.l.b16 %v4152
        %v6349 = vunpack.c.h.b16 %v4152
        %v6350 = vunpack.c.l.b16 %v4153
        %v6351 = vunpack.c.h.b16 %v4153
        %v6352 = vunpack.c.l.b16 %v4154
        %v6353 = vunpack.c.h.b16 %v4154
        %v6354 = vunpack.c.l.b16 %v4155
        %v6355 = vunpack.c.h.b16 %v4155
        %v6356 = vunpack.c.l.b16 %v4156
        %v6357 = vunpack.c.h.b16 %v4156
        %v6358 = vunpack.c.l.b16 %v4157
        %v6359 = vunpack.c.h.b16 %v4157
        %v6360 = vunpack.c.l.b16 %v4158
        %v6361 = vunpack.c.h.b16 %v4158
        %v6362 = vunpack.c.l.b16 %v4159
        %v6363 = vunpack.c.h.b16 %v4159
        %v6364 = vunpack.c.l.b16 %v4160
        %v6365 = vunpack.c.h.b16 %v4160
        %v6366 = vunpack.c.l.b16 %v4161
        %v6367 = vunpack.c.h.b16 %v4161
        %v6368 = vunpack.c.l.b16 %v4162
        %v6369 = vunpack.c.h.b16 %v4162
        %v6370 = vunpack.c.l.b16 %v4163
        %v6371 = vunpack.c.h.b16 %v4163
        %v6372 = vunpack.c.l.b16 %v4164
        %v6373 = vunpack.c.h.b16 %v4164
        %v6374 = vunpack.c.l.b16 %v4165
        %v6375 = vunpack.c.h.b16 %v4165
        %v6376 = vunpack.c.l.b16 %v4166
        %v6377 = vunpack.c.h.b16 %v4166
        %v6378 = vunpack.c.l.b16 %v4167
        %v6379 = vunpack.c.h.b16 %v4167
        %v6380 = vunpack.c.l.b16 %v4168
        %v6381 = vunpack.c.h.b16 %v4168
        %v6382 = vunpack.c.l.b16 %v4169
        %v6383 = vunpack.c.h.b16 %v4169
        %v6384 = vunpack.c.l.b16 %v4170
        %v6385 = vunpack.c.h.b16 %v4170
        %v6386 = vunpack.c.l.b16 %v4171
        %v6387 = vunpack.c.h.b16 %v4171
        %v6388 = vunpack.c.l.b16 %v4172
        %v6389 = vunpack.c.h.b16 %v4172
        %v6390 = vunpack.c.l.b16 %v4173
        %v6391 = vunpack.c.h.b16 %v4173
        %v6392 = vunpack.c.l.b16 %v4174
        %v6393 = vunpack.c.h.b16 %v4174
        %v6394 = vunpack.c.l.b16 %v4175
        %v6395 = vunpack.c.h.b16 %v4175
        %v6396 = vunpack.c.l.b16 %v4176
        %v6397 = vunpack.c.h.b16 %v4176
        %v6398 = vunpack.c.l.b16 %v4177
        %v6399 = vunpack.c.h.b16 %v4177
        %v6400 = vunpack.c.l.b16 %v4178
        %v6401 = vunpack.c.h.b16 %v4178
        %v6402 = vunpack.c.l.b16 %v4179
        %v6403 = vunpack.c.h.b16 %v4179
        %v6404 = vunpack.c.l.b16 %v4180
        %v6405 = vunpack.c.h.b16 %v4180
        %v6406 = vunpack.c.l.b16 %v4181
        %v6407 = vunpack.c.h.b16 %v4181
        %v6408 = vunpack.c.l.b16 %v4182
        %v6409 = vunpack.c.h.b16 %v4182
        %v6410 = vunpack.c.l.b16 %v4183
        %v6411 = vunpack.c.h.b16 %v4183
        %v6412 = vunpack.c.l.b16 %v4184
        %v6413 = vunpack.c.h.b16 %v4184
        %v6414 = vunpack.c.l.b16 %v4185
        %v6415 = vunpack.c.h.b16 %v4185
        %v6416 = vunpack.c.l.b16 %v4186
        %v6417 = vunpack.c.h.b16 %v4186
        %v6418 = vunpack.c.l.b16 %v4187
        %v6419 = vunpack.c.h.b16 %v4187
        %v6420 = vunpack.c.l.b16 %v4188
        %v6421 = vunpack.c.h.b16 %v4188
        %v6422 = vunpack.c.l.b16 %v4189
        %v6423 = vunpack.c.h.b16 %v4189
        %v6424 = vunpack.c.l.b16 %v4190
        %v6425 = vunpack.c.h.b16 %v4190
        %v6426 = vunpack.c.l.b16 %v4191
        %v6427 = vunpack.c.h.b16 %v4191
        %v6428 = vunpack.c.l.b16 %v4192
        %v6429 = vunpack.c.h.b16 %v4192
        %v6430 = vunpack.c.l.b16 %v4193
        %v6431 = vunpack.c.h.b16 %v4193
        %v6432 = vunpack.c.l.b16 %v4194
        %v6433 = vunpack.c.h.b16 %v4194
        %v6434 = vunpack.c.l.b16 %v4195
        %v6435 = vunpack.c.h.b16 %v4195
        %v6436 = vunpack.c.l.b16 %v4196
        %v6437 = vunpack.c.h.b16 %v4196
        %v6438 = vunpack.c.l.b16 %v4197
        %v6439 = vunpack.c.h.b16 %v4197
        %v6440 = vunpack.c.l.b16 %v4198
        %v6441 = vunpack.c.h.b16 %v4198
        %v6442 = vunpack.c.l.b16 %v4199
        %v6443 = vunpack.c.h.b16 %v4199
        %v6444 = vunpack.c.l.b16 %v4200
        %v6445 = vunpack.c.h.b16 %v4200
        %v6446 = vunpack.c.l.b16 %v4201
        %v6447 = vunpack.c.h.b16 %v4201
        %v6448 = vunpack.c.l.b16 %v4202
        %v6449 = vunpack.c.h.b16 %v4202
        %v6450 = vunpack.c.l.b16 %v4203
        %v6451 = vunpack.c.h.b16 %v4203
        %v6452 = vunpack.c.l.b16 %v4204
        %v6453 = vunpack.c.h.b16 %v4204
        %v6454 = vunpack.c.l.b16 %v4205
        %v6455 = vunpack.c.h.b16 %v4205
        %v6456 = vunpack.c.l.b16 %v4206
        %v6457 = vunpack.c.h.b16 %v4206
        %v6458 = vunpack.c.l.b16 %v4207
        %v6459 = vunpack.c.h.b16 %v4207
        %v6460 = vunpack.c.l.b16 %v4208
        %v6461 = vunpack.c.h.b16 %v4208
        %v6462 = vunpack.c.l.b16 %v4209
        %v6463 = vunpack.c.h.b16 %v4209
        %v6464 = vunpack.c.l.b16 %v4210
        %v6465 = vunpack.c.h.b16 %v4210
        %v6466 = vunpack.c.l.b16 %v4211
        %v6467 = vunpack.c.h.b16 %v4211
        %v6468 = vunpack.c.l.b16 %v4212
        %v6469 = vunpack.c.h.b16 %v4212
        %v6470 = vunpack.c.l.b16 %v4213
        %v6471 = vunpack.c.h.b16 %v4213
        %v6472 = vunpack.c.l.b16 %v4214
        %v6473 = vunpack.c.h.b16 %v4214
        %v6474 = vunpack.c.l.b16 %v4215
        %v6475 = vunpack.c.h.b16 %v4215
        %v6476 = vunpack.c.l.b16 %v4216
        %v6477 = vunpack.c.h.b16 %v4216
        %v6478 = vunpack.c.l.b16 %v4217
        %v6479 = vunpack.c.h.b16 %v4217
        %v6480 = vunpack.c.l.b16 %v4218
        %v6481 = vunpack.c.h.b16 %v4218
        %v6482 = vunpack.c.l.b16 %v4219
        %v6483 = vunpack.c.h.b16 %v4219
        %v6484 = vunpack.c.l.b16 %v4220
        %v6485 = vunpack.c.h.b16 %v4220
        %v6486 = vunpack.c.l.b16 %v4221
        %v6487 = vunpack.c.h.b16 %v4221
        %v6488 = vunpack.c.l.b16 %v4222
        %v6489 = vunpack.c.h.b16 %v4222
        %v6490 = vunpack.c.l.b16 %v4223
        %v6491 = vunpack.c.h.b16 %v4223
        %v6492 = vunpack.c.l.b16 %v4224
        %v6493 = vunpack.c.h.b16 %v4224
        %v6494 = vunpack.c.l.b16 %v4225
        %v6495 = vunpack.c.h.b16 %v4225
        %v6496 = vunpack.c.l.b16 %v4226
        %v6497 = vunpack.c.h.b16 %v4226
        %v6498 = vunpack.c.l.b16 %v4227
        %v6499 = vunpack.c.h.b16 %v4227
        %v6500 = vunpack.c.l.b16 %v4228
        %v6501 = vunpack.c.h.b16 %v4228
        %v6502 = vunpack.c.l.b16 %v4229
        %v6503 = vunpack.c.h.b16 %v4229
        %v6504 = vunpack.c.l.b16 %v4230
        %v6505 = vunpack.c.h.b16 %v4230
        %v6506 = vunpack.c.l.b16 %v4231
        %v6507 = vunpack.c.h.b16 %v4231
        %v6508 = vunpack.c.l.b16 %v4232
        %v6509 = vunpack.c.h.b16 %v4232
        %v6510 = vunpack.c.l.b16 %v4233
        %v6511 = vunpack.c.h.b16 %v4233
        %v6512 = vunpack.c.l.b16 %v4234
        %v6513 = vunpack.c.h.b16 %v4234
        %v6514 = vunpack.c.l.b16 %v4235
        %v6515 = vunpack.c.h.b16 %v4235
        %v6516 = vunpack.c.l.b16 %v4236
        %v6517 = vunpack.c.h.b16 %v4236
        %v6518 = vunpack.c.l.b16 %v4237
        %v6519 = vunpack.c.h.b16 %v4237
        %v6520 = vunpack.c.l.b16 %v4238
        %v6521 = vunpack.c.h.b16 %v4238
        %v6522 = vunpack.c.l.b16 %v4239
        %v6523 = vunpack.c.h.b16 %v4239
        %v6524 = vunpack.c.l.b16 %v4240
        %v6525 = vunpack.c.h.b16 %v4240
        %v6526 = vunpack.c.l.b16 %v4241
        %v6527 = vunpack.c.h.b16 %v4241
        %v6528 = vunpack.c.l.b16 %v4242
        %v6529 = vunpack.c.h.b16 %v4242
        %v6530 = vunpack.c.l.b16 %v4243
        %v6531 = vunpack.c.h.b16 %v4243
        %v6532 = vunpack.c.l.b16 %v4244
        %v6533 = vunpack.c.h.b16 %v4244
        %v6534 = vunpack.c.l.b16 %v4245
        %v6535 = vunpack.c.h.b16 %v4245
        %v6536 = vunpack.c.l.b16 %v4246
        %v6537 = vunpack.c.h.b16 %v4246
        %v6538 = vunpack.c.l.b16 %v4247
        %v6539 = vunpack.c.h.b16 %v4247
        %v6540 = vunpack.c.l.b16 %v4248
        %v6541 = vunpack.c.h.b16 %v4248
        %v6542 = vunpack.c.l.b16 %v4249
        %v6543 = vunpack.c.h.b16 %v4249
        %v6544 = vunpack.c.l.b16 %v4250
        %v6545 = vunpack.c.h.b16 %v4250
        %v6546 = vunpack.c.l.b16 %v4251
        %v6547 = vunpack.c.h.b16 %v4251
        %v6548 = vunpack.c.l.b16 %v4252
        %v6549 = vunpack.c.h.b16 %v4252
        %v6550 = vunpack.c.l.b16 %v4253
        %v6551 = vunpack.c.h.b16 %v4253
        %v6552 = vunpack.c.l.b16 %v4254
        %v6553 = vunpack.c.h.b16 %v4254
        %v6554 = vunpack.c.l.b16 %v4255
        %v6555 = vunpack.c.h.b16 %v4255
        %v6556 = vunpack.c.l.b16 %v4256
        %v6557 = vunpack.c.h.b16 %v4256
        %v6558 = vunpack.c.l.b16 %v4257
        %v6559 = vunpack.c.h.b16 %v4257
        %v6560 = vunpack.c.l.b16 %v4258
        %v6561 = vunpack.c.h.b16 %v4258
        %v6562 = vunpack.c.l.b16 %v4259
        %v6563 = vunpack.c.h.b16 %v4259
        %v6564 = vunpack.c.l.b16 %v4260
        %v6565 = vunpack.c.h.b16 %v4260
        %v6566 = vunpack.c.l.b16 %v4261
        %v6567 = vunpack.c.h.b16 %v4261
        %v6568 = vunpack.c.l.b16 %v4262
        %v6569 = vunpack.c.h.b16 %v4262
        %v6570 = vunpack.c.l.b16 %v4263
        %v6571 = vunpack.c.h.b16 %v4263
        %v6572 = vunpack.c.l.b16 %v4264
        %v6573 = vunpack.c.h.b16 %v4264
        %v6574 = vunpack.c.l.b16 %v4265
        %v6575 = vunpack.c.h.b16 %v4265
        %v6576 = vunpack.c.l.b16 %v4266
        %v6577 = vunpack.c.h.b16 %v4266
        %v6578 = vunpack.c.l.b16 %v4267
        %v6579 = vunpack.c.h.b16 %v4267
        %v6580 = vunpack.c.l.b16 %v4268
        %v6581 = vunpack.c.h.b16 %v4268
        %v6582 = vunpack.c.l.b16 %v4269
        %v6583 = vunpack.c.h.b16 %v4269
        %v6584 = vunpack.c.l.b16 %v4270
        %v6585 = vunpack.c.h.b16 %v4270
        %v6586 = vunpack.c.l.b16 %v4271
        %v6587 = vunpack.c.h.b16 %v4271
        %v6588 = vunpack.c.l.b16 %v4272
        %v6589 = vunpack.c.h.b16 %v4272
        %v6590 = vunpack.c.l.b16 %v4273
        %v6591 = vunpack.c.h.b16 %v4273
        %v6592 = vunpack.c.l.b16 %v4274
        %v6593 = vunpack.c.h.b16 %v4274
        %v6594 = vunpack.c.l.b16 %v4275
        %v6595 = vunpack.c.h.b16 %v4275
        %v6596 = vunpack.c.l.b16 %v4276
        %v6597 = vunpack.c.h.b16 %v4276
        %v6598 = vunpack.c.l.b16 %v4277
        %v6599 = vunpack.c.h.b16 %v4277
        %v6600 = vunpack.c.l.b16 %v4278
        %v6601 = vunpack.c.h.b16 %v4278
        %v6602 = vunpack.c.l.b16 %v4279
        %v6603 = vunpack.c.h.b16 %v4279
        %v6604 = vunpack.c.l.b16 %v4280
        %v6605 = vunpack.c.h.b16 %v4280
        %v6606 = vunpack.c.l.b16 %v4281
        %v6607 = vunpack.c.h.b16 %v4281
        %v6608 = vunpack.c.l.b16 %v4282
        %v6609 = vunpack.c.h.b16 %v4282
        %v6610 = vunpack.c.l.b16 %v4283
        %v6611 = vunpack.c.h.b16 %v4283
        %v6612 = vunpack.c.l.b16 %v4284
        %v6613 = vunpack.c.h.b16 %v4284
        %v6614 = vunpack.c.l.b16 %v4285
        %v6615 = vunpack.c.h.b16 %v4285
        %v6616 = vunpack.c.l.b16 %v4286
        %v6617 = vunpack.c.h.b16 %v4286
        %v6618 = vunpack.c.l.b16 %v4287
        %v6619 = vunpack.c.h.b16 %v4287
        %v6620 = vunpack.c.l.b16 %v4288
        %v6621 = vunpack.c.h.b16 %v4288
        %v6622 = vunpack.c.l.b16 %v4289
        %v6623 = vunpack.c.h.b16 %v4289
        %v6624 = vunpack.c.l.b16 %v4290
        %v6625 = vunpack.c.h.b16 %v4290
        %v6626 = vunpack.c.l.b16 %v4291
        %v6627 = vunpack.c.h.b16 %v4291
        %v6628 = vunpack.c.l.b16 %v4292
        %v6629 = vunpack.c.h.b16 %v4292
        %v6630 = vunpack.c.l.b16 %v4293
        %v6631 = vunpack.c.h.b16 %v4293
        %v6632 = vunpack.c.l.b16 %v4294
        %v6633 = vunpack.c.h.b16 %v4294
        %v6634 = vunpack.c.l.b16 %v4295
        %v6635 = vunpack.c.h.b16 %v4295
        %v6636 = vunpack.c.l.b16 %v4296
        %v6637 = vunpack.c.h.b16 %v4296
        %v6638 = vunpack.c.l.b16 %v4297
        %v6639 = vunpack.c.h.b16 %v4297
        %v6640 = vunpack.c.l.b16 %v4298
        %v6641 = vunpack.c.h.b16 %v4298
        %v6642 = vunpack.c.l.b16 %v4299
        %v6643 = vunpack.c.h.b16 %v4299
        %v6644 = vunpack.c.l.b16 %v4300
        %v6645 = vunpack.c.h.b16 %v4300
        %v6646 = vunpack.c.l.b16 %v4301
        %v6647 = vunpack.c.h.b16 %v4301
        %v6648 = vunpack.c.l.b16 %v4302
        %v6649 = vunpack.c.h.b16 %v4302
        %v6650 = vunpack.c.l.b16 %v4303
        %v6651 = vunpack.c.h.b16 %v4303
        %v6652 = vunpack.c.l.b16 %v4304
        %v6653 = vunpack.c.h.b16 %v4304
        %v6654 = vunpack.c.l.b16 %v4305
        %v6655 = vunpack.c.h.b16 %v4305
        %v6656 = vunpack.c.l.b16 %v4306
        %v6657 = vunpack.c.h.b16 %v4306
        %v6658 = vunpack.c.l.b16 %v4307
        %v6659 = vunpack.c.h.b16 %v4307
        %v6660 = vunpack.c.l.b16 %v4308
        %v6661 = vunpack.c.h.b16 %v4308
        %v6662 = vunpack.c.l.b16 %v4309
        %v6663 = vunpack.c.h.b16 %v4309
        %v6664 = vunpack.c.l.b16 %v4310
        %v6665 = vunpack.c.h.b16 %v4310
        %v6666 = vunpack.c.l.b16 %v4311
        %v6667 = vunpack.c.h.b16 %v4311
        %v6668 = vunpack.c.l.b16 %v4312
        %v6669 = vunpack.c.h.b16 %v4312
        %v6670 = vunpack.c.l.b16 %v4313
        %v6671 = vunpack.c.h.b16 %v4313
        %v6672 = vunpack.c.l.b16 %v4314
        %v6673 = vunpack.c.h.b16 %v4314
        %v6674 = vunpack.c.l.b16 %v4315
        %v6675 = vunpack.c.h.b16 %v4315
        %v6676 = vunpack.c.l.b16 %v4316
        %v6677 = vunpack.c.h.b16 %v4316
        %v6678 = vunpack.c.l.b16 %v4317
        %v6679 = vunpack.c.h.b16 %v4317
        %v6680 = vunpack.c.l.b16 %v4318
        %v6681 = vunpack.c.h.b16 %v4318
        %v6682 = vunpack.c.l.b16 %v4319
        %v6683 = vunpack.c.h.b16 %v4319
        %v6684 = vunpack.c.l.b16 %v4320
        %v6685 = vunpack.c.h.b16 %v4320
        %v6686 = vunpack.c.l.b16 %v4321
        %v6687 = vunpack.c.h.b16 %v4321
        %v6688 = vunpack.c.l.b16 %v4322
        %v6689 = vunpack.c.h.b16 %v4322
        %v6690 = vunpack.c.l.b16 %v4323
        %v6691 = vunpack.c.h.b16 %v4323
        %v6692 = vpack.c.b16 %v5168, %v5156
        %v6693 = vpack.c.b16 %v5169, %v5157
        %v6694 = vpack.c.b16 %v5170, %v5158
        %v6695 = vpack.c.b16 %v5171, %v5159
        %v6696 = vpack.c.b16 %v5172, %v5160
        %v6697 = vpack.c.b16 %v5173, %v5161
        %v6698 = vpack.c.b16 %v5174, %v5162
        %v6699 = vpack.c.b16 %v5175, %v5163
        %v6700 = vpack.c.b16 %v5176, %v5164
        %v6701 = vpack.c.b16 %v5177, %v5165
        %v6702 = vpack.c.b16 %v5178, %v5166
        %v6703 = vpack.c.b16 %v5179, %v5167
        %v6704 = vpack.c.b16 %v5192, %v5180
        %v6705 = vpack.c.b16 %v5193, %v5181
        %v6706 = vpack.c.b16 %v5194, %v5182
        %v6707 = vpack.c.b16 %v5195, %v5183
        %v6708 = vpack.c.b16 %v5196, %v5184
        %v6709 = vpack.c.b16 %v5197, %v5185
        %v6710 = vpack.c.b16 %v5198, %v5186
        %v6711 = vpack.c.b16 %v5199, %v5187
        %v6712 = vpack.c.b16 %v5200, %v5188
        %v6713 = vpack.c.b16 %v5201, %v5189
        %v6714 = vpack.c.b16 %v5202, %v5190
        %v6715 = vpack.c.b16 %v5203, %v5191
        %v6716 = vpack.c.b16 %v5216, %v5204
        %v6717 = vpack.c.b16 %v5217, %v5205
        %v6718 = vpack.c.b16 %v5218, %v5206
        %v6719 = vpack.c.b16 %v5219, %v5207
        %v6720 = vpack.c.b16 %v5220, %v5208
        %v6721 = vpack.c.b16 %v5221, %v5209
        %v6722 = vpack.c.b16 %v5222, %v5210
        %v6723 = vpack.c.b16 %v5223, %v5211
        %v6724 = vpack.c.b16 %v5224, %v5212
        %v6725 = vpack.c.b16 %v5225, %v5213
        %v6726 = vpack.c.b16 %v5226, %v5214
        %v6727 = vpack.c.b16 %v5227, %v5215
        %v6728 = vpack.c.b16 %v5240, %v5228
        %v6729 = vpack.c.b16 %v5241, %v5229
        %v6730 = vpack.c.b16 %v5242, %v5230
        %v6731 = vpack.c.b16 %v5243, %v5231
        %v6732 = vpack.c.b16 %v5244, %v5232
        %v6733 = vpack.c.b16 %v5245, %v5233
        %v6734 = vpack.c.b16 %v5246, %v5234
        %v6735 = vpack.c.b16 %v5247, %v5235
        %v6736 = vpack.c.b16 %v5248, %v5236
        %v6737 = vpack.c.b16 %v5249, %v5237
        %v6738 = vpack.c.b16 %v5250, %v5238
        %v6739 = vpack.c.b16 %v5251, %v5239
        %v6740 = vpack.c.b16 %v5264, %v5252
        %v6741 = vpack.c.b16 %v5265, %v5253
        %v6742 = vpack.c.b16 %v5266, %v5254
        %v6743 = vpack.c.b16 %v5267, %v5255
        %v6744 = vpack.c.b16 %v5268, %v5256
        %v6745 = vpack.c.b16 %v5269, %v5257
        %v6746 = vpack.c.b16 %v5270, %v5258
        %v6747 = vpack.c.b16 %v5271, %v5259
        %v6748 = vpack.c.b16 %v5272, %v5260
        %v6749 = vpack.c.b16 %v5273, %v5261
        %v6750 = vpack.c.b16 %v5274, %v5262
        %v6751 = vpack.c.b16 %v5275, %v5263
        %v6752 = vpack.c.b16 %v5288, %v5276
        %v6753 = vpack.c.b16 %v5289, %v5277
        %v6754 = vpack.c.b16 %v5290, %v5278
        %v6755 = vpack.c.b16 %v5291, %v5279
        %v6756 = vpack.c.b16 %v5292, %v5280
        %v6757 = vpack.c.b16 %v5293, %v5281
        %v6758 = vpack.c.b16 %v5294, %v5282
        %v6759 = vpack.c.b16 %v5295, %v5283
        %v6760 = vpack.c.b16 %v5296, %v5284
        %v6761 = vpack.c.b16 %v5297, %v5285
        %v6762 = vpack.c.b16 %v5298, %v5286
        %v6763 = vpack.c.b16 %v5299, %v5287
        %v6764 = vpack.c.b16 %v5312, %v5300
        %v6765 = vpack.c.b16 %v5313, %v5301
        %v6766 = vpack.c.b16 %v5314, %v5302
        %v6767 = vpack.c.b16 %v5315, %v5303
        %v6768 = vpack.c.b16 %v5316, %v5304
        %v6769 = vpack.c.b16 %v5317, %v5305
        %v6770 = vpack.c.b16 %v5318, %v5306
        %v6771 = vpack.c.b16 %v5319, %v5307
        %v6772 = vpack.c.b16 %v5320, %v5308
        %v6773 = vpack.c.b16 %v5321, %v5309
        %v6774 = vpack.c.b16 %v5322, %v5310
        %v6775 = vpack.c.b16 %v5323, %v5311
        %v6776 = vpack.c.b16 %v5336, %v5324
        %v6777 = vpack.c.b16 %v5337, %v5325
        %v6778 = vpack.c.b16 %v5338, %v5326
        %v6779 = vpack.c.b16 %v5339, %v5327
        %v6780 = vpack.c.b16 %v5340, %v5328
        %v6781 = vpack.c.b16 %v5341, %v5329
        %v6782 = vpack.c.b16 %v5342, %v5330
        %v6783 = vpack.c.b16 %v5343, %v5331
        %v6784 = vpack.c.b16 %v5344, %v5332
        %v6785 = vpack.c.b16 %v5345, %v5333
        %v6786 = vpack.c.b16 %v5346, %v5334
        %v6787 = vpack.c.b16 %v5347, %v5335
        %v6788 = vpack.c.b16 %v5360, %v5348
        %v6789 = vpack.c.b16 %v5361, %v5349
        %v6790 = vpack.c.b16 %v5362, %v5350
        %v6791 = vpack.c.b16 %v5363, %v5351
        %v6792 = vpack.c.b16 %v5364, %v5352
        %v6793 = vpack.c.b16 %v5365, %v5353
        %v6794 = vpack.c.b16 %v5366, %v5354
        %v6795 = vpack.c.b16 %v5367, %v5355
        %v6796 = vpack.c.b16 %v5368, %v5356
        %v6797 = vpack.c.b16 %v5369, %v5357
        %v6798 = vpack.c.b16 %v5370, %v5358
        %v6799 = vpack.c.b16 %v5371, %v5359
        %v6800 = vpack.c.b16 %v5384, %v5372
        %v6801 = vpack.c.b16 %v5385, %v5373
        %v6802 = vpack.c.b16 %v5386, %v5374
        %v6803 = vpack.c.b16 %v5387, %v5375
        %v6804 = vpack.c.b16 %v5388, %v5376
        %v6805 = vpack.c.b16 %v5389, %v5377
        %v6806 = vpack.c.b16 %v5390, %v5378
        %v6807 = vpack.c.b16 %v5391, %v5379
        %v6808 = vpack.c.b16 %v5392, %v5380
        %v6809 = vpack.c.b16 %v5393, %v5381
        %v6810 = vpack.c.b16 %v5394, %v5382
        %v6811 = vpack.c.b16 %v5395, %v5383
        %v6812 = vpack.c.b16 %v5408, %v5396
        %v6813 = vpack.c.b16 %v5409, %v5397
        %v6814 = vpack.c.b16 %v5410, %v5398
        %v6815 = vpack.c.b16 %v5411, %v5399
        %v6816 = vpack.c.b16 %v5412, %v5400
        %v6817 = vpack.c.b16 %v5413, %v5401
        %v6818 = vpack.c.b16 %v5414, %v5402
        %v6819 = vpack.c.b16 %v5415, %v5403
        %v6820 = vpack.c.b16 %v5416, %v5404
        %v6821 = vpack.c.b16 %v5417, %v5405
        %v6822 = vpack.c.b16 %v5418, %v5406
        %v6823 = vpack.c.b16 %v5419, %v5407
        %v6824 = vpack.c.b16 %v5432, %v5420
        %v6825 = vpack.c.b16 %v5433, %v5421
        %v6826 = vpack.c.b16 %v5434, %v5422
        %v6827 = vpack.c.b16 %v5435, %v5423
        %v6828 = vpack.c.b16 %v5436, %v5424
        %v6829 = vpack.c.b16 %v5437, %v5425
        %v6830 = vpack.c.b16 %v5438, %v5426
        %v6831 = vpack.c.b16 %v5439, %v5427
        %v6832 = vpack.c.b16 %v5440, %v5428
        %v6833 = vpack.c.b16 %v5441, %v5429
        %v6834 = vpack.c.b16 %v5442, %v5430
        %v6835 = vpack.c.b16 %v5443, %v5431
        %v6836 = vpack.c.b16 %v5456, %v5444
        %v6837 = vpack.c.b16 %v5457, %v5445
        %v6838 = vpack.c.b16 %v5458, %v5446
        %v6839 = vpack.c.b16 %v5459, %v5447
        %v6840 = vpack.c.b16 %v5460, %v5448
        %v6841 = vpack.c.b16 %v5461, %v5449
        %v6842 = vpack.c.b16 %v5462, %v5450
        %v6843 = vpack.c.b16 %v5463, %v5451
        %v6844 = vpack.c.b16 %v5464, %v5452
        %v6845 = vpack.c.b16 %v5465, %v5453
        %v6846 = vpack.c.b16 %v5466, %v5454
        %v6847 = vpack.c.b16 %v5467, %v5455
        %v6848 = vpack.c.b16 %v5480, %v5468
        %v6849 = vpack.c.b16 %v5481, %v5469
        %v6850 = vpack.c.b16 %v5482, %v5470
        %v6851 = vpack.c.b16 %v5483, %v5471
        %v6852 = vpack.c.b16 %v5484, %v5472
        %v6853 = vpack.c.b16 %v5485, %v5473
        %v6854 = vpack.c.b16 %v5486, %v5474
        %v6855 = vpack.c.b16 %v5487, %v5475
        %v6856 = vpack.c.b16 %v5488, %v5476
        %v6857 = vpack.c.b16 %v5489, %v5477
        %v6858 = vpack.c.b16 %v5490, %v5478
        %v6859 = vpack.c.b16 %v5491, %v5479
        %v6860 = vpack.c.b16 %v5504, %v5492
        %v6861 = vpack.c.b16 %v5505, %v5493
        %v6862 = vpack.c.b16 %v5506, %v5494
        %v6863 = vpack.c.b16 %v5507, %v5495
        %v6864 = vpack.c.b16 %v5508, %v5496
        %v6865 = vpack.c.b16 %v5509, %v5497
        %v6866 = vpack.c.b16 %v5510, %v5498
        %v6867 = vpack.c.b16 %v5511, %v5499
        %v6868 = vpack.c.b16 %v5512, %v5500
        %v6869 = vpack.c.b16 %v5513, %v5501
        %v6870 = vpack.c.b16 %v5514, %v5502
        %v6871 = vpack.c.b16 %v5515, %v5503
        %v6872 = vpack.c.b16 %v5528, %v5516
        %v6873 = vpack.c.b16 %v5529, %v5517
        %v6874 = vpack.c.b16 %v5530, %v5518
        %v6875 = vpack.c.b16 %v5531, %v5519
        %v6876 = vpack.c.b16 %v5532, %v5520
        %v6877 = vpack.c.b16 %v5533, %v5521
        %v6878 = vpack.c.b16 %v5534, %v5522
        %v6879 = vpack.c.b16 %v5535, %v5523
        %v6880 = vpack.c.b16 %v5536, %v5524
        %v6881 = vpack.c.b16 %v5537, %v5525
        %v6882 = vpack.c.b16 %v5538, %v5526
        %v6883 = vpack.c.b16 %v5539, %v5527
        %v6884 = vpack.c.b16 %v5552, %v5540
        %v6885 = vpack.c.b16 %v5553, %v5541
        %v6886 = vpack.c.b16 %v5554, %v5542
        %v6887 = vpack.c.b16 %v5555, %v5543
        %v6888 = vpack.c.b16 %v5556, %v5544
        %v6889 = vpack.c.b16 %v5557, %v5545
        %v6890 = vpack.c.b16 %v5558, %v5546
        %v6891 = vpack.c.b16 %v5559, %v5547
        %v6892 = vpack.c.b16 %v5560, %v5548
        %v6893 = vpack.c.b16 %v5561, %v5549
        %v6894 = vpack.c.b16 %v5562, %v5550
        %v6895 = vpack.c.b16 %v5563, %v5551
        %v6896 = vpack.c.b16 %v5576, %v5564
        %v6897 = vpack.c.b16 %v5577, %v5565
        %v6898 = vpack.c.b16 %v5578, %v5566
        %v6899 = vpack.c.b16 %v5579, %v5567
        %v6900 = vpack.c.b16 %v5580, %v5568
        %v6901 = vpack.c.b16 %v5581, %v5569
        %v6902 = vpack.c.b16 %v5582, %v5570
        %v6903 = vpack.c.b16 %v5583, %v5571
        %v6904 = vpack.c.b16 %v5584, %v5572
        %v6905 = vpack.c.b16 %v5585, %v5573
        %v6906 = vpack.c.b16 %v5586, %v5574
        %v6907 = vpack.c.b16 %v5587, %v5575
        %v6908 = vpack.c.b16 %v5600, %v5588
        %v6909 = vpack.c.b16 %v5601, %v5589
        %v6910 = vpack.c.b16 %v5602, %v5590
        %v6911 = vpack.c.b16 %v5603, %v5591
        %v6912 = vpack.c.b16 %v5604, %v5592
        %v6913 = vpack.c.b16 %v5605, %v5593
        %v6914 = vpack.c.b16 %v5606, %v5594
        %v6915 = vpack.c.b16 %v5607, %v5595
        %v6916 = vpack.c.b16 %v5608, %v5596
        %v6917 = vpack.c.b16 %v5609, %v5597
        %v6918 = vpack.c.b16 %v5610, %v5598
        %v6919 = vpack.c.b16 %v5611, %v5599
        %v6920 = vpack.c.b16 %v5624, %v5612
        %v6921 = vpack.c.b16 %v5625, %v5613
        %v6922 = vpack.c.b16 %v5626, %v5614
        %v6923 = vpack.c.b16 %v5627, %v5615
        %v6924 = vpack.c.b16 %v5628, %v5616
        %v6925 = vpack.c.b16 %v5629, %v5617
        %v6926 = vpack.c.b16 %v5630, %v5618
        %v6927 = vpack.c.b16 %v5631, %v5619
        %v6928 = vpack.c.b16 %v5632, %v5620
        %v6929 = vpack.c.b16 %v5633, %v5621
        %v6930 = vpack.c.b16 %v5634, %v5622
        %v6931 = vpack.c.b16 %v5635, %v5623
        %v6932 = vpack.c.b16 %v5648, %v5636
        %v6933 = vpack.c.b16 %v5649, %v5637
        %v6934 = vpack.c.b16 %v5650, %v5638
        %v6935 = vpack.c.b16 %v5651, %v5639
        %v6936 = vpack.c.b16 %v5652, %v5640
        %v6937 = vpack.c.b16 %v5653, %v5641
        %v6938 = vpack.c.b16 %v5654, %v5642
        %v6939 = vpack.c.b16 %v5655, %v5643
        %v6940 = vpack.c.b16 %v5656, %v5644
        %v6941 = vpack.c.b16 %v5657, %v5645
        %v6942 = vpack.c.b16 %v5658, %v5646
        %v6943 = vpack.c.b16 %v5659, %v5647
        %v6944 = vpack.c.b16 %v5672, %v5660
        %v6945 = vpack.c.b16 %v5673, %v5661
        %v6946 = vpack.c.b16 %v5674, %v5662
        %v6947 = vpack.c.b16 %v5675, %v5663
        %v6948 = vpack.c.b16 %v5676, %v5664
        %v6949 = vpack.c.b16 %v5677, %v5665
        %v6950 = vpack.c.b16 %v5678, %v5666
        %v6951 = vpack.c.b16 %v5679, %v5667
        %v6952 = vpack.c.b16 %v5680, %v5668
        %v6953 = vpack.c.b16 %v5681, %v5669
        %v6954 = vpack.c.b16 %v5682, %v5670
        %v6955 = vpack.c.b16 %v5683, %v5671
        %v6956 = vpack.c.b16 %v5696, %v5684
        %v6957 = vpack.c.b16 %v5697, %v5685
        %v6958 = vpack.c.b16 %v5698, %v5686
        %v6959 = vpack.c.b16 %v5699, %v5687
        %v6960 = vpack.c.b16 %v5700, %v5688
        %v6961 = vpack.c.b16 %v5701, %v5689
        %v6962 = vpack.c.b16 %v5702, %v5690
        %v6963 = vpack.c.b16 %v5703, %v5691
        %v6964 = vpack.c.b16 %v5704, %v5692
        %v6965 = vpack.c.b16 %v5705, %v5693
        %v6966 = vpack.c.b16 %v5706, %v5694
        %v6967 = vpack.c.b16 %v5707, %v5695
        %v6968 = vpack.c.b16 %v5720, %v5708
        %v6969 = vpack.c.b16 %v5721, %v5709
        %v6970 = vpack.c.b16 %v5722, %v5710
        %v6971 = vpack.c.b16 %v5723, %v5711
        %v6972 = vpack.c.b16 %v5724, %v5712
        %v6973 = vpack.c.b16 %v5725, %v5713
        %v6974 = vpack.c.b16 %v5726, %v5714
        %v6975 = vpack.c.b16 %v5727, %v5715
        %v6976 = vpack.c.b16 %v5728, %v5716
        %v6977 = vpack.c.b16 %v5729, %v5717
        %v6978 = vpack.c.b16 %v5730, %v5718
        %v6979 = vpack.c.b16 %v5731, %v5719
        %v6980 = vpack.c.b16 %v5744, %v5732
        %v6981 = vpack.c.b16 %v5745, %v5733
        %v6982 = vpack.c.b16 %v5746, %v5734
        %v6983 = vpack.c.b16 %v5747, %v5735
        %v6984 = vpack.c.b16 %v5748, %v5736
        %v6985 = vpack.c.b16 %v5749, %v5737
        %v6986 = vpack.c.b16 %v5750, %v5738
        %v6987 = vpack.c.b16 %v5751, %v5739
        %v6988 = vpack.c.b16 %v5752, %v5740
        %v6989 = vpack.c.b16 %v5753, %v5741
        %v6990 = vpack.c.b16 %v5754, %v5742
        %v6991 = vpack.c.b16 %v5755, %v5743
        %v6992 = vpack.c.b16 %v5768, %v5756
        %v6993 = vpack.c.b16 %v5769, %v5757
        %v6994 = vpack.c.b16 %v5770, %v5758
        %v6995 = vpack.c.b16 %v5771, %v5759
        %v6996 = vpack.c.b16 %v5772, %v5760
        %v6997 = vpack.c.b16 %v5773, %v5761
        %v6998 = vpack.c.b16 %v5774, %v5762
        %v6999 = vpack.c.b16 %v5775, %v5763
        %v7000 = vpack.c.b16 %v5776, %v5764
        %v7001 = vpack.c.b16 %v5777, %v5765
        %v7002 = vpack.c.b16 %v5778, %v5766
        %v7003 = vpack.c.b16 %v5779, %v5767
        %v7004 = vpack.c.b16 %v5792, %v5780
        %v7005 = vpack.c.b16 %v5793, %v5781
        %v7006 = vpack.c.b16 %v5794, %v5782
        %v7007 = vpack.c.b16 %v5795, %v5783
        %v7008 = vpack.c.b16 %v5796, %v5784
        %v7009 = vpack.c.b16 %v5797, %v5785
        %v7010 = vpack.c.b16 %v5798, %v5786
        %v7011 = vpack.c.b16 %v5799, %v5787
        %v7012 = vpack.c.b16 %v5800, %v5788
        %v7013 = vpack.c.b16 %v5801, %v5789
        %v7014 = vpack.c.b16 %v5802, %v5790
        %v7015 = vpack.c.b16 %v5803, %v5791
        %v7016 = vpack.c.b16 %v5816, %v5804
        %v7017 = vpack.c.b16 %v5817, %v5805
        %v7018 = vpack.c.b16 %v5818, %v5806
        %v7019 = vpack.c.b16 %v5819, %v5807
        %v7020 = vpack.c.b16 %v5820, %v5808
        %v7021 = vpack.c.b16 %v5821, %v5809
        %v7022 = vpack.c.b16 %v5822, %v5810
        %v7023 = vpack.c.b16 %v5823, %v5811
        %v7024 = vpack.c.b16 %v5824, %v5812
        %v7025 = vpack.c.b16 %v5825, %v5813
        %v7026 = vpack.c.b16 %v5826, %v5814
        %v7027 = vpack.c.b16 %v5827, %v5815
        %v7028 = vpack.c.b16 %v5840, %v5828
        %v7029 = vpack.c.b16 %v5841, %v5829
        %v7030 = vpack.c.b16 %v5842, %v5830
        %v7031 = vpack.c.b16 %v5843, %v5831
        %v7032 = vpack.c.b16 %v5844, %v5832
        %v7033 = vpack.c.b16 %v5845, %v5833
        %v7034 = vpack.c.b16 %v5846, %v5834
        %v7035 = vpack.c.b16 %v5847, %v5835
        %v7036 = vpack.c.b16 %v5848, %v5836
        %v7037 = vpack.c.b16 %v5849, %v5837
        %v7038 = vpack.c.b16 %v5850, %v5838
        %v7039 = vpack.c.b16 %v5851, %v5839
        %v7040 = vpack.c.b16 %v5864, %v5852
        %v7041 = vpack.c.b16 %v5865, %v5853
        %v7042 = vpack.c.b16 %v5866, %v5854
        %v7043 = vpack.c.b16 %v5867, %v5855
        %v7044 = vpack.c.b16 %v5868, %v5856
        %v7045 = vpack.c.b16 %v5869, %v5857
        %v7046 = vpack.c.b16 %v5870, %v5858
        %v7047 = vpack.c.b16 %v5871, %v5859
        %v7048 = vpack.c.b16 %v5872, %v5860
        %v7049 = vpack.c.b16 %v5873, %v5861
        %v7050 = vpack.c.b16 %v5874, %v5862
        %v7051 = vpack.c.b16 %v5875, %v5863
        %v7052 = vpack.c.b16 %v5888, %v5876
        %v7053 = vpack.c.b16 %v5889, %v5877
        %v7054 = vpack.c.b16 %v5890, %v5878
        %v7055 = vpack.c.b16 %v5891, %v5879
        %v7056 = vpack.c.b16 %v5892, %v5880
        %v7057 = vpack.c.b16 %v5893, %v5881
        %v7058 = vpack.c.b16 %v5894, %v5882
        %v7059 = vpack.c.b16 %v5895, %v5883
        %v7060 = vpack.c.b16 %v5896, %v5884
        %v7061 = vpack.c.b16 %v5897, %v5885
        %v7062 = vpack.c.b16 %v5898, %v5886
        %v7063 = vpack.c.b16 %v5899, %v5887
        %v7064 = vpack.c.b16 %v5912, %v5900
        %v7065 = vpack.c.b16 %v5913, %v5901
        %v7066 = vpack.c.b16 %v5914, %v5902
        %v7067 = vpack.c.b16 %v5915, %v5903
        %v7068 = vpack.c.b16 %v5916, %v5904
        %v7069 = vpack.c.b16 %v5917, %v5905
        %v7070 = vpack.c.b16 %v5918, %v5906
        %v7071 = vpack.c.b16 %v5919, %v5907
        %v7072 = vpack.c.b16 %v5920, %v5908
        %v7073 = vpack.c.b16 %v5921, %v5909
        %v7074 = vpack.c.b16 %v5922, %v5910
        %v7075 = vpack.c.b16 %v5923, %v5911
        %v7076 = vpack.c.b16 %v5936, %v5924
        %v7077 = vpack.c.b16 %v5937, %v5925
        %v7078 = vpack.c.b16 %v5938, %v5926
        %v7079 = vpack.c.b16 %v5939, %v5927
        %v7080 = vpack.c.b16 %v5940, %v5928
        %v7081 = vpack.c.b16 %v5941, %v5929
        %v7082 = vpack.c.b16 %v5942, %v5930
        %v7083 = vpack.c.b16 %v5943, %v5931
        %v7084 = vpack.c.b16 %v5944, %v5932
        %v7085 = vpack.c.b16 %v5945, %v5933
        %v7086 = vpack.c.b16 %v5946, %v5934
        %v7087 = vpack.c.b16 %v5947, %v5935
        %v7088 = vpack.c.b16 %v5960, %v5948
        %v7089 = vpack.c.b16 %v5961, %v5949
        %v7090 = vpack.c.b16 %v5962, %v5950
        %v7091 = vpack.c.b16 %v5963, %v5951
        %v7092 = vpack.c.b16 %v5964, %v5952
        %v7093 = vpack.c.b16 %v5965, %v5953
        %v7094 = vpack.c.b16 %v5966, %v5954
        %v7095 = vpack.c.b16 %v5967, %v5955
        %v7096 = vpack.c.b16 %v5968, %v5956
        %v7097 = vpack.c.b16 %v5969, %v5957
        %v7098 = vpack.c.b16 %v5970, %v5958
        %v7099 = vpack.c.b16 %v5971, %v5959
        %v7100 = vpack.c.b16 %v5984, %v5972
        %v7101 = vpack.c.b16 %v5985, %v5973
        %v7102 = vpack.c.b16 %v5986, %v5974
        %v7103 = vpack.c.b16 %v5987, %v5975
        %v7104 = vpack.c.b16 %v5988, %v5976
        %v7105 = vpack.c.b16 %v5989, %v5977
        %v7106 = vpack.c.b16 %v5990, %v5978
        %v7107 = vpack.c.b16 %v5991, %v5979
        %v7108 = vpack.c.b16 %v5992, %v5980
        %v7109 = vpack.c.b16 %v5993, %v5981
        %v7110 = vpack.c.b16 %v5994, %v5982
        %v7111 = vpack.c.b16 %v5995, %v5983
        %v7112 = vpack.c.b16 %v6008, %v5996
        %v7113 = vpack.c.b16 %v6009, %v5997
        %v7114 = vpack.c.b16 %v6010, %v5998
        %v7115 = vpack.c.b16 %v6011, %v5999
        %v7116 = vpack.c.b16 %v6012, %v6000
        %v7117 = vpack.c.b16 %v6013, %v6001
        %v7118 = vpack.c.b16 %v6014, %v6002
        %v7119 = vpack.c.b16 %v6015, %v6003
        %v7120 = vpack.c.b16 %v6016, %v6004
        %v7121 = vpack.c.b16 %v6017, %v6005
        %v7122 = vpack.c.b16 %v6018, %v6006
        %v7123 = vpack.c.b16 %v6019, %v6007
        %v7124 = vpack.c.b16 %v6032, %v6020
        %v7125 = vpack.c.b16 %v6033, %v6021
        %v7126 = vpack.c.b16 %v6034, %v6022
        %v7127 = vpack.c.b16 %v6035, %v6023
        %v7128 = vpack.c.b16 %v6036, %v6024
        %v7129 = vpack.c.b16 %v6037, %v6025
        %v7130 = vpack.c.b16 %v6038, %v6026
        %v7131 = vpack.c.b16 %v6039, %v6027
        %v7132 = vpack.c.b16 %v6040, %v6028
        %v7133 = vpack.c.b16 %v6041, %v6029
        %v7134 = vpack.c.b16 %v6042, %v6030
        %v7135 = vpack.c.b16 %v6043, %v6031
        %v7136 = vpack.c.b16 %v6056, %v6044
        %v7137 = vpack.c.b16 %v6057, %v6045
        %v7138 = vpack.c.b16 %v6058, %v6046
        %v7139 = vpack.c.b16 %v6059, %v6047
        %v7140 = vpack.c.b16 %v6060, %v6048
        %v7141 = vpack.c.b16 %v6061, %v6049
        %v7142 = vpack.c.b16 %v6062, %v6050
        %v7143 = vpack.c.b16 %v6063, %v6051
        %v7144 = vpack.c.b16 %v6064, %v6052
        %v7145 = vpack.c.b16 %v6065, %v6053
        %v7146 = vpack.c.b16 %v6066, %v6054
        %v7147 = vpack.c.b16 %v6067, %v6055
        %v7148 = vpack.c.b16 %v6080, %v6068
        %v7149 = vpack.c.b16 %v6081, %v6069
        %v7150 = vpack.c.b16 %v6082, %v6070
        %v7151 = vpack.c.b16 %v6083, %v6071
        %v7152 = vpack.c.b16 %v6084, %v6072
        %v7153 = vpack.c.b16 %v6085, %v6073
        %v7154 = vpack.c.b16 %v6086, %v6074
        %v7155 = vpack.c.b16 %v6087, %v6075
        %v7156 = vpack.c.b16 %v6088, %v6076
        %v7157 = vpack.c.b16 %v6089, %v6077
        %v7158 = vpack.c.b16 %v6090, %v6078
        %v7159 = vpack.c.b16 %v6091, %v6079
        %v7160 = vpack.c.b16 %v6104, %v6092
        %v7161 = vpack.c.b16 %v6105, %v6093
        %v7162 = vpack.c.b16 %v6106, %v6094
        %v7163 = vpack.c.b16 %v6107, %v6095
        %v7164 = vpack.c.b16 %v6108, %v6096
        %v7165 = vpack.c.b16 %v6109, %v6097
        %v7166 = vpack.c.b16 %v6110, %v6098
        %v7167 = vpack.c.b16 %v6111, %v6099
        %v7168 = vpack.c.b16 %v6112, %v6100
        %v7169 = vpack.c.b16 %v6113, %v6101
        %v7170 = vpack.c.b16 %v6114, %v6102
        %v7171 = vpack.c.b16 %v6115, %v6103
        %v7172 = vpack.c.b16 %v6128, %v6116
        %v7173 = vpack.c.b16 %v6129, %v6117
        %v7174 = vpack.c.b16 %v6130, %v6118
        %v7175 = vpack.c.b16 %v6131, %v6119
        %v7176 = vpack.c.b16 %v6132, %v6120
        %v7177 = vpack.c.b16 %v6133, %v6121
        %v7178 = vpack.c.b16 %v6134, %v6122
        %v7179 = vpack.c.b16 %v6135, %v6123
        %v7180 = vpack.c.b16 %v6136, %v6124
        %v7181 = vpack.c.b16 %v6137, %v6125
        %v7182 = vpack.c.b16 %v6138, %v6126
        %v7183 = vpack.c.b16 %v6139, %v6127
        %v7184 = vpack.c.b16 %v6152, %v6140
        %v7185 = vpack.c.b16 %v6153, %v6141
        %v7186 = vpack.c.b16 %v6154, %v6142
        %v7187 = vpack.c.b16 %v6155, %v6143
        %v7188 = vpack.c.b16 %v6156, %v6144
        %v7189 = vpack.c.b16 %v6157, %v6145
        %v7190 = vpack.c.b16 %v6158, %v6146
        %v7191 = vpack.c.b16 %v6159, %v6147
        %v7192 = vpack.c.b16 %v6160, %v6148
        %v7193 = vpack.c.b16 %v6161, %v6149
        %v7194 = vpack.c.b16 %v6162, %v6150
        %v7195 = vpack.c.b16 %v6163, %v6151
        %v7196 = vpack.c.b16 %v6176, %v6164
        %v7197 = vpack.c.b16 %v6177, %v6165
        %v7198 = vpack.c.b16 %v6178, %v6166
        %v7199 = vpack.c.b16 %v6179, %v6167
        %v7200 = vpack.c.b16 %v6180, %v6168
        %v7201 = vpack.c.b16 %v6181, %v6169
        %v7202 = vpack.c.b16 %v6182, %v6170
        %v7203 = vpack.c.b16 %v6183, %v6171
        %v7204 = vpack.c.b16 %v6184, %v6172
        %v7205 = vpack.c.b16 %v6185, %v6173
        %v7206 = vpack.c.b16 %v6186, %v6174
        %v7207 = vpack.c.b16 %v6187, %v6175
        %v7208 = vpack.c.b16 %v6200, %v6188
        %v7209 = vpack.c.b16 %v6201, %v6189
        %v7210 = vpack.c.b16 %v6202, %v6190
        %v7211 = vpack.c.b16 %v6203, %v6191
        %v7212 = vpack.c.b16 %v6204, %v6192
        %v7213 = vpack.c.b16 %v6205, %v6193
        %v7214 = vpack.c.b16 %v6206, %v6194
        %v7215 = vpack.c.b16 %v6207, %v6195
        %v7216 = vpack.c.b16 %v6208, %v6196
        %v7217 = vpack.c.b16 %v6209, %v6197
        %v7218 = vpack.c.b16 %v6210, %v6198
        %v7219 = vpack.c.b16 %v6211, %v6199
        %v7220 = vpack.c.b16 %v6224, %v6212
        %v7221 = vpack.c.b16 %v6225, %v6213
        %v7222 = vpack.c.b16 %v6226, %v6214
        %v7223 = vpack.c.b16 %v6227, %v6215
        %v7224 = vpack.c.b16 %v6228, %v6216
        %v7225 = vpack.c.b16 %v6229, %v6217
        %v7226 = vpack.c.b16 %v6230, %v6218
        %v7227 = vpack.c.b16 %v6231, %v6219
        %v7228 = vpack.c.b16 %v6232, %v6220
        %v7229 = vpack.c.b16 %v6233, %v6221
        %v7230 = vpack.c.b16 %v6234, %v6222
        %v7231 = vpack.c.b16 %v6235, %v6223
        %v7232 = vpack.c.b16 %v6248, %v6236
        %v7233 = vpack.c.b16 %v6249, %v6237
        %v7234 = vpack.c.b16 %v6250, %v6238
        %v7235 = vpack.c.b16 %v6251, %v6239
        %v7236 = vpack.c.b16 %v6252, %v6240
        %v7237 = vpack.c.b16 %v6253, %v6241
        %v7238 = vpack.c.b16 %v6254, %v6242
        %v7239 = vpack.c.b16 %v6255, %v6243
        %v7240 = vpack.c.b16 %v6256, %v6244
        %v7241 = vpack.c.b16 %v6257, %v6245
        %v7242 = vpack.c.b16 %v6258, %v6246
        %v7243 = vpack.c.b16 %v6259, %v6247
        %v7244 = vpack.c.b16 %v6272, %v6260
        %v7245 = vpack.c.b16 %v6273, %v6261
        %v7246 = vpack.c.b16 %v6274, %v6262
        %v7247 = vpack.c.b16 %v6275, %v6263
        %v7248 = vpack.c.b16 %v6276, %v6264
        %v7249 = vpack.c.b16 %v6277, %v6265
        %v7250 = vpack.c.b16 %v6278, %v6266
        %v7251 = vpack.c.b16 %v6279, %v6267
        %v7252 = vpack.c.b16 %v6280, %v6268
        %v7253 = vpack.c.b16 %v6281, %v6269
        %v7254 = vpack.c.b16 %v6282, %v6270
        %v7255 = vpack.c.b16 %v6283, %v6271
        %v7256 = vpack.c.b16 %v6296, %v6284
        %v7257 = vpack.c.b16 %v6297, %v6285
        %v7258 = vpack.c.b16 %v6298, %v6286
        %v7259 = vpack.c.b16 %v6299, %v6287
        %v7260 = vpack.c.b16 %v6300, %v6288
        %v7261 = vpack.c.b16 %v6301, %v6289
        %v7262 = vpack.c.b16 %v6302, %v6290
        %v7263 = vpack.c.b16 %v6303, %v6291
        %v7264 = vpack.c.b16 %v6304, %v6292
        %v7265 = vpack.c.b16 %v6305, %v6293
        %v7266 = vpack.c.b16 %v6306, %v6294
        %v7267 = vpack.c.b16 %v6307, %v6295
        %v7268 = vpack.c.b16 %v6320, %v6308
        %v7269 = vpack.c.b16 %v6321, %v6309
        %v7270 = vpack.c.b16 %v6322, %v6310
        %v7271 = vpack.c.b16 %v6323, %v6311
        %v7272 = vpack.c.b16 %v6324, %v6312
        %v7273 = vpack.c.b16 %v6325, %v6313
        %v7274 = vpack.c.b16 %v6326, %v6314
        %v7275 = vpack.c.b16 %v6327, %v6315
        %v7276 = vpack.c.b16 %v6328, %v6316
        %v7277 = vpack.c.b16 %v6329, %v6317
        %v7278 = vpack.c.b16 %v6330, %v6318
        %v7279 = vpack.c.b16 %v6331, %v6319
        %v7280 = vpack.c.b16 %v6344, %v6332
        %v7281 = vpack.c.b16 %v6345, %v6333
        %v7282 = vpack.c.b16 %v6346, %v6334
        %v7283 = vpack.c.b16 %v6347, %v6335
        %v7284 = vpack.c.b16 %v6348, %v6336
        %v7285 = vpack.c.b16 %v6349, %v6337
        %v7286 = vpack.c.b16 %v6350, %v6338
        %v7287 = vpack.c.b16 %v6351, %v6339
        %v7288 = vpack.c.b16 %v6352, %v6340
        %v7289 = vpack.c.b16 %v6353, %v6341
        %v7290 = vpack.c.b16 %v6354, %v6342
        %v7291 = vpack.c.b16 %v6355, %v6343
        %v7292 = vpack.c.b16 %v6368, %v6356
        %v7293 = vpack.c.b16 %v6369, %v6357
        %v7294 = vpack.c.b16 %v6370, %v6358
        %v7295 = vpack.c.b16 %v6371, %v6359
        %v7296 = vpack.c.b16 %v6372, %v6360
        %v7297 = vpack.c.b16 %v6373, %v6361
        %v7298 = vpack.c.b16 %v6374, %v6362
        %v7299 = vpack.c.b16 %v6375, %v6363
        %v7300 = vpack.c.b16 %v6376, %v6364
        %v7301 = vpack.c.b16 %v6377, %v6365
        %v7302 = vpack.c.b16 %v6378, %v6366
        %v7303 = vpack.c.b16 %v6379, %v6367
        %v7304 = vpack.c.b16 %v6392, %v6380
        %v7305 = vpack.c.b16 %v6393, %v6381
        %v7306 = vpack.c.b16 %v6394, %v6382
        %v7307 = vpack.c.b16 %v6395, %v6383
        %v7308 = vpack.c.b16 %v6396, %v6384
        %v7309 = vpack.c.b16 %v6397, %v6385
        %v7310 = vpack.c.b16 %v6398, %v6386
        %v7311 = vpack.c.b16 %v6399, %v6387
        %v7312 = vpack.c.b16 %v6400, %v6388
        %v7313 = vpack.c.b16 %v6401, %v6389
        %v7314 = vpack.c.b16 %v6402, %v6390
        %v7315 = vpack.c.b16 %v6403, %v6391
        %v7316 = vpack.c.b16 %v6416, %v6404
        %v7317 = vpack.c.b16 %v6417, %v6405
        %v7318 = vpack.c.b16 %v6418, %v6406
        %v7319 = vpack.c.b16 %v6419, %v6407
        %v7320 = vpack.c.b16 %v6420, %v6408
        %v7321 = vpack.c.b16 %v6421, %v6409
        %v7322 = vpack.c.b16 %v6422, %v6410
        %v7323 = vpack.c.b16 %v6423, %v6411
        %v7324 = vpack.c.b16 %v6424, %v6412
        %v7325 = vpack.c.b16 %v6425, %v6413
        %v7326 = vpack.c.b16 %v6426, %v6414
        %v7327 = vpack.c.b16 %v6427, %v6415
        %v7328 = vpack.c.b16 %v6440, %v6428
        %v7329 = vpack.c.b16 %v6441, %v6429
        %v7330 = vpack.c.b16 %v6442, %v6430
        %v7331 = vpack.c.b16 %v6443, %v6431
        %v7332 = vpack.c.b16 %v6444, %v6432
        %v7333 = vpack.c.b16 %v6445, %v6433
        %v7334 = vpack.c.b16 %v6446, %v6434
        %v7335 = vpack.c.b16 %v6447, %v6435
        %v7336 = vpack.c.b16 %v6448, %v6436
        %v7337 = vpack.c.b16 %v6449, %v6437
        %v7338 = vpack.c.b16 %v6450, %v6438
        %v7339 = vpack.c.b16 %v6451, %v6439
        %v7340 = vpack.c.b16 %v6464, %v6452
        %v7341 = vpack.c.b16 %v6465, %v6453
        %v7342 = vpack.c.b16 %v6466, %v6454
        %v7343 = vpack.c.b16 %v6467, %v6455
        %v7344 = vpack.c.b16 %v6468, %v6456
        %v7345 = vpack.c.b16 %v6469, %v6457
        %v7346 = vpack.c.b16 %v6470, %v6458
        %v7347 = vpack.c.b16 %v6471, %v6459
        %v7348 = vpack.c.b16 %v6472, %v6460
        %v7349 = vpack.c.b16 %v6473, %v6461
        %v7350 = vpack.c.b16 %v6474, %v6462
        %v7351 = vpack.c.b16 %v6475, %v6463
        %v7352 = vpack.c.b16 %v6488, %v6476
        %v7353 = vpack.c.b16 %v6489, %v6477
        %v7354 = vpack.c.b16 %v6490, %v6478
        %v7355 = vpack.c.b16 %v6491, %v6479
        %v7356 = vpack.c.b16 %v6492, %v6480
        %v7357 = vpack.c.b16 %v6493, %v6481
        %v7358 = vpack.c.b16 %v6494, %v6482
        %v7359 = vpack.c.b16 %v6495, %v6483
        %v7360 = vpack.c.b16 %v6496, %v6484
        %v7361 = vpack.c.b16 %v6497, %v6485
        %v7362 = vpack.c.b16 %v6498, %v6486
        %v7363 = vpack.c.b16 %v6499, %v6487
        %v7364 = vpack.c.b16 %v6512, %v6500
        %v7365 = vpack.c.b16 %v6513, %v6501
        %v7366 = vpack.c.b16 %v6514, %v6502
        %v7367 = vpack.c.b16 %v6515, %v6503
        %v7368 = vpack.c.b16 %v6516, %v6504
        %v7369 = vpack.c.b16 %v6517, %v6505
        %v7370 = vpack.c.b16 %v6518, %v6506
        %v7371 = vpack.c.b16 %v6519, %v6507
        %v7372 = vpack.c.b16 %v6520, %v6508
        %v7373 = vpack.c.b16 %v6521, %v6509
        %v7374 = vpack.c.b16 %v6522, %v6510
        %v7375 = vpack.c.b16 %v6523, %v6511
        %v7376 = vpack.c.b16 %v6536, %v6524
        %v7377 = vpack.c.b16 %v6537, %v6525
        %v7378 = vpack.c.b16 %v6538, %v6526
        %v7379 = vpack.c.b16 %v6539, %v6527
        %v7380 = vpack.c.b16 %v6540, %v6528
        %v7381 = vpack.c.b16 %v6541, %v6529
        %v7382 = vpack.c.b16 %v6542, %v6530
        %v7383 = vpack.c.b16 %v6543, %v6531
        %v7384 = vpack.c.b16 %v6544, %v6532
        %v7385 = vpack.c.b16 %v6545, %v6533
        %v7386 = vpack.c.b16 %v6546, %v6534
        %v7387 = vpack.c.b16 %v6547, %v6535
        %v7388 = vpack.c.b16 %v6560, %v6548
        %v7389 = vpack.c.b16 %v6561, %v6549
        %v7390 = vpack.c.b16 %v6562, %v6550
        %v7391 = vpack.c.b16 %v6563, %v6551
        %v7392 = vpack.c.b16 %v6564, %v6552
        %v7393 = vpack.c.b16 %v6565, %v6553
        %v7394 = vpack.c.b16 %v6566, %v6554
        %v7395 = vpack.c.b16 %v6567, %v6555
        %v7396 = vpack.c.b16 %v6568, %v6556
        %v7397 = vpack.c.b16 %v6569, %v6557
        %v7398 = vpack.c.b16 %v6570, %v6558
        %v7399 = vpack.c.b16 %v6571, %v6559
        %v7400 = vpack.c.b16 %v6584, %v6572
        %v7401 = vpack.c.b16 %v6585, %v6573
        %v7402 = vpack.c.b16 %v6586, %v6574
        %v7403 = vpack.c.b16 %v6587, %v6575
        %v7404 = vpack.c.b16 %v6588, %v6576
        %v7405 = vpack.c.b16 %v6589, %v6577
        %v7406 = vpack.c.b16 %v6590, %v6578
        %v7407 = vpack.c.b16 %v6591, %v6579
        %v7408 = vpack.c.b16 %v6592, %v6580
        %v7409 = vpack.c.b16 %v6593, %v6581
        %v7410 = vpack.c.b16 %v6594, %v6582
        %v7411 = vpack.c.b16 %v6595, %v6583
        %v7412 = vpack.c.b16 %v6608, %v6596
        %v7413 = vpack.c.b16 %v6609, %v6597
        %v7414 = vpack.c.b16 %v6610, %v6598
        %v7415 = vpack.c.b16 %v6611, %v6599
        %v7416 = vpack.c.b16 %v6612, %v6600
        %v7417 = vpack.c.b16 %v6613, %v6601
        %v7418 = vpack.c.b16 %v6614, %v6602
        %v7419 = vpack.c.b16 %v6615, %v6603
        %v7420 = vpack.c.b16 %v6616, %v6604
        %v7421 = vpack.c.b16 %v6617, %v6605
        %v7422 = vpack.c.b16 %v6618, %v6606
        %v7423 = vpack.c.b16 %v6619, %v6607
        %v7424 = vpack.c.b16 %v6632, %v6620
        %v7425 = vpack.c.b16 %v6633, %v6621
        %v7426 = vpack.c.b16 %v6634, %v6622
        %v7427 = vpack.c.b16 %v6635, %v6623
        %v7428 = vpack.c.b16 %v6636, %v6624
        %v7429 = vpack.c.b16 %v6637, %v6625
        %v7430 = vpack.c.b16 %v6638, %v6626
        %v7431 = vpack.c.b16 %v6639, %v6627
        %v7432 = vpack.c.b16 %v6640, %v6628
        %v7433 = vpack.c.b16 %v6641, %v6629
        %v7434 = vpack.c.b16 %v6642, %v6630
        %v7435 = vpack.c.b16 %v6643, %v6631
        %v7436 = vpack.c.b16 %v6656, %v6644
        %v7437 = vpack.c.b16 %v6657, %v6645
        %v7438 = vpack.c.b16 %v6658, %v6646
        %v7439 = vpack.c.b16 %v6659, %v6647
        %v7440 = vpack.c.b16 %v6660, %v6648
        %v7441 = vpack.c.b16 %v6661, %v6649
        %v7442 = vpack.c.b16 %v6662, %v6650
        %v7443 = vpack.c.b16 %v6663, %v6651
        %v7444 = vpack.c.b16 %v6664, %v6652
        %v7445 = vpack.c.b16 %v6665, %v6653
        %v7446 = vpack.c.b16 %v6666, %v6654
        %v7447 = vpack.c.b16 %v6667, %v6655
        %v7448 = vpack.c.b16 %v6680, %v6668
        %v7449 = vpack.c.b16 %v6681, %v6669
        %v7450 = vpack.c.b16 %v6682, %v6670
        %v7451 = vpack.c.b16 %v6683, %v6671
        %v7452 = vpack.c.b16 %v6684, %v6672
        %v7453 = vpack.c.b16 %v6685, %v6673
        %v7454 = vpack.c.b16 %v6686, %v6674
        %v7455 = vpack.c.b16 %v6687, %v6675
        %v7456 = vpack.c.b16 %v6688, %v6676
        %v7457 = vpack.c.b16 %v6689, %v6677
        %v7458 = vpack.c.b16 %v6690, %v6678
        %v7459 = vpack.c.b16 %v6691, %v6679
        %8228 = vmatprep.subr.bf16.mxu0 %v6693
        %8229 = vmatpush1.bf16.msra.mxu0 %v6692
        %8230 = vmatprep.subr.bf16.mxu0 %v6705
        %8231 = vmatpush1.bf16.msra.mxu0 %v6704
        %8232 = vmatprep.subr.bf16.mxu0 %v6717
        %8233 = vmatpush1.bf16.msra.mxu0 %v6716
        %8234 = vmatprep.subr.bf16.mxu0 %v6729
        %8235 = vmatpush1.bf16.msra.mxu0 %v6728
        %8236 = vmatprep.subr.bf16.mxu0 %v6741
        %8237 = vmatpush1.bf16.msra.mxu0 %v6740
        %8238 = vmatprep.subr.bf16.mxu0 %v6753
        %8239 = vmatpush1.bf16.msra.mxu0 %v6752
        %8240 = vmatprep.subr.bf16.mxu0 %v6765
        %8241 = vmatpush1.bf16.msra.mxu0 %v6764
        %8242 = vmatprep.subr.bf16.mxu0 %v6777
        %8243 = vmatpush1.bf16.msra.mxu0 %v6776
        %8244 = vmatprep.subr.bf16.mxu0 %v6789
        %8245 = vmatpush1.bf16.msra.mxu0 %v6788
        %8246 = vmatprep.subr.bf16.mxu0 %v6801
        %8247 = vmatpush1.bf16.msra.mxu0 %v6800
        %8248 = vmatprep.subr.bf16.mxu0 %v6813
        %8249 = vmatpush1.bf16.msra.mxu0 %v6812
        %8250 = vmatprep.subr.bf16.mxu0 %v6825
        %8251 = vmatpush1.bf16.msra.mxu0 %v6824
        %8252 = vmatprep.subr.bf16.mxu0 %v6837
        %8253 = vmatpush1.bf16.msra.mxu0 %v6836
        %8254 = vmatprep.subr.bf16.mxu0 %v6849
        %8255 = vmatpush1.bf16.msra.mxu0 %v6848
        %8256 = vmatprep.subr.bf16.mxu0 %v6861
        %8257 = vmatpush1.bf16.msra.mxu0 %v6860
        %8258 = vmatprep.subr.bf16.mxu0 %v6873
        %8259 = vmatpush1.bf16.msra.mxu0 %v6872
        %8260 = vmatprep.mubr.bf16.mxu0 %v3549
        %8261 = vmatmul.mubr.bf16.gmra.mrb[0].mxu0 %v3548
        %v8262 = vpop.f32.mrb[0].mxu0
        %v8263 = vadd.f32 %v4331, %v8262
        %v8264 = vpop.f32.mrb[0].mxu0
        %v8265 = vadd.f32 %v4335, %v8264
        %v8266 = vpop.f32.mrb[0].mxu0
        %v8267 = vpop.f32.mrb[0].mxu0
        %8268 = vdwg.mxu0
        %8269 = vmatprep.subr.bf16.mxu0 %v6885
        %8270 = vmatpush1.bf16.msra.mxu0 %v6884
        %8271 = vmatprep.subr.bf16.mxu0 %v6897
        %8272 = vmatpush1.bf16.msra.mxu0 %v6896
        %8273 = vmatprep.subr.bf16.mxu0 %v6909
        %8274 = vmatpush1.bf16.msra.mxu0 %v6908
        %8275 = vmatprep.subr.bf16.mxu0 %v6921
        %8276 = vmatpush1.bf16.msra.mxu0 %v6920
        %8277 = vmatprep.subr.bf16.mxu0 %v6933
        %8278 = vmatpush1.bf16.msra.mxu0 %v6932
        %8279 = vmatprep.subr.bf16.mxu0 %v6945
        %8280 = vmatpush1.bf16.msra.mxu0 %v6944
        %8281 = vmatprep.subr.bf16.mxu0 %v6957
        %8282 = vmatpush1.bf16.msra.mxu0 %v6956
        %8283 = vmatprep.subr.bf16.mxu0 %v6969
        %8284 = vmatpush1.bf16.msra.mxu0 %v6968
        %8285 = vmatprep.subr.bf16.mxu0 %v6981
        %8286 = vmatpush1.bf16.msra.mxu0 %v6980
        %8287 = vmatprep.subr.bf16.mxu0 %v6993
        %8288 = vmatpush1.bf16.msra.mxu0 %v6992
        %8289 = vmatprep.subr.bf16.mxu0 %v7005
        %8290 = vmatpush1.bf16.msra.mxu0 %v7004
        %8291 = vmatprep.subr.bf16.mxu0 %v7017
        %8292 = vmatpush1.bf16.msra.mxu0 %v7016
        %8293 = vmatprep.subr.bf16.mxu0 %v7029
        %8294 = vmatpush1.bf16.msra.mxu0 %v7028
        %8295 = vmatprep.subr.bf16.mxu0 %v7041
        %8296 = vmatpush1.bf16.msra.mxu0 %v7040
        %8297 = vmatprep.subr.bf16.mxu0 %v7053
        %8298 = vmatpush1.bf16.msra.mxu0 %v7052
        %8299 = vmatprep.subr.bf16.mxu0 %v7065
        %8300 = vmatpush1.bf16.msra.mxu0 %v7064
        %8301 = vmatprep.mubr.bf16.mxu0 %v3551
        %8302 = vmatmul.mubr.bf16.gmra.mrb[0].mxu0 %v3550
        %v8303 = vpop.f32.mrb[0].mxu0
        %v8304 = vadd.f32 %v8263, %v8303
        %v8305 = vpop.f32.mrb[0].mxu0
        %v8306 = vadd.f32 %v8265, %v8305
        %v8307 = vpop.f32.mrb[0].mxu0
        %v8308 = vpop.f32.mrb[0].mxu0
        %8309 = vdwg.mxu0
        %8310 = vmatprep.subr.bf16.mxu0 %v7077
        %8311 = vmatpush1.bf16.msra.mxu0 %v7076
        %8312 = vmatprep.subr.bf16.mxu0 %v7089
        %8313 = vmatpush1.bf16.msra.mxu0 %v7088
        %8314 = vmatprep.subr.bf16.mxu0 %v7101
        %8315 = vmatpush1.bf16.msra.mxu0 %v7100
        %8316 = vmatprep.subr.bf16.mxu0 %v7113
        %8317 = vmatpush1.bf16.msra.mxu0 %v7112
        %8318 = vmatprep.subr.bf16.mxu0 %v7125
        %8319 = vmatpush1.bf16.msra.mxu0 %v7124
        %8320 = vmatprep.subr.bf16.mxu0 %v7137
        %8321 = vmatpush1.bf16.msra.mxu0 %v7136
        %8322 = vmatprep.subr.bf16.mxu0 %v7149
        %8323 = vmatpush1.bf16.msra.mxu0 %v7148
        %8324 = vmatprep.subr.bf16.mxu0 %v7161
        %8325 = vmatpush1.bf16.msra.mxu0 %v7160
        %8326 = vmatprep.subr.bf16.mxu0 %v7173
        %8327 = vmatpush1.bf16.msra.mxu0 %v7172
        %8328 = vmatprep.subr.bf16.mxu0 %v7185
        %8329 = vmatpush1.bf16.msra.mxu0 %v7184
        %8330 = vmatprep.subr.bf16.mxu0 %v7197
        %8331 = vmatpush1.bf16.msra.mxu0 %v7196
        %8332 = vmatprep.subr.bf16.mxu0 %v7209
        %8333 = vmatpush1.bf16.msra.mxu0 %v7208
        %8334 = vmatprep.subr.bf16.mxu0 %v7221
        %8335 = vmatpush1.bf16.msra.mxu0 %v7220
        %8336 = vmatprep.subr.bf16.mxu0 %v7233
        %8337 = vmatpush1.bf16.msra.mxu0 %v7232
        %8338 = vmatprep.subr.bf16.mxu0 %v7245
        %8339 = vmatpush1.bf16.msra.mxu0 %v7244
        %8340 = vmatprep.subr.bf16.mxu0 %v7257
        %8341 = vmatpush1.bf16.msra.mxu0 %v7256
        %8342 = vmatprep.mubr.bf16.mxu0 %v3553
        %8343 = vmatmul.mubr.bf16.gmra.mrb[0].mxu0 %v3552
        %v8344 = vpop.f32.mrb[0].mxu0
        %v8345 = vadd.f32 %v8304, %v8344
        %v8346 = vpop.f32.mrb[0].mxu0
        %v8347 = vadd.f32 %v8306, %v8346
        %v8348 = vpop.f32.mrb[0].mxu0
        %v8349 = vpop.f32.mrb[0].mxu0
        %8350 = vdwg.mxu0
        %8351 = vmatprep.subr.bf16.mxu0 %v7269
        %8352 = vmatpush1.bf16.msra.mxu0 %v7268
        %8353 = vmatprep.subr.bf16.mxu0 %v7281
        %8354 = vmatpush1.bf16.msra.mxu0 %v7280
        %8355 = vmatprep.subr.bf16.mxu0 %v7293
        %8356 = vmatpush1.bf16.msra.mxu0 %v7292
        %8357 = vmatprep.subr.bf16.mxu0 %v7305
        %8358 = vmatpush1.bf16.msra.mxu0 %v7304
        %8359 = vmatprep.subr.bf16.mxu0 %v7317
        %8360 = vmatpush1.bf16.msra.mxu0 %v7316
        %8361 = vmatprep.subr.bf16.mxu0 %v7329
        %8362 = vmatpush1.bf16.msra.mxu0 %v7328
        %8363 = vmatprep.subr.bf16.mxu0 %v7341
        %8364 = vmatpush1.bf16.msra.mxu0 %v7340
        %8365 = vmatprep.subr.bf16.mxu0 %v7353
        %8366 = vmatpush1.bf16.msra.mxu0 %v7352
        %8367 = vmatprep.subr.bf16.mxu0 %v7365
        %8368 = vmatpush1.bf16.msra.mxu0 %v7364
        %8369 = vmatprep.subr.bf16.mxu0 %v7377
        %8370 = vmatpush1.bf16.msra.mxu0 %v7376
        %8371 = vmatprep.subr.bf16.mxu0 %v7389
        %8372 = vmatpush1.bf16.msra.mxu0 %v7388
        %8373 = vmatprep.subr.bf16.mxu0 %v7401
        %8374 = vmatpush1.bf16.msra.mxu0 %v7400
        %8375 = vmatprep.subr.bf16.mxu0 %v7413
        %8376 = vmatpush1.bf16.msra.mxu0 %v7412
        %8377 = vmatprep.subr.bf16.mxu0 %v7425
        %8378 = vmatpush1.bf16.msra.mxu0 %v7424
        %8379 = vmatprep.subr.bf16.mxu0 %v7437
        %8380 = vmatpush1.bf16.msra.mxu0 %v7436
        %8381 = vmatprep.subr.bf16.mxu0 %v7449
        %8382 = vmatpush1.bf16.msra.mxu0 %v7448
        %8383 = vmatprep.mubr.bf16.mxu0 %v3555
        %8384 = vmatmul.mubr.bf16.gmra.mrb[0].mxu0 %v3554
        %v8385 = vpop.f32.mrb[0].mxu0
        %v8386 = vadd.f32 %v8345, %v8385
        %v8387 = vpop.f32.mrb[0].mxu0
        %v8388 = vadd.f32 %v8347, %v8387
        %v8389 = vpop.f32.mrb[0].mxu0
        %v8390 = vpop.f32.mrb[0].mxu0
        %8391 = vdwg.mxu0
        %8392 = vmatprep.subr.bf16.mxu0 %v6695
        %8393 = vmatpush1.bf16.msra.mxu0 %v6694
        %8394 = vmatprep.subr.bf16.mxu0 %v6707
        %8395 = vmatpush1.bf16.msra.mxu0 %v6706
        %8396 = vmatprep.subr.bf16.mxu0 %v6719
        %8397 = vmatpush1.bf16.msra.mxu0 %v6718
        %8398 = vmatprep.subr.bf16.mxu0 %v6731
        %8399 = vmatpush1.bf16.msra.mxu0 %v6730
        %8400 = vmatprep.subr.bf16.mxu0 %v6743
        %8401 = vmatpush1.bf16.msra.mxu0 %v6742
        %8402 = vmatprep.subr.bf16.mxu0 %v6755
        %8403 = vmatpush1.bf16.msra.mxu0 %v6754
        %8404 = vmatprep.subr.bf16.mxu0 %v6767
        %8405 = vmatpush1.bf16.msra.mxu0 %v6766
        %8406 = vmatprep.subr.bf16.mxu0 %v6779
        %8407 = vmatpush1.bf16.msra.mxu0 %v6778
        %8408 = vmatprep.subr.bf16.mxu0 %v6791
        %8409 = vmatpush1.bf16.msra.mxu0 %v6790
        %8410 = vmatprep.subr.bf16.mxu0 %v6803
        %8411 = vmatpush1.bf16.msra.mxu0 %v6802
        %8412 = vmatprep.subr.bf16.mxu0 %v6815
        %8413 = vmatpush1.bf16.msra.mxu0 %v6814
        %8414 = vmatprep.subr.bf16.mxu0 %v6827
        %8415 = vmatpush1.bf16.msra.mxu0 %v6826
        %8416 = vmatprep.subr.bf16.mxu0 %v6839
        %8417 = vmatpush1.bf16.msra.mxu0 %v6838
        %8418 = vmatprep.subr.bf16.mxu0 %v6851
        %8419 = vmatpush1.bf16.msra.mxu0 %v6850
        %8420 = vmatprep.subr.bf16.mxu0 %v6863
        %8421 = vmatpush1.bf16.msra.mxu0 %v6862
        %8422 = vmatprep.subr.bf16.mxu0 %v6875
        %8423 = vmatpush1.bf16.msra.mxu0 %v6874
        %8424 = vmatprep.mubr.bf16.mxu0 %v3549
        %8425 = vmatmul.mubr.bf16.gmra.mrb[0].mxu0 %v3548
        %v8426 = vpop.f32.mrb[0].mxu0
        %v8427 = vadd.f32 %v4339, %v8426
        %v8428 = vpop.f32.mrb[0].mxu0
        %v8429 = vadd.f32 %v4343, %v8428
        %v8430 = vpop.f32.mrb[0].mxu0
        %v8431 = vpop.f32.mrb[0].mxu0
        %8432 = vdwg.mxu0
        %8433 = vmatprep.subr.bf16.mxu0 %v6887
        %8434 = vmatpush1.bf16.msra.mxu0 %v6886
        %8435 = vmatprep.subr.bf16.mxu0 %v6899
        %8436 = vmatpush1.bf16.msra.mxu0 %v6898
        %8437 = vmatprep.subr.bf16.mxu0 %v6911
        %8438 = vmatpush1.bf16.msra.mxu0 %v6910
        %8439 = vmatprep.subr.bf16.mxu0 %v6923
        %8440 = vmatpush1.bf16.msra.mxu0 %v6922
        %8441 = vmatprep.subr.bf16.mxu0 %v6935
        %8442 = vmatpush1.bf16.msra.mxu0 %v6934
        %8443 = vmatprep.subr.bf16.mxu0 %v6947
        %8444 = vmatpush1.bf16.msra.mxu0 %v6946
        %8445 = vmatprep.subr.bf16.mxu0 %v6959
        %8446 = vmatpush1.bf16.msra.mxu0 %v6958
        %8447 = vmatprep.subr.bf16.mxu0 %v6971
        %8448 = vmatpush1.bf16.msra.mxu0 %v6970
        %8449 = vmatprep.subr.bf16.mxu0 %v6983
        %8450 = vmatpush1.bf16.msra.mxu0 %v6982
        %8451 = vmatprep.subr.bf16.mxu0 %v6995
        %8452 = vmatpush1.bf16.msra.mxu0 %v6994
        %8453 = vmatprep.subr.bf16.mxu0 %v7007
        %8454 = vmatpush1.bf16.msra.mxu0 %v7006
        %8455 = vmatprep.subr.bf16.mxu0 %v7019
        %8456 = vmatpush1.bf16.msra.mxu0 %v7018
        %8457 = vmatprep.subr.bf16.mxu0 %v7031
        %8458 = vmatpush1.bf16.msra.mxu0 %v7030
        %8459 = vmatprep.subr.bf16.mxu0 %v7043
        %8460 = vmatpush1.bf16.msra.mxu0 %v7042
        %8461 = vmatprep.subr.bf16.mxu0 %v7055
        %8462 = vmatpush1.bf16.msra.mxu0 %v7054
        %8463 = vmatprep.subr.bf16.mxu0 %v7067
        %8464 = vmatpush1.bf16.msra.mxu0 %v7066
        %8465 = vmatprep.mubr.bf16.mxu0 %v3551
        %8466 = vmatmul.mubr.bf16.gmra.mrb[0].mxu0 %v3550
        %v8467 = vpop.f32.mrb[0].mxu0
        %v8468 = vadd.f32 %v8427, %v8467
        %v8469 = vpop.f32.mrb[0].mxu0
        %v8470 = vadd.f32 %v8429, %v8469
        %v8471 = vpop.f32.mrb[0].mxu0
        %v8472 = vpop.f32.mrb[0].mxu0
        %8473 = vdwg.mxu0
        %8474 = vmatprep.subr.bf16.mxu0 %v7079
        %8475 = vmatpush1.bf16.msra.mxu0 %v7078
        %8476 = vmatprep.subr.bf16.mxu0 %v7091
        %8477 = vmatpush1.bf16.msra.mxu0 %v7090
        %8478 = vmatprep.subr.bf16.mxu0 %v7103
        %8479 = vmatpush1.bf16.msra.mxu0 %v7102
        %8480 = vmatprep.subr.bf16.mxu0 %v7115
        %8481 = vmatpush1.bf16.msra.mxu0 %v7114
        %8482 = vmatprep.subr.bf16.mxu0 %v7127
        %8483 = vmatpush1.bf16.msra.mxu0 %v7126
        %8484 = vmatprep.subr.bf16.mxu0 %v7139
        %8485 = vmatpush1.bf16.msra.mxu0 %v7138
        %8486 = vmatprep.subr.bf16.mxu0 %v7151
        %8487 = vmatpush1.bf16.msra.mxu0 %v7150
        %8488 = vmatprep.subr.bf16.mxu0 %v7163
        %8489 = vmatpush1.bf16.msra.mxu0 %v7162
        %8490 = vmatprep.subr.bf16.mxu0 %v7175
        %8491 = vmatpush1.bf16.msra.mxu0 %v7174
        %8492 = vmatprep.subr.bf16.mxu0 %v7187
        %8493 = vmatpush1.bf16.msra.mxu0 %v7186
        %8494 = vmatprep.subr.bf16.mxu0 %v7199
        %8495 = vmatpush1.bf16.msra.mxu0 %v7198
        %8496 = vmatprep.subr.bf16.mxu0 %v7211
        %8497 = vmatpush1.bf16.msra.mxu0 %v7210
        %8498 = vmatprep.subr.bf16.mxu0 %v7223
        %8499 = vmatpush1.bf16.msra.mxu0 %v7222
        %8500 = vmatprep.subr.bf16.mxu0 %v7235
        %8501 = vmatpush1.bf16.msra.mxu0 %v7234
        %8502 = vmatprep.subr.bf16.mxu0 %v7247
        %8503 = vmatpush1.bf16.msra.mxu0 %v7246
        %8504 = vmatprep.subr.bf16.mxu0 %v7259
        %8505 = vmatpush1.bf16.msra.mxu0 %v7258
        %8506 = vmatprep.mubr.bf16.mxu0 %v3553
        %8507 = vmatmul.mubr.bf16.gmra.mrb[0].mxu0 %v3552
        %v8508 = vpop.f32.mrb[0].mxu0
        %v8509 = vadd.f32 %v8468, %v8508
        %v8510 = vpop.f32.mrb[0].mxu0
        %v8511 = vadd.f32 %v8470, %v8510
        %v8512 = vpop.f32.mrb[0].mxu0
        %v8513 = vpop.f32.mrb[0].mxu0
        %8514 = vdwg.mxu0
        %8515 = vmatprep.subr.bf16.mxu0 %v7271
        %8516 = vmatpush1.bf16.msra.mxu0 %v7270
        %8517 = vmatprep.subr.bf16.mxu0 %v7283
        %8518 = vmatpush1.bf16.msra.mxu0 %v7282
        %8519 = vmatprep.subr.bf16.mxu0 %v7295
        %8520 = vmatpush1.bf16.msra.mxu0 %v7294
        %8521 = vmatprep.subr.bf16.mxu0 %v7307
        %8522 = vmatpush1.bf16.msra.mxu0 %v7306
        %8523 = vmatprep.subr.bf16.mxu0 %v7319
        %8524 = vmatpush1.bf16.msra.mxu0 %v7318
        %8525 = vmatprep.subr.bf16.mxu0 %v7331
        %8526 = vmatpush1.bf16.msra.mxu0 %v7330
        %8527 = vmatprep.subr.bf16.mxu0 %v7343
        %8528 = vmatpush1.bf16.msra.mxu0 %v7342
        %8529 = vmatprep.subr.bf16.mxu0 %v7355
        %8530 = vmatpush1.bf16.msra.mxu0 %v7354
        %8531 = vmatprep.subr.bf16.mxu0 %v7367
        %8532 = vmatpush1.bf16.msra.mxu0 %v7366
        %8533 = vmatprep.subr.bf16.mxu0 %v7379
        %8534 = vmatpush1.bf16.msra.mxu0 %v7378
        %8535 = vmatprep.subr.bf16.mxu0 %v7391
        %8536 = vmatpush1.bf16.msra.mxu0 %v7390
        %8537 = vmatprep.subr.bf16.mxu0 %v7403
        %8538 = vmatpush1.bf16.msra.mxu0 %v7402
        %8539 = vmatprep.subr.bf16.mxu0 %v7415
        %8540 = vmatpush1.bf16.msra.mxu0 %v7414
        %8541 = vmatprep.subr.bf16.mxu0 %v7427
        %8542 = vmatpush1.bf16.msra.mxu0 %v7426
        %8543 = vmatprep.subr.bf16.mxu0 %v7439
        %8544 = vmatpush1.bf16.msra.mxu0 %v7438
        %8545 = vmatprep.subr.bf16.mxu0 %v7451
        %8546 = vmatpush1.bf16.msra.mxu0 %v7450
        %8547 = vmatprep.mubr.bf16.mxu0 %v3555
        %8548 = vmatmul.mubr.bf16.gmra.mrb[0].mxu0 %v3554
        %v8549 = vpop.f32.mrb[0].mxu0
        %v8550 = vadd.f32 %v8509, %v8549
        %v8551 = vpop.f32.mrb[0].mxu0
        %v8552 = vadd.f32 %v8511, %v8551
        %v8553 = vpop.f32.mrb[0].mxu0
        %v8554 = vpop.f32.mrb[0].mxu0
        %8555 = vdwg.mxu0
        %8556 = vmatprep.subr.bf16.mxu0 %v6697
        %8557 = vmatpush1.bf16.msra.mxu0 %v6696
        %8558 = vmatprep.subr.bf16.mxu0 %v6709
        %8559 = vmatpush1.bf16.msra.mxu0 %v6708
        %8560 = vmatprep.subr.bf16.mxu0 %v6721
        %8561 = vmatpush1.bf16.msra.mxu0 %v6720
        %8562 = vmatprep.subr.bf16.mxu0 %v6733
        %8563 = vmatpush1.bf16.msra.mxu0 %v6732
        %8564 = vmatprep.subr.bf16.mxu0 %v6745
        %8565 = vmatpush1.bf16.msra.mxu0 %v6744
        %8566 = vmatprep.subr.bf16.mxu0 %v6757
        %8567 = vmatpush1.bf16.msra.mxu0 %v6756
        %8568 = vmatprep.subr.bf16.mxu0 %v6769
        %8569 = vmatpush1.bf16.msra.mxu0 %v6768
        %8570 = vmatprep.subr.bf16.mxu0 %v6781
        %8571 = vmatpush1.bf16.msra.mxu0 %v6780
        %8572 = vmatprep.subr.bf16.mxu0 %v6793
        %8573 = vmatpush1.bf16.msra.mxu0 %v6792
        %8574 = vmatprep.subr.bf16.mxu0 %v6805
        %8575 = vmatpush1.bf16.msra.mxu0 %v6804
        %8576 = vmatprep.subr.bf16.mxu0 %v6817
        %8577 = vmatpush1.bf16.msra.mxu0 %v6816
        %8578 = vmatprep.subr.bf16.mxu0 %v6829
        %8579 = vmatpush1.bf16.msra.mxu0 %v6828
        %8580 = vmatprep.subr.bf16.mxu0 %v6841
        %8581 = vmatpush1.bf16.msra.mxu0 %v6840
        %8582 = vmatprep.subr.bf16.mxu0 %v6853
        %8583 = vmatpush1.bf16.msra.mxu0 %v6852
        %8584 = vmatprep.subr.bf16.mxu0 %v6865
        %8585 = vmatpush1.bf16.msra.mxu0 %v6864
        %8586 = vmatprep.subr.bf16.mxu0 %v6877
        %8587 = vmatpush1.bf16.msra.mxu0 %v6876
        %8588 = vmatprep.mubr.bf16.mxu0 %v3549
        %8589 = vmatmul.mubr.bf16.gmra.mrb[0].mxu0 %v3548
        %v8590 = vpop.f32.mrb[0].mxu0
        %v8591 = vadd.f32 %v4347, %v8590
        %v8592 = vpop.f32.mrb[0].mxu0
        %v8593 = vadd.f32 %v4351, %v8592
        %v8594 = vpop.f32.mrb[0].mxu0
        %v8595 = vpop.f32.mrb[0].mxu0
        %8596 = vdwg.mxu0
        %8597 = vmatprep.subr.bf16.mxu0 %v6889
        %8598 = vmatpush1.bf16.msra.mxu0 %v6888
        %8599 = vmatprep.subr.bf16.mxu0 %v6901
        %8600 = vmatpush1.bf16.msra.mxu0 %v6900
        %8601 = vmatprep.subr.bf16.mxu0 %v6913
        %8602 = vmatpush1.bf16.msra.mxu0 %v6912
        %8603 = vmatprep.subr.bf16.mxu0 %v6925
        %8604 = vmatpush1.bf16.msra.mxu0 %v6924
        %8605 = vmatprep.subr.bf16.mxu0 %v6937
        %8606 = vmatpush1.bf16.msra.mxu0 %v6936
        %8607 = vmatprep.subr.bf16.mxu0 %v6949
        %8608 = vmatpush1.bf16.msra.mxu0 %v6948
        %8609 = vmatprep.subr.bf16.mxu0 %v6961
        %8610 = vmatpush1.bf16.msra.mxu0 %v6960
        %8611 = vmatprep.subr.bf16.mxu0 %v6973
        %8612 = vmatpush1.bf16.msra.mxu0 %v6972
        %8613 = vmatprep.subr.bf16.mxu0 %v6985
        %8614 = vmatpush1.bf16.msra.mxu0 %v6984
        %8615 = vmatprep.subr.bf16.mxu0 %v6997
        %8616 = vmatpush1.bf16.msra.mxu0 %v6996
        %8617 = vmatprep.subr.bf16.mxu0 %v7009
        %8618 = vmatpush1.bf16.msra.mxu0 %v7008
        %8619 = vmatprep.subr.bf16.mxu0 %v7021
        %8620 = vmatpush1.bf16.msra.mxu0 %v7020
        %8621 = vmatprep.subr.bf16.mxu0 %v7033
        %8622 = vmatpush1.bf16.msra.mxu0 %v7032
        %8623 = vmatprep.subr.bf16.mxu0 %v7045
        %8624 = vmatpush1.bf16.msra.mxu0 %v7044
        %8625 = vmatprep.subr.bf16.mxu0 %v7057
        %8626 = vmatpush1.bf16.msra.mxu0 %v7056
        %8627 = vmatprep.subr.bf16.mxu0 %v7069
        %8628 = vmatpush1.bf16.msra.mxu0 %v7068
        %8629 = vmatprep.mubr.bf16.mxu0 %v3551
        %8630 = vmatmul.mubr.bf16.gmra.mrb[0].mxu0 %v3550
        %v8631 = vpop.f32.mrb[0].mxu0
        %v8632 = vadd.f32 %v8591, %v8631
        %v8633 = vpop.f32.mrb[0].mxu0
        %v8634 = vadd.f32 %v8593, %v8633
        %v8635 = vpop.f32.mrb[0].mxu0
        %v8636 = vpop.f32.mrb[0].mxu0
        %8637 = vdwg.mxu0
        %8638 = vmatprep.subr.bf16.mxu0 %v7081
        %8639 = vmatpush1.bf16.msra.mxu0 %v7080
        %8640 = vmatprep.subr.bf16.mxu0 %v7093
        %8641 = vmatpush1.bf16.msra.mxu0 %v7092
        %8642 = vmatprep.subr.bf16.mxu0 %v7105
        %8643 = vmatpush1.bf16.msra.mxu0 %v7104
        %8644 = vmatprep.subr.bf16.mxu0 %v7117
        %8645 = vmatpush1.bf16.msra.mxu0 %v7116
        %8646 = vmatprep.subr.bf16.mxu0 %v7129
        %8647 = vmatpush1.bf16.msra.mxu0 %v7128
        %8648 = vmatprep.subr.bf16.mxu0 %v7141
        %8649 = vmatpush1.bf16.msra.mxu0 %v7140
        %8650 = vmatprep.subr.bf16.mxu0 %v7153
        %8651 = vmatpush1.bf16.msra.mxu0 %v7152
        %8652 = vmatprep.subr.bf16.mxu0 %v7165
        %8653 = vmatpush1.bf16.msra.mxu0 %v7164
        %8654 = vmatprep.subr.bf16.mxu0 %v7177
        %8655 = vmatpush1.bf16.msra.mxu0 %v7176
        %8656 = vmatprep.subr.bf16.mxu0 %v7189
        %8657 = vmatpush1.bf16.msra.mxu0 %v7188
        %8658 = vmatprep.subr.bf16.mxu0 %v7201
        %8659 = vmatpush1.bf16.msra.mxu0 %v7200
        %8660 = vmatprep.subr.bf16.mxu0 %v7213
        %8661 = vmatpush1.bf16.msra.mxu0 %v7212
        %8662 = vmatprep.subr.bf16.mxu0 %v7225
        %8663 = vmatpush1.bf16.msra.mxu0 %v7224
        %8664 = vmatprep.subr.bf16.mxu0 %v7237
        %8665 = vmatpush1.bf16.msra.mxu0 %v7236
        %8666 = vmatprep.subr.bf16.mxu0 %v7249
        %8667 = vmatpush1.bf16.msra.mxu0 %v7248
        %8668 = vmatprep.subr.bf16.mxu0 %v7261
        %8669 = vmatpush1.bf16.msra.mxu0 %v7260
        %8670 = vmatprep.mubr.bf16.mxu0 %v3553
        %8671 = vmatmul.mubr.bf16.gmra.mrb[0].mxu0 %v3552
        %v8672 = vpop.f32.mrb[0].mxu0
        %v8673 = vadd.f32 %v8632, %v8672
        %v8674 = vpop.f32.mrb[0].mxu0
        %v8675 = vadd.f32 %v8634, %v8674
        %v8676 = vpop.f32.mrb[0].mxu0
        %v8677 = vpop.f32.mrb[0].mxu0
        %8678 = vdwg.mxu0
        %8679 = vmatprep.subr.bf16.mxu0 %v7273
        %8680 = vmatpush1.bf16.msra.mxu0 %v7272
        %8681 = vmatprep.subr.bf16.mxu0 %v7285
        %8682 = vmatpush1.bf16.msra.mxu0 %v7284
        %8683 = vmatprep.subr.bf16.mxu0 %v7297
        %8684 = vmatpush1.bf16.msra.mxu0 %v7296
        %8685 = vmatprep.subr.bf16.mxu0 %v7309
        %8686 = vmatpush1.bf16.msra.mxu0 %v7308
        %8687 = vmatprep.subr.bf16.mxu0 %v7321
        %8688 = vmatpush1.bf16.msra.mxu0 %v7320
        %8689 = vmatprep.subr.bf16.mxu0 %v7333
        %8690 = vmatpush1.bf16.msra.mxu0 %v7332
        %8691 = vmatprep.subr.bf16.mxu0 %v7345
        %8692 = vmatpush1.bf16.msra.mxu0 %v7344
        %8693 = vmatprep.subr.bf16.mxu0 %v7357
        %8694 = vmatpush1.bf16.msra.mxu0 %v7356
        %8695 = vmatprep.subr.bf16.mxu0 %v7369
        %8696 = vmatpush1.bf16.msra.mxu0 %v7368
        %8697 = vmatprep.subr.bf16.mxu0 %v7381
        %8698 = vmatpush1.bf16.msra.mxu0 %v7380
        %8699 = vmatprep.subr.bf16.mxu0 %v7393
        %8700 = vmatpush1.bf16.msra.mxu0 %v7392
        %8701 = vmatprep.subr.bf16.mxu0 %v7405
        %8702 = vmatpush1.bf16.msra.mxu0 %v7404
        %8703 = vmatprep.subr.bf16.mxu0 %v7417
        %8704 = vmatpush1.bf16.msra.mxu0 %v7416
        %8705 = vmatprep.subr.bf16.mxu0 %v7429
        %8706 = vmatpush1.bf16.msra.mxu0 %v7428
        %8707 = vmatprep.subr.bf16.mxu0 %v7441
        %8708 = vmatpush1.bf16.msra.mxu0 %v7440
        %8709 = vmatprep.subr.bf16.mxu0 %v7453
        %8710 = vmatpush1.bf16.msra.mxu0 %v7452
        %8711 = vmatprep.mubr.bf16.mxu0 %v3555
        %8712 = vmatmul.mubr.bf16.gmra.mrb[0].mxu0 %v3554
        %v8713 = vpop.f32.mrb[0].mxu0
        %v8714 = vadd.f32 %v8673, %v8713
        %v8715 = vpop.f32.mrb[0].mxu0
        %v8716 = vadd.f32 %v8675, %v8715
        %v8717 = vpop.f32.mrb[0].mxu0
        %v8718 = vpop.f32.mrb[0].mxu0
        %8719 = vdwg.mxu0
        %8720 = vmatprep.subr.bf16.mxu0 %v6699
        %8721 = vmatpush1.bf16.msra.mxu0 %v6698
        %8722 = vmatprep.subr.bf16.mxu0 %v6711
        %8723 = vmatpush1.bf16.msra.mxu0 %v6710
        %8724 = vmatprep.subr.bf16.mxu0 %v6723
        %8725 = vmatpush1.bf16.msra.mxu0 %v6722
        %8726 = vmatprep.subr.bf16.mxu0 %v6735
        %8727 = vmatpush1.bf16.msra.mxu0 %v6734
        %8728 = vmatprep.subr.bf16.mxu0 %v6747
        %8729 = vmatpush1.bf16.msra.mxu0 %v6746
        %8730 = vmatprep.subr.bf16.mxu0 %v6759
        %8731 = vmatpush1.bf16.msra.mxu0 %v6758
        %8732 = vmatprep.subr.bf16.mxu0 %v6771
        %8733 = vmatpush1.bf16.msra.mxu0 %v6770
        %8734 = vmatprep.subr.bf16.mxu0 %v6783
        %8735 = vmatpush1.bf16.msra.mxu0 %v6782
        %8736 = vmatprep.subr.bf16.mxu0 %v6795
        %8737 = vmatpush1.bf16.msra.mxu0 %v6794
        %8738 = vmatprep.subr.bf16.mxu0 %v6807
        %8739 = vmatpush1.bf16.msra.mxu0 %v6806
        %8740 = vmatprep.subr.bf16.mxu0 %v6819
        %8741 = vmatpush1.bf16.msra.mxu0 %v6818
        %8742 = vmatprep.subr.bf16.mxu0 %v6831
        %8743 = vmatpush1.bf16.msra.mxu0 %v6830
        %8744 = vmatprep.subr.bf16.mxu0 %v6843
        %8745 = vmatpush1.bf16.msra.mxu0 %v6842
        %8746 = vmatprep.subr.bf16.mxu0 %v6855
        %8747 = vmatpush1.bf16.msra.mxu0 %v6854
        %8748 = vmatprep.subr.bf16.mxu0 %v6867
        %8749 = vmatpush1.bf16.msra.mxu0 %v6866
        %8750 = vmatprep.subr.bf16.mxu0 %v6879
        %8751 = vmatpush1.bf16.msra.mxu0 %v6878
        %8752 = vmatprep.mubr.bf16.mxu0 %v3549
        %8753 = vmatmul.mubr.bf16.gmra.mrb[0].mxu0 %v3548
        %v8754 = vpop.f32.mrb[0].mxu0
        %v8755 = vadd.f32 %v4355, %v8754
        %v8756 = vpop.f32.mrb[0].mxu0
        %v8757 = vadd.f32 %v4359, %v8756
        %v8758 = vpop.f32.mrb[0].mxu0
        %v8759 = vpop.f32.mrb[0].mxu0
        %8760 = vdwg.mxu0
        %8761 = vmatprep.subr.bf16.mxu0 %v6891
        %8762 = vmatpush1.bf16.msra.mxu0 %v6890
        %8763 = vmatprep.subr.bf16.mxu0 %v6903
        %8764 = vmatpush1.bf16.msra.mxu0 %v6902
        %8765 = vmatprep.subr.bf16.mxu0 %v6915
        %8766 = vmatpush1.bf16.msra.mxu0 %v6914
        %8767 = vmatprep.subr.bf16.mxu0 %v6927
        %8768 = vmatpush1.bf16.msra.mxu0 %v6926
        %8769 = vmatprep.subr.bf16.mxu0 %v6939
        %8770 = vmatpush1.bf16.msra.mxu0 %v6938
        %8771 = vmatprep.subr.bf16.mxu0 %v6951
        %8772 = vmatpush1.bf16.msra.mxu0 %v6950
        %8773 = vmatprep.subr.bf16.mxu0 %v6963
        %8774 = vmatpush1.bf16.msra.mxu0 %v6962
        %8775 = vmatprep.subr.bf16.mxu0 %v6975
        %8776 = vmatpush1.bf16.msra.mxu0 %v6974
        %8777 = vmatprep.subr.bf16.mxu0 %v6987
        %8778 = vmatpush1.bf16.msra.mxu0 %v6986
        %8779 = vmatprep.subr.bf16.mxu0 %v6999
        %8780 = vmatpush1.bf16.msra.mxu0 %v6998
        %8781 = vmatprep.subr.bf16.mxu0 %v7011
        %8782 = vmatpush1.bf16.msra.mxu0 %v7010
        %8783 = vmatprep.subr.bf16.mxu0 %v7023
        %8784 = vmatpush1.bf16.msra.mxu0 %v7022
        %8785 = vmatprep.subr.bf16.mxu0 %v7035
        %8786 = vmatpush1.bf16.msra.mxu0 %v7034
        %8787 = vmatprep.subr.bf16.mxu0 %v7047
        %8788 = vmatpush1.bf16.msra.mxu0 %v7046
        %8789 = vmatprep.subr.bf16.mxu0 %v7059
        %8790 = vmatpush1.bf16.msra.mxu0 %v7058
        %8791 = vmatprep.subr.bf16.mxu0 %v7071
        %8792 = vmatpush1.bf16.msra.mxu0 %v7070
        %8793 = vmatprep.mubr.bf16.mxu0 %v3551
        %8794 = vmatmul.mubr.bf16.gmra.mrb[0].mxu0 %v3550
        %v8795 = vpop.f32.mrb[0].mxu0
        %v8796 = vadd.f32 %v8755, %v8795
        %v8797 = vpop.f32.mrb[0].mxu0
        %v8798 = vadd.f32 %v8757, %v8797
        %v8799 = vpop.f32.mrb[0].mxu0
        %v8800 = vpop.f32.mrb[0].mxu0
        %8801 = vdwg.mxu0
        %8802 = vmatprep.subr.bf16.mxu0 %v7083
        %8803 = vmatpush1.bf16.msra.mxu0 %v7082
        %8804 = vmatprep.subr.bf16.mxu0 %v7095
        %8805 = vmatpush1.bf16.msra.mxu0 %v7094
        %8806 = vmatprep.subr.bf16.mxu0 %v7107
        %8807 = vmatpush1.bf16.msra.mxu0 %v7106
        %8808 = vmatprep.subr.bf16.mxu0 %v7119
        %8809 = vmatpush1.bf16.msra.mxu0 %v7118
        %8810 = vmatprep.subr.bf16.mxu0 %v7131
        %8811 = vmatpush1.bf16.msra.mxu0 %v7130
        %8812 = vmatprep.subr.bf16.mxu0 %v7143
        %8813 = vmatpush1.bf16.msra.mxu0 %v7142
        %8814 = vmatprep.subr.bf16.mxu0 %v7155
        %8815 = vmatpush1.bf16.msra.mxu0 %v7154
        %8816 = vmatprep.subr.bf16.mxu0 %v7167
        %8817 = vmatpush1.bf16.msra.mxu0 %v7166
        %8818 = vmatprep.subr.bf16.mxu0 %v7179
        %8819 = vmatpush1.bf16.msra.mxu0 %v7178
        %8820 = vmatprep.subr.bf16.mxu0 %v7191
        %8821 = vmatpush1.bf16.msra.mxu0 %v7190
        %8822 = vmatprep.subr.bf16.mxu0 %v7203
        %8823 = vmatpush1.bf16.msra.mxu0 %v7202
        %8824 = vmatprep.subr.bf16.mxu0 %v7215
        %8825 = vmatpush1.bf16.msra.mxu0 %v7214
        %8826 = vmatprep.subr.bf16.mxu0 %v7227
        %8827 = vmatpush1.bf16.msra.mxu0 %v7226
        %8828 = vmatprep.subr.bf16.mxu0 %v7239
        %8829 = vmatpush1.bf16.msra.mxu0 %v7238
        %8830 = vmatprep.subr.bf16.mxu0 %v7251
        %8831 = vmatpush1.bf16.msra.mxu0 %v7250
        %8832 = vmatprep.subr.bf16.mxu0 %v7263
        %8833 = vmatpush1.bf16.msra.mxu0 %v7262
        %8834 = vmatprep.mubr.bf16.mxu0 %v3553
        %8835 = vmatmul.mubr.bf16.gmra.mrb[0].mxu0 %v3552
        %v8836 = vpop.f32.mrb[0].mxu0
        %v8837 = vadd.f32 %v8796, %v8836
        %v8838 = vpop.f32.mrb[0].mxu0
        %v8839 = vadd.f32 %v8798, %v8838
        %v8840 = vpop.f32.mrb[0].mxu0
        %v8841 = vpop.f32.mrb[0].mxu0
        %8842 = vdwg.mxu0
        %8843 = vmatprep.subr.bf16.mxu0 %v7275
        %8844 = vmatpush1.bf16.msra.mxu0 %v7274
        %8845 = vmatprep.subr.bf16.mxu0 %v7287
        %8846 = vmatpush1.bf16.msra.mxu0 %v7286
        %8847 = vmatprep.subr.bf16.mxu0 %v7299
        %8848 = vmatpush1.bf16.msra.mxu0 %v7298
        %8849 = vmatprep.subr.bf16.mxu0 %v7311
        %8850 = vmatpush1.bf16.msra.mxu0 %v7310
        %8851 = vmatprep.subr.bf16.mxu0 %v7323
        %8852 = vmatpush1.bf16.msra.mxu0 %v7322
        %8853 = vmatprep.subr.bf16.mxu0 %v7335
        %8854 = vmatpush1.bf16.msra.mxu0 %v7334
        %8855 = vmatprep.subr.bf16.mxu0 %v7347
        %8856 = vmatpush1.bf16.msra.mxu0 %v7346
        %8857 = vmatprep.subr.bf16.mxu0 %v7359
        %8858 = vmatpush1.bf16.msra.mxu0 %v7358
        %8859 = vmatprep.subr.bf16.mxu0 %v7371
        %8860 = vmatpush1.bf16.msra.mxu0 %v7370
        %8861 = vmatprep.subr.bf16.mxu0 %v7383
        %8862 = vmatpush1.bf16.msra.mxu0 %v7382
        %8863 = vmatprep.subr.bf16.mxu0 %v7395
        %8864 = vmatpush1.bf16.msra.mxu0 %v7394
        %8865 = vmatprep.subr.bf16.mxu0 %v7407
        %8866 = vmatpush1.bf16.msra.mxu0 %v7406
        %8867 = vmatprep.subr.bf16.mxu0 %v7419
        %8868 = vmatpush1.bf16.msra.mxu0 %v7418
        %8869 = vmatprep.subr.bf16.mxu0 %v7431
        %8870 = vmatpush1.bf16.msra.mxu0 %v7430
        %8871 = vmatprep.subr.bf16.mxu0 %v7443
        %8872 = vmatpush1.bf16.msra.mxu0 %v7442
        %8873 = vmatprep.subr.bf16.mxu0 %v7455
        %8874 = vmatpush1.bf16.msra.mxu0 %v7454
        %8875 = vmatprep.mubr.bf16.mxu0 %v3555
        %8876 = vmatmul.mubr.bf16.gmra.mrb[0].mxu0 %v3554
        %v8877 = vpop.f32.mrb[0].mxu0
        %v8878 = vadd.f32 %v8837, %v8877
        %v8879 = vpop.f32.mrb[0].mxu0
        %v8880 = vadd.f32 %v8839, %v8879
        %v8881 = vpop.f32.mrb[0].mxu0
        %v8882 = vpop.f32.mrb[0].mxu0
        %8883 = vdwg.mxu0
        %8884 = vmatprep.subr.bf16.mxu0 %v6701
        %8885 = vmatpush1.bf16.msra.mxu0 %v6700
        %8886 = vmatprep.subr.bf16.mxu0 %v6713
        %8887 = vmatpush1.bf16.msra.mxu0 %v6712
        %8888 = vmatprep.subr.bf16.mxu0 %v6725
        %8889 = vmatpush1.bf16.msra.mxu0 %v6724
        %8890 = vmatprep.subr.bf16.mxu0 %v6737
        %8891 = vmatpush1.bf16.msra.mxu0 %v6736
        %8892 = vmatprep.subr.bf16.mxu0 %v6749
        %8893 = vmatpush1.bf16.msra.mxu0 %v6748
        %8894 = vmatprep.subr.bf16.mxu0 %v6761
        %8895 = vmatpush1.bf16.msra.mxu0 %v6760
        %8896 = vmatprep.subr.bf16.mxu0 %v6773
        %8897 = vmatpush1.bf16.msra.mxu0 %v6772
        %8898 = vmatprep.subr.bf16.mxu0 %v6785
        %8899 = vmatpush1.bf16.msra.mxu0 %v6784
        %8900 = vmatprep.subr.bf16.mxu0 %v6797
        %8901 = vmatpush1.bf16.msra.mxu0 %v6796
        %8902 = vmatprep.subr.bf16.mxu0 %v6809
        %8903 = vmatpush1.bf16.msra.mxu0 %v6808
        %8904 = vmatprep.subr.bf16.mxu0 %v6821
        %8905 = vmatpush1.bf16.msra.mxu0 %v6820
        %8906 = vmatprep.subr.bf16.mxu0 %v6833
        %8907 = vmatpush1.bf16.msra.mxu0 %v6832
        %8908 = vmatprep.subr.bf16.mxu0 %v6845
        %8909 = vmatpush1.bf16.msra.mxu0 %v6844
        %8910 = vmatprep.subr.bf16.mxu0 %v6857
        %8911 = vmatpush1.bf16.msra.mxu0 %v6856
        %8912 = vmatprep.subr.bf16.mxu0 %v6869
        %8913 = vmatpush1.bf16.msra.mxu0 %v6868
        %8914 = vmatprep.subr.bf16.mxu0 %v6881
        %8915 = vmatpush1.bf16.msra.mxu0 %v6880
        %8916 = vmatprep.mubr.bf16.mxu0 %v3549
        %8917 = vmatmul.mubr.bf16.gmra.mrb[0].mxu0 %v3548
        %v8918 = vpop.f32.mrb[0].mxu0
        %v8919 = vadd.f32 %v4363, %v8918
        %v8920 = vpop.f32.mrb[0].mxu0
        %v8921 = vadd.f32 %v4367, %v8920
        %v8922 = vpop.f32.mrb[0].mxu0
        %v8923 = vpop.f32.mrb[0].mxu0
        %8924 = vdwg.mxu0
        %8925 = vmatprep.subr.bf16.mxu0 %v6893
        %8926 = vmatpush1.bf16.msra.mxu0 %v6892
        %8927 = vmatprep.subr.bf16.mxu0 %v6905
        %8928 = vmatpush1.bf16.msra.mxu0 %v6904
        %8929 = vmatprep.subr.bf16.mxu0 %v6917
        %8930 = vmatpush1.bf16.msra.mxu0 %v6916
        %8931 = vmatprep.subr.bf16.mxu0 %v6929
        %8932 = vmatpush1.bf16.msra.mxu0 %v6928
        %8933 = vmatprep.subr.bf16.mxu0 %v6941
        %8934 = vmatpush1.bf16.msra.mxu0 %v6940
        %8935 = vmatprep.subr.bf16.mxu0 %v6953
        %8936 = vmatpush1.bf16.msra.mxu0 %v6952
        %8937 = vmatprep.subr.bf16.mxu0 %v6965
        %8938 = vmatpush1.bf16.msra.mxu0 %v6964
        %8939 = vmatprep.subr.bf16.mxu0 %v6977
        %8940 = vmatpush1.bf16.msra.mxu0 %v6976
        %8941 = vmatprep.subr.bf16.mxu0 %v6989
        %8942 = vmatpush1.bf16.msra.mxu0 %v6988
        %8943 = vmatprep.subr.bf16.mxu0 %v7001
        %8944 = vmatpush1.bf16.msra.mxu0 %v7000
        %8945 = vmatprep.subr.bf16.mxu0 %v7013
        %8946 = vmatpush1.bf16.msra.mxu0 %v7012
        %8947 = vmatprep.subr.bf16.mxu0 %v7025
        %8948 = vmatpush1.bf16.msra.mxu0 %v7024
        %8949 = vmatprep.subr.bf16.mxu0 %v7037
        %8950 = vmatpush1.bf16.msra.mxu0 %v7036
        %8951 = vmatprep.subr.bf16.mxu0 %v7049
        %8952 = vmatpush1.bf16.msra.mxu0 %v7048
        %8953 = vmatprep.subr.bf16.mxu0 %v7061
        %8954 = vmatpush1.bf16.msra.mxu0 %v7060
        %8955 = vmatprep.subr.bf16.mxu0 %v7073
        %8956 = vmatpush1.bf16.msra.mxu0 %v7072
        %8957 = vmatprep.mubr.bf16.mxu0 %v3551
        %8958 = vmatmul.mubr.bf16.gmra.mrb[0].mxu0 %v3550
        %v8959 = vpop.f32.mrb[0].mxu0
        %v8960 = vadd.f32 %v8919, %v8959
        %v8961 = vpop.f32.mrb[0].mxu0
        %v8962 = vadd.f32 %v8921, %v8961
        %v8963 = vpop.f32.mrb[0].mxu0
        %v8964 = vpop.f32.mrb[0].mxu0
        %8965 = vdwg.mxu0
        %8966 = vmatprep.subr.bf16.mxu0 %v7085
        %8967 = vmatpush1.bf16.msra.mxu0 %v7084
        %8968 = vmatprep.subr.bf16.mxu0 %v7097
        %8969 = vmatpush1.bf16.msra.mxu0 %v7096
        %8970 = vmatprep.subr.bf16.mxu0 %v7109
        %8971 = vmatpush1.bf16.msra.mxu0 %v7108
        %8972 = vmatprep.subr.bf16.mxu0 %v7121
        %8973 = vmatpush1.bf16.msra.mxu0 %v7120
        %8974 = vmatprep.subr.bf16.mxu0 %v7133
        %8975 = vmatpush1.bf16.msra.mxu0 %v7132
        %8976 = vmatprep.subr.bf16.mxu0 %v7145
        %8977 = vmatpush1.bf16.msra.mxu0 %v7144
        %8978 = vmatprep.subr.bf16.mxu0 %v7157
        %8979 = vmatpush1.bf16.msra.mxu0 %v7156
        %8980 = vmatprep.subr.bf16.mxu0 %v7169
        %8981 = vmatpush1.bf16.msra.mxu0 %v7168
        %8982 = vmatprep.subr.bf16.mxu0 %v7181
        %8983 = vmatpush1.bf16.msra.mxu0 %v7180
        %8984 = vmatprep.subr.bf16.mxu0 %v7193
        %8985 = vmatpush1.bf16.msra.mxu0 %v7192
        %8986 = vmatprep.subr.bf16.mxu0 %v7205
        %8987 = vmatpush1.bf16.msra.mxu0 %v7204
        %8988 = vmatprep.subr.bf16.mxu0 %v7217
        %8989 = vmatpush1.bf16.msra.mxu0 %v7216
        %8990 = vmatprep.subr.bf16.mxu0 %v7229
        %8991 = vmatpush1.bf16.msra.mxu0 %v7228
        %8992 = vmatprep.subr.bf16.mxu0 %v7241
        %8993 = vmatpush1.bf16.msra.mxu0 %v7240
        %8994 = vmatprep.subr.bf16.mxu0 %v7253
        %8995 = vmatpush1.bf16.msra.mxu0 %v7252
        %8996 = vmatprep.subr.bf16.mxu0 %v7265
        %8997 = vmatpush1.bf16.msra.mxu0 %v7264
        %8998 = vmatprep.mubr.bf16.mxu0 %v3553
        %8999 = vmatmul.mubr.bf16.gmra.mrb[0].mxu0 %v3552
        %v9000 = vpop.f32.mrb[0].mxu0
        %v9001 = vadd.f32 %v8960, %v9000
        %v9002 = vpop.f32.mrb[0].mxu0
        %v9003 = vadd.f32 %v8962, %v9002
        %v9004 = vpop.f32.mrb[0].mxu0
        %v9005 = vpop.f32.mrb[0].mxu0
        %9006 = vdwg.mxu0
        %9007 = vmatprep.subr.bf16.mxu0 %v7277
        %9008 = vmatpush1.bf16.msra.mxu0 %v7276
        %9009 = vmatprep.subr.bf16.mxu0 %v7289
        %9010 = vmatpush1.bf16.msra.mxu0 %v7288
        %9011 = vmatprep.subr.bf16.mxu0 %v7301
        %9012 = vmatpush1.bf16.msra.mxu0 %v7300
        %9013 = vmatprep.subr.bf16.mxu0 %v7313
        %9014 = vmatpush1.bf16.msra.mxu0 %v7312
        %9015 = vmatprep.subr.bf16.mxu0 %v7325
        %9016 = vmatpush1.bf16.msra.mxu0 %v7324
        %9017 = vmatprep.subr.bf16.mxu0 %v7337
        %9018 = vmatpush1.bf16.msra.mxu0 %v7336
        %9019 = vmatprep.subr.bf16.mxu0 %v7349
        %9020 = vmatpush1.bf16.msra.mxu0 %v7348
        %9021 = vmatprep.subr.bf16.mxu0 %v7361
        %9022 = vmatpush1.bf16.msra.mxu0 %v7360
        %9023 = vmatprep.subr.bf16.mxu0 %v7373
        %9024 = vmatpush1.bf16.msra.mxu0 %v7372
        %9025 = vmatprep.subr.bf16.mxu0 %v7385
        %9026 = vmatpush1.bf16.msra.mxu0 %v7384
        %9027 = vmatprep.subr.bf16.mxu0 %v7397
        %9028 = vmatpush1.bf16.msra.mxu0 %v7396
        %9029 = vmatprep.subr.bf16.mxu0 %v7409
        %9030 = vmatpush1.bf16.msra.mxu0 %v7408
        %9031 = vmatprep.subr.bf16.mxu0 %v7421
        %9032 = vmatpush1.bf16.msra.mxu0 %v7420
        %9033 = vmatprep.subr.bf16.mxu0 %v7433
        %9034 = vmatpush1.bf16.msra.mxu0 %v7432
        %9035 = vmatprep.subr.bf16.mxu0 %v7445
        %9036 = vmatpush1.bf16.msra.mxu0 %v7444
        %9037 = vmatprep.subr.bf16.mxu0 %v7457
        %9038 = vmatpush1.bf16.msra.mxu0 %v7456
        %9039 = vmatprep.mubr.bf16.mxu0 %v3555
        %9040 = vmatmul.mubr.bf16.gmra.mrb[0].mxu0 %v3554
        %v9041 = vpop.f32.mrb[0].mxu0
        %v9042 = vadd.f32 %v9001, %v9041
        %v9043 = vpop.f32.mrb[0].mxu0
        %v9044 = vadd.f32 %v9003, %v9043
        %v9045 = vpop.f32.mrb[0].mxu0
        %v9046 = vpop.f32.mrb[0].mxu0
        %9047 = vdwg.mxu0
        %9048 = vmatprep.subr.bf16.mxu0 %v6703
        %9049 = vmatpush1.bf16.msra.mxu0 %v6702
        %9050 = vmatprep.subr.bf16.mxu0 %v6715
        %9051 = vmatpush1.bf16.msra.mxu0 %v6714
        %9052 = vmatprep.subr.bf16.mxu0 %v6727
        %9053 = vmatpush1.bf16.msra.mxu0 %v6726
        %9054 = vmatprep.subr.bf16.mxu0 %v6739
        %9055 = vmatpush1.bf16.msra.mxu0 %v6738
        %9056 = vmatprep.subr.bf16.mxu0 %v6751
        %9057 = vmatpush1.bf16.msra.mxu0 %v6750
        %9058 = vmatprep.subr.bf16.mxu0 %v6763
        %9059 = vmatpush1.bf16.msra.mxu0 %v6762
        %9060 = vmatprep.subr.bf16.mxu0 %v6775
        %9061 = vmatpush1.bf16.msra.mxu0 %v6774
        %9062 = vmatprep.subr.bf16.mxu0 %v6787
        %9063 = vmatpush1.bf16.msra.mxu0 %v6786
        %9064 = vmatprep.subr.bf16.mxu0 %v6799
        %9065 = vmatpush1.bf16.msra.mxu0 %v6798
        %9066 = vmatprep.subr.bf16.mxu0 %v6811
        %9067 = vmatpush1.bf16.msra.mxu0 %v6810
        %9068 = vmatprep.subr.bf16.mxu0 %v6823
        %9069 = vmatpush1.bf16.msra.mxu0 %v6822
        %9070 = vmatprep.subr.bf16.mxu0 %v6835
        %9071 = vmatpush1.bf16.msra.mxu0 %v6834
        %9072 = vmatprep.subr.bf16.mxu0 %v6847
        %9073 = vmatpush1.bf16.msra.mxu0 %v6846
        %9074 = vmatprep.subr.bf16.mxu0 %v6859
        %9075 = vmatpush1.bf16.msra.mxu0 %v6858
        %9076 = vmatprep.subr.bf16.mxu0 %v6871
        %9077 = vmatpush1.bf16.msra.mxu0 %v6870
        %9078 = vmatprep.subr.bf16.mxu0 %v6883
        %9079 = vmatpush1.bf16.msra.mxu0 %v6882
        %9080 = vmatprep.mubr.bf16.mxu0 %v3549
        %9081 = vmatmul.mubr.bf16.gmra.mrb[0].mxu0 %v3548
        %v9082 = vpop.f32.mrb[0].mxu0
        %v9083 = vadd.f32 %v4371, %v9082
        %v9084 = vpop.f32.mrb[0].mxu0
        %v9085 = vadd.f32 %v4375, %v9084
        %v9086 = vpop.f32.mrb[0].mxu0
        %v9087 = vpop.f32.mrb[0].mxu0
        %9088 = vdwg.mxu0
        %9089 = vmatprep.subr.bf16.mxu0 %v6895
        %9090 = vmatpush1.bf16.msra.mxu0 %v6894
        %9091 = vmatprep.subr.bf16.mxu0 %v6907
        %9092 = vmatpush1.bf16.msra.mxu0 %v6906
        %9093 = vmatprep.subr.bf16.mxu0 %v6919
        %9094 = vmatpush1.bf16.msra.mxu0 %v6918
        %9095 = vmatprep.subr.bf16.mxu0 %v6931
        %9096 = vmatpush1.bf16.msra.mxu0 %v6930
        %9097 = vmatprep.subr.bf16.mxu0 %v6943
        %9098 = vmatpush1.bf16.msra.mxu0 %v6942
        %9099 = vmatprep.subr.bf16.mxu0 %v6955
        %9100 = vmatpush1.bf16.msra.mxu0 %v6954
        %9101 = vmatprep.subr.bf16.mxu0 %v6967
        %9102 = vmatpush1.bf16.msra.mxu0 %v6966
        %9103 = vmatprep.subr.bf16.mxu0 %v6979
        %9104 = vmatpush1.bf16.msra.mxu0 %v6978
        %9105 = vmatprep.subr.bf16.mxu0 %v6991
        %9106 = vmatpush1.bf16.msra.mxu0 %v6990
        %9107 = vmatprep.subr.bf16.mxu0 %v7003
        %9108 = vmatpush1.bf16.msra.mxu0 %v7002
        %9109 = vmatprep.subr.bf16.mxu0 %v7015
        %9110 = vmatpush1.bf16.msra.mxu0 %v7014
        %9111 = vmatprep.subr.bf16.mxu0 %v7027
        %9112 = vmatpush1.bf16.msra.mxu0 %v7026
        %9113 = vmatprep.subr.bf16.mxu0 %v7039
        %9114 = vmatpush1.bf16.msra.mxu0 %v7038
        %9115 = vmatprep.subr.bf16.mxu0 %v7051
        %9116 = vmatpush1.bf16.msra.mxu0 %v7050
        %9117 = vmatprep.subr.bf16.mxu0 %v7063
        %9118 = vmatpush1.bf16.msra.mxu0 %v7062
        %9119 = vmatprep.subr.bf16.mxu0 %v7075
        %9120 = vmatpush1.bf16.msra.mxu0 %v7074
        %9121 = vmatprep.mubr.bf16.mxu0 %v3551
        %9122 = vmatmul.mubr.bf16.gmra.mrb[0].mxu0 %v3550
        %v9123 = vpop.f32.mrb[0].mxu0
        %v9124 = vadd.f32 %v9083, %v9123
        %v9125 = vpop.f32.mrb[0].mxu0
        %v9126 = vadd.f32 %v9085, %v9125
        %v9127 = vpop.f32.mrb[0].mxu0
        %v9128 = vpop.f32.mrb[0].mxu0
        %9129 = vdwg.mxu0
        %9130 = vmatprep.subr.bf16.mxu0 %v7087
        %9131 = vmatpush1.bf16.msra.mxu0 %v7086
        %9132 = vmatprep.subr.bf16.mxu0 %v7099
        %9133 = vmatpush1.bf16.msra.mxu0 %v7098
        %9134 = vmatprep.subr.bf16.mxu0 %v7111
        %9135 = vmatpush1.bf16.msra.mxu0 %v7110
        %9136 = vmatprep.subr.bf16.mxu0 %v7123
        %9137 = vmatpush1.bf16.msra.mxu0 %v7122
        %9138 = vmatprep.subr.bf16.mxu0 %v7135
        %9139 = vmatpush1.bf16.msra.mxu0 %v7134
        %9140 = vmatprep.subr.bf16.mxu0 %v7147
        %9141 = vmatpush1.bf16.msra.mxu0 %v7146
        %9142 = vmatprep.subr.bf16.mxu0 %v7159
        %9143 = vmatpush1.bf16.msra.mxu0 %v7158
        %9144 = vmatprep.subr.bf16.mxu0 %v7171
        %9145 = vmatpush1.bf16.msra.mxu0 %v7170
        %9146 = vmatprep.subr.bf16.mxu0 %v7183
        %9147 = vmatpush1.bf16.msra.mxu0 %v7182
        %9148 = vmatprep.subr.bf16.mxu0 %v7195
        %9149 = vmatpush1.bf16.msra.mxu0 %v7194
        %9150 = vmatprep.subr.bf16.mxu0 %v7207
        %9151 = vmatpush1.bf16.msra.mxu0 %v7206
        %9152 = vmatprep.subr.bf16.mxu0 %v7219
        %9153 = vmatpush1.bf16.msra.mxu0 %v7218
        %9154 = vmatprep.subr.bf16.mxu0 %v7231
        %9155 = vmatpush1.bf16.msra.mxu0 %v7230
        %9156 = vmatprep.subr.bf16.mxu0 %v7243
        %9157 = vmatpush1.bf16.msra.mxu0 %v7242
        %9158 = vmatprep.subr.bf16.mxu0 %v7255
        %9159 = vmatpush1.bf16.msra.mxu0 %v7254
        %9160 = vmatprep.subr.bf16.mxu0 %v7267
        %9161 = vmatpush1.bf16.msra.mxu0 %v7266
        %9162 = vmatprep.mubr.bf16.mxu0 %v3553
        %9163 = vmatmul.mubr.bf16.gmra.mrb[0].mxu0 %v3552
        %v9164 = vpop.f32.mrb[0].mxu0
        %v9165 = vadd.f32 %v9124, %v9164
        %v9166 = vpop.f32.mrb[0].mxu0
        %v9167 = vadd.f32 %v9126, %v9166
        %v9168 = vpop.f32.mrb[0].mxu0
        %v9169 = vpop.f32.mrb[0].mxu0
        %9170 = vdwg.mxu0
        %9171 = vmatprep.subr.bf16.mxu0 %v7279
        %9172 = vmatpush1.bf16.msra.mxu0 %v7278
        %9173 = vmatprep.subr.bf16.mxu0 %v7291
        %9174 = vmatpush1.bf16.msra.mxu0 %v7290
        %9175 = vmatprep.subr.bf16.mxu0 %v7303
        %9176 = vmatpush1.bf16.msra.mxu0 %v7302
        %9177 = vmatprep.subr.bf16.mxu0 %v7315
        %9178 = vmatpush1.bf16.msra.mxu0 %v7314
        %9179 = vmatprep.subr.bf16.mxu0 %v7327
        %9180 = vmatpush1.bf16.msra.mxu0 %v7326
        %9181 = vmatprep.subr.bf16.mxu0 %v7339
        %9182 = vmatpush1.bf16.msra.mxu0 %v7338
        %9183 = vmatprep.subr.bf16.mxu0 %v7351
        %9184 = vmatpush1.bf16.msra.mxu0 %v7350
        %9185 = vmatprep.subr.bf16.mxu0 %v7363
        %9186 = vmatpush1.bf16.msra.mxu0 %v7362
        %9187 = vmatprep.subr.bf16.mxu0 %v7375
        %9188 = vmatpush1.bf16.msra.mxu0 %v7374
        %9189 = vmatprep.subr.bf16.mxu0 %v7387
        %9190 = vmatpush1.bf16.msra.mxu0 %v7386
        %9191 = vmatprep.subr.bf16.mxu0 %v7399
        %9192 = vmatpush1.bf16.msra.mxu0 %v7398
        %9193 = vmatprep.subr.bf16.mxu0 %v7411
        %9194 = vmatpush1.bf16.msra.mxu0 %v7410
        %9195 = vmatprep.subr.bf16.mxu0 %v7423
        %9196 = vmatpush1.bf16.msra.mxu0 %v7422
        %9197 = vmatprep.subr.bf16.mxu0 %v7435
        %9198 = vmatpush1.bf16.msra.mxu0 %v7434
        %9199 = vmatprep.subr.bf16.mxu0 %v7447
        %9200 = vmatpush1.bf16.msra.mxu0 %v7446
        %9201 = vmatprep.subr.bf16.mxu0 %v7459
        %9202 = vmatpush1.bf16.msra.mxu0 %v7458
        %9203 = vmatprep.mubr.bf16.mxu0 %v3555
        %9204 = vmatmul.mubr.bf16.gmra.mrb[0].mxu0 %v3554
        %v9205 = vpop.f32.mrb[0].mxu0
        %v9206 = vadd.f32 %v9165, %v9205
        %v9207 = vpop.f32.mrb[0].mxu0
        %v9208 = vadd.f32 %v9167, %v9207
        %v9209 = vpop.f32.mrb[0].mxu0
        %v9210 = vpop.f32.mrb[0].mxu0
        %9211 = vdwg.mxu0
        %v9212 = vtanh.pop %v8386
        %v9213 = vtanh.pop %v8388
        %v9214 = vtanh.pop %v8550
        %v9215 = vtanh.pop %v8552
        %v9216 = vtanh.pop %v8714
        %v9217 = vtanh.pop %v8716
        %v9218 = vtanh.pop %v8878
        %v9219 = vtanh.pop %v8880
        %v9220 = vtanh.pop %v9042
        %v9221 = vtanh.pop %v9044
        %v9222 = vtanh.pop %v9206
        %v9223 = vtanh.pop %v9208
        %9224 = vst [vmem:[%s560] sm:$0xff] %v9212
        %9225 = vst [vmem:[%s560 + $0x8] sm:$0xff] %v9213
        %9226 = vst [vmem:[%s560 + $0x10] sm:$0xff] %v9214
        %9227 = vst [vmem:[%s560 + $0x18] sm:$0xff] %v9215
        %9228 = vst [vmem:[%s560 + $0x20] sm:$0xff] %v9216
        %9229 = vst [vmem:[%s560 + $0x28] sm:$0xff] %v9217
        %9230 = vst [vmem:[%s560 + $0x30] sm:$0xff] %v9218
        %9231 = vst [vmem:[%s560 + $0x38] sm:$0xff] %v9219
        %9232 = vst [vmem:[%s560 + $0x40] sm:$0xff] %v9220
        %9233 = vst [vmem:[%s560 + $0x48] sm:$0xff] %v9221
        %9234 = vst [vmem:[%s560 + $0x50] sm:$0xff] %v9222
        %9235 = vst [vmem:[%s560 + $0x58] sm:$0xff] %v9223
        %s9236 = sand.u32 %s282, 1
        %s9237 = scalar_lea.sflag [#allocation4], %s9236
        %s9238 = sand.u32 %s282, 1
        %s9239 = smul.addr %s9238, 96
        %s9240 = scalar_lea.vmem [#allocation20], %s9239
        // Predicated region
        $region109: #{tpu_custom_call.1} parent=63 // pred_check
          %p9241 = pneg %p292
        $region110: #{tpu_custom_call.1} parent=63 // pred_check_branch
          %9243 = sbr.rel (%p9241) target = $region112
        $region111: #{tpu_custom_call.1} parent=63 // pred_region
          %s9244 = smul.u32 12, %s33
          %s9246 = ssub.s32 1536, 1536
          %9247 = vsyncadd %s9237, %s9246
          %s9248 = smul.addr %s9244, 128
          %s9249 = scalar_lea.hbm %s11, %s9248
          %s9251 = sshll.u32 %s9240, 4
          %s9252 = int_to_ptr.vmem [resolvable:$true] %s9251
          %9254 = dma.vmem_to_hbm [thread:$0]  %s9252, 1536, %s9249, %s9237
        $region112: #{tpu_custom_call.1} parent=63 // pred_fallthru
          _
      $region64: #{tpu_custom_call.1} parent=5 // pred_fallthru
        _
      %p9255 = scmp.le.s32.totalorder 2, %s28
      // Predicated region
      $region113: #{tpu_custom_call.1} parent=5 // pred_check
        %p9256 = pneg %p9255
      $region114: #{tpu_custom_call.1} parent=5 // pred_check_branch
        %9258 = sbr.rel (%p9256) target = $region116
      $region115: #{tpu_custom_call.1} parent=5 // pred_region
        %s9259 = ssub.s32 %s28, 2
        // Predicated region
        $region117: #{tpu_custom_call.1} parent=115 // pred_check
          %p9260 = pneg %p298
        $region118: #{tpu_custom_call.1} parent=115 // pred_check_branch
          %9262 = sbr.rel (%p9260) target = $region120
        $region119: #{tpu_custom_call.1} parent=115 // pred_region
          %s9263 = sand.u32 %s283, 1
          %s9264 = scalar_lea.sflag [#allocation4], %s9263
          %s9265 = sand.u32 %s283, 1
          %s9266 = smul.addr %s9265, 96
          %s9267 = scalar_lea.vmem [#allocation20], %s9266
          %9268 = dma.done %s9264, 1536
        $region120: #{tpu_custom_call.1} parent=115 // pred_fallthru
          _
      $region116: #{tpu_custom_call.1} parent=5 // pred_fallthru
        _
    $region6: #{tpu_custom_call.1} parent=1 // loop_footer
      %s32 = sadd.s32 1, %s28
    $region7: #{tpu_custom_call.1} parent=1 // loop_footer_branch
      %27 = sbr.rel target = $region3
    $region8: #{tpu_custom_call.1} parent=1 // loop_exit
      _
    %9269 = vsyncpa [#allocation3], 1
    %s9270 = scalar_lea.sflag [#allocation3], 1
    %9271 = vsyncpa %s9270, 1
    %9272 = vsyncpa [#allocation6], 1
    %9273 = vsyncpa [#allocation9], 1
    %9274 = vsyncpa [#allocation12], 1
    %9275 = vsyncpa [#allocation15], 1
    %9276 = vsyncpa [#allocation18], 1
    %s9277 = scalar_lea.sflag [#allocation18], 1
    %9278 = vsyncpa %s9277, 1
    %9279 = vsyncpa [#allocation4], 1
    %s9280 = scalar_lea.sflag [#allocation4], 1
    %9281 = vsyncpa %s9280, 1

</llo_original>
